<compile_context>
chip_gen: v5e
topology: v5e:2x2
jax: 0.10.0
libtpu: 0.0.40
codegen_flags: <defaults>
</compile_context>

<pallas_src>
import functools
import math

import jax
import jax.numpy as jnp
from jax.experimental import pallas as pl
from jax.experimental.pallas import tpu as pltpu


# ---------------------------------------------------------------------------
# VMEM budget: adapt to chip generation (128 MiB v5e/v6e, 64 MiB v7x).
# ---------------------------------------------------------------------------
def _vmem_limit_bytes():
    try:
        cap = int(pltpu.get_tpu_info().vmem_capacity_bytes)
    except Exception:
        cap = 64 * 1024 * 1024          # conservative (v7x-sized) fallback
    return min((cap * 3) // 4, 96 * 1024 * 1024)


_VMEM_LIMIT = _vmem_limit_bytes()


def _cparams(dims):
    return pltpu.CompilerParams(dimension_semantics=dims,
                                vmem_limit_bytes=_VMEM_LIMIT)


def _pick_tile(dim, preferred, parallel=False):
    """Largest preferred tile dividing dim; on parallel axes prefer >=2 steps."""
    cands = [t for t in preferred if dim % t == 0]
    if not cands:
        return dim                       # block == full dim is always legal
    if parallel:
        for t in cands:
            if t < dim:
                return t
    return cands[0]


# ---------------------------------------------------------------------------
# Kernel 1: tiled matmul + bias (+ optional ReLU) epilogue
# ---------------------------------------------------------------------------
def _linear_kernel(x_ref, w_ref, b_ref, o_ref, acc_ref, *, activation):
    @pl.when(pl.program_id(2) == 0)
    def _():
        acc_ref[...] = jnp.zeros_like(acc_ref)

    acc_ref[...] += jnp.dot(x_ref[...], w_ref[...],
                            preferred_element_type=jnp.float32)

    @pl.when(pl.program_id(2) == pl.num_programs(2) - 1)
    def _():
        y = acc_ref[...] + b_ref[...]
        if activation == "relu":
            y = jnp.maximum(y, 0.0)
        o_ref[...] = y.astype(o_ref.dtype)


def linear(x2d, w, b, activation=None, out_dtype=jnp.bfloat16):
    """x2d: (M, K), w: (K, N) [bf16], b: (N,) -> (M, N)."""
    x2d = x2d.astype(w.dtype)
    M, K = x2d.shape
    N = w.shape[1]
    tm = _pick_tile(M, (512, 256, 128), parallel=True)
    tn = _pick_tile(N, (512, 256, 128), parallel=True)
    tk = _pick_tile(K, (512, 256, 128))
    grid = (M // tm, N // tn, K // tk)
    return pl.pallas_call(
        functools.partial(_linear_kernel, activation=activation),
        out_shape=jax.ShapeDtypeStruct((M, N), out_dtype),
        grid=grid,
        in_specs=[
            pl.BlockSpec((tm, tk), lambda i, j, k: (i, k)),
            pl.BlockSpec((tk, tn), lambda i, j, k: (k, j)),
            pl.BlockSpec((1, tn), lambda i, j, k: (0, j)),
        ],
        out_specs=pl.BlockSpec((tm, tn), lambda i, j, k: (i, j)),
        scratch_shapes=[pltpu.VMEM((tm, tn), jnp.float32)],
        compiler_params=_cparams(("parallel", "parallel", "arbitrary")),
    )(x2d, w, b.reshape(1, N).astype(jnp.float32))


# ---------------------------------------------------------------------------
# Kernel 2: row-tiled LayerNorm (embedding LN)
# ---------------------------------------------------------------------------
def _layernorm_kernel(x_ref, g_ref, b_ref, o_ref, *, eps):
    x = x_ref[...].astype(jnp.float32)
    mu = jnp.mean(x, axis=-1, keepdims=True)
    var = jnp.mean(jnp.square(x - mu), axis=-1, keepdims=True)
    y = (x - mu) * jax.lax.rsqrt(var + eps)
    o_ref[...] = (y * g_ref[...] + b_ref[...]).astype(o_ref.dtype)


def layernorm(x2d, g, b, eps=1e-5, out_dtype=jnp.bfloat16):
    M, H = x2d.shape
    tm = _pick_tile(M, (512, 256, 128), parallel=True)
    return pl.pallas_call(
        functools.partial(_layernorm_kernel, eps=eps),
        out_shape=jax.ShapeDtypeStruct((M, H), out_dtype),
        grid=(M // tm,),
        in_specs=[
            pl.BlockSpec((tm, H), lambda i: (i, 0)),
            pl.BlockSpec((1, H), lambda i: (0, 0)),
            pl.BlockSpec((1, H), lambda i: (0, 0)),
        ],
        out_specs=pl.BlockSpec((tm, H), lambda i: (i, 0)),
        compiler_params=_cparams(("parallel",)),
    )(x2d, g.reshape(1, H).astype(jnp.float32), b.reshape(1, H).astype(jnp.float32))


# ---------------------------------------------------------------------------
# Kernel 3: out-projection + residual add + LayerNorm (fused epilogue)
# ---------------------------------------------------------------------------
def _proj_res_ln_kernel(ctx_ref, res_ref, w_ref, b_ref, g_ref, bln_ref, o_ref, *, eps):
    y = jnp.dot(ctx_ref[...], w_ref[...], preferred_element_type=jnp.float32)
    y = y + b_ref[...] + res_ref[...].astype(jnp.float32)
    mu = jnp.mean(y, axis=-1, keepdims=True)
    var = jnp.mean(jnp.square(y - mu), axis=-1, keepdims=True)
    y = (y - mu) * jax.lax.rsqrt(var + eps)
    o_ref[...] = (y * g_ref[...] + bln_ref[...]).astype(o_ref.dtype)


def proj_res_ln(ctx2d, res2d, w, b, g, bln, eps=1e-5, out_dtype=jnp.bfloat16):
    """LayerNorm(res + ctx @ w + b)."""
    M, H = ctx2d.shape
    tm = _pick_tile(M, (256, 128), parallel=True)
    return pl.pallas_call(
        functools.partial(_proj_res_ln_kernel, eps=eps),
        out_shape=jax.ShapeDtypeStruct((M, H), out_dtype),
        grid=(M // tm,),
        in_specs=[
            pl.BlockSpec((tm, H), lambda i: (i, 0)),
            pl.BlockSpec((tm, H), lambda i: (i, 0)),
            pl.BlockSpec((H, H), lambda i: (0, 0)),
            pl.BlockSpec((1, H), lambda i: (0, 0)),
            pl.BlockSpec((1, H), lambda i: (0, 0)),
            pl.BlockSpec((1, H), lambda i: (0, 0)),
        ],
        out_specs=pl.BlockSpec((tm, H), lambda i: (i, 0)),
        compiler_params=_cparams(("parallel",)),
    )(ctx2d, res2d, w, b.reshape(1, H).astype(jnp.float32),
      g.reshape(1, H).astype(jnp.float32), bln.reshape(1, H).astype(jnp.float32))


# ---------------------------------------------------------------------------
# Kernel 4: fused FFN block  LN(x + relu(x@W1+b1)@W2 + b2)
# (tm kept small: the (tm,F) f32 hidden + resident W1/W2 must fit v7x VMEM)
# ---------------------------------------------------------------------------
def _ffn_ln_kernel(x_ref, w1_ref, b1_ref, w2_ref, b2_ref, g_ref, bln_ref, o_ref, *, eps):
    x = x_ref[...]
    h = jnp.dot(x, w1_ref[...], preferred_element_type=jnp.float32) + b1_ref[...]
    h = jnp.maximum(h, 0.0)
    y = jnp.dot(h.astype(w2_ref.dtype), w2_ref[...],
                preferred_element_type=jnp.float32) + b2_ref[...]
    y = y + x.astype(jnp.float32)
    mu = jnp.mean(y, axis=-1, keepdims=True)
    var = jnp.mean(jnp.square(y - mu), axis=-1, keepdims=True)
    y = (y - mu) * jax.lax.rsqrt(var + eps)
    o_ref[...] = (y * g_ref[...] + bln_ref[...]).astype(o_ref.dtype)


def ffn_ln(x2d, w1, b1, w2, b2, g, bln, eps=1e-5, out_dtype=jnp.bfloat16):
    M, H = x2d.shape
    F = w1.shape[1]
    tm = _pick_tile(M, (128,), parallel=True)
    return pl.pallas_call(
        functools.partial(_ffn_ln_kernel, eps=eps),
        out_shape=jax.ShapeDtypeStruct((M, H), out_dtype),
        grid=(M // tm,),
        in_specs=[
            pl.BlockSpec((tm, H), lambda i: (i, 0)),
            pl.BlockSpec((H, F), lambda i: (0, 0)),
            pl.BlockSpec((1, F), lambda i: (0, 0)),
            pl.BlockSpec((F, H), lambda i: (0, 0)),
            pl.BlockSpec((1, H), lambda i: (0, 0)),
            pl.BlockSpec((1, H), lambda i: (0, 0)),
            pl.BlockSpec((1, H), lambda i: (0, 0)),
        ],
        out_specs=pl.BlockSpec((tm, H), lambda i: (i, 0)),
        compiler_params=_cparams(("parallel",)),
    )(x2d, w1, b1.reshape(1, F).astype(jnp.float32), w2,
      b2.reshape(1, H).astype(jnp.float32),
      g.reshape(1, H).astype(jnp.float32), bln.reshape(1, H).astype(jnp.float32))


# ---------------------------------------------------------------------------
# Kernel 5: output head  relu(x@W1+b1)@W2 + b2
# Vocab is the inner "arbitrary" axis; the ReLU hidden is computed ONCE per
# (tm) row-tile into VMEM scratch (no recompute per vocab tile).
# ---------------------------------------------------------------------------
def _head_kernel(x_ref, w1_ref, b1_ref, w2_ref, b2_ref, o_ref, h_sc):
    @pl.when(pl.program_id(1) == 0)
    def _():
        h = jnp.dot(x_ref[...], w1_ref[...],
                    preferred_element_type=jnp.float32) + b1_ref[...]
        h_sc[...] = jnp.maximum(h, 0.0).astype(h_sc.dtype)

    y = jnp.dot(h_sc[...], w2_ref[...],
                preferred_element_type=jnp.float32) + b2_ref[...]
    o_ref[...] = y.astype(o_ref.dtype)


def head_mlp(x2d, w1, b1, w2, b2, out_dtype=jnp.float32):
    # out_dtype=f32 keeps reference semantics; pass bf16 to halve logits HBM
    # writeback at production vocab sizes if the consumer tolerates it.
    M, H = x2d.shape
    V = w2.shape[1]
    tm = _pick_tile(M, (256, 128), parallel=True)
    tv = _pick_tile(V, (512, 256, 128))
    return pl.pallas_call(
        _head_kernel,
        out_shape=jax.ShapeDtypeStruct((M, V), out_dtype),
        grid=(M // tm, V // tv),
        in_specs=[
            pl.BlockSpec((tm, H), lambda i, j: (i, 0)),
            pl.BlockSpec((H, H), lambda i, j: (0, 0)),
            pl.BlockSpec((1, H), lambda i, j: (0, 0)),
            pl.BlockSpec((H, tv), lambda i, j: (0, j)),
            pl.BlockSpec((1, tv), lambda i, j: (0, j)),
        ],
        out_specs=pl.BlockSpec((tm, tv), lambda i, j: (i, j)),
        scratch_shapes=[pltpu.VMEM((tm, H), jnp.bfloat16)],
        compiler_params=_cparams(("parallel", "arbitrary")),
    )(x2d, w1, b1.reshape(1, H).astype(jnp.float32),
      w2, b2.reshape(1, V).astype(jnp.float32))


# ---------------------------------------------------------------------------
# Kernel 6: flash-style multi-head attention.
# grid = (B, Sq/tq, Sk/tk); online softmax with m/l/acc VMEM scratch.
# Q and KV are *views* (different last-dim block indices) into the same fused
# projection output when doing self-attention, so no HBM slice copies.
# ---------------------------------------------------------------------------
def _flash_attn_kernel(*refs, num_heads, scale, use_mask):
    if use_mask:
        q_ref, kv_ref, msk_ref, o_ref, m_sc, l_sc, acc_sc = refs
    else:
        q_ref, kv_ref, o_ref, m_sc, l_sc, acc_sc = refs
        msk_ref = None
    ki = pl.program_id(2)

    @pl.when(ki == 0)
    def _():
        m_sc[...] = jnp.full_like(m_sc, -jnp.inf)
        l_sc[...] = jnp.zeros_like(l_sc)
        acc_sc[...] = jnp.zeros_like(acc_sc)

    q = q_ref[0]                      # (tq, H)   bf16
    kv = kv_ref[0]                    # (tk, 2H)  bf16  ([K | V] columns)
    H = q.shape[-1]
    Dh = H // num_heads
    if use_mask:
        bias = (1.0 - msk_ref[0].astype(jnp.float32)) * -1e9    # (1, tk)

    for h in range(num_heads):        # static unroll; per-head state stored
        sl = slice(h * Dh, (h + 1) * Dh)
        qh = q[:, sl]
        kh = kv[:, sl]
        vh = kv[:, H + h * Dh:H + (h + 1) * Dh]
        # Q @ K^T without an explicit transpose (contract last dims).
        s = jax.lax.dot_general(qh, kh, (((1,), (1,)), ((), ())),
                                preferred_element_type=jnp.float32) * scale
        if use_mask:
            s = s + bias
        m_prev = m_sc[h]                                         # (tq, 1)
        m_new = jnp.maximum(m_prev, jnp.max(s, axis=-1, keepdims=True))
        alpha = jnp.exp(m_prev - m_new)
        p = jnp.exp(s - m_new)
        l_sc[h] = alpha * l_sc[h] + jnp.sum(p, axis=-1, keepdims=True)
        acc_sc[:, sl] = alpha * acc_sc[:, sl] + jnp.dot(
            p.astype(vh.dtype), vh, preferred_element_type=jnp.float32)
        m_sc[h] = m_new

    @pl.when(ki == pl.num_programs(2) - 1)
    def _():
        for h in range(num_heads):    # per-head store: no concat / lane shuffle
            sl = slice(h * Dh, (h + 1) * Dh)
            inv = pl.reciprocal(l_sc[h], approx=False)           # exact
            o_ref[0, :, sl] = (acc_sc[:, sl] * inv).astype(o_ref.dtype)


def flash_attention(q_arr, kv_arr, num_heads, mask=None, *, hidden,
                    q_col_block=0, kv_col_block=0, out_dtype=jnp.bfloat16):
    """q view: columns [q_col_block*H, (q_col_block+1)*H) of q_arr;
       kv view: columns [kv_col_block*2H, ...) of kv_arr ([K|V] layout).
       mask: optional (B, Sk) 1=keep / 0=mask. Returns (B, Sq, H)."""
    B, Sq = q_arr.shape[0], q_arr.shape[1]
    Sk = kv_arr.shape[1]
    H = hidden
    scale = 1.0 / math.sqrt(H // num_heads)
    tq = _pick_tile(Sq, (256, 128), parallel=True)
    tk = _pick_tile(Sk, (512, 256, 128))
    use_mask = mask is not None

    in_specs = [
        pl.BlockSpec((1, tq, H), lambda b, qi, ki: (b, qi, q_col_block)),
        pl.BlockSpec((1, tk, 2 * H), lambda b, qi, ki: (b, ki, kv_col_block)),
    ]
    args = [q_arr, kv_arr]
    if use_mask:
        in_specs.append(pl.BlockSpec((1, 1, tk), lambda b, qi, ki: (b, 0, ki)))
        args.append(mask.reshape(B, 1, Sk).astype(jnp.float32))

    return pl.pallas_call(
        functools.partial(_flash_attn_kernel, num_heads=num_heads,
                          scale=scale, use_mask=use_mask),
        out_shape=jax.ShapeDtypeStruct((B, Sq, H), out_dtype),
        grid=(B, Sq // tq, Sk // tk),
        in_specs=in_specs,
        out_specs=pl.BlockSpec((1, tq, H), lambda b, qi, ki: (b, qi, 0)),
        scratch_shapes=[
            pltpu.VMEM((num_heads, tq, 1), jnp.float32),   # running max
            pltpu.VMEM((num_heads, tq, 1), jnp.float32),   # running denom
            pltpu.VMEM((tq, H), jnp.float32),              # running context
        ],
        compiler_params=_cparams(("parallel", "parallel", "arbitrary")),
    )(*args)


# ---------------------------------------------------------------------------
# Model glue (plain JAX around the Pallas kernels)
# ---------------------------------------------------------------------------
def init_linear(key, k_in, k_out):
    w = (jax.random.normal(key, (k_in, k_out), jnp.float32)
         * (1.0 / math.sqrt(k_in))).astype(jnp.bfloat16)
    return {"w": w, "b": jnp.zeros((k_out,), jnp.float32)}


def init_ln(h):
    return {"g": jnp.ones((h,), jnp.float32), "b": jnp.zeros((h,), jnp.float32)}


def init_self_mha(key, h):
    kqkv, ko = jax.random.split(key, 2)
    # Fused projection, column layout [K | V | Q] so the attention kernel's
    # KV view is columns [0, 2H) and the Q view is columns [2H, 3H).
    return {"qkv": init_linear(kqkv, h, 3 * h), "o": init_linear(ko, h, h)}


def init_cross_mha(key, h):
    kq, kkv, ko = jax.random.split(key, 3)
    return {"q": init_linear(kq, h, h),
            "kv": init_linear(kkv, h, 2 * h),     # [K | V]
            "o": init_linear(ko, h, h)}


def init_block(key, h):
    ka, k1, k2 = jax.random.split(key, 3)
    return {"attn": init_self_mha(ka, h), "ln1": init_ln(h),
            "ff1": init_linear(k1, h, 4 * h), "ff2": init_linear(k2, 4 * h, h),
            "ln2": init_ln(h)}


def init_params(key, vocab_size, point_dim, hidden, num_layers, num_heads, max_pos):
    keys = jax.random.split(key, 16)
    return {
        # point encoder
        "pt_proj": init_linear(keys[0], point_dim, hidden),
        "pt_block": init_block(keys[1], hidden),
        # language encoder
        "tok_emb": (jax.random.normal(keys[2], (vocab_size, hidden), jnp.float32)
                    * 0.02).astype(jnp.bfloat16),
        "pos_emb": (jax.random.normal(keys[3], (max_pos, hidden), jnp.float32)
                    * 0.02).astype(jnp.bfloat16),
        "emb_ln": init_ln(hidden),
        "layers": [init_block(k, hidden) for k in jax.random.split(keys[4], num_layers)],
        # cross-modal attention
        "xm_pt_proj": init_linear(keys[5], hidden, hidden),
        "xm_tx_proj": init_linear(keys[6], hidden, hidden),
        "xm_attn": init_cross_mha(keys[7], hidden),
        "xm_ln": init_ln(hidden),
        # output head
        "head1": init_linear(keys[8], hidden, hidden),
        "head2": init_linear(keys[9], hidden, vocab_size),
    }


def transformer_block(x, p, num_heads, mask=None):
    """Post-LN transformer block, fused QKV + flash attention + fused LN epilogues."""
    B, S, H = x.shape
    x2 = x.reshape(-1, H)
    qkv = linear(x2, p["attn"]["qkv"]["w"], p["attn"]["qkv"]["b"])   # (B*S, 3H) [K|V|Q]
    qkv = qkv.reshape(B, S, 3 * H)
    ctx = flash_attention(qkv, qkv, num_heads, mask, hidden=H, q_col_block=2)
    x2 = proj_res_ln(ctx.reshape(-1, H), x2,
                     p["attn"]["o"]["w"], p["attn"]["o"]["b"],
                     p["ln1"]["g"], p["ln1"]["b"])
    x2 = ffn_ln(x2, p["ff1"]["w"], p["ff1"]["b"], p["ff2"]["w"], p["ff2"]["b"],
                p["ln2"]["g"], p["ln2"]["b"])
    return x2.reshape(B, S, H)


def meta_bert_3d(params, points, input_ids, attention_mask, *, num_heads):
    B, Np, _ = points.shape
    S = input_ids.shape[1]
    H = params["tok_emb"].shape[1]

    # ---- PointTransformerEncoder -------------------------------------------
    pt = linear(points.reshape(-1, points.shape[-1]),
                params["pt_proj"]["w"], params["pt_proj"]["b"]).reshape(B, Np, H)
    point_features = transformer_block(pt, params["pt_block"], num_heads, mask=None)

    # ---- LanguageEncoder ----------------------------------------------------
    tok = jnp.take(params["tok_emb"], input_ids, axis=0)          # (B, S, H)
    pos = params["pos_emb"][:S][None, :, :]
    x = (tok + pos).astype(jnp.bfloat16)
    x = layernorm(x.reshape(-1, H), params["emb_ln"]["g"],
                  params["emb_ln"]["b"]).reshape(B, S, H)
    mask = None if attention_mask is None else attention_mask
    # TODO(synk): a fully-masked row yields a uniform softmax over masked keys
    # (additive -1e9 bias), matching common BERT practice but not masked_fill(-inf).
    for layer in params["layers"]:
        x = transformer_block(x, layer, num_heads, mask)
    text_features = x

    # ---- CrossModalAttention (text queries attend over point keys) ---------
    pt_j = linear(point_features.reshape(-1, H),
                  params["xm_pt_proj"]["w"], params["xm_pt_proj"]["b"])
    tx_j = linear(text_features.reshape(-1, H),
                  params["xm_tx_proj"]["w"], params["xm_tx_proj"]["b"])
    q = linear(tx_j, params["xm_attn"]["q"]["w"], params["xm_attn"]["q"]["b"])
    kv = linear(pt_j, params["xm_attn"]["kv"]["w"], params["xm_attn"]["kv"]["b"])
    ctx = flash_attention(q.reshape(B, S, H), kv.reshape(B, Np, 2 * H),
                          num_heads, mask=None, hidden=H)
    joint = proj_res_ln(ctx.reshape(-1, H), tx_j,
                        params["xm_attn"]["o"]["w"], params["xm_attn"]["o"]["b"],
                        params["xm_ln"]["g"], params["xm_ln"]["b"])   # (B*S, H)

    # ---- Output head: Linear -> ReLU -> Linear (single fused kernel) -------
    out = head_mlp(joint, params["head1"]["w"], params["head1"]["b"],
                   params["head2"]["w"], params["head2"]["b"])
    return out.reshape(B, S, -1)                                      # (B, S, vocab)


# ---------------------------------------------------------------------------
if __name__ == "__main__":
    # small, lane-dense (128-multiple) demo shapes
    VOCAB, POINT_DIM, HIDDEN, NUM_LAYERS, NUM_HEADS = 128, 3, 128, 2, 4
    B, NPTS, SEQ, MAX_POS = 2, 16, 8, 64

    key = jax.random.PRNGKey(0)
    kp, kpts, kids = jax.random.split(key, 3)

    params = init_params(kp, VOCAB, POINT_DIM, HIDDEN, NUM_LAYERS, NUM_HEADS, MAX_POS)
    points = jax.random.normal(kpts, (B, NPTS, POINT_DIM), jnp.float32)
    input_ids = jax.random.randint(kids, (B, SEQ), 0, VOCAB, dtype=jnp.int32)
    attention_mask = jnp.ones((B, SEQ), jnp.int32)

    fwd = jax.jit(functools.partial(meta_bert_3d, num_heads=NUM_HEADS))
    out = fwd(params, points, input_ids, attention_mask)
    jax.block_until_ready(out)

    assert out.shape == (B, SEQ, VOCAB), out.shape
    assert jnp.all(jnp.isfinite(out))
    print("KERNEL_OK")
</pallas_src>

<mosaic_0001>
module attributes {stable_mosaic.version = 11 : i64} {
  func.func @_linear_kernel(%arg0: i32, %arg1: i32, %arg2: i32, %arg3: memref<16x128xbf16, #tpu.memory_space<vmem>>, %arg4: memref<128x128xbf16, #tpu.memory_space<vmem>>, %arg5: memref<1x128xf32, #tpu.memory_space<vmem>>, %arg6: memref<16x128xbf16, #tpu.memory_space<vmem>>, %arg7: memref<16x128xf32, #tpu.memory_space<vmem>>) attributes {dimension_semantics = [#tpu.dimension_semantics<parallel>, #tpu.dimension_semantics<parallel>, #tpu.dimension_semantics<arbitrary>], iteration_bounds = array<i64: 1, 3, 1>, scalar_prefetch = 0 : i64, scratch_operands = 1 : i64, tpu.core_type = #tpu.core_type<tc>, window_params = [{transform_indices = @transform_0, window_bounds = array<i64: 16, 128>}, {transform_indices = @transform_1, window_bounds = array<i64: 128, 128>}, {transform_indices = @transform_2, window_bounds = array<i64: 1, 128>}, {transform_indices = @transform_3, window_bounds = array<i64: 16, 128>}]} {
    %c0_i32 = arith.constant 0 : i32
    %0 = arith.cmpi eq, %arg2, %c0_i32 : i32
    %1 = arith.extui %0 : i1 to i32
    %c0_i32_0 = arith.constant 0 : i32
    %2 = arith.cmpi ne, %1, %c0_i32_0 : i32
    scf.if %2 {
      %cst_10 = arith.constant 0.000000e+00 : f32
      %12 = vector.broadcast %cst_10 : f32 to vector<16x128xf32>
      %c0_11 = arith.constant 0 : index
      %c0_12 = arith.constant 0 : index
      %13 = vector.load %arg7[%c0_11, %c0_12] : memref<16x128xf32, #tpu.memory_space<vmem>>, vector<16x128xf32>
      tpu.vector_store %arg7[%c0_11, %c0_12], %12 {strides = array<i32>} : memref<16x128xf32, #tpu.memory_space<vmem>>, vector<16x128xf32>,
    } else {
    }
    %c0 = arith.constant 0 : index
    %c0_1 = arith.constant 0 : index
    %3 = vector.load %arg7[%c0, %c0_1] : memref<16x128xf32, #tpu.memory_space<vmem>>, vector<16x128xf32>
    %c0_2 = arith.constant 0 : index
    %c0_3 = arith.constant 0 : index
    %4 = vector.load %arg3[%c0_2, %c0_3] : memref<16x128xbf16, #tpu.memory_space<vmem>>, vector<16x128xbf16>
    %c0_4 = arith.constant 0 : index
    %c0_5 = arith.constant 0 : index
    %5 = vector.load %arg4[%c0_4, %c0_5] : memref<128x128xbf16, #tpu.memory_space<vmem>>, vector<128x128xbf16>
    %cst = arith.constant dense<0.000000e+00> : vector<16x128xf32>
    %6 = tpu.matmul %4, %5, %cst {dimension_numbers = #tpu.dot_dimension_numbers<[1], [0], [0], [1], [0, 0, 1, 1], [], []>} : vector<16x128xbf16>, vector<128x128xbf16>, vector<16x128xf32> -> vector<16x128xf32>
    %7 = arith.addf %3, %6 : vector<16x128xf32>
    %c0_6 = arith.constant 0 : index
    %c0_7 = arith.constant 0 : index
    %8 = vector.load %arg7[%c0_6, %c0_7] : memref<16x128xf32, #tpu.memory_space<vmem>>, vector<16x128xf32>
    tpu.vector_store %arg7[%c0_6, %c0_7], %7 {strides = array<i32>} : memref<16x128xf32, #tpu.memory_space<vmem>>, vector<16x128xf32>,
    %c0_i32_8 = arith.constant 0 : i32
    %9 = arith.cmpi eq, %arg2, %c0_i32_8 : i32
    %10 = arith.extui %9 : i1 to i32
    %c0_i32_9 = arith.constant 0 : i32
    %11 = arith.cmpi ne, %10, %c0_i32_9 : i32
    scf.if %11 {
      %c0_10 = arith.constant 0 : index
      %c0_11 = arith.constant 0 : index
      %12 = vector.load %arg7[%c0_10, %c0_11] : memref<16x128xf32, #tpu.memory_space<vmem>>, vector<16x128xf32>
      %c0_12 = arith.constant 0 : index
      %c0_13 = arith.constant 0 : index
      %13 = vector.load %arg5[%c0_12, %c0_13] : memref<1x128xf32, #tpu.memory_space<vmem>>, vector<1x128xf32>
      %14 = vector.broadcast %13 : vector<1x128xf32> to vector<16x128xf32>
      %15 = arith.addf %12, %14 : vector<16x128xf32>
      %16 = arith.truncf %15 : vector<16x128xf32> to vector<16x128xbf16>
      %c0_14 = arith.constant 0 : index
      %c0_15 = arith.constant 0 : index
      %17 = vector.load %arg6[%c0_14, %c0_15] : memref<16x128xbf16, #tpu.memory_space<vmem>>, vector<16x128xbf16>
      tpu.vector_store %arg6[%c0_14, %c0_15], %16 {strides = array<i32>} : memref<16x128xbf16, #tpu.memory_space<vmem>>, vector<16x128xbf16>,
    } else {
    }
    return
  }
  func.func @transform_0(%arg0: i32, %arg1: i32, %arg2: i32) -> (i32, i32) {
    %c0_i32 = arith.constant 0 : i32
    return %arg0, %arg2 : i32, i32
  }
  func.func @transform_1(%arg0: i32, %arg1: i32, %arg2: i32) -> (i32, i32) {
    %c0_i32 = arith.constant 0 : i32
    return %arg2, %arg1 : i32, i32
  }
  func.func @transform_2(%arg0: i32, %arg1: i32, %arg2: i32) -> (i32, i32) {
    %c0_i32 = arith.constant 0 : i32
    %c0_i32_0 = arith.constant 0 : i32
    return %c0_i32, %arg1 : i32, i32
  }
  func.func @transform_3(%arg0: i32, %arg1: i32, %arg2: i32) -> (i32, i32) {
    %c0_i32 = arith.constant 0 : i32
    return %arg0, %arg1 : i32, i32
  }
}

module attributes {stable_mosaic.version = 11 : i64} {
  func.func @_linear_kernel(%arg0: i32, %arg1: i32, %arg2: i32, %arg3: memref<32x3xbf16, #tpu.memory_space<vmem>>, %arg4: memref<3x128xbf16, #tpu.memory_space<vmem>>, %arg5: memref<1x128xf32, #tpu.memory_space<vmem>>, %arg6: memref<32x128xbf16, #tpu.memory_space<vmem>>, %arg7: memref<32x128xf32, #tpu.memory_space<vmem>>) attributes {dimension_semantics = [#tpu.dimension_semantics<parallel>, #tpu.dimension_semantics<parallel>, #tpu.dimension_semantics<arbitrary>], iteration_bounds = array<i64: 1, 1, 1>, scalar_prefetch = 0 : i64, scratch_operands = 1 : i64, tpu.core_type = #tpu.core_type<tc>, window_params = [{transform_indices = @transform_0, window_bounds = array<i64: 32, 3>}, {transform_indices = @transform_1, window_bounds = array<i64: 3, 128>}, {transform_indices = @transform_2, window_bounds = array<i64: 1, 128>}, {transform_indices = @transform_3, window_bounds = array<i64: 32, 128>}]} {
    %c0_i32 = arith.constant 0 : i32
    %0 = arith.cmpi eq, %arg2, %c0_i32 : i32
    %1 = arith.extui %0 : i1 to i32
    %c0_i32_0 = arith.constant 0 : i32
    %2 = arith.cmpi ne, %1, %c0_i32_0 : i32
    scf.if %2 {
      %cst_10 = arith.constant 0.000000e+00 : f32
      %12 = vector.broadcast %cst_10 : f32 to vector<32x128xf32>
      %c0_11 = arith.constant 0 : index
      %c0_12 = arith.constant 0 : index
      %13 = vector.load %arg7[%c0_11, %c0_12] : memref<32x128xf32, #tpu.memory_space<vmem>>, vector<32x128xf32>
      tpu.vector_store %arg7[%c0_11, %c0_12], %12 {strides = array<i32>} : memref<32x128xf32, #tpu.memory_space<vmem>>, vector<32x128xf32>,
    } else {
    }
    %c0 = arith.constant 0 : index
    %c0_1 = arith.constant 0 : index
    %3 = vector.load %arg7[%c0, %c0_1] : memref<32x128xf32, #tpu.memory_space<vmem>>, vector<32x128xf32>
    %c0_2 = arith.constant 0 : index
    %c0_3 = arith.constant 0 : index
    %4 = vector.load %arg3[%c0_2, %c0_3] : memref<32x3xbf16, #tpu.memory_space<vmem>>, vector<32x3xbf16>
    %c0_4 = arith.constant 0 : index
    %c0_5 = arith.constant 0 : index
    %5 = vector.load %arg4[%c0_4, %c0_5] : memref<3x128xbf16, #tpu.memory_space<vmem>>, vector<3x128xbf16>
    %cst = arith.constant dense<0.000000e+00> : vector<32x128xf32>
    %6 = tpu.matmul %4, %5, %cst {dimension_numbers = #tpu.dot_dimension_numbers<[1], [0], [0], [1], [0, 0, 1, 1], [], []>} : vector<32x3xbf16>, vector<3x128xbf16>, vector<32x128xf32> -> vector<32x128xf32>
    %7 = arith.addf %3, %6 : vector<32x128xf32>
    %c0_6 = arith.constant 0 : index
    %c0_7 = arith.constant 0 : index
    %8 = vector.load %arg7[%c0_6, %c0_7] : memref<32x128xf32, #tpu.memory_space<vmem>>, vector<32x128xf32>
    tpu.vector_store %arg7[%c0_6, %c0_7], %7 {strides = array<i32>} : memref<32x128xf32, #tpu.memory_space<vmem>>, vector<32x128xf32>,
    %c0_i32_8 = arith.constant 0 : i32
    %9 = arith.cmpi eq, %arg2, %c0_i32_8 : i32
    %10 = arith.extui %9 : i1 to i32
    %c0_i32_9 = arith.constant 0 : i32
    %11 = arith.cmpi ne, %10, %c0_i32_9 : i32
    scf.if %11 {
      %c0_10 = arith.constant 0 : index
      %c0_11 = arith.constant 0 : index
      %12 = vector.load %arg7[%c0_10, %c0_11] : memref<32x128xf32, #tpu.memory_space<vmem>>, vector<32x128xf32>
      %c0_12 = arith.constant 0 : index
      %c0_13 = arith.constant 0 : index
      %13 = vector.load %arg5[%c0_12, %c0_13] : memref<1x128xf32, #tpu.memory_space<vmem>>, vector<1x128xf32>
      %14 = vector.broadcast %13 : vector<1x128xf32> to vector<32x128xf32>
      %15 = arith.addf %12, %14 : vector<32x128xf32>
      %16 = arith.truncf %15 : vector<32x128xf32> to vector<32x128xbf16>
      %c0_14 = arith.constant 0 : index
      %c0_15 = arith.constant 0 : index
      %17 = vector.load %arg6[%c0_14, %c0_15] : memref<32x128xbf16, #tpu.memory_space<vmem>>, vector<32x128xbf16>
      tpu.vector_store %arg6[%c0_14, %c0_15], %16 {strides = array<i32>} : memref<32x128xbf16, #tpu.memory_space<vmem>>, vector<32x128xbf16>,
    } else {
    }
    return
  }
  func.func @transform_0(%arg0: i32, %arg1: i32, %arg2: i32) -> (i32, i32) {
    %c0_i32 = arith.constant 0 : i32
    return %arg0, %arg2 : i32, i32
  }
  func.func @transform_1(%arg0: i32, %arg1: i32, %arg2: i32) -> (i32, i32) {
    %c0_i32 = arith.constant 0 : i32
    return %arg2, %arg1 : i32, i32
  }
  func.func @transform_2(%arg0: i32, %arg1: i32, %arg2: i32) -> (i32, i32) {
    %c0_i32 = arith.constant 0 : i32
    %c0_i32_0 = arith.constant 0 : i32
    return %c0_i32, %arg1 : i32, i32
  }
  func.func @transform_3(%arg0: i32, %arg1: i32, %arg2: i32) -> (i32, i32) {
    %c0_i32 = arith.constant 0 : i32
    return %arg0, %arg1 : i32, i32
  }
}

module attributes {stable_mosaic.version = 11 : i64} {
  func.func @_layernorm_kernel(%arg0: i32, %arg1: memref<16x128xbf16, #tpu.memory_space<vmem>>, %arg2: memref<1x128xf32, #tpu.memory_space<vmem>>, %arg3: memref<1x128xf32, #tpu.memory_space<vmem>>, %arg4: memref<16x128xbf16, #tpu.memory_space<vmem>>) attributes {dimension_semantics = [#tpu.dimension_semantics<parallel>], iteration_bounds = array<i64: 1>, scalar_prefetch = 0 : i64, scratch_operands = 0 : i64, tpu.core_type = #tpu.core_type<tc>, window_params = [{transform_indices = @transform_0, window_bounds = array<i64: 16, 128>}, {pipeline_mode = #tpu.pipeline_mode<synchronous>, transform_indices = @transform_1, window_bounds = array<i64: 1, 128>}, {pipeline_mode = #tpu.pipeline_mode<synchronous>, transform_indices = @transform_2, window_bounds = array<i64: 1, 128>}, {transform_indices = @transform_3, window_bounds = array<i64: 16, 128>}]} {
    %c0 = arith.constant 0 : index
    %c0_0 = arith.constant 0 : index
    %0 = vector.load %arg1[%c0, %c0_0] : memref<16x128xbf16, #tpu.memory_space<vmem>>, vector<16x128xbf16>
    %1 = arith.extf %0 : vector<16x128xbf16> to vector<16x128xf32>
    %cst = arith.constant dense<0.000000e+00> : vector<16xf32>
    %2 = vector.multi_reduction <add>, %1, %cst [1] : vector<16x128xf32> to vector<16xf32>
    %3 = vector.shape_cast %2 : vector<16xf32> to vector<16x1xf32>
    %cst_1 = arith.constant 1.280000e+02 : f32
    %4 = vector.broadcast %cst_1 : f32 to vector<16x1xf32>
    %5 = arith.divf %3, %4 : vector<16x1xf32>
    %6 = vector.broadcast %5 : vector<16x1xf32> to vector<16x128xf32>
    %7 = arith.subf %1, %6 : vector<16x128xf32>
    %8 = arith.mulf %7, %7 : vector<16x128xf32>
    %cst_2 = arith.constant dense<0.000000e+00> : vector<16xf32>
    %9 = vector.multi_reduction <add>, %8, %cst_2 [1] : vector<16x128xf32> to vector<16xf32>
    %10 = vector.shape_cast %9 : vector<16xf32> to vector<16x1xf32>
    %cst_3 = arith.constant 1.280000e+02 : f32
    %11 = vector.broadcast %cst_3 : f32 to vector<16x1xf32>
    %12 = arith.divf %10, %11 : vector<16x1xf32>
    %13 = vector.broadcast %5 : vector<16x1xf32> to vector<16x128xf32>
    %14 = arith.subf %1, %13 : vector<16x128xf32>
    %cst_4 = arith.constant 9.99999974E-6 : f32
    %15 = vector.broadcast %cst_4 : f32 to vector<16x1xf32>
    %16 = arith.addf %12, %15 : vector<16x1xf32>
    %17 = math.rsqrt %16 : vector<16x1xf32>
    %18 = vector.broadcast %17 : vector<16x1xf32> to vector<16x128xf32>
    %19 = arith.mulf %14, %18 : vector<16x128xf32>
    %c0_5 = arith.constant 0 : index
    %c0_6 = arith.constant 0 : index
    %20 = vector.load %arg2[%c0_5, %c0_6] : memref<1x128xf32, #tpu.memory_space<vmem>>, vector<1x128xf32>
    %21 = vector.broadcast %20 : vector<1x128xf32> to vector<16x128xf32>
    %22 = arith.mulf %19, %21 : vector<16x128xf32>
    %c0_7 = arith.constant 0 : index
    %c0_8 = arith.constant 0 : index
    %23 = vector.load %arg3[%c0_7, %c0_8] : memref<1x128xf32, #tpu.memory_space<vmem>>, vector<1x128xf32>
    %24 = vector.broadcast %23 : vector<1x128xf32> to vector<16x128xf32>
    %25 = arith.addf %22, %24 : vector<16x128xf32>
    %26 = arith.truncf %25 : vector<16x128xf32> to vector<16x128xbf16>
    %c0_9 = arith.constant 0 : index
    %c0_10 = arith.constant 0 : index
    %27 = vector.load %arg4[%c0_9, %c0_10] : memref<16x128xbf16, #tpu.memory_space<vmem>>, vector<16x128xbf16>
    tpu.vector_store %arg4[%c0_9, %c0_10], %26 {strides = array<i32>} : memref<16x128xbf16, #tpu.memory_space<vmem>>, vector<16x128xbf16>,
    return
  }
  func.func @transform_0(%arg0: i32) -> (i32, i32) {
    %c0_i32 = arith.constant 0 : i32
    %c0_i32_0 = arith.constant 0 : i32
    return %arg0, %c0_i32 : i32, i32
  }
  func.func @transform_1(%arg0: i32) -> (i32, i32) {
    %c0_i32 = arith.constant 0 : i32
    %c0_i32_0 = arith.constant 0 : i32
    %c0_i32_1 = arith.constant 0 : i32
    return %c0_i32, %c0_i32_0 : i32, i32
  }
  func.func @transform_2(%arg0: i32) -> (i32, i32) {
    %c0_i32 = arith.constant 0 : i32
    %c0_i32_0 = arith.constant 0 : i32
    %c0_i32_1 = arith.constant 0 : i32
    return %c0_i32, %c0_i32_0 : i32, i32
  }
  func.func @transform_3(%arg0: i32) -> (i32, i32) {
    %c0_i32 = arith.constant 0 : i32
    %c0_i32_0 = arith.constant 0 : i32
    return %arg0, %c0_i32 : i32, i32
  }
}

module attributes {stable_mosaic.version = 11 : i64} {
  func.func @_flash_attn_kernel(%arg0: i32, %arg1: i32, %arg2: i32, %arg3: memref<1x8x128xbf16, #tpu.memory_space<vmem>>, %arg4: memref<1x8x256xbf16, #tpu.memory_space<vmem>>, %arg5: memref<1x1x8xf32, #tpu.memory_space<vmem>>, %arg6: memref<1x8x128xbf16, #tpu.memory_space<vmem>>, %arg7: memref<4x8x1xf32, #tpu.memory_space<vmem>>, %arg8: memref<4x8x1xf32, #tpu.memory_space<vmem>>, %arg9: memref<8x128xf32, #tpu.memory_space<vmem>>) attributes {dimension_semantics = [#tpu.dimension_semantics<parallel>, #tpu.dimension_semantics<parallel>, #tpu.dimension_semantics<arbitrary>], iteration_bounds = array<i64: 2, 1, 1>, scalar_prefetch = 0 : i64, scratch_operands = 3 : i64, tpu.core_type = #tpu.core_type<tc>, window_params = [{transform_indices = @transform_0, window_bounds = array<i64: 1, 8, 128>}, {transform_indices = @transform_1, window_bounds = array<i64: 1, 8, 256>}, {transform_indices = @transform_2, window_bounds = array<i64: 1, 1, 8>}, {transform_indices = @transform_3, window_bounds = array<i64: 1, 8, 128>}]} {
    %c0_i32 = arith.constant 0 : i32
    %0 = arith.cmpi eq, %arg2, %c0_i32 : i32
    %1 = arith.extui %0 : i1 to i32
    %c0_i32_0 = arith.constant 0 : i32
    %2 = arith.cmpi ne, %1, %c0_i32_0 : i32
    scf.if %2 {
      %cst_90 = arith.constant 0xFF800000 : f32
      %164 = vector.broadcast %cst_90 : f32 to vector<4x8x1xf32>
      %c0_91 = arith.constant 0 : index
      %c0_92 = arith.constant 0 : index
      %c0_93 = arith.constant 0 : index
      %165 = vector.load %arg7[%c0_91, %c0_92, %c0_93] : memref<4x8x1xf32, #tpu.memory_space<vmem>>, vector<4x8x1xf32>
      tpu.vector_store %arg7[%c0_91, %c0_92, %c0_93], %164 {strides = array<i32>} : memref<4x8x1xf32, #tpu.memory_space<vmem>>, vector<4x8x1xf32>,
      %cst_94 = arith.constant 0.000000e+00 : f32
      %166 = vector.broadcast %cst_94 : f32 to vector<4x8x1xf32>
      %c0_95 = arith.constant 0 : index
      %c0_96 = arith.constant 0 : index
      %c0_97 = arith.constant 0 : index
      %167 = vector.load %arg8[%c0_95, %c0_96, %c0_97] : memref<4x8x1xf32, #tpu.memory_space<vmem>>, vector<4x8x1xf32>
      tpu.vector_store %arg8[%c0_95, %c0_96, %c0_97], %166 {strides = array<i32>} : memref<4x8x1xf32, #tpu.memory_space<vmem>>, vector<4x8x1xf32>,
      %cst_98 = arith.constant 0.000000e+00 : f32
      %168 = vector.broadcast %cst_98 : f32 to vector<8x128xf32>
      %c0_99 = arith.constant 0 : index
      %c0_100 = arith.constant 0 : index
      %169 = vector.load %arg9[%c0_99, %c0_100] : memref<8x128xf32, #tpu.memory_space<vmem>>, vector<8x128xf32>
      tpu.vector_store %arg9[%c0_99, %c0_100], %168 {strides = array<i32>} : memref<8x128xf32, #tpu.memory_space<vmem>>, vector<8x128xf32>,
    } else {
    }
    %c0 = arith.constant 0 : index
    %c0_1 = arith.constant 0 : index
    %c0_2 = arith.constant 0 : index
    %3 = vector.load %arg3[%c0, %c0_1, %c0_2] : memref<1x8x128xbf16, #tpu.memory_space<vmem>>, vector<1x8x128xbf16>
    %4 = vector.shape_cast %3 : vector<1x8x128xbf16> to vector<8x128xbf16>
    %c0_3 = arith.constant 0 : index
    %c0_4 = arith.constant 0 : index
    %c0_5 = arith.constant 0 : index
    %5 = vector.load %arg4[%c0_3, %c0_4, %c0_5] : memref<1x8x256xbf16, #tpu.memory_space<vmem>>, vector<1x8x256xbf16>
    %6 = vector.shape_cast %5 : vector<1x8x256xbf16> to vector<8x256xbf16>
    %c0_6 = arith.constant 0 : index
    %c0_7 = arith.constant 0 : index
    %c0_8 = arith.constant 0 : index
    %7 = vector.load %arg5[%c0_6, %c0_7, %c0_8] : memref<1x1x8xf32, #tpu.memory_space<vmem>>, vector<1x1x8xf32>
    %8 = vector.shape_cast %7 : vector<1x1x8xf32> to vector<1x8xf32>
    %cst = arith.constant 1.000000e+00 : f32
    %9 = vector.broadcast %cst : f32 to vector<1x8xf32>
    %10 = arith.subf %9, %8 : vector<1x8xf32>
    %cst_9 = arith.constant -1.000000e+09 : f32
    %11 = vector.broadcast %cst_9 : f32 to vector<1x8xf32>
    %12 = arith.mulf %10, %11 : vector<1x8xf32>
    %13 = vector.extract_strided_slice %4 {offsets = [0, 0], sizes = [8, 32], strides = [1, 1]} : vector<8x128xbf16> to vector<8x32xbf16>
    %14 = vector.extract_strided_slice %6 {offsets = [0, 0], sizes = [8, 32], strides = [1, 1]} : vector<8x256xbf16> to vector<8x32xbf16>
    %15 = vector.extract_strided_slice %6 {offsets = [0, 128], sizes = [8, 32], strides = [1, 1]} : vector<8x256xbf16> to vector<8x32xbf16>
    %cst_10 = arith.constant dense<0.000000e+00> : vector<8x8xf32>
    %16 = tpu.matmul %13, %14, %cst_10 {dimension_numbers = #tpu.dot_dimension_numbers<[1], [1], [0], [0], [0, 0, 1, 0], [], []>} : vector<8x32xbf16>, vector<8x32xbf16>, vector<8x8xf32> -> vector<8x8xf32>
    %cst_11 = arith.constant 0.176776692 : f32
    %17 = vector.broadcast %cst_11 : f32 to vector<8x8xf32>
    %18 = arith.mulf %16, %17 : vector<8x8xf32>
    %19 = vector.broadcast %12 : vector<1x8xf32> to vector<8x8xf32>
    %20 = arith.addf %18, %19 : vector<8x8xf32>
    %c0_12 = arith.constant 0 : index
    %c0_13 = arith.constant 0 : index
    %c0_14 = arith.constant 0 : index
    %21 = vector.load %arg7[%c0_12, %c0_13, %c0_14] : memref<4x8x1xf32, #tpu.memory_space<vmem>>, vector<1x8x1xf32>
    %22 = vector.shape_cast %21 : vector<1x8x1xf32> to vector<8x1xf32>
    %cst_15 = arith.constant dense<0xFF800000> : vector<8xf32>
    %23 = vector.multi_reduction <maximumf>, %20, %cst_15 [1] : vector<8x8xf32> to vector<8xf32>
    %24 = vector.shape_cast %23 : vector<8xf32> to vector<8x1xf32>
    %25 = arith.maximumf %22, %24 : vector<8x1xf32>
    %26 = arith.subf %22, %25 : vector<8x1xf32>
    %27 = math.exp %26 : vector<8x1xf32>
    %28 = vector.broadcast %25 : vector<8x1xf32> to vector<8x8xf32>
    %29 = arith.subf %20, %28 : vector<8x8xf32>
    %30 = math.exp %29 : vector<8x8xf32>
    %c0_16 = arith.constant 0 : index
    %c0_17 = arith.constant 0 : index
    %c0_18 = arith.constant 0 : index
    %31 = vector.load %arg8[%c0_16, %c0_17, %c0_18] : memref<4x8x1xf32, #tpu.memory_space<vmem>>, vector<1x8x1xf32>
    %32 = vector.shape_cast %31 : vector<1x8x1xf32> to vector<8x1xf32>
    %33 = arith.mulf %27, %32 : vector<8x1xf32>
    %cst_19 = arith.constant dense<0.000000e+00> : vector<8xf32>
    %34 = vector.multi_reduction <add>, %30, %cst_19 [1] : vector<8x8xf32> to vector<8xf32>
    %35 = vector.shape_cast %34 : vector<8xf32> to vector<8x1xf32>
    %36 = arith.addf %33, %35 : vector<8x1xf32>
    %c0_20 = arith.constant 0 : index
    %c0_21 = arith.constant 0 : index
    %c0_22 = arith.constant 0 : index
    %37 = vector.load %arg8[%c0_20, %c0_21, %c0_22] : memref<4x8x1xf32, #tpu.memory_space<vmem>>, vector<1x8x1xf32>
    %38 = vector.shape_cast %37 : vector<1x8x1xf32> to vector<8x1xf32>
    %39 = vector.shape_cast %36 : vector<8x1xf32> to vector<1x8x1xf32>
    tpu.vector_store %arg8[%c0_20, %c0_21, %c0_22], %39 {strides = array<i32>} : memref<4x8x1xf32, #tpu.memory_space<vmem>>, vector<1x8x1xf32>,
    %c0_23 = arith.constant 0 : index
    %c0_24 = arith.constant 0 : index
    %40 = vector.load %arg9[%c0_23, %c0_24] : memref<8x128xf32, #tpu.memory_space<vmem>>, vector<8x32xf32>
    %41 = vector.broadcast %27 : vector<8x1xf32> to vector<8x32xf32>
    %42 = arith.mulf %41, %40 : vector<8x32xf32>
    %43 = arith.truncf %30 : vector<8x8xf32> to vector<8x8xbf16>
    %cst_25 = arith.constant dense<0.000000e+00> : vector<8x32xf32>
    %44 = tpu.matmul %43, %15, %cst_25 {dimension_numbers = #tpu.dot_dimension_numbers<[1], [0], [0], [1], [0, 0, 1, 1], [], []>} : vector<8x8xbf16>, vector<8x32xbf16>, vector<8x32xf32> -> vector<8x32xf32>
    %45 = arith.addf %42, %44 : vector<8x32xf32>
    %c0_26 = arith.constant 0 : index
    %c0_27 = arith.constant 0 : index
    %46 = vector.load %arg9[%c0_26, %c0_27] : memref<8x128xf32, #tpu.memory_space<vmem>>, vector<8x32xf32>
    tpu.vector_store %arg9[%c0_26, %c0_27], %45 {strides = array<i32>} : memref<8x128xf32, #tpu.memory_space<vmem>>, vector<8x32xf32>,
    %c0_28 = arith.constant 0 : index
    %c0_29 = arith.constant 0 : index
    %c0_30 = arith.constant 0 : index
    %47 = vector.load %arg7[%c0_28, %c0_29, %c0_30] : memref<4x8x1xf32, #tpu.memory_space<vmem>>, vector<1x8x1xf32>
    %48 = vector.shape_cast %47 : vector<1x8x1xf32> to vector<8x1xf32>
    %49 = vector.shape_cast %25 : vector<8x1xf32> to vector<1x8x1xf32>
    tpu.vector_store %arg7[%c0_28, %c0_29, %c0_30], %49 {strides = array<i32>} : memref<4x8x1xf32, #tpu.memory_space<vmem>>, vector<1x8x1xf32>,
    %50 = vector.extract_strided_slice %4 {offsets = [0, 32], sizes = [8, 32], strides = [1, 1]} : vector<8x128xbf16> to vector<8x32xbf16>
    %51 = vector.extract_strided_slice %6 {offsets = [0, 32], sizes = [8, 32], strides = [1, 1]} : vector<8x256xbf16> to vector<8x32xbf16>
    %52 = vector.extract_strided_slice %6 {offsets = [0, 160], sizes = [8, 32], strides = [1, 1]} : vector<8x256xbf16> to vector<8x32xbf16>
    %cst_31 = arith.constant dense<0.000000e+00> : vector<8x8xf32>
    %53 = tpu.matmul %50, %51, %cst_31 {dimension_numbers = #tpu.dot_dimension_numbers<[1], [1], [0], [0], [0, 0, 1, 0], [], []>} : vector<8x32xbf16>, vector<8x32xbf16>, vector<8x8xf32> -> vector<8x8xf32>
    %cst_32 = arith.constant 0.176776692 : f32
    %54 = vector.broadcast %cst_32 : f32 to vector<8x8xf32>
    %55 = arith.mulf %53, %54 : vector<8x8xf32>
    %56 = vector.broadcast %12 : vector<1x8xf32> to vector<8x8xf32>
    %57 = arith.addf %55, %56 : vector<8x8xf32>
    %c1 = arith.constant 1 : index
    %c0_33 = arith.constant 0 : index
    %c0_34 = arith.constant 0 : index
    %58 = vector.load %arg7[%c1, %c0_33, %c0_34] : memref<4x8x1xf32, #tpu.memory_space<vmem>>, vector<1x8x1xf32>
    %59 = vector.shape_cast %58 : vector<1x8x1xf32> to vector<8x1xf32>
    %cst_35 = arith.constant dense<0xFF800000> : vector<8xf32>
    %60 = vector.multi_reduction <maximumf>, %57, %cst_35 [1] : vector<8x8xf32> to vector<8xf32>
    %61 = vector.shape_cast %60 : vector<8xf32> to vector<8x1xf32>
    %62 = arith.maximumf %59, %61 : vector<8x1xf32>
    %63 = arith.subf %59, %62 : vector<8x1xf32>
    %64 = math.exp %63 : vector<8x1xf32>
    %65 = vector.broadcast %62 : vector<8x1xf32> to vector<8x8xf32>
    %66 = arith.subf %57, %65 : vector<8x8xf32>
    %67 = math.exp %66 : vector<8x8xf32>
    %c1_36 = arith.constant 1 : index
    %c0_37 = arith.constant 0 : index
    %c0_38 = arith.constant 0 : index
    %68 = vector.load %arg8[%c1_36, %c0_37, %c0_38] : memref<4x8x1xf32, #tpu.memory_space<vmem>>, vector<1x8x1xf32>
    %69 = vector.shape_cast %68 : vector<1x8x1xf32> to vector<8x1xf32>
    %70 = arith.mulf %64, %69 : vector<8x1xf32>
    %cst_39 = arith.constant dense<0.000000e+00> : vector<8xf32>
    %71 = vector.multi_reduction <add>, %67, %cst_39 [1] : vector<8x8xf32> to vector<8xf32>
    %72 = vector.shape_cast %71 : vector<8xf32> to vector<8x1xf32>
    %73 = arith.addf %70, %72 : vector<8x1xf32>
    %c1_40 = arith.constant 1 : index
    %c0_41 = arith.constant 0 : index
    %c0_42 = arith.constant 0 : index
    %74 = vector.load %arg8[%c1_40, %c0_41, %c0_42] : memref<4x8x1xf32, #tpu.memory_space<vmem>>, vector<1x8x1xf32>
    %75 = vector.shape_cast %74 : vector<1x8x1xf32> to vector<8x1xf32>
    %76 = vector.shape_cast %73 : vector<8x1xf32> to vector<1x8x1xf32>
    tpu.vector_store %arg8[%c1_40, %c0_41, %c0_42], %76 {strides = array<i32>} : memref<4x8x1xf32, #tpu.memory_space<vmem>>, vector<1x8x1xf32>,
    %c0_43 = arith.constant 0 : index
    %c32 = arith.constant 32 : index
    %77 = vector.load %arg9[%c0_43, %c32] : memref<8x128xf32, #tpu.memory_space<vmem>>, vector<8x32xf32>
    %78 = vector.broadcast %64 : vector<8x1xf32> to vector<8x32xf32>
    %79 = arith.mulf %78, %77 : vector<8x32xf32>
    %80 = arith.truncf %67 : vector<8x8xf32> to vector<8x8xbf16>
    %cst_44 = arith.constant dense<0.000000e+00> : vector<8x32xf32>
    %81 = tpu.matmul %80, %52, %cst_44 {dimension_numbers = #tpu.dot_dimension_numbers<[1], [0], [0], [1], [0, 0, 1, 1], [], []>} : vector<8x8xbf16>, vector<8x32xbf16>, vector<8x32xf32> -> vector<8x32xf32>
    %82 = arith.addf %79, %81 : vector<8x32xf32>
    %c0_45 = arith.constant 0 : index
    %c32_46 = arith.constant 32 : index
    %83 = vector.load %arg9[%c0_45, %c32_46] : memref<8x128xf32, #tpu.memory_space<vmem>>, vector<8x32xf32>
    tpu.vector_store %arg9[%c0_45, %c32_46], %82 {strides = array<i32>} : memref<8x128xf32, #tpu.memory_space<vmem>>, vector<8x32xf32>,
    %c1_47 = arith.constant 1 : index
    %c0_48 = arith.constant 0 : index
    %c0_49 = arith.constant 0 : index
    %84 = vector.load %arg7[%c1_47, %c0_48, %c0_49] : memref<4x8x1xf32, #tpu.memory_space<vmem>>, vector<1x8x1xf32>
    %85 = vector.shape_cast %84 : vector<1x8x1xf32> to vector<8x1xf32>
    %86 = vector.shape_cast %62 : vector<8x1xf32> to vector<1x8x1xf32>
    tpu.vector_store %arg7[%c1_47, %c0_48, %c0_49], %86 {strides = array<i32>} : memref<4x8x1xf32, #tpu.memory_space<vmem>>, vector<1x8x1xf32>,
    %87 = vector.extract_strided_slice %4 {offsets = [0, 64], sizes = [8, 32], strides = [1, 1]} : vector<8x128xbf16> to vector<8x32xbf16>
    %88 = vector.extract_strided_slice %6 {offsets = [0, 64], sizes = [8, 32], strides = [1, 1]} : vector<8x256xbf16> to vector<8x32xbf16>
    %89 = vector.extract_strided_slice %6 {offsets = [0, 192], sizes = [8, 32], strides = [1, 1]} : vector<8x256xbf16> to vector<8x32xbf16>
    %cst_50 = arith.constant dense<0.000000e+00> : vector<8x8xf32>
    %90 = tpu.matmul %87, %88, %cst_50 {dimension_numbers = #tpu.dot_dimension_numbers<[1], [1], [0], [0], [0, 0, 1, 0], [], []>} : vector<8x32xbf16>, vector<8x32xbf16>, vector<8x8xf32> -> vector<8x8xf32>
    %cst_51 = arith.constant 0.176776692 : f32
    %91 = vector.broadcast %cst_51 : f32 to vector<8x8xf32>
    %92 = arith.mulf %90, %91 : vector<8x8xf32>
    %93 = vector.broadcast %12 : vector<1x8xf32> to vector<8x8xf32>
    %94 = arith.addf %92, %93 : vector<8x8xf32>
    %c2 = arith.constant 2 : index
    %c0_52 = arith.constant 0 : index
    %c0_53 = arith.constant 0 : index
    %95 = vector.load %arg7[%c2, %c0_52, %c0_53] : memref<4x8x1xf32, #tpu.memory_space<vmem>>, vector<1x8x1xf32>
    %96 = vector.shape_cast %95 : vector<1x8x1xf32> to vector<8x1xf32>
    %cst_54 = arith.constant dense<0xFF800000> : vector<8xf32>
    %97 = vector.multi_reduction <maximumf>, %94, %cst_54 [1] : vector<8x8xf32> to vector<8xf32>
    %98 = vector.shape_cast %97 : vector<8xf32> to vector<8x1xf32>
    %99 = arith.maximumf %96, %98 : vector<8x1xf32>
    %100 = arith.subf %96, %99 : vector<8x1xf32>
    %101 = math.exp %100 : vector<8x1xf32>
    %102 = vector.broadcast %99 : vector<8x1xf32> to vector<8x8xf32>
    %103 = arith.subf %94, %102 : vector<8x8xf32>
    %104 = math.exp %103 : vector<8x8xf32>
    %c2_55 = arith.constant 2 : index
    %c0_56 = arith.constant 0 : index
    %c0_57 = arith.constant 0 : index
    %105 = vector.load %arg8[%c2_55, %c0_56, %c0_57] : memref<4x8x1xf32, #tpu.memory_space<vmem>>, vector<1x8x1xf32>
    %106 = vector.shape_cast %105 : vector<1x8x1xf32> to vector<8x1xf32>
    %107 = arith.mulf %101, %106 : vector<8x1xf32>
    %cst_58 = arith.constant dense<0.000000e+00> : vector<8xf32>
    %108 = vector.multi_reduction <add>, %104, %cst_58 [1] : vector<8x8xf32> to vector<8xf32>
    %109 = vector.shape_cast %108 : vector<8xf32> to vector<8x1xf32>
    %110 = arith.addf %107, %109 : vector<8x1xf32>
    %c2_59 = arith.constant 2 : index
    %c0_60 = arith.constant 0 : index
    %c0_61 = arith.constant 0 : index
    %111 = vector.load %arg8[%c2_59, %c0_60, %c0_61] : memref<4x8x1xf32, #tpu.memory_space<vmem>>, vector<1x8x1xf32>
    %112 = vector.shape_cast %111 : vector<1x8x1xf32> to vector<8x1xf32>
    %113 = vector.shape_cast %110 : vector<8x1xf32> to vector<1x8x1xf32>
    tpu.vector_store %arg8[%c2_59, %c0_60, %c0_61], %113 {strides = array<i32>} : memref<4x8x1xf32, #tpu.memory_space<vmem>>, vector<1x8x1xf32>,
    %c0_62 = arith.constant 0 : index
    %c64 = arith.constant 64 : index
    %114 = vector.load %arg9[%c0_62, %c64] : memref<8x128xf32, #tpu.memory_space<vmem>>, vector<8x32xf32>
    %115 = vector.broadcast %101 : vector<8x1xf32> to vector<8x32xf32>
    %116 = arith.mulf %115, %114 : vector<8x32xf32>
    %117 = arith.truncf %104 : vector<8x8xf32> to vector<8x8xbf16>
    %cst_63 = arith.constant dense<0.000000e+00> : vector<8x32xf32>
    %118 = tpu.matmul %117, %89, %cst_63 {dimension_numbers = #tpu.dot_dimension_numbers<[1], [0], [0], [1], [0, 0, 1, 1], [], []>} : vector<8x8xbf16>, vector<8x32xbf16>, vector<8x32xf32> -> vector<8x32xf32>
    %119 = arith.addf %116, %118 : vector<8x32xf32>
    %c0_64 = arith.constant 0 : index
    %c64_65 = arith.constant 64 : index
    %120 = vector.load %arg9[%c0_64, %c64_65] : memref<8x128xf32, #tpu.memory_space<vmem>>, vector<8x32xf32>
    tpu.vector_store %arg9[%c0_64, %c64_65], %119 {strides = array<i32>} : memref<8x128xf32, #tpu.memory_space<vmem>>, vector<8x32xf32>,
    %c2_66 = arith.constant 2 : index
    %c0_67 = arith.constant 0 : index
    %c0_68 = arith.constant 0 : index
    %121 = vector.load %arg7[%c2_66, %c0_67, %c0_68] : memref<4x8x1xf32, #tpu.memory_space<vmem>>, vector<1x8x1xf32>
    %122 = vector.shape_cast %121 : vector<1x8x1xf32> to vector<8x1xf32>
    %123 = vector.shape_cast %99 : vector<8x1xf32> to vector<1x8x1xf32>
    tpu.vector_store %arg7[%c2_66, %c0_67, %c0_68], %123 {strides = array<i32>} : memref<4x8x1xf32, #tpu.memory_space<vmem>>, vector<1x8x1xf32>,
    %124 = vector.extract_strided_slice %4 {offsets = [0, 96], sizes = [8, 32], strides = [1, 1]} : vector<8x128xbf16> to vector<8x32xbf16>
    %125 = vector.extract_strided_slice %6 {offsets = [0, 96], sizes = [8, 32], strides = [1, 1]} : vector<8x256xbf16> to vector<8x32xbf16>
    %126 = vector.extract_strided_slice %6 {offsets = [0, 224], sizes = [8, 32], strides = [1, 1]} : vector<8x256xbf16> to vector<8x32xbf16>
    %cst_69 = arith.constant dense<0.000000e+00> : vector<8x8xf32>
    %127 = tpu.matmul %124, %125, %cst_69 {dimension_numbers = #tpu.dot_dimension_numbers<[1], [1], [0], [0], [0, 0, 1, 0], [], []>} : vector<8x32xbf16>, vector<8x32xbf16>, vector<8x8xf32> -> vector<8x8xf32>
    %cst_70 = arith.constant 0.176776692 : f32
    %128 = vector.broadcast %cst_70 : f32 to vector<8x8xf32>
    %129 = arith.mulf %127, %128 : vector<8x8xf32>
    %130 = vector.broadcast %12 : vector<1x8xf32> to vector<8x8xf32>
    %131 = arith.addf %129, %130 : vector<8x8xf32>
    %c3 = arith.constant 3 : index
    %c0_71 = arith.constant 0 : index
    %c0_72 = arith.constant 0 : index
    %132 = vector.load %arg7[%c3, %c0_71, %c0_72] : memref<4x8x1xf32, #tpu.memory_space<vmem>>, vector<1x8x1xf32>
    %133 = vector.shape_cast %132 : vector<1x8x1xf32> to vector<8x1xf32>
    %cst_73 = arith.constant dense<0xFF800000> : vector<8xf32>
    %134 = vector.multi_reduction <maximumf>, %131, %cst_73 [1] : vector<8x8xf32> to vector<8xf32>
    %135 = vector.shape_cast %134 : vector<8xf32> to vector<8x1xf32>
    %136 = arith.maximumf %133, %135 : vector<8x1xf32>
    %137 = arith.subf %133, %136 : vector<8x1xf32>
    %138 = math.exp %137 : vector<8x1xf32>
    %139 = vector.broadcast %136 : vector<8x1xf32> to vector<8x8xf32>
    %140 = arith.subf %131, %139 : vector<8x8xf32>
    %141 = math.exp %140 : vector<8x8xf32>
    %c3_74 = arith.constant 3 : index
    %c0_75 = arith.constant 0 : index
    %c0_76 = arith.constant 0 : index
    %142 = vector.load %arg8[%c3_74, %c0_75, %c0_76] : memref<4x8x1xf32, #tpu.memory_space<vmem>>, vector<1x8x1xf32>
    %143 = vector.shape_cast %142 : vector<1x8x1xf32> to vector<8x1xf32>
    %144 = arith.mulf %138, %143 : vector<8x1xf32>
    %cst_77 = arith.constant dense<0.000000e+00> : vector<8xf32>
    %145 = vector.multi_reduction <add>, %141, %cst_77 [1] : vector<8x8xf32> to vector<8xf32>
    %146 = vector.shape_cast %145 : vector<8xf32> to vector<8x1xf32>
    %147 = arith.addf %144, %146 : vector<8x1xf32>
    %c3_78 = arith.constant 3 : index
    %c0_79 = arith.constant 0 : index
    %c0_80 = arith.constant 0 : index
    %148 = vector.load %arg8[%c3_78, %c0_79, %c0_80] : memref<4x8x1xf32, #tpu.memory_space<vmem>>, vector<1x8x1xf32>
    %149 = vector.shape_cast %148 : vector<1x8x1xf32> to vector<8x1xf32>
    %150 = vector.shape_cast %147 : vector<8x1xf32> to vector<1x8x1xf32>
    tpu.vector_store %arg8[%c3_78, %c0_79, %c0_80], %150 {strides = array<i32>} : memref<4x8x1xf32, #tpu.memory_space<vmem>>, vector<1x8x1xf32>,
    %c0_81 = arith.constant 0 : index
    %c96 = arith.constant 96 : index
    %151 = vector.load %arg9[%c0_81, %c96] : memref<8x128xf32, #tpu.memory_space<vmem>>, vector<8x32xf32>
    %152 = vector.broadcast %138 : vector<8x1xf32> to vector<8x32xf32>
    %153 = arith.mulf %152, %151 : vector<8x32xf32>
    %154 = arith.truncf %141 : vector<8x8xf32> to vector<8x8xbf16>
    %cst_82 = arith.constant dense<0.000000e+00> : vector<8x32xf32>
    %155 = tpu.matmul %154, %126, %cst_82 {dimension_numbers = #tpu.dot_dimension_numbers<[1], [0], [0], [1], [0, 0, 1, 1], [], []>} : vector<8x8xbf16>, vector<8x32xbf16>, vector<8x32xf32> -> vector<8x32xf32>
    %156 = arith.addf %153, %155 : vector<8x32xf32>
    %c0_83 = arith.constant 0 : index
    %c96_84 = arith.constant 96 : index
    %157 = vector.load %arg9[%c0_83, %c96_84] : memref<8x128xf32, #tpu.memory_space<vmem>>, vector<8x32xf32>
    tpu.vector_store %arg9[%c0_83, %c96_84], %156 {strides = array<i32>} : memref<8x128xf32, #tpu.memory_space<vmem>>, vector<8x32xf32>,
    %c3_85 = arith.constant 3 : index
    %c0_86 = arith.constant 0 : index
    %c0_87 = arith.constant 0 : index
    %158 = vector.load %arg7[%c3_85, %c0_86, %c0_87] : memref<4x8x1xf32, #tpu.memory_space<vmem>>, vector<1x8x1xf32>
    %159 = vector.shape_cast %158 : vector<1x8x1xf32> to vector<8x1xf32>
    %160 = vector.shape_cast %136 : vector<8x1xf32> to vector<1x8x1xf32>
    tpu.vector_store %arg7[%c3_85, %c0_86, %c0_87], %160 {strides = array<i32>} : memref<4x8x1xf32, #tpu.memory_space<vmem>>, vector<1x8x1xf32>,
    %c0_i32_88 = arith.constant 0 : i32
    %161 = arith.cmpi eq, %arg2, %c0_i32_88 : i32
    %162 = arith.extui %161 : i1 to i32
    %c0_i32_89 = arith.constant 0 : i32
    %163 = arith.cmpi ne, %162, %c0_i32_89 : i32
    scf.if %163 {
      %c0_90 = arith.constant 0 : index
      %c0_91 = arith.constant 0 : index
      %c0_92 = arith.constant 0 : index
      %164 = vector.load %arg8[%c0_90, %c0_91, %c0_92] : memref<4x8x1xf32, #tpu.memory_space<vmem>>, vector<1x8x1xf32>
      %165 = vector.shape_cast %164 : vector<1x8x1xf32> to vector<8x1xf32>
      %166 = tpu.reciprocal %165 : vector<8x1xf32> -> vector<8x1xf32>
      %c0_93 = arith.constant 0 : index
      %c0_94 = arith.constant 0 : index
      %167 = vector.load %arg9[%c0_93, %c0_94] : memref<8x128xf32, #tpu.memory_space<vmem>>, vector<8x32xf32>
      %168 = vector.broadcast %166 : vector<8x1xf32> to vector<8x32xf32>
      %169 = arith.mulf %167, %168 : vector<8x32xf32>
      %170 = arith.truncf %169 : vector<8x32xf32> to vector<8x32xbf16>
      %c0_95 = arith.constant 0 : index
      %c0_96 = arith.constant 0 : index
      %c0_97 = arith.constant 0 : index
      %171 = vector.load %arg6[%c0_95, %c0_96, %c0_97] : memref<1x8x128xbf16, #tpu.memory_space<vmem>>, vector<1x8x32xbf16>
      %172 = vector.shape_cast %171 : vector<1x8x32xbf16> to vector<8x32xbf16>
      %173 = vector.shape_cast %170 : vector<8x32xbf16> to vector<1x8x32xbf16>
      tpu.vector_store %arg6[%c0_95, %c0_96, %c0_97], %173 {strides = array<i32>} : memref<1x8x128xbf16, #tpu.memory_space<vmem>>, vector<1x8x32xbf16>,
      %c1_98 = arith.constant 1 : index
      %c0_99 = arith.constant 0 : index
      %c0_100 = arith.constant 0 : index
      %174 = vector.load %arg8[%c1_98, %c0_99, %c0_100] : memref<4x8x1xf32, #tpu.memory_space<vmem>>, vector<1x8x1xf32>
      %175 = vector.shape_cast %174 : vector<1x8x1xf32> to vector<8x1xf32>
      %176 = tpu.reciprocal %175 : vector<8x1xf32> -> vector<8x1xf32>
      %c0_101 = arith.constant 0 : index
      %c32_102 = arith.constant 32 : index
      %177 = vector.load %arg9[%c0_101, %c32_102] : memref<8x128xf32, #tpu.memory_space<vmem>>, vector<8x32xf32>
      %178 = vector.broadcast %176 : vector<8x1xf32> to vector<8x32xf32>
      %179 = arith.mulf %177, %178 : vector<8x32xf32>
      %180 = arith.truncf %179 : vector<8x32xf32> to vector<8x32xbf16>
      %c0_103 = arith.constant 0 : index
      %c0_104 = arith.constant 0 : index
      %c32_105 = arith.constant 32 : index
      %181 = vector.load %arg6[%c0_103, %c0_104, %c32_105] : memref<1x8x128xbf16, #tpu.memory_space<vmem>>, vector<1x8x32xbf16>
      %182 = vector.shape_cast %181 : vector<1x8x32xbf16> to vector<8x32xbf16>
      %183 = vector.shape_cast %180 : vector<8x32xbf16> to vector<1x8x32xbf16>
      tpu.vector_store %arg6[%c0_103, %c0_104, %c32_105], %183 {strides = array<i32>} : memref<1x8x128xbf16, #tpu.memory_space<vmem>>, vector<1x8x32xbf16>,
      %c2_106 = arith.constant 2 : index
      %c0_107 = arith.constant 0 : index
      %c0_108 = arith.constant 0 : index
      %184 = vector.load %arg8[%c2_106, %c0_107, %c0_108] : memref<4x8x1xf32, #tpu.memory_space<vmem>>, vector<1x8x1xf32>
      %185 = vector.shape_cast %184 : vector<1x8x1xf32> to vector<8x1xf32>
      %186 = tpu.reciprocal %185 : vector<8x1xf32> -> vector<8x1xf32>
      %c0_109 = arith.constant 0 : index
      %c64_110 = arith.constant 64 : index
      %187 = vector.load %arg9[%c0_109, %c64_110] : memref<8x128xf32, #tpu.memory_space<vmem>>, vector<8x32xf32>
      %188 = vector.broadcast %186 : vector<8x1xf32> to vector<8x32xf32>
      %189 = arith.mulf %187, %188 : vector<8x32xf32>
      %190 = arith.truncf %189 : vector<8x32xf32> to vector<8x32xbf16>
      %c0_111 = arith.constant 0 : index
      %c0_112 = arith.constant 0 : index
      %c64_113 = arith.constant 64 : index
      %191 = vector.load %arg6[%c0_111, %c0_112, %c64_113] : memref<1x8x128xbf16, #tpu.memory_space<vmem>>, vector<1x8x32xbf16>
      %192 = vector.shape_cast %191 : vector<1x8x32xbf16> to vector<8x32xbf16>
      %193 = vector.shape_cast %190 : vector<8x32xbf16> to vector<1x8x32xbf16>
      tpu.vector_store %arg6[%c0_111, %c0_112, %c64_113], %193 {strides = array<i32>} : memref<1x8x128xbf16, #tpu.memory_space<vmem>>, vector<1x8x32xbf16>,
      %c3_114 = arith.constant 3 : index
      %c0_115 = arith.constant 0 : index
      %c0_116 = arith.constant 0 : index
      %194 = vector.load %arg8[%c3_114, %c0_115, %c0_116] : memref<4x8x1xf32, #tpu.memory_space<vmem>>, vector<1x8x1xf32>
      %195 = vector.shape_cast %194 : vector<1x8x1xf32> to vector<8x1xf32>
      %196 = tpu.reciprocal %195 : vector<8x1xf32> -> vector<8x1xf32>
      %c0_117 = arith.constant 0 : index
      %c96_118 = arith.constant 96 : index
      %197 = vector.load %arg9[%c0_117, %c96_118] : memref<8x128xf32, #tpu.memory_space<vmem>>, vector<8x32xf32>
      %198 = vector.broadcast %196 : vector<8x1xf32> to vector<8x32xf32>
      %199 = arith.mulf %197, %198 : vector<8x32xf32>
      %200 = arith.truncf %199 : vector<8x32xf32> to vector<8x32xbf16>
      %c0_119 = arith.constant 0 : index
      %c0_120 = arith.constant 0 : index
      %c96_121 = arith.constant 96 : index
      %201 = vector.load %arg6[%c0_119, %c0_120, %c96_121] : memref<1x8x128xbf16, #tpu.memory_space<vmem>>, vector<1x8x32xbf16>
      %202 = vector.shape_cast %201 : vector<1x8x32xbf16> to vector<8x32xbf16>
      %203 = vector.shape_cast %200 : vector<8x32xbf16> to vector<1x8x32xbf16>
      tpu.vector_store %arg6[%c0_119, %c0_120, %c96_121], %203 {strides = array<i32>} : memref<1x8x128xbf16, #tpu.memory_space<vmem>>, vector<1x8x32xbf16>,
    } else {
    }
    return
  }
  func.func @transform_0(%arg0: i32, %arg1: i32, %arg2: i32) -> (i32, i32, i32) {
    %c2_i32 = arith.constant 2 : i32
    %c0_i32 = arith.constant 0 : i32
    return %arg0, %arg1, %c2_i32 : i32, i32, i32
  }
  func.func @transform_1(%arg0: i32, %arg1: i32, %arg2: i32) -> (i32, i32, i32) {
    %c0_i32 = arith.constant 0 : i32
    %c0_i32_0 = arith.constant 0 : i32
    return %arg0, %arg2, %c0_i32 : i32, i32, i32
  }
  func.func @transform_2(%arg0: i32, %arg1: i32, %arg2: i32) -> (i32, i32, i32) {
    %c0_i32 = arith.constant 0 : i32
    %c0_i32_0 = arith.constant 0 : i32
    return %arg0, %c0_i32, %arg2 : i32, i32, i32
  }
  func.func @transform_3(%arg0: i32, %arg1: i32, %arg2: i32) -> (i32, i32, i32) {
    %c0_i32 = arith.constant 0 : i32
    %c0_i32_0 = arith.constant 0 : i32
    return %arg0, %arg1, %c0_i32 : i32, i32, i32
  }
}

module attributes {stable_mosaic.version = 11 : i64} {
  func.func @_proj_res_ln_kernel(%arg0: i32, %arg1: memref<16x128xbf16, #tpu.memory_space<vmem>>, %arg2: memref<16x128xbf16, #tpu.memory_space<vmem>>, %arg3: memref<128x128xbf16, #tpu.memory_space<vmem>>, %arg4: memref<1x128xf32, #tpu.memory_space<vmem>>, %arg5: memref<1x128xf32, #tpu.memory_space<vmem>>, %arg6: memref<1x128xf32, #tpu.memory_space<vmem>>, %arg7: memref<16x128xbf16, #tpu.memory_space<vmem>>) attributes {dimension_semantics = [#tpu.dimension_semantics<parallel>], iteration_bounds = array<i64: 1>, scalar_prefetch = 0 : i64, scratch_operands = 0 : i64, tpu.core_type = #tpu.core_type<tc>, window_params = [{transform_indices = @transform_0, window_bounds = array<i64: 16, 128>}, {transform_indices = @transform_1, window_bounds = array<i64: 16, 128>}, {pipeline_mode = #tpu.pipeline_mode<synchronous>, transform_indices = @transform_2, window_bounds = array<i64: 128, 128>}, {pipeline_mode = #tpu.pipeline_mode<synchronous>, transform_indices = @transform_3, window_bounds = array<i64: 1, 128>}, {pipeline_mode = #tpu.pipeline_mode<synchronous>, transform_indices = @transform_4, window_bounds = array<i64: 1, 128>}, {pipeline_mode = #tpu.pipeline_mode<synchronous>, transform_indices = @transform_5, window_bounds = array<i64: 1, 128>}, {transform_indices = @transform_6, window_bounds = array<i64: 16, 128>}]} {
    %c0 = arith.constant 0 : index
    %c0_0 = arith.constant 0 : index
    %0 = vector.load %arg1[%c0, %c0_0] : memref<16x128xbf16, #tpu.memory_space<vmem>>, vector<16x128xbf16>
    %c0_1 = arith.constant 0 : index
    %c0_2 = arith.constant 0 : index
    %1 = vector.load %arg3[%c0_1, %c0_2] : memref<128x128xbf16, #tpu.memory_space<vmem>>, vector<128x128xbf16>
    %cst = arith.constant dense<0.000000e+00> : vector<16x128xf32>
    %2 = tpu.matmul %0, %1, %cst {dimension_numbers = #tpu.dot_dimension_numbers<[1], [0], [0], [1], [0, 0, 1, 1], [], []>} : vector<16x128xbf16>, vector<128x128xbf16>, vector<16x128xf32> -> vector<16x128xf32>
    %c0_3 = arith.constant 0 : index
    %c0_4 = arith.constant 0 : index
    %3 = vector.load %arg4[%c0_3, %c0_4] : memref<1x128xf32, #tpu.memory_space<vmem>>, vector<1x128xf32>
    %4 = vector.broadcast %3 : vector<1x128xf32> to vector<16x128xf32>
    %5 = arith.addf %2, %4 : vector<16x128xf32>
    %c0_5 = arith.constant 0 : index
    %c0_6 = arith.constant 0 : index
    %6 = vector.load %arg2[%c0_5, %c0_6] : memref<16x128xbf16, #tpu.memory_space<vmem>>, vector<16x128xbf16>
    %7 = arith.extf %6 : vector<16x128xbf16> to vector<16x128xf32>
    %8 = arith.addf %5, %7 : vector<16x128xf32>
    %cst_7 = arith.constant dense<0.000000e+00> : vector<16xf32>
    %9 = vector.multi_reduction <add>, %8, %cst_7 [1] : vector<16x128xf32> to vector<16xf32>
    %10 = vector.shape_cast %9 : vector<16xf32> to vector<16x1xf32>
    %cst_8 = arith.constant 1.280000e+02 : f32
    %11 = vector.broadcast %cst_8 : f32 to vector<16x1xf32>
    %12 = arith.divf %10, %11 : vector<16x1xf32>
    %13 = vector.broadcast %12 : vector<16x1xf32> to vector<16x128xf32>
    %14 = arith.subf %8, %13 : vector<16x128xf32>
    %15 = arith.mulf %14, %14 : vector<16x128xf32>
    %cst_9 = arith.constant dense<0.000000e+00> : vector<16xf32>
    %16 = vector.multi_reduction <add>, %15, %cst_9 [1] : vector<16x128xf32> to vector<16xf32>
    %17 = vector.shape_cast %16 : vector<16xf32> to vector<16x1xf32>
    %cst_10 = arith.constant 1.280000e+02 : f32
    %18 = vector.broadcast %cst_10 : f32 to vector<16x1xf32>
    %19 = arith.divf %17, %18 : vector<16x1xf32>
    %20 = vector.broadcast %12 : vector<16x1xf32> to vector<16x128xf32>
    %21 = arith.subf %8, %20 : vector<16x128xf32>
    %cst_11 = arith.constant 9.99999974E-6 : f32
    %22 = vector.broadcast %cst_11 : f32 to vector<16x1xf32>
    %23 = arith.addf %19, %22 : vector<16x1xf32>
    %24 = math.rsqrt %23 : vector<16x1xf32>
    %25 = vector.broadcast %24 : vector<16x1xf32> to vector<16x128xf32>
    %26 = arith.mulf %21, %25 : vector<16x128xf32>
    %c0_12 = arith.constant 0 : index
    %c0_13 = arith.constant 0 : index
    %27 = vector.load %arg5[%c0_12, %c0_13] : memref<1x128xf32, #tpu.memory_space<vmem>>, vector<1x128xf32>
    %28 = vector.broadcast %27 : vector<1x128xf32> to vector<16x128xf32>
    %29 = arith.mulf %26, %28 : vector<16x128xf32>
    %c0_14 = arith.constant 0 : index
    %c0_15 = arith.constant 0 : index
    %30 = vector.load %arg6[%c0_14, %c0_15] : memref<1x128xf32, #tpu.memory_space<vmem>>, vector<1x128xf32>
    %31 = vector.broadcast %30 : vector<1x128xf32> to vector<16x128xf32>
    %32 = arith.addf %29, %31 : vector<16x128xf32>
    %33 = arith.truncf %32 : vector<16x128xf32> to vector<16x128xbf16>
    %c0_16 = arith.constant 0 : index
    %c0_17 = arith.constant 0 : index
    %34 = vector.load %arg7[%c0_16, %c0_17] : memref<16x128xbf16, #tpu.memory_space<vmem>>, vector<16x128xbf16>
    tpu.vector_store %arg7[%c0_16, %c0_17], %33 {strides = array<i32>} : memref<16x128xbf16, #tpu.memory_space<vmem>>, vector<16x128xbf16>,
    return
  }
  func.func @transform_0(%arg0: i32) -> (i32, i32) {
    %c0_i32 = arith.constant 0 : i32
    %c0_i32_0 = arith.constant 0 : i32
    return %arg0, %c0_i32 : i32, i32
  }
  func.func @transform_1(%arg0: i32) -> (i32, i32) {
    %c0_i32 = arith.constant 0 : i32
    %c0_i32_0 = arith.constant 0 : i32
    return %arg0, %c0_i32 : i32, i32
  }
  func.func @transform_2(%arg0: i32) -> (i32, i32) {
    %c0_i32 = arith.constant 0 : i32
    %c0_i32_0 = arith.constant 0 : i32
    %c0_i32_1 = arith.constant 0 : i32
    return %c0_i32, %c0_i32_0 : i32, i32
  }
  func.func @transform_3(%arg0: i32) -> (i32, i32) {
    %c0_i32 = arith.constant 0 : i32
    %c0_i32_0 = arith.constant 0 : i32
    %c0_i32_1 = arith.constant 0 : i32
    return %c0_i32, %c0_i32_0 : i32, i32
  }
  func.func @transform_4(%arg0: i32) -> (i32, i32) {
    %c0_i32 = arith.constant 0 : i32
    %c0_i32_0 = arith.constant 0 : i32
    %c0_i32_1 = arith.constant 0 : i32
    return %c0_i32, %c0_i32_0 : i32, i32
  }
  func.func @transform_5(%arg0: i32) -> (i32, i32) {
    %c0_i32 = arith.constant 0 : i32
    %c0_i32_0 = arith.constant 0 : i32
    %c0_i32_1 = arith.constant 0 : i32
    return %c0_i32, %c0_i32_0 : i32, i32
  }
  func.func @transform_6(%arg0: i32) -> (i32, i32) {
    %c0_i32 = arith.constant 0 : i32
    %c0_i32_0 = arith.constant 0 : i32
    return %arg0, %c0_i32 : i32, i32
  }
}

module attributes {stable_mosaic.version = 11 : i64} {
  func.func @_ffn_ln_kernel(%arg0: i32, %arg1: memref<16x128xbf16, #tpu.memory_space<vmem>>, %arg2: memref<128x512xbf16, #tpu.memory_space<vmem>>, %arg3: memref<1x512xf32, #tpu.memory_space<vmem>>, %arg4: memref<512x128xbf16, #tpu.memory_space<vmem>>, %arg5: memref<1x128xf32, #tpu.memory_space<vmem>>, %arg6: memref<1x128xf32, #tpu.memory_space<vmem>>, %arg7: memref<1x128xf32, #tpu.memory_space<vmem>>, %arg8: memref<16x128xbf16, #tpu.memory_space<vmem>>) attributes {dimension_semantics = [#tpu.dimension_semantics<parallel>], iteration_bounds = array<i64: 1>, scalar_prefetch = 0 : i64, scratch_operands = 0 : i64, tpu.core_type = #tpu.core_type<tc>, window_params = [{transform_indices = @transform_0, window_bounds = array<i64: 16, 128>}, {pipeline_mode = #tpu.pipeline_mode<synchronous>, transform_indices = @transform_1, window_bounds = array<i64: 128, 512>}, {pipeline_mode = #tpu.pipeline_mode<synchronous>, transform_indices = @transform_2, window_bounds = array<i64: 1, 512>}, {pipeline_mode = #tpu.pipeline_mode<synchronous>, transform_indices = @transform_3, window_bounds = array<i64: 512, 128>}, {pipeline_mode = #tpu.pipeline_mode<synchronous>, transform_indices = @transform_4, window_bounds = array<i64: 1, 128>}, {pipeline_mode = #tpu.pipeline_mode<synchronous>, transform_indices = @transform_5, window_bounds = array<i64: 1, 128>}, {pipeline_mode = #tpu.pipeline_mode<synchronous>, transform_indices = @transform_6, window_bounds = array<i64: 1, 128>}, {transform_indices = @transform_7, window_bounds = array<i64: 16, 128>}]} {
    %c0 = arith.constant 0 : index
    %c0_0 = arith.constant 0 : index
    %0 = vector.load %arg1[%c0, %c0_0] : memref<16x128xbf16, #tpu.memory_space<vmem>>, vector<16x128xbf16>
    %c0_1 = arith.constant 0 : index
    %c0_2 = arith.constant 0 : index
    %1 = vector.load %arg2[%c0_1, %c0_2] : memref<128x512xbf16, #tpu.memory_space<vmem>>, vector<128x512xbf16>
    %cst = arith.constant dense<0.000000e+00> : vector<16x512xf32>
    %2 = tpu.matmul %0, %1, %cst {dimension_numbers = #tpu.dot_dimension_numbers<[1], [0], [0], [1], [0, 0, 1, 1], [], []>} : vector<16x128xbf16>, vector<128x512xbf16>, vector<16x512xf32> -> vector<16x512xf32>
    %c0_3 = arith.constant 0 : index
    %c0_4 = arith.constant 0 : index
    %3 = vector.load %arg3[%c0_3, %c0_4] : memref<1x512xf32, #tpu.memory_space<vmem>>, vector<1x512xf32>
    %4 = vector.broadcast %3 : vector<1x512xf32> to vector<16x512xf32>
    %5 = arith.addf %2, %4 : vector<16x512xf32>
    %cst_5 = arith.constant 0.000000e+00 : f32
    %6 = vector.broadcast %cst_5 : f32 to vector<16x512xf32>
    %7 = arith.maximumf %5, %6 : vector<16x512xf32>
    %8 = arith.truncf %7 : vector<16x512xf32> to vector<16x512xbf16>
    %c0_6 = arith.constant 0 : index
    %c0_7 = arith.constant 0 : index
    %9 = vector.load %arg4[%c0_6, %c0_7] : memref<512x128xbf16, #tpu.memory_space<vmem>>, vector<512x128xbf16>
    %cst_8 = arith.constant dense<0.000000e+00> : vector<16x128xf32>
    %10 = tpu.matmul %8, %9, %cst_8 {dimension_numbers = #tpu.dot_dimension_numbers<[1], [0], [0], [1], [0, 0, 1, 1], [], []>} : vector<16x512xbf16>, vector<512x128xbf16>, vector<16x128xf32> -> vector<16x128xf32>
    %c0_9 = arith.constant 0 : index
    %c0_10 = arith.constant 0 : index
    %11 = vector.load %arg5[%c0_9, %c0_10] : memref<1x128xf32, #tpu.memory_space<vmem>>, vector<1x128xf32>
    %12 = vector.broadcast %11 : vector<1x128xf32> to vector<16x128xf32>
    %13 = arith.addf %10, %12 : vector<16x128xf32>
    %14 = arith.extf %0 : vector<16x128xbf16> to vector<16x128xf32>
    %15 = arith.addf %13, %14 : vector<16x128xf32>
    %cst_11 = arith.constant dense<0.000000e+00> : vector<16xf32>
    %16 = vector.multi_reduction <add>, %15, %cst_11 [1] : vector<16x128xf32> to vector<16xf32>
    %17 = vector.shape_cast %16 : vector<16xf32> to vector<16x1xf32>
    %cst_12 = arith.constant 1.280000e+02 : f32
    %18 = vector.broadcast %cst_12 : f32 to vector<16x1xf32>
    %19 = arith.divf %17, %18 : vector<16x1xf32>
    %20 = vector.broadcast %19 : vector<16x1xf32> to vector<16x128xf32>
    %21 = arith.subf %15, %20 : vector<16x128xf32>
    %22 = arith.mulf %21, %21 : vector<16x128xf32>
    %cst_13 = arith.constant dense<0.000000e+00> : vector<16xf32>
    %23 = vector.multi_reduction <add>, %22, %cst_13 [1] : vector<16x128xf32> to vector<16xf32>
    %24 = vector.shape_cast %23 : vector<16xf32> to vector<16x1xf32>
    %cst_14 = arith.constant 1.280000e+02 : f32
    %25 = vector.broadcast %cst_14 : f32 to vector<16x1xf32>
    %26 = arith.divf %24, %25 : vector<16x1xf32>
    %27 = vector.broadcast %19 : vector<16x1xf32> to vector<16x128xf32>
    %28 = arith.subf %15, %27 : vector<16x128xf32>
    %cst_15 = arith.constant 9.99999974E-6 : f32
    %29 = vector.broadcast %cst_15 : f32 to vector<16x1xf32>
    %30 = arith.addf %26, %29 : vector<16x1xf32>
    %31 = math.rsqrt %30 : vector<16x1xf32>
    %32 = vector.broadcast %31 : vector<16x1xf32> to vector<16x128xf32>
    %33 = arith.mulf %28, %32 : vector<16x128xf32>
    %c0_16 = arith.constant 0 : index
    %c0_17 = arith.constant 0 : index
    %34 = vector.load %arg6[%c0_16, %c0_17] : memref<1x128xf32, #tpu.memory_space<vmem>>, vector<1x128xf32>
    %35 = vector.broadcast %34 : vector<1x128xf32> to vector<16x128xf32>
    %36 = arith.mulf %33, %35 : vector<16x128xf32>
    %c0_18 = arith.constant 0 : index
    %c0_19 = arith.constant 0 : index
    %37 = vector.load %arg7[%c0_18, %c0_19] : memref<1x128xf32, #tpu.memory_space<vmem>>, vector<1x128xf32>
    %38 = vector.broadcast %37 : vector<1x128xf32> to vector<16x128xf32>
    %39 = arith.addf %36, %38 : vector<16x128xf32>
    %40 = arith.truncf %39 : vector<16x128xf32> to vector<16x128xbf16>
    %c0_20 = arith.constant 0 : index
    %c0_21 = arith.constant 0 : index
    %41 = vector.load %arg8[%c0_20, %c0_21] : memref<16x128xbf16, #tpu.memory_space<vmem>>, vector<16x128xbf16>
    tpu.vector_store %arg8[%c0_20, %c0_21], %40 {strides = array<i32>} : memref<16x128xbf16, #tpu.memory_space<vmem>>, vector<16x128xbf16>,
    return
  }
  func.func @transform_0(%arg0: i32) -> (i32, i32) {
    %c0_i32 = arith.constant 0 : i32
    %c0_i32_0 = arith.constant 0 : i32
    return %arg0, %c0_i32 : i32, i32
  }
  func.func @transform_1(%arg0: i32) -> (i32, i32) {
    %c0_i32 = arith.constant 0 : i32
    %c0_i32_0 = arith.constant 0 : i32
    %c0_i32_1 = arith.constant 0 : i32
    return %c0_i32, %c0_i32_0 : i32, i32
  }
  func.func @transform_2(%arg0: i32) -> (i32, i32) {
    %c0_i32 = arith.constant 0 : i32
    %c0_i32_0 = arith.constant 0 : i32
    %c0_i32_1 = arith.constant 0 : i32
    return %c0_i32, %c0_i32_0 : i32, i32
  }
  func.func @transform_3(%arg0: i32) -> (i32, i32) {
    %c0_i32 = arith.constant 0 : i32
    %c0_i32_0 = arith.constant 0 : i32
    %c0_i32_1 = arith.constant 0 : i32
    return %c0_i32, %c0_i32_0 : i32, i32
  }
  func.func @transform_4(%arg0: i32) -> (i32, i32) {
    %c0_i32 = arith.constant 0 : i32
    %c0_i32_0 = arith.constant 0 : i32
    %c0_i32_1 = arith.constant 0 : i32
    return %c0_i32, %c0_i32_0 : i32, i32
  }
  func.func @transform_5(%arg0: i32) -> (i32, i32) {
    %c0_i32 = arith.constant 0 : i32
    %c0_i32_0 = arith.constant 0 : i32
    %c0_i32_1 = arith.constant 0 : i32
    return %c0_i32, %c0_i32_0 : i32, i32
  }
  func.func @transform_6(%arg0: i32) -> (i32, i32) {
    %c0_i32 = arith.constant 0 : i32
    %c0_i32_0 = arith.constant 0 : i32
    %c0_i32_1 = arith.constant 0 : i32
    return %c0_i32, %c0_i32_0 : i32, i32
  }
  func.func @transform_7(%arg0: i32) -> (i32, i32) {
    %c0_i32 = arith.constant 0 : i32
    %c0_i32_0 = arith.constant 0 : i32
    return %arg0, %c0_i32 : i32, i32
  }
}

module attributes {stable_mosaic.version = 11 : i64} {
  func.func @_linear_kernel(%arg0: i32, %arg1: i32, %arg2: i32, %arg3: memref<16x128xbf16, #tpu.memory_space<vmem>>, %arg4: memref<128x128xbf16, #tpu.memory_space<vmem>>, %arg5: memref<1x128xf32, #tpu.memory_space<vmem>>, %arg6: memref<16x128xbf16, #tpu.memory_space<vmem>>, %arg7: memref<16x128xf32, #tpu.memory_space<vmem>>) attributes {dimension_semantics = [#tpu.dimension_semantics<parallel>, #tpu.dimension_semantics<parallel>, #tpu.dimension_semantics<arbitrary>], iteration_bounds = array<i64: 1, 1, 1>, scalar_prefetch = 0 : i64, scratch_operands = 1 : i64, tpu.core_type = #tpu.core_type<tc>, window_params = [{transform_indices = @transform_0, window_bounds = array<i64: 16, 128>}, {transform_indices = @transform_1, window_bounds = array<i64: 128, 128>}, {transform_indices = @transform_2, window_bounds = array<i64: 1, 128>}, {transform_indices = @transform_3, window_bounds = array<i64: 16, 128>}]} {
    %c0_i32 = arith.constant 0 : i32
    %0 = arith.cmpi eq, %arg2, %c0_i32 : i32
    %1 = arith.extui %0 : i1 to i32
    %c0_i32_0 = arith.constant 0 : i32
    %2 = arith.cmpi ne, %1, %c0_i32_0 : i32
    scf.if %2 {
      %cst_10 = arith.constant 0.000000e+00 : f32
      %12 = vector.broadcast %cst_10 : f32 to vector<16x128xf32>
      %c0_11 = arith.constant 0 : index
      %c0_12 = arith.constant 0 : index
      %13 = vector.load %arg7[%c0_11, %c0_12] : memref<16x128xf32, #tpu.memory_space<vmem>>, vector<16x128xf32>
      tpu.vector_store %arg7[%c0_11, %c0_12], %12 {strides = array<i32>} : memref<16x128xf32, #tpu.memory_space<vmem>>, vector<16x128xf32>,
    } else {
    }
    %c0 = arith.constant 0 : index
    %c0_1 = arith.constant 0 : index
    %3 = vector.load %arg7[%c0, %c0_1] : memref<16x128xf32, #tpu.memory_space<vmem>>, vector<16x128xf32>
    %c0_2 = arith.constant 0 : index
    %c0_3 = arith.constant 0 : index
    %4 = vector.load %arg3[%c0_2, %c0_3] : memref<16x128xbf16, #tpu.memory_space<vmem>>, vector<16x128xbf16>
    %c0_4 = arith.constant 0 : index
    %c0_5 = arith.constant 0 : index
    %5 = vector.load %arg4[%c0_4, %c0_5] : memref<128x128xbf16, #tpu.memory_space<vmem>>, vector<128x128xbf16>
    %cst = arith.constant dense<0.000000e+00> : vector<16x128xf32>
    %6 = tpu.matmul %4, %5, %cst {dimension_numbers = #tpu.dot_dimension_numbers<[1], [0], [0], [1], [0, 0, 1, 1], [], []>} : vector<16x128xbf16>, vector<128x128xbf16>, vector<16x128xf32> -> vector<16x128xf32>
    %7 = arith.addf %3, %6 : vector<16x128xf32>
    %c0_6 = arith.constant 0 : index
    %c0_7 = arith.constant 0 : index
    %8 = vector.load %arg7[%c0_6, %c0_7] : memref<16x128xf32, #tpu.memory_space<vmem>>, vector<16x128xf32>
    tpu.vector_store %arg7[%c0_6, %c0_7], %7 {strides = array<i32>} : memref<16x128xf32, #tpu.memory_space<vmem>>, vector<16x128xf32>,
    %c0_i32_8 = arith.constant 0 : i32
    %9 = arith.cmpi eq, %arg2, %c0_i32_8 : i32
    %10 = arith.extui %9 : i1 to i32
    %c0_i32_9 = arith.constant 0 : i32
    %11 = arith.cmpi ne, %10, %c0_i32_9 : i32
    scf.if %11 {
      %c0_10 = arith.constant 0 : index
      %c0_11 = arith.constant 0 : index
      %12 = vector.load %arg7[%c0_10, %c0_11] : memref<16x128xf32, #tpu.memory_space<vmem>>, vector<16x128xf32>
      %c0_12 = arith.constant 0 : index
      %c0_13 = arith.constant 0 : index
      %13 = vector.load %arg5[%c0_12, %c0_13] : memref<1x128xf32, #tpu.memory_space<vmem>>, vector<1x128xf32>
      %14 = vector.broadcast %13 : vector<1x128xf32> to vector<16x128xf32>
      %15 = arith.addf %12, %14 : vector<16x128xf32>
      %16 = arith.truncf %15 : vector<16x128xf32> to vector<16x128xbf16>
      %c0_14 = arith.constant 0 : index
      %c0_15 = arith.constant 0 : index
      %17 = vector.load %arg6[%c0_14, %c0_15] : memref<16x128xbf16, #tpu.memory_space<vmem>>, vector<16x128xbf16>
      tpu.vector_store %arg6[%c0_14, %c0_15], %16 {strides = array<i32>} : memref<16x128xbf16, #tpu.memory_space<vmem>>, vector<16x128xbf16>,
    } else {
    }
    return
  }
  func.func @transform_0(%arg0: i32, %arg1: i32, %arg2: i32) -> (i32, i32) {
    %c0_i32 = arith.constant 0 : i32
    return %arg0, %arg2 : i32, i32
  }
  func.func @transform_1(%arg0: i32, %arg1: i32, %arg2: i32) -> (i32, i32) {
    %c0_i32 = arith.constant 0 : i32
    return %arg2, %arg1 : i32, i32
  }
  func.func @transform_2(%arg0: i32, %arg1: i32, %arg2: i32) -> (i32, i32) {
    %c0_i32 = arith.constant 0 : i32
    %c0_i32_0 = arith.constant 0 : i32
    return %c0_i32, %arg1 : i32, i32
  }
  func.func @transform_3(%arg0: i32, %arg1: i32, %arg2: i32) -> (i32, i32) {
    %c0_i32 = arith.constant 0 : i32
    return %arg0, %arg1 : i32, i32
  }
}

module attributes {stable_mosaic.version = 11 : i64} {
  func.func @_linear_kernel(%arg0: i32, %arg1: i32, %arg2: i32, %arg3: memref<16x128xbf16, #tpu.memory_space<vmem>>, %arg4: memref<128x128xbf16, #tpu.memory_space<vmem>>, %arg5: memref<1x128xf32, #tpu.memory_space<vmem>>, %arg6: memref<16x128xbf16, #tpu.memory_space<vmem>>, %arg7: memref<16x128xf32, #tpu.memory_space<vmem>>) attributes {dimension_semantics = [#tpu.dimension_semantics<parallel>, #tpu.dimension_semantics<parallel>, #tpu.dimension_semantics<arbitrary>], iteration_bounds = array<i64: 1, 1, 1>, scalar_prefetch = 0 : i64, scratch_operands = 1 : i64, tpu.core_type = #tpu.core_type<tc>, window_params = [{transform_indices = @transform_0, window_bounds = array<i64: 16, 128>}, {transform_indices = @transform_1, window_bounds = array<i64: 128, 128>}, {transform_indices = @transform_2, window_bounds = array<i64: 1, 128>}, {transform_indices = @transform_3, window_bounds = array<i64: 16, 128>}]} {
    %c0_i32 = arith.constant 0 : i32
    %0 = arith.cmpi eq, %arg2, %c0_i32 : i32
    %1 = arith.extui %0 : i1 to i32
    %c0_i32_0 = arith.constant 0 : i32
    %2 = arith.cmpi ne, %1, %c0_i32_0 : i32
    scf.if %2 {
      %cst_10 = arith.constant 0.000000e+00 : f32
      %12 = vector.broadcast %cst_10 : f32 to vector<16x128xf32>
      %c0_11 = arith.constant 0 : index
      %c0_12 = arith.constant 0 : index
      %13 = vector.load %arg7[%c0_11, %c0_12] : memref<16x128xf32, #tpu.memory_space<vmem>>, vector<16x128xf32>
      tpu.vector_store %arg7[%c0_11, %c0_12], %12 {strides = array<i32>} : memref<16x128xf32, #tpu.memory_space<vmem>>, vector<16x128xf32>,
    } else {
    }
    %c0 = arith.constant 0 : index
    %c0_1 = arith.constant 0 : index
    %3 = vector.load %arg7[%c0, %c0_1] : memref<16x128xf32, #tpu.memory_space<vmem>>, vector<16x128xf32>
    %c0_2 = arith.constant 0 : index
    %c0_3 = arith.constant 0 : index
    %4 = vector.load %arg3[%c0_2, %c0_3] : memref<16x128xbf16, #tpu.memory_space<vmem>>, vector<16x128xbf16>
    %c0_4 = arith.constant 0 : index
    %c0_5 = arith.constant 0 : index
    %5 = vector.load %arg4[%c0_4, %c0_5] : memref<128x128xbf16, #tpu.memory_space<vmem>>, vector<128x128xbf16>
    %cst = arith.constant dense<0.000000e+00> : vector<16x128xf32>
    %6 = tpu.matmul %4, %5, %cst {dimension_numbers = #tpu.dot_dimension_numbers<[1], [0], [0], [1], [0, 0, 1, 1], [], []>} : vector<16x128xbf16>, vector<128x128xbf16>, vector<16x128xf32> -> vector<16x128xf32>
    %7 = arith.addf %3, %6 : vector<16x128xf32>
    %c0_6 = arith.constant 0 : index
    %c0_7 = arith.constant 0 : index
    %8 = vector.load %arg7[%c0_6, %c0_7] : memref<16x128xf32, #tpu.memory_space<vmem>>, vector<16x128xf32>
    tpu.vector_store %arg7[%c0_6, %c0_7], %7 {strides = array<i32>} : memref<16x128xf32, #tpu.memory_space<vmem>>, vector<16x128xf32>,
    %c0_i32_8 = arith.constant 0 : i32
    %9 = arith.cmpi eq, %arg2, %c0_i32_8 : i32
    %10 = arith.extui %9 : i1 to i32
    %c0_i32_9 = arith.constant 0 : i32
    %11 = arith.cmpi ne, %10, %c0_i32_9 : i32
    scf.if %11 {
      %c0_10 = arith.constant 0 : index
      %c0_11 = arith.constant 0 : index
      %12 = vector.load %arg7[%c0_10, %c0_11] : memref<16x128xf32, #tpu.memory_space<vmem>>, vector<16x128xf32>
      %c0_12 = arith.constant 0 : index
      %c0_13 = arith.constant 0 : index
      %13 = vector.load %arg5[%c0_12, %c0_13] : memref<1x128xf32, #tpu.memory_space<vmem>>, vector<1x128xf32>
      %14 = vector.broadcast %13 : vector<1x128xf32> to vector<16x128xf32>
      %15 = arith.addf %12, %14 : vector<16x128xf32>
      %16 = arith.truncf %15 : vector<16x128xf32> to vector<16x128xbf16>
      %c0_14 = arith.constant 0 : index
      %c0_15 = arith.constant 0 : index
      %17 = vector.load %arg6[%c0_14, %c0_15] : memref<16x128xbf16, #tpu.memory_space<vmem>>, vector<16x128xbf16>
      tpu.vector_store %arg6[%c0_14, %c0_15], %16 {strides = array<i32>} : memref<16x128xbf16, #tpu.memory_space<vmem>>, vector<16x128xbf16>,
    } else {
    }
    return
  }
  func.func @transform_0(%arg0: i32, %arg1: i32, %arg2: i32) -> (i32, i32) {
    %c0_i32 = arith.constant 0 : i32
    return %arg0, %arg2 : i32, i32
  }
  func.func @transform_1(%arg0: i32, %arg1: i32, %arg2: i32) -> (i32, i32) {
    %c0_i32 = arith.constant 0 : i32
    return %arg2, %arg1 : i32, i32
  }
  func.func @transform_2(%arg0: i32, %arg1: i32, %arg2: i32) -> (i32, i32) {
    %c0_i32 = arith.constant 0 : i32
    %c0_i32_0 = arith.constant 0 : i32
    return %c0_i32, %arg1 : i32, i32
  }
  func.func @transform_3(%arg0: i32, %arg1: i32, %arg2: i32) -> (i32, i32) {
    %c0_i32 = arith.constant 0 : i32
    return %arg0, %arg1 : i32, i32
  }
}

module attributes {stable_mosaic.version = 11 : i64} {
  func.func @_linear_kernel(%arg0: i32, %arg1: i32, %arg2: i32, %arg3: memref<32x128xbf16, #tpu.memory_space<vmem>>, %arg4: memref<128x128xbf16, #tpu.memory_space<vmem>>, %arg5: memref<1x128xf32, #tpu.memory_space<vmem>>, %arg6: memref<32x128xbf16, #tpu.memory_space<vmem>>, %arg7: memref<32x128xf32, #tpu.memory_space<vmem>>) attributes {dimension_semantics = [#tpu.dimension_semantics<parallel>, #tpu.dimension_semantics<parallel>, #tpu.dimension_semantics<arbitrary>], iteration_bounds = array<i64: 1, 3, 1>, scalar_prefetch = 0 : i64, scratch_operands = 1 : i64, tpu.core_type = #tpu.core_type<tc>, window_params = [{transform_indices = @transform_0, window_bounds = array<i64: 32, 128>}, {transform_indices = @transform_1, window_bounds = array<i64: 128, 128>}, {transform_indices = @transform_2, window_bounds = array<i64: 1, 128>}, {transform_indices = @transform_3, window_bounds = array<i64: 32, 128>}]} {
    %c0_i32 = arith.constant 0 : i32
    %0 = arith.cmpi eq, %arg2, %c0_i32 : i32
    %1 = arith.extui %0 : i1 to i32
    %c0_i32_0 = arith.constant 0 : i32
    %2 = arith.cmpi ne, %1, %c0_i32_0 : i32
    scf.if %2 {
      %cst_10 = arith.constant 0.000000e+00 : f32
      %12 = vector.broadcast %cst_10 : f32 to vector<32x128xf32>
      %c0_11 = arith.constant 0 : index
      %c0_12 = arith.constant 0 : index
      %13 = vector.load %arg7[%c0_11, %c0_12] : memref<32x128xf32, #tpu.memory_space<vmem>>, vector<32x128xf32>
      tpu.vector_store %arg7[%c0_11, %c0_12], %12 {strides = array<i32>} : memref<32x128xf32, #tpu.memory_space<vmem>>, vector<32x128xf32>,
    } else {
    }
    %c0 = arith.constant 0 : index
    %c0_1 = arith.constant 0 : index
    %3 = vector.load %arg7[%c0, %c0_1] : memref<32x128xf32, #tpu.memory_space<vmem>>, vector<32x128xf32>
    %c0_2 = arith.constant 0 : index
    %c0_3 = arith.constant 0 : index
    %4 = vector.load %arg3[%c0_2, %c0_3] : memref<32x128xbf16, #tpu.memory_space<vmem>>, vector<32x128xbf16>
    %c0_4 = arith.constant 0 : index
    %c0_5 = arith.constant 0 : index
    %5 = vector.load %arg4[%c0_4, %c0_5] : memref<128x128xbf16, #tpu.memory_space<vmem>>, vector<128x128xbf16>
    %cst = arith.constant dense<0.000000e+00> : vector<32x128xf32>
    %6 = tpu.matmul %4, %5, %cst {dimension_numbers = #tpu.dot_dimension_numbers<[1], [0], [0], [1], [0, 0, 1, 1], [], []>} : vector<32x128xbf16>, vector<128x128xbf16>, vector<32x128xf32> -> vector<32x128xf32>
    %7 = arith.addf %3, %6 : vector<32x128xf32>
    %c0_6 = arith.constant 0 : index
    %c0_7 = arith.constant 0 : index
    %8 = vector.load %arg7[%c0_6, %c0_7] : memref<32x128xf32, #tpu.memory_space<vmem>>, vector<32x128xf32>
    tpu.vector_store %arg7[%c0_6, %c0_7], %7 {strides = array<i32>} : memref<32x128xf32, #tpu.memory_space<vmem>>, vector<32x128xf32>,
    %c0_i32_8 = arith.constant 0 : i32
    %9 = arith.cmpi eq, %arg2, %c0_i32_8 : i32
    %10 = arith.extui %9 : i1 to i32
    %c0_i32_9 = arith.constant 0 : i32
    %11 = arith.cmpi ne, %10, %c0_i32_9 : i32
    scf.if %11 {
      %c0_10 = arith.constant 0 : index
      %c0_11 = arith.constant 0 : index
      %12 = vector.load %arg7[%c0_10, %c0_11] : memref<32x128xf32, #tpu.memory_space<vmem>>, vector<32x128xf32>
      %c0_12 = arith.constant 0 : index
      %c0_13 = arith.constant 0 : index
      %13 = vector.load %arg5[%c0_12, %c0_13] : memref<1x128xf32, #tpu.memory_space<vmem>>, vector<1x128xf32>
      %14 = vector.broadcast %13 : vector<1x128xf32> to vector<32x128xf32>
      %15 = arith.addf %12, %14 : vector<32x128xf32>
      %16 = arith.truncf %15 : vector<32x128xf32> to vector<32x128xbf16>
      %c0_14 = arith.constant 0 : index
      %c0_15 = arith.constant 0 : index
      %17 = vector.load %arg6[%c0_14, %c0_15] : memref<32x128xbf16, #tpu.memory_space<vmem>>, vector<32x128xbf16>
      tpu.vector_store %arg6[%c0_14, %c0_15], %16 {strides = array<i32>} : memref<32x128xbf16, #tpu.memory_space<vmem>>, vector<32x128xbf16>,
    } else {
    }
    return
  }
  func.func @transform_0(%arg0: i32, %arg1: i32, %arg2: i32) -> (i32, i32) {
    %c0_i32 = arith.constant 0 : i32
    return %arg0, %arg2 : i32, i32
  }
  func.func @transform_1(%arg0: i32, %arg1: i32, %arg2: i32) -> (i32, i32) {
    %c0_i32 = arith.constant 0 : i32
    return %arg2, %arg1 : i32, i32
  }
  func.func @transform_2(%arg0: i32, %arg1: i32, %arg2: i32) -> (i32, i32) {
    %c0_i32 = arith.constant 0 : i32
    %c0_i32_0 = arith.constant 0 : i32
    return %c0_i32, %arg1 : i32, i32
  }
  func.func @transform_3(%arg0: i32, %arg1: i32, %arg2: i32) -> (i32, i32) {
    %c0_i32 = arith.constant 0 : i32
    return %arg0, %arg1 : i32, i32
  }
}

module attributes {stable_mosaic.version = 11 : i64} {
  func.func @_flash_attn_kernel(%arg0: i32, %arg1: i32, %arg2: i32, %arg3: memref<1x16x128xbf16, #tpu.memory_space<vmem>>, %arg4: memref<1x16x256xbf16, #tpu.memory_space<vmem>>, %arg5: memref<1x16x128xbf16, #tpu.memory_space<vmem>>, %arg6: memref<4x16x1xf32, #tpu.memory_space<vmem>>, %arg7: memref<4x16x1xf32, #tpu.memory_space<vmem>>, %arg8: memref<16x128xf32, #tpu.memory_space<vmem>>) attributes {dimension_semantics = [#tpu.dimension_semantics<parallel>, #tpu.dimension_semantics<parallel>, #tpu.dimension_semantics<arbitrary>], iteration_bounds = array<i64: 2, 1, 1>, scalar_prefetch = 0 : i64, scratch_operands = 3 : i64, tpu.core_type = #tpu.core_type<tc>, window_params = [{transform_indices = @transform_0, window_bounds = array<i64: 1, 16, 128>}, {transform_indices = @transform_1, window_bounds = array<i64: 1, 16, 256>}, {transform_indices = @transform_2, window_bounds = array<i64: 1, 16, 128>}]} {
    %c0_i32 = arith.constant 0 : i32
    %0 = arith.cmpi eq, %arg2, %c0_i32 : i32
    %1 = arith.extui %0 : i1 to i32
    %c0_i32_0 = arith.constant 0 : i32
    %2 = arith.cmpi ne, %1, %c0_i32_0 : i32
    scf.if %2 {
      %cst_85 = arith.constant 0xFF800000 : f32
      %150 = vector.broadcast %cst_85 : f32 to vector<4x16x1xf32>
      %c0_86 = arith.constant 0 : index
      %c0_87 = arith.constant 0 : index
      %c0_88 = arith.constant 0 : index
      %151 = vector.load %arg6[%c0_86, %c0_87, %c0_88] : memref<4x16x1xf32, #tpu.memory_space<vmem>>, vector<4x16x1xf32>
      tpu.vector_store %arg6[%c0_86, %c0_87, %c0_88], %150 {strides = array<i32>} : memref<4x16x1xf32, #tpu.memory_space<vmem>>, vector<4x16x1xf32>,
      %cst_89 = arith.constant 0.000000e+00 : f32
      %152 = vector.broadcast %cst_89 : f32 to vector<4x16x1xf32>
      %c0_90 = arith.constant 0 : index
      %c0_91 = arith.constant 0 : index
      %c0_92 = arith.constant 0 : index
      %153 = vector.load %arg7[%c0_90, %c0_91, %c0_92] : memref<4x16x1xf32, #tpu.memory_space<vmem>>, vector<4x16x1xf32>
      tpu.vector_store %arg7[%c0_90, %c0_91, %c0_92], %152 {strides = array<i32>} : memref<4x16x1xf32, #tpu.memory_space<vmem>>, vector<4x16x1xf32>,
      %cst_93 = arith.constant 0.000000e+00 : f32
      %154 = vector.broadcast %cst_93 : f32 to vector<16x128xf32>
      %c0_94 = arith.constant 0 : index
      %c0_95 = arith.constant 0 : index
      %155 = vector.load %arg8[%c0_94, %c0_95] : memref<16x128xf32, #tpu.memory_space<vmem>>, vector<16x128xf32>
      tpu.vector_store %arg8[%c0_94, %c0_95], %154 {strides = array<i32>} : memref<16x128xf32, #tpu.memory_space<vmem>>, vector<16x128xf32>,
    } else {
    }
    %c0 = arith.constant 0 : index
    %c0_1 = arith.constant 0 : index
    %c0_2 = arith.constant 0 : index
    %3 = vector.load %arg3[%c0, %c0_1, %c0_2] : memref<1x16x128xbf16, #tpu.memory_space<vmem>>, vector<1x16x128xbf16>
    %4 = vector.shape_cast %3 : vector<1x16x128xbf16> to vector<16x128xbf16>
    %c0_3 = arith.constant 0 : index
    %c0_4 = arith.constant 0 : index
    %c0_5 = arith.constant 0 : index
    %5 = vector.load %arg4[%c0_3, %c0_4, %c0_5] : memref<1x16x256xbf16, #tpu.memory_space<vmem>>, vector<1x16x256xbf16>
    %6 = vector.shape_cast %5 : vector<1x16x256xbf16> to vector<16x256xbf16>
    %7 = vector.extract_strided_slice %4 {offsets = [0, 0], sizes = [16, 32], strides = [1, 1]} : vector<16x128xbf16> to vector<16x32xbf16>
    %8 = vector.extract_strided_slice %6 {offsets = [0, 0], sizes = [16, 32], strides = [1, 1]} : vector<16x256xbf16> to vector<16x32xbf16>
    %9 = vector.extract_strided_slice %6 {offsets = [0, 128], sizes = [16, 32], strides = [1, 1]} : vector<16x256xbf16> to vector<16x32xbf16>
    %cst = arith.constant dense<0.000000e+00> : vector<16x16xf32>
    %10 = tpu.matmul %7, %8, %cst {dimension_numbers = #tpu.dot_dimension_numbers<[1], [1], [0], [0], [0, 0, 1, 0], [], []>} : vector<16x32xbf16>, vector<16x32xbf16>, vector<16x16xf32> -> vector<16x16xf32>
    %cst_6 = arith.constant 0.176776692 : f32
    %11 = vector.broadcast %cst_6 : f32 to vector<16x16xf32>
    %12 = arith.mulf %10, %11 : vector<16x16xf32>
    %c0_7 = arith.constant 0 : index
    %c0_8 = arith.constant 0 : index
    %c0_9 = arith.constant 0 : index
    %13 = vector.load %arg6[%c0_7, %c0_8, %c0_9] : memref<4x16x1xf32, #tpu.memory_space<vmem>>, vector<1x16x1xf32>
    %14 = vector.shape_cast %13 : vector<1x16x1xf32> to vector<16x1xf32>
    %cst_10 = arith.constant dense<0xFF800000> : vector<16xf32>
    %15 = vector.multi_reduction <maximumf>, %12, %cst_10 [1] : vector<16x16xf32> to vector<16xf32>
    %16 = vector.shape_cast %15 : vector<16xf32> to vector<16x1xf32>
    %17 = arith.maximumf %14, %16 : vector<16x1xf32>
    %18 = arith.subf %14, %17 : vector<16x1xf32>
    %19 = math.exp %18 : vector<16x1xf32>
    %20 = vector.broadcast %17 : vector<16x1xf32> to vector<16x16xf32>
    %21 = arith.subf %12, %20 : vector<16x16xf32>
    %22 = math.exp %21 : vector<16x16xf32>
    %c0_11 = arith.constant 0 : index
    %c0_12 = arith.constant 0 : index
    %c0_13 = arith.constant 0 : index
    %23 = vector.load %arg7[%c0_11, %c0_12, %c0_13] : memref<4x16x1xf32, #tpu.memory_space<vmem>>, vector<1x16x1xf32>
    %24 = vector.shape_cast %23 : vector<1x16x1xf32> to vector<16x1xf32>
    %25 = arith.mulf %19, %24 : vector<16x1xf32>
    %cst_14 = arith.constant dense<0.000000e+00> : vector<16xf32>
    %26 = vector.multi_reduction <add>, %22, %cst_14 [1] : vector<16x16xf32> to vector<16xf32>
    %27 = vector.shape_cast %26 : vector<16xf32> to vector<16x1xf32>
    %28 = arith.addf %25, %27 : vector<16x1xf32>
    %c0_15 = arith.constant 0 : index
    %c0_16 = arith.constant 0 : index
    %c0_17 = arith.constant 0 : index
    %29 = vector.load %arg7[%c0_15, %c0_16, %c0_17] : memref<4x16x1xf32, #tpu.memory_space<vmem>>, vector<1x16x1xf32>
    %30 = vector.shape_cast %29 : vector<1x16x1xf32> to vector<16x1xf32>
    %31 = vector.shape_cast %28 : vector<16x1xf32> to vector<1x16x1xf32>
    tpu.vector_store %arg7[%c0_15, %c0_16, %c0_17], %31 {strides = array<i32>} : memref<4x16x1xf32, #tpu.memory_space<vmem>>, vector<1x16x1xf32>,
    %c0_18 = arith.constant 0 : index
    %c0_19 = arith.constant 0 : index
    %32 = vector.load %arg8[%c0_18, %c0_19] : memref<16x128xf32, #tpu.memory_space<vmem>>, vector<16x32xf32>
    %33 = vector.broadcast %19 : vector<16x1xf32> to vector<16x32xf32>
    %34 = arith.mulf %33, %32 : vector<16x32xf32>
    %35 = arith.truncf %22 : vector<16x16xf32> to vector<16x16xbf16>
    %cst_20 = arith.constant dense<0.000000e+00> : vector<16x32xf32>
    %36 = tpu.matmul %35, %9, %cst_20 {dimension_numbers = #tpu.dot_dimension_numbers<[1], [0], [0], [1], [0, 0, 1, 1], [], []>} : vector<16x16xbf16>, vector<16x32xbf16>, vector<16x32xf32> -> vector<16x32xf32>
    %37 = arith.addf %34, %36 : vector<16x32xf32>
    %c0_21 = arith.constant 0 : index
    %c0_22 = arith.constant 0 : index
    %38 = vector.load %arg8[%c0_21, %c0_22] : memref<16x128xf32, #tpu.memory_space<vmem>>, vector<16x32xf32>
    tpu.vector_store %arg8[%c0_21, %c0_22], %37 {strides = array<i32>} : memref<16x128xf32, #tpu.memory_space<vmem>>, vector<16x32xf32>,
    %c0_23 = arith.constant 0 : index
    %c0_24 = arith.constant 0 : index
    %c0_25 = arith.constant 0 : index
    %39 = vector.load %arg6[%c0_23, %c0_24, %c0_25] : memref<4x16x1xf32, #tpu.memory_space<vmem>>, vector<1x16x1xf32>
    %40 = vector.shape_cast %39 : vector<1x16x1xf32> to vector<16x1xf32>
    %41 = vector.shape_cast %17 : vector<16x1xf32> to vector<1x16x1xf32>
    tpu.vector_store %arg6[%c0_23, %c0_24, %c0_25], %41 {strides = array<i32>} : memref<4x16x1xf32, #tpu.memory_space<vmem>>, vector<1x16x1xf32>,
    %42 = vector.extract_strided_slice %4 {offsets = [0, 32], sizes = [16, 32], strides = [1, 1]} : vector<16x128xbf16> to vector<16x32xbf16>
    %43 = vector.extract_strided_slice %6 {offsets = [0, 32], sizes = [16, 32], strides = [1, 1]} : vector<16x256xbf16> to vector<16x32xbf16>
    %44 = vector.extract_strided_slice %6 {offsets = [0, 160], sizes = [16, 32], strides = [1, 1]} : vector<16x256xbf16> to vector<16x32xbf16>
    %cst_26 = arith.constant dense<0.000000e+00> : vector<16x16xf32>
    %45 = tpu.matmul %42, %43, %cst_26 {dimension_numbers = #tpu.dot_dimension_numbers<[1], [1], [0], [0], [0, 0, 1, 0], [], []>} : vector<16x32xbf16>, vector<16x32xbf16>, vector<16x16xf32> -> vector<16x16xf32>
    %cst_27 = arith.constant 0.176776692 : f32
    %46 = vector.broadcast %cst_27 : f32 to vector<16x16xf32>
    %47 = arith.mulf %45, %46 : vector<16x16xf32>
    %c1 = arith.constant 1 : index
    %c0_28 = arith.constant 0 : index
    %c0_29 = arith.constant 0 : index
    %48 = vector.load %arg6[%c1, %c0_28, %c0_29] : memref<4x16x1xf32, #tpu.memory_space<vmem>>, vector<1x16x1xf32>
    %49 = vector.shape_cast %48 : vector<1x16x1xf32> to vector<16x1xf32>
    %cst_30 = arith.constant dense<0xFF800000> : vector<16xf32>
    %50 = vector.multi_reduction <maximumf>, %47, %cst_30 [1] : vector<16x16xf32> to vector<16xf32>
    %51 = vector.shape_cast %50 : vector<16xf32> to vector<16x1xf32>
    %52 = arith.maximumf %49, %51 : vector<16x1xf32>
    %53 = arith.subf %49, %52 : vector<16x1xf32>
    %54 = math.exp %53 : vector<16x1xf32>
    %55 = vector.broadcast %52 : vector<16x1xf32> to vector<16x16xf32>
    %56 = arith.subf %47, %55 : vector<16x16xf32>
    %57 = math.exp %56 : vector<16x16xf32>
    %c1_31 = arith.constant 1 : index
    %c0_32 = arith.constant 0 : index
    %c0_33 = arith.constant 0 : index
    %58 = vector.load %arg7[%c1_31, %c0_32, %c0_33] : memref<4x16x1xf32, #tpu.memory_space<vmem>>, vector<1x16x1xf32>
    %59 = vector.shape_cast %58 : vector<1x16x1xf32> to vector<16x1xf32>
    %60 = arith.mulf %54, %59 : vector<16x1xf32>
    %cst_34 = arith.constant dense<0.000000e+00> : vector<16xf32>
    %61 = vector.multi_reduction <add>, %57, %cst_34 [1] : vector<16x16xf32> to vector<16xf32>
    %62 = vector.shape_cast %61 : vector<16xf32> to vector<16x1xf32>
    %63 = arith.addf %60, %62 : vector<16x1xf32>
    %c1_35 = arith.constant 1 : index
    %c0_36 = arith.constant 0 : index
    %c0_37 = arith.constant 0 : index
    %64 = vector.load %arg7[%c1_35, %c0_36, %c0_37] : memref<4x16x1xf32, #tpu.memory_space<vmem>>, vector<1x16x1xf32>
    %65 = vector.shape_cast %64 : vector<1x16x1xf32> to vector<16x1xf32>
    %66 = vector.shape_cast %63 : vector<16x1xf32> to vector<1x16x1xf32>
    tpu.vector_store %arg7[%c1_35, %c0_36, %c0_37], %66 {strides = array<i32>} : memref<4x16x1xf32, #tpu.memory_space<vmem>>, vector<1x16x1xf32>,
    %c0_38 = arith.constant 0 : index
    %c32 = arith.constant 32 : index
    %67 = vector.load %arg8[%c0_38, %c32] : memref<16x128xf32, #tpu.memory_space<vmem>>, vector<16x32xf32>
    %68 = vector.broadcast %54 : vector<16x1xf32> to vector<16x32xf32>
    %69 = arith.mulf %68, %67 : vector<16x32xf32>
    %70 = arith.truncf %57 : vector<16x16xf32> to vector<16x16xbf16>
    %cst_39 = arith.constant dense<0.000000e+00> : vector<16x32xf32>
    %71 = tpu.matmul %70, %44, %cst_39 {dimension_numbers = #tpu.dot_dimension_numbers<[1], [0], [0], [1], [0, 0, 1, 1], [], []>} : vector<16x16xbf16>, vector<16x32xbf16>, vector<16x32xf32> -> vector<16x32xf32>
    %72 = arith.addf %69, %71 : vector<16x32xf32>
    %c0_40 = arith.constant 0 : index
    %c32_41 = arith.constant 32 : index
    %73 = vector.load %arg8[%c0_40, %c32_41] : memref<16x128xf32, #tpu.memory_space<vmem>>, vector<16x32xf32>
    tpu.vector_store %arg8[%c0_40, %c32_41], %72 {strides = array<i32>} : memref<16x128xf32, #tpu.memory_space<vmem>>, vector<16x32xf32>,
    %c1_42 = arith.constant 1 : index
    %c0_43 = arith.constant 0 : index
    %c0_44 = arith.constant 0 : index
    %74 = vector.load %arg6[%c1_42, %c0_43, %c0_44] : memref<4x16x1xf32, #tpu.memory_space<vmem>>, vector<1x16x1xf32>
    %75 = vector.shape_cast %74 : vector<1x16x1xf32> to vector<16x1xf32>
    %76 = vector.shape_cast %52 : vector<16x1xf32> to vector<1x16x1xf32>
    tpu.vector_store %arg6[%c1_42, %c0_43, %c0_44], %76 {strides = array<i32>} : memref<4x16x1xf32, #tpu.memory_space<vmem>>, vector<1x16x1xf32>,
    %77 = vector.extract_strided_slice %4 {offsets = [0, 64], sizes = [16, 32], strides = [1, 1]} : vector<16x128xbf16> to vector<16x32xbf16>
    %78 = vector.extract_strided_slice %6 {offsets = [0, 64], sizes = [16, 32], strides = [1, 1]} : vector<16x256xbf16> to vector<16x32xbf16>
    %79 = vector.extract_strided_slice %6 {offsets = [0, 192], sizes = [16, 32], strides = [1, 1]} : vector<16x256xbf16> to vector<16x32xbf16>
    %cst_45 = arith.constant dense<0.000000e+00> : vector<16x16xf32>
    %80 = tpu.matmul %77, %78, %cst_45 {dimension_numbers = #tpu.dot_dimension_numbers<[1], [1], [0], [0], [0, 0, 1, 0], [], []>} : vector<16x32xbf16>, vector<16x32xbf16>, vector<16x16xf32> -> vector<16x16xf32>
    %cst_46 = arith.constant 0.176776692 : f32
    %81 = vector.broadcast %cst_46 : f32 to vector<16x16xf32>
    %82 = arith.mulf %80, %81 : vector<16x16xf32>
    %c2 = arith.constant 2 : index
    %c0_47 = arith.constant 0 : index
    %c0_48 = arith.constant 0 : index
    %83 = vector.load %arg6[%c2, %c0_47, %c0_48] : memref<4x16x1xf32, #tpu.memory_space<vmem>>, vector<1x16x1xf32>
    %84 = vector.shape_cast %83 : vector<1x16x1xf32> to vector<16x1xf32>
    %cst_49 = arith.constant dense<0xFF800000> : vector<16xf32>
    %85 = vector.multi_reduction <maximumf>, %82, %cst_49 [1] : vector<16x16xf32> to vector<16xf32>
    %86 = vector.shape_cast %85 : vector<16xf32> to vector<16x1xf32>
    %87 = arith.maximumf %84, %86 : vector<16x1xf32>
    %88 = arith.subf %84, %87 : vector<16x1xf32>
    %89 = math.exp %88 : vector<16x1xf32>
    %90 = vector.broadcast %87 : vector<16x1xf32> to vector<16x16xf32>
    %91 = arith.subf %82, %90 : vector<16x16xf32>
    %92 = math.exp %91 : vector<16x16xf32>
    %c2_50 = arith.constant 2 : index
    %c0_51 = arith.constant 0 : index
    %c0_52 = arith.constant 0 : index
    %93 = vector.load %arg7[%c2_50, %c0_51, %c0_52] : memref<4x16x1xf32, #tpu.memory_space<vmem>>, vector<1x16x1xf32>
    %94 = vector.shape_cast %93 : vector<1x16x1xf32> to vector<16x1xf32>
    %95 = arith.mulf %89, %94 : vector<16x1xf32>
    %cst_53 = arith.constant dense<0.000000e+00> : vector<16xf32>
    %96 = vector.multi_reduction <add>, %92, %cst_53 [1] : vector<16x16xf32> to vector<16xf32>
    %97 = vector.shape_cast %96 : vector<16xf32> to vector<16x1xf32>
    %98 = arith.addf %95, %97 : vector<16x1xf32>
    %c2_54 = arith.constant 2 : index
    %c0_55 = arith.constant 0 : index
    %c0_56 = arith.constant 0 : index
    %99 = vector.load %arg7[%c2_54, %c0_55, %c0_56] : memref<4x16x1xf32, #tpu.memory_space<vmem>>, vector<1x16x1xf32>
    %100 = vector.shape_cast %99 : vector<1x16x1xf32> to vector<16x1xf32>
    %101 = vector.shape_cast %98 : vector<16x1xf32> to vector<1x16x1xf32>
    tpu.vector_store %arg7[%c2_54, %c0_55, %c0_56], %101 {strides = array<i32>} : memref<4x16x1xf32, #tpu.memory_space<vmem>>, vector<1x16x1xf32>,
    %c0_57 = arith.constant 0 : index
    %c64 = arith.constant 64 : index
    %102 = vector.load %arg8[%c0_57, %c64] : memref<16x128xf32, #tpu.memory_space<vmem>>, vector<16x32xf32>
    %103 = vector.broadcast %89 : vector<16x1xf32> to vector<16x32xf32>
    %104 = arith.mulf %103, %102 : vector<16x32xf32>
    %105 = arith.truncf %92 : vector<16x16xf32> to vector<16x16xbf16>
    %cst_58 = arith.constant dense<0.000000e+00> : vector<16x32xf32>
    %106 = tpu.matmul %105, %79, %cst_58 {dimension_numbers = #tpu.dot_dimension_numbers<[1], [0], [0], [1], [0, 0, 1, 1], [], []>} : vector<16x16xbf16>, vector<16x32xbf16>, vector<16x32xf32> -> vector<16x32xf32>
    %107 = arith.addf %104, %106 : vector<16x32xf32>
    %c0_59 = arith.constant 0 : index
    %c64_60 = arith.constant 64 : index
    %108 = vector.load %arg8[%c0_59, %c64_60] : memref<16x128xf32, #tpu.memory_space<vmem>>, vector<16x32xf32>
    tpu.vector_store %arg8[%c0_59, %c64_60], %107 {strides = array<i32>} : memref<16x128xf32, #tpu.memory_space<vmem>>, vector<16x32xf32>,
    %c2_61 = arith.constant 2 : index
    %c0_62 = arith.constant 0 : index
    %c0_63 = arith.constant 0 : index
    %109 = vector.load %arg6[%c2_61, %c0_62, %c0_63] : memref<4x16x1xf32, #tpu.memory_space<vmem>>, vector<1x16x1xf32>
    %110 = vector.shape_cast %109 : vector<1x16x1xf32> to vector<16x1xf32>
    %111 = vector.shape_cast %87 : vector<16x1xf32> to vector<1x16x1xf32>
    tpu.vector_store %arg6[%c2_61, %c0_62, %c0_63], %111 {strides = array<i32>} : memref<4x16x1xf32, #tpu.memory_space<vmem>>, vector<1x16x1xf32>,
    %112 = vector.extract_strided_slice %4 {offsets = [0, 96], sizes = [16, 32], strides = [1, 1]} : vector<16x128xbf16> to vector<16x32xbf16>
    %113 = vector.extract_strided_slice %6 {offsets = [0, 96], sizes = [16, 32], strides = [1, 1]} : vector<16x256xbf16> to vector<16x32xbf16>
    %114 = vector.extract_strided_slice %6 {offsets = [0, 224], sizes = [16, 32], strides = [1, 1]} : vector<16x256xbf16> to vector<16x32xbf16>
    %cst_64 = arith.constant dense<0.000000e+00> : vector<16x16xf32>
    %115 = tpu.matmul %112, %113, %cst_64 {dimension_numbers = #tpu.dot_dimension_numbers<[1], [1], [0], [0], [0, 0, 1, 0], [], []>} : vector<16x32xbf16>, vector<16x32xbf16>, vector<16x16xf32> -> vector<16x16xf32>
    %cst_65 = arith.constant 0.176776692 : f32
    %116 = vector.broadcast %cst_65 : f32 to vector<16x16xf32>
    %117 = arith.mulf %115, %116 : vector<16x16xf32>
    %c3 = arith.constant 3 : index
    %c0_66 = arith.constant 0 : index
    %c0_67 = arith.constant 0 : index
    %118 = vector.load %arg6[%c3, %c0_66, %c0_67] : memref<4x16x1xf32, #tpu.memory_space<vmem>>, vector<1x16x1xf32>
    %119 = vector.shape_cast %118 : vector<1x16x1xf32> to vector<16x1xf32>
    %cst_68 = arith.constant dense<0xFF800000> : vector<16xf32>
    %120 = vector.multi_reduction <maximumf>, %117, %cst_68 [1] : vector<16x16xf32> to vector<16xf32>
    %121 = vector.shape_cast %120 : vector<16xf32> to vector<16x1xf32>
    %122 = arith.maximumf %119, %121 : vector<16x1xf32>
    %123 = arith.subf %119, %122 : vector<16x1xf32>
    %124 = math.exp %123 : vector<16x1xf32>
    %125 = vector.broadcast %122 : vector<16x1xf32> to vector<16x16xf32>
    %126 = arith.subf %117, %125 : vector<16x16xf32>
    %127 = math.exp %126 : vector<16x16xf32>
    %c3_69 = arith.constant 3 : index
    %c0_70 = arith.constant 0 : index
    %c0_71 = arith.constant 0 : index
    %128 = vector.load %arg7[%c3_69, %c0_70, %c0_71] : memref<4x16x1xf32, #tpu.memory_space<vmem>>, vector<1x16x1xf32>
    %129 = vector.shape_cast %128 : vector<1x16x1xf32> to vector<16x1xf32>
    %130 = arith.mulf %124, %129 : vector<16x1xf32>
    %cst_72 = arith.constant dense<0.000000e+00> : vector<16xf32>
    %131 = vector.multi_reduction <add>, %127, %cst_72 [1] : vector<16x16xf32> to vector<16xf32>
    %132 = vector.shape_cast %131 : vector<16xf32> to vector<16x1xf32>
    %133 = arith.addf %130, %132 : vector<16x1xf32>
    %c3_73 = arith.constant 3 : index
    %c0_74 = arith.constant 0 : index
    %c0_75 = arith.constant 0 : index
    %134 = vector.load %arg7[%c3_73, %c0_74, %c0_75] : memref<4x16x1xf32, #tpu.memory_space<vmem>>, vector<1x16x1xf32>
    %135 = vector.shape_cast %134 : vector<1x16x1xf32> to vector<16x1xf32>
    %136 = vector.shape_cast %133 : vector<16x1xf32> to vector<1x16x1xf32>
    tpu.vector_store %arg7[%c3_73, %c0_74, %c0_75], %136 {strides = array<i32>} : memref<4x16x1xf32, #tpu.memory_space<vmem>>, vector<1x16x1xf32>,
    %c0_76 = arith.constant 0 : index
    %c96 = arith.constant 96 : index
    %137 = vector.load %arg8[%c0_76, %c96] : memref<16x128xf32, #tpu.memory_space<vmem>>, vector<16x32xf32>
    %138 = vector.broadcast %124 : vector<16x1xf32> to vector<16x32xf32>
    %139 = arith.mulf %138, %137 : vector<16x32xf32>
    %140 = arith.truncf %127 : vector<16x16xf32> to vector<16x16xbf16>
    %cst_77 = arith.constant dense<0.000000e+00> : vector<16x32xf32>
    %141 = tpu.matmul %140, %114, %cst_77 {dimension_numbers = #tpu.dot_dimension_numbers<[1], [0], [0], [1], [0, 0, 1, 1], [], []>} : vector<16x16xbf16>, vector<16x32xbf16>, vector<16x32xf32> -> vector<16x32xf32>
    %142 = arith.addf %139, %141 : vector<16x32xf32>
    %c0_78 = arith.constant 0 : index
    %c96_79 = arith.constant 96 : index
    %143 = vector.load %arg8[%c0_78, %c96_79] : memref<16x128xf32, #tpu.memory_space<vmem>>, vector<16x32xf32>
    tpu.vector_store %arg8[%c0_78, %c96_79], %142 {strides = array<i32>} : memref<16x128xf32, #tpu.memory_space<vmem>>, vector<16x32xf32>,
    %c3_80 = arith.constant 3 : index
    %c0_81 = arith.constant 0 : index
    %c0_82 = arith.constant 0 : index
    %144 = vector.load %arg6[%c3_80, %c0_81, %c0_82] : memref<4x16x1xf32, #tpu.memory_space<vmem>>, vector<1x16x1xf32>
    %145 = vector.shape_cast %144 : vector<1x16x1xf32> to vector<16x1xf32>
    %146 = vector.shape_cast %122 : vector<16x1xf32> to vector<1x16x1xf32>
    tpu.vector_store %arg6[%c3_80, %c0_81, %c0_82], %146 {strides = array<i32>} : memref<4x16x1xf32, #tpu.memory_space<vmem>>, vector<1x16x1xf32>,
    %c0_i32_83 = arith.constant 0 : i32
    %147 = arith.cmpi eq, %arg2, %c0_i32_83 : i32
    %148 = arith.extui %147 : i1 to i32
    %c0_i32_84 = arith.constant 0 : i32
    %149 = arith.cmpi ne, %148, %c0_i32_84 : i32
    scf.if %149 {
      %c0_85 = arith.constant 0 : index
      %c0_86 = arith.constant 0 : index
      %c0_87 = arith.constant 0 : index
      %150 = vector.load %arg7[%c0_85, %c0_86, %c0_87] : memref<4x16x1xf32, #tpu.memory_space<vmem>>, vector<1x16x1xf32>
      %151 = vector.shape_cast %150 : vector<1x16x1xf32> to vector<16x1xf32>
      %152 = tpu.reciprocal %151 : vector<16x1xf32> -> vector<16x1xf32>
      %c0_88 = arith.constant 0 : index
      %c0_89 = arith.constant 0 : index
      %153 = vector.load %arg8[%c0_88, %c0_89] : memref<16x128xf32, #tpu.memory_space<vmem>>, vector<16x32xf32>
      %154 = vector.broadcast %152 : vector<16x1xf32> to vector<16x32xf32>
      %155 = arith.mulf %153, %154 : vector<16x32xf32>
      %156 = arith.truncf %155 : vector<16x32xf32> to vector<16x32xbf16>
      %c0_90 = arith.constant 0 : index
      %c0_91 = arith.constant 0 : index
      %c0_92 = arith.constant 0 : index
      %157 = vector.load %arg5[%c0_90, %c0_91, %c0_92] : memref<1x16x128xbf16, #tpu.memory_space<vmem>>, vector<1x16x32xbf16>
      %158 = vector.shape_cast %157 : vector<1x16x32xbf16> to vector<16x32xbf16>
      %159 = vector.shape_cast %156 : vector<16x32xbf16> to vector<1x16x32xbf16>
      tpu.vector_store %arg5[%c0_90, %c0_91, %c0_92], %159 {strides = array<i32>} : memref<1x16x128xbf16, #tpu.memory_space<vmem>>, vector<1x16x32xbf16>,
      %c1_93 = arith.constant 1 : index
      %c0_94 = arith.constant 0 : index
      %c0_95 = arith.constant 0 : index
      %160 = vector.load %arg7[%c1_93, %c0_94, %c0_95] : memref<4x16x1xf32, #tpu.memory_space<vmem>>, vector<1x16x1xf32>
      %161 = vector.shape_cast %160 : vector<1x16x1xf32> to vector<16x1xf32>
      %162 = tpu.reciprocal %161 : vector<16x1xf32> -> vector<16x1xf32>
      %c0_96 = arith.constant 0 : index
      %c32_97 = arith.constant 32 : index
      %163 = vector.load %arg8[%c0_96, %c32_97] : memref<16x128xf32, #tpu.memory_space<vmem>>, vector<16x32xf32>
      %164 = vector.broadcast %162 : vector<16x1xf32> to vector<16x32xf32>
      %165 = arith.mulf %163, %164 : vector<16x32xf32>
      %166 = arith.truncf %165 : vector<16x32xf32> to vector<16x32xbf16>
      %c0_98 = arith.constant 0 : index
      %c0_99 = arith.constant 0 : index
      %c32_100 = arith.constant 32 : index
      %167 = vector.load %arg5[%c0_98, %c0_99, %c32_100] : memref<1x16x128xbf16, #tpu.memory_space<vmem>>, vector<1x16x32xbf16>
      %168 = vector.shape_cast %167 : vector<1x16x32xbf16> to vector<16x32xbf16>
      %169 = vector.shape_cast %166 : vector<16x32xbf16> to vector<1x16x32xbf16>
      tpu.vector_store %arg5[%c0_98, %c0_99, %c32_100], %169 {strides = array<i32>} : memref<1x16x128xbf16, #tpu.memory_space<vmem>>, vector<1x16x32xbf16>,
      %c2_101 = arith.constant 2 : index
      %c0_102 = arith.constant 0 : index
      %c0_103 = arith.constant 0 : index
      %170 = vector.load %arg7[%c2_101, %c0_102, %c0_103] : memref<4x16x1xf32, #tpu.memory_space<vmem>>, vector<1x16x1xf32>
      %171 = vector.shape_cast %170 : vector<1x16x1xf32> to vector<16x1xf32>
      %172 = tpu.reciprocal %171 : vector<16x1xf32> -> vector<16x1xf32>
      %c0_104 = arith.constant 0 : index
      %c64_105 = arith.constant 64 : index
      %173 = vector.load %arg8[%c0_104, %c64_105] : memref<16x128xf32, #tpu.memory_space<vmem>>, vector<16x32xf32>
      %174 = vector.broadcast %172 : vector<16x1xf32> to vector<16x32xf32>
      %175 = arith.mulf %173, %174 : vector<16x32xf32>
      %176 = arith.truncf %175 : vector<16x32xf32> to vector<16x32xbf16>
      %c0_106 = arith.constant 0 : index
      %c0_107 = arith.constant 0 : index
      %c64_108 = arith.constant 64 : index
      %177 = vector.load %arg5[%c0_106, %c0_107, %c64_108] : memref<1x16x128xbf16, #tpu.memory_space<vmem>>, vector<1x16x32xbf16>
      %178 = vector.shape_cast %177 : vector<1x16x32xbf16> to vector<16x32xbf16>
      %179 = vector.shape_cast %176 : vector<16x32xbf16> to vector<1x16x32xbf16>
      tpu.vector_store %arg5[%c0_106, %c0_107, %c64_108], %179 {strides = array<i32>} : memref<1x16x128xbf16, #tpu.memory_space<vmem>>, vector<1x16x32xbf16>,
      %c3_109 = arith.constant 3 : index
      %c0_110 = arith.constant 0 : index
      %c0_111 = arith.constant 0 : index
      %180 = vector.load %arg7[%c3_109, %c0_110, %c0_111] : memref<4x16x1xf32, #tpu.memory_space<vmem>>, vector<1x16x1xf32>
      %181 = vector.shape_cast %180 : vector<1x16x1xf32> to vector<16x1xf32>
      %182 = tpu.reciprocal %181 : vector<16x1xf32> -> vector<16x1xf32>
      %c0_112 = arith.constant 0 : index
      %c96_113 = arith.constant 96 : index
      %183 = vector.load %arg8[%c0_112, %c96_113] : memref<16x128xf32, #tpu.memory_space<vmem>>, vector<16x32xf32>
      %184 = vector.broadcast %182 : vector<16x1xf32> to vector<16x32xf32>
      %185 = arith.mulf %183, %184 : vector<16x32xf32>
      %186 = arith.truncf %185 : vector<16x32xf32> to vector<16x32xbf16>
      %c0_114 = arith.constant 0 : index
      %c0_115 = arith.constant 0 : index
      %c96_116 = arith.constant 96 : index
      %187 = vector.load %arg5[%c0_114, %c0_115, %c96_116] : memref<1x16x128xbf16, #tpu.memory_space<vmem>>, vector<1x16x32xbf16>
      %188 = vector.shape_cast %187 : vector<1x16x32xbf16> to vector<16x32xbf16>
      %189 = vector.shape_cast %186 : vector<16x32xbf16> to vector<1x16x32xbf16>
      tpu.vector_store %arg5[%c0_114, %c0_115, %c96_116], %189 {strides = array<i32>} : memref<1x16x128xbf16, #tpu.memory_space<vmem>>, vector<1x16x32xbf16>,
    } else {
    }
    return
  }
  func.func @transform_0(%arg0: i32, %arg1: i32, %arg2: i32) -> (i32, i32, i32) {
    %c2_i32 = arith.constant 2 : i32
    %c0_i32 = arith.constant 0 : i32
    return %arg0, %arg1, %c2_i32 : i32, i32, i32
  }
  func.func @transform_1(%arg0: i32, %arg1: i32, %arg2: i32) -> (i32, i32, i32) {
    %c0_i32 = arith.constant 0 : i32
    %c0_i32_0 = arith.constant 0 : i32
    return %arg0, %arg2, %c0_i32 : i32, i32, i32
  }
  func.func @transform_2(%arg0: i32, %arg1: i32, %arg2: i32) -> (i32, i32, i32) {
    %c0_i32 = arith.constant 0 : i32
    %c0_i32_0 = arith.constant 0 : i32
    return %arg0, %arg1, %c0_i32 : i32, i32, i32
  }
}

module attributes {stable_mosaic.version = 11 : i64} {
  func.func @_proj_res_ln_kernel(%arg0: i32, %arg1: memref<32x128xbf16, #tpu.memory_space<vmem>>, %arg2: memref<32x128xbf16, #tpu.memory_space<vmem>>, %arg3: memref<128x128xbf16, #tpu.memory_space<vmem>>, %arg4: memref<1x128xf32, #tpu.memory_space<vmem>>, %arg5: memref<1x128xf32, #tpu.memory_space<vmem>>, %arg6: memref<1x128xf32, #tpu.memory_space<vmem>>, %arg7: memref<32x128xbf16, #tpu.memory_space<vmem>>) attributes {dimension_semantics = [#tpu.dimension_semantics<parallel>], iteration_bounds = array<i64: 1>, scalar_prefetch = 0 : i64, scratch_operands = 0 : i64, tpu.core_type = #tpu.core_type<tc>, window_params = [{transform_indices = @transform_0, window_bounds = array<i64: 32, 128>}, {transform_indices = @transform_1, window_bounds = array<i64: 32, 128>}, {pipeline_mode = #tpu.pipeline_mode<synchronous>, transform_indices = @transform_2, window_bounds = array<i64: 128, 128>}, {pipeline_mode = #tpu.pipeline_mode<synchronous>, transform_indices = @transform_3, window_bounds = array<i64: 1, 128>}, {pipeline_mode = #tpu.pipeline_mode<synchronous>, transform_indices = @transform_4, window_bounds = array<i64: 1, 128>}, {pipeline_mode = #tpu.pipeline_mode<synchronous>, transform_indices = @transform_5, window_bounds = array<i64: 1, 128>}, {transform_indices = @transform_6, window_bounds = array<i64: 32, 128>}]} {
    %c0 = arith.constant 0 : index
    %c0_0 = arith.constant 0 : index
    %0 = vector.load %arg1[%c0, %c0_0] : memref<32x128xbf16, #tpu.memory_space<vmem>>, vector<32x128xbf16>
    %c0_1 = arith.constant 0 : index
    %c0_2 = arith.constant 0 : index
    %1 = vector.load %arg3[%c0_1, %c0_2] : memref<128x128xbf16, #tpu.memory_space<vmem>>, vector<128x128xbf16>
    %cst = arith.constant dense<0.000000e+00> : vector<32x128xf32>
    %2 = tpu.matmul %0, %1, %cst {dimension_numbers = #tpu.dot_dimension_numbers<[1], [0], [0], [1], [0, 0, 1, 1], [], []>} : vector<32x128xbf16>, vector<128x128xbf16>, vector<32x128xf32> -> vector<32x128xf32>
    %c0_3 = arith.constant 0 : index
    %c0_4 = arith.constant 0 : index
    %3 = vector.load %arg4[%c0_3, %c0_4] : memref<1x128xf32, #tpu.memory_space<vmem>>, vector<1x128xf32>
    %4 = vector.broadcast %3 : vector<1x128xf32> to vector<32x128xf32>
    %5 = arith.addf %2, %4 : vector<32x128xf32>
    %c0_5 = arith.constant 0 : index
    %c0_6 = arith.constant 0 : index
    %6 = vector.load %arg2[%c0_5, %c0_6] : memref<32x128xbf16, #tpu.memory_space<vmem>>, vector<32x128xbf16>
    %7 = arith.extf %6 : vector<32x128xbf16> to vector<32x128xf32>
    %8 = arith.addf %5, %7 : vector<32x128xf32>
    %cst_7 = arith.constant dense<0.000000e+00> : vector<32xf32>
    %9 = vector.multi_reduction <add>, %8, %cst_7 [1] : vector<32x128xf32> to vector<32xf32>
    %10 = vector.shape_cast %9 : vector<32xf32> to vector<32x1xf32>
    %cst_8 = arith.constant 1.280000e+02 : f32
    %11 = vector.broadcast %cst_8 : f32 to vector<32x1xf32>
    %12 = arith.divf %10, %11 : vector<32x1xf32>
    %13 = vector.broadcast %12 : vector<32x1xf32> to vector<32x128xf32>
    %14 = arith.subf %8, %13 : vector<32x128xf32>
    %15 = arith.mulf %14, %14 : vector<32x128xf32>
    %cst_9 = arith.constant dense<0.000000e+00> : vector<32xf32>
    %16 = vector.multi_reduction <add>, %15, %cst_9 [1] : vector<32x128xf32> to vector<32xf32>
    %17 = vector.shape_cast %16 : vector<32xf32> to vector<32x1xf32>
    %cst_10 = arith.constant 1.280000e+02 : f32
    %18 = vector.broadcast %cst_10 : f32 to vector<32x1xf32>
    %19 = arith.divf %17, %18 : vector<32x1xf32>
    %20 = vector.broadcast %12 : vector<32x1xf32> to vector<32x128xf32>
    %21 = arith.subf %8, %20 : vector<32x128xf32>
    %cst_11 = arith.constant 9.99999974E-6 : f32
    %22 = vector.broadcast %cst_11 : f32 to vector<32x1xf32>
    %23 = arith.addf %19, %22 : vector<32x1xf32>
    %24 = math.rsqrt %23 : vector<32x1xf32>
    %25 = vector.broadcast %24 : vector<32x1xf32> to vector<32x128xf32>
    %26 = arith.mulf %21, %25 : vector<32x128xf32>
    %c0_12 = arith.constant 0 : index
    %c0_13 = arith.constant 0 : index
    %27 = vector.load %arg5[%c0_12, %c0_13] : memref<1x128xf32, #tpu.memory_space<vmem>>, vector<1x128xf32>
    %28 = vector.broadcast %27 : vector<1x128xf32> to vector<32x128xf32>
    %29 = arith.mulf %26, %28 : vector<32x128xf32>
    %c0_14 = arith.constant 0 : index
    %c0_15 = arith.constant 0 : index
    %30 = vector.load %arg6[%c0_14, %c0_15] : memref<1x128xf32, #tpu.memory_space<vmem>>, vector<1x128xf32>
    %31 = vector.broadcast %30 : vector<1x128xf32> to vector<32x128xf32>
    %32 = arith.addf %29, %31 : vector<32x128xf32>
    %33 = arith.truncf %32 : vector<32x128xf32> to vector<32x128xbf16>
    %c0_16 = arith.constant 0 : index
    %c0_17 = arith.constant 0 : index
    %34 = vector.load %arg7[%c0_16, %c0_17] : memref<32x128xbf16, #tpu.memory_space<vmem>>, vector<32x128xbf16>
    tpu.vector_store %arg7[%c0_16, %c0_17], %33 {strides = array<i32>} : memref<32x128xbf16, #tpu.memory_space<vmem>>, vector<32x128xbf16>,
    return
  }
  func.func @transform_0(%arg0: i32) -> (i32, i32) {
    %c0_i32 = arith.constant 0 : i32
    %c0_i32_0 = arith.constant 0 : i32
    return %arg0, %c0_i32 : i32, i32
  }
  func.func @transform_1(%arg0: i32) -> (i32, i32) {
    %c0_i32 = arith.constant 0 : i32
    %c0_i32_0 = arith.constant 0 : i32
    return %arg0, %c0_i32 : i32, i32
  }
  func.func @transform_2(%arg0: i32) -> (i32, i32) {
    %c0_i32 = arith.constant 0 : i32
    %c0_i32_0 = arith.constant 0 : i32
    %c0_i32_1 = arith.constant 0 : i32
    return %c0_i32, %c0_i32_0 : i32, i32
  }
  func.func @transform_3(%arg0: i32) -> (i32, i32) {
    %c0_i32 = arith.constant 0 : i32
    %c0_i32_0 = arith.constant 0 : i32
    %c0_i32_1 = arith.constant 0 : i32
    return %c0_i32, %c0_i32_0 : i32, i32
  }
  func.func @transform_4(%arg0: i32) -> (i32, i32) {
    %c0_i32 = arith.constant 0 : i32
    %c0_i32_0 = arith.constant 0 : i32
    %c0_i32_1 = arith.constant 0 : i32
    return %c0_i32, %c0_i32_0 : i32, i32
  }
  func.func @transform_5(%arg0: i32) -> (i32, i32) {
    %c0_i32 = arith.constant 0 : i32
    %c0_i32_0 = arith.constant 0 : i32
    %c0_i32_1 = arith.constant 0 : i32
    return %c0_i32, %c0_i32_0 : i32, i32
  }
  func.func @transform_6(%arg0: i32) -> (i32, i32) {
    %c0_i32 = arith.constant 0 : i32
    %c0_i32_0 = arith.constant 0 : i32
    return %arg0, %c0_i32 : i32, i32
  }
}

module attributes {stable_mosaic.version = 11 : i64} {
  func.func @_ffn_ln_kernel(%arg0: i32, %arg1: memref<32x128xbf16, #tpu.memory_space<vmem>>, %arg2: memref<128x512xbf16, #tpu.memory_space<vmem>>, %arg3: memref<1x512xf32, #tpu.memory_space<vmem>>, %arg4: memref<512x128xbf16, #tpu.memory_space<vmem>>, %arg5: memref<1x128xf32, #tpu.memory_space<vmem>>, %arg6: memref<1x128xf32, #tpu.memory_space<vmem>>, %arg7: memref<1x128xf32, #tpu.memory_space<vmem>>, %arg8: memref<32x128xbf16, #tpu.memory_space<vmem>>) attributes {dimension_semantics = [#tpu.dimension_semantics<parallel>], iteration_bounds = array<i64: 1>, scalar_prefetch = 0 : i64, scratch_operands = 0 : i64, tpu.core_type = #tpu.core_type<tc>, window_params = [{transform_indices = @transform_0, window_bounds = array<i64: 32, 128>}, {pipeline_mode = #tpu.pipeline_mode<synchronous>, transform_indices = @transform_1, window_bounds = array<i64: 128, 512>}, {pipeline_mode = #tpu.pipeline_mode<synchronous>, transform_indices = @transform_2, window_bounds = array<i64: 1, 512>}, {pipeline_mode = #tpu.pipeline_mode<synchronous>, transform_indices = @transform_3, window_bounds = array<i64: 512, 128>}, {pipeline_mode = #tpu.pipeline_mode<synchronous>, transform_indices = @transform_4, window_bounds = array<i64: 1, 128>}, {pipeline_mode = #tpu.pipeline_mode<synchronous>, transform_indices = @transform_5, window_bounds = array<i64: 1, 128>}, {pipeline_mode = #tpu.pipeline_mode<synchronous>, transform_indices = @transform_6, window_bounds = array<i64: 1, 128>}, {transform_indices = @transform_7, window_bounds = array<i64: 32, 128>}]} {
    %c0 = arith.constant 0 : index
    %c0_0 = arith.constant 0 : index
    %0 = vector.load %arg1[%c0, %c0_0] : memref<32x128xbf16, #tpu.memory_space<vmem>>, vector<32x128xbf16>
    %c0_1 = arith.constant 0 : index
    %c0_2 = arith.constant 0 : index
    %1 = vector.load %arg2[%c0_1, %c0_2] : memref<128x512xbf16, #tpu.memory_space<vmem>>, vector<128x512xbf16>
    %cst = arith.constant dense<0.000000e+00> : vector<32x512xf32>
    %2 = tpu.matmul %0, %1, %cst {dimension_numbers = #tpu.dot_dimension_numbers<[1], [0], [0], [1], [0, 0, 1, 1], [], []>} : vector<32x128xbf16>, vector<128x512xbf16>, vector<32x512xf32> -> vector<32x512xf32>
    %c0_3 = arith.constant 0 : index
    %c0_4 = arith.constant 0 : index
    %3 = vector.load %arg3[%c0_3, %c0_4] : memref<1x512xf32, #tpu.memory_space<vmem>>, vector<1x512xf32>
    %4 = vector.broadcast %3 : vector<1x512xf32> to vector<32x512xf32>
    %5 = arith.addf %2, %4 : vector<32x512xf32>
    %cst_5 = arith.constant 0.000000e+00 : f32
    %6 = vector.broadcast %cst_5 : f32 to vector<32x512xf32>
    %7 = arith.maximumf %5, %6 : vector<32x512xf32>
    %8 = arith.truncf %7 : vector<32x512xf32> to vector<32x512xbf16>
    %c0_6 = arith.constant 0 : index
    %c0_7 = arith.constant 0 : index
    %9 = vector.load %arg4[%c0_6, %c0_7] : memref<512x128xbf16, #tpu.memory_space<vmem>>, vector<512x128xbf16>
    %cst_8 = arith.constant dense<0.000000e+00> : vector<32x128xf32>
    %10 = tpu.matmul %8, %9, %cst_8 {dimension_numbers = #tpu.dot_dimension_numbers<[1], [0], [0], [1], [0, 0, 1, 1], [], []>} : vector<32x512xbf16>, vector<512x128xbf16>, vector<32x128xf32> -> vector<32x128xf32>
    %c0_9 = arith.constant 0 : index
    %c0_10 = arith.constant 0 : index
    %11 = vector.load %arg5[%c0_9, %c0_10] : memref<1x128xf32, #tpu.memory_space<vmem>>, vector<1x128xf32>
    %12 = vector.broadcast %11 : vector<1x128xf32> to vector<32x128xf32>
    %13 = arith.addf %10, %12 : vector<32x128xf32>
    %14 = arith.extf %0 : vector<32x128xbf16> to vector<32x128xf32>
    %15 = arith.addf %13, %14 : vector<32x128xf32>
    %cst_11 = arith.constant dense<0.000000e+00> : vector<32xf32>
    %16 = vector.multi_reduction <add>, %15, %cst_11 [1] : vector<32x128xf32> to vector<32xf32>
    %17 = vector.shape_cast %16 : vector<32xf32> to vector<32x1xf32>
    %cst_12 = arith.constant 1.280000e+02 : f32
    %18 = vector.broadcast %cst_12 : f32 to vector<32x1xf32>
    %19 = arith.divf %17, %18 : vector<32x1xf32>
    %20 = vector.broadcast %19 : vector<32x1xf32> to vector<32x128xf32>
    %21 = arith.subf %15, %20 : vector<32x128xf32>
    %22 = arith.mulf %21, %21 : vector<32x128xf32>
    %cst_13 = arith.constant dense<0.000000e+00> : vector<32xf32>
    %23 = vector.multi_reduction <add>, %22, %cst_13 [1] : vector<32x128xf32> to vector<32xf32>
    %24 = vector.shape_cast %23 : vector<32xf32> to vector<32x1xf32>
    %cst_14 = arith.constant 1.280000e+02 : f32
    %25 = vector.broadcast %cst_14 : f32 to vector<32x1xf32>
    %26 = arith.divf %24, %25 : vector<32x1xf32>
    %27 = vector.broadcast %19 : vector<32x1xf32> to vector<32x128xf32>
    %28 = arith.subf %15, %27 : vector<32x128xf32>
    %cst_15 = arith.constant 9.99999974E-6 : f32
    %29 = vector.broadcast %cst_15 : f32 to vector<32x1xf32>
    %30 = arith.addf %26, %29 : vector<32x1xf32>
    %31 = math.rsqrt %30 : vector<32x1xf32>
    %32 = vector.broadcast %31 : vector<32x1xf32> to vector<32x128xf32>
    %33 = arith.mulf %28, %32 : vector<32x128xf32>
    %c0_16 = arith.constant 0 : index
    %c0_17 = arith.constant 0 : index
    %34 = vector.load %arg6[%c0_16, %c0_17] : memref<1x128xf32, #tpu.memory_space<vmem>>, vector<1x128xf32>
    %35 = vector.broadcast %34 : vector<1x128xf32> to vector<32x128xf32>
    %36 = arith.mulf %33, %35 : vector<32x128xf32>
    %c0_18 = arith.constant 0 : index
    %c0_19 = arith.constant 0 : index
    %37 = vector.load %arg7[%c0_18, %c0_19] : memref<1x128xf32, #tpu.memory_space<vmem>>, vector<1x128xf32>
    %38 = vector.broadcast %37 : vector<1x128xf32> to vector<32x128xf32>
    %39 = arith.addf %36, %38 : vector<32x128xf32>
    %40 = arith.truncf %39 : vector<32x128xf32> to vector<32x128xbf16>
    %c0_20 = arith.constant 0 : index
    %c0_21 = arith.constant 0 : index
    %41 = vector.load %arg8[%c0_20, %c0_21] : memref<32x128xbf16, #tpu.memory_space<vmem>>, vector<32x128xbf16>
    tpu.vector_store %arg8[%c0_20, %c0_21], %40 {strides = array<i32>} : memref<32x128xbf16, #tpu.memory_space<vmem>>, vector<32x128xbf16>,
    return
  }
  func.func @transform_0(%arg0: i32) -> (i32, i32) {
    %c0_i32 = arith.constant 0 : i32
    %c0_i32_0 = arith.constant 0 : i32
    return %arg0, %c0_i32 : i32, i32
  }
  func.func @transform_1(%arg0: i32) -> (i32, i32) {
    %c0_i32 = arith.constant 0 : i32
    %c0_i32_0 = arith.constant 0 : i32
    %c0_i32_1 = arith.constant 0 : i32
    return %c0_i32, %c0_i32_0 : i32, i32
  }
  func.func @transform_2(%arg0: i32) -> (i32, i32) {
    %c0_i32 = arith.constant 0 : i32
    %c0_i32_0 = arith.constant 0 : i32
    %c0_i32_1 = arith.constant 0 : i32
    return %c0_i32, %c0_i32_0 : i32, i32
  }
  func.func @transform_3(%arg0: i32) -> (i32, i32) {
    %c0_i32 = arith.constant 0 : i32
    %c0_i32_0 = arith.constant 0 : i32
    %c0_i32_1 = arith.constant 0 : i32
    return %c0_i32, %c0_i32_0 : i32, i32
  }
  func.func @transform_4(%arg0: i32) -> (i32, i32) {
    %c0_i32 = arith.constant 0 : i32
    %c0_i32_0 = arith.constant 0 : i32
    %c0_i32_1 = arith.constant 0 : i32
    return %c0_i32, %c0_i32_0 : i32, i32
  }
  func.func @transform_5(%arg0: i32) -> (i32, i32) {
    %c0_i32 = arith.constant 0 : i32
    %c0_i32_0 = arith.constant 0 : i32
    %c0_i32_1 = arith.constant 0 : i32
    return %c0_i32, %c0_i32_0 : i32, i32
  }
  func.func @transform_6(%arg0: i32) -> (i32, i32) {
    %c0_i32 = arith.constant 0 : i32
    %c0_i32_0 = arith.constant 0 : i32
    %c0_i32_1 = arith.constant 0 : i32
    return %c0_i32, %c0_i32_0 : i32, i32
  }
  func.func @transform_7(%arg0: i32) -> (i32, i32) {
    %c0_i32 = arith.constant 0 : i32
    %c0_i32_0 = arith.constant 0 : i32
    return %arg0, %c0_i32 : i32, i32
  }
}

module attributes {stable_mosaic.version = 11 : i64} {
  func.func @_linear_kernel(%arg0: i32, %arg1: i32, %arg2: i32, %arg3: memref<32x128xbf16, #tpu.memory_space<vmem>>, %arg4: memref<128x128xbf16, #tpu.memory_space<vmem>>, %arg5: memref<1x128xf32, #tpu.memory_space<vmem>>, %arg6: memref<32x128xbf16, #tpu.memory_space<vmem>>, %arg7: memref<32x128xf32, #tpu.memory_space<vmem>>) attributes {dimension_semantics = [#tpu.dimension_semantics<parallel>, #tpu.dimension_semantics<parallel>, #tpu.dimension_semantics<arbitrary>], iteration_bounds = array<i64: 1, 1, 1>, scalar_prefetch = 0 : i64, scratch_operands = 1 : i64, tpu.core_type = #tpu.core_type<tc>, window_params = [{transform_indices = @transform_0, window_bounds = array<i64: 32, 128>}, {transform_indices = @transform_1, window_bounds = array<i64: 128, 128>}, {transform_indices = @transform_2, window_bounds = array<i64: 1, 128>}, {transform_indices = @transform_3, window_bounds = array<i64: 32, 128>}]} {
    %c0_i32 = arith.constant 0 : i32
    %0 = arith.cmpi eq, %arg2, %c0_i32 : i32
    %1 = arith.extui %0 : i1 to i32
    %c0_i32_0 = arith.constant 0 : i32
    %2 = arith.cmpi ne, %1, %c0_i32_0 : i32
    scf.if %2 {
      %cst_10 = arith.constant 0.000000e+00 : f32
      %12 = vector.broadcast %cst_10 : f32 to vector<32x128xf32>
      %c0_11 = arith.constant 0 : index
      %c0_12 = arith.constant 0 : index
      %13 = vector.load %arg7[%c0_11, %c0_12] : memref<32x128xf32, #tpu.memory_space<vmem>>, vector<32x128xf32>
      tpu.vector_store %arg7[%c0_11, %c0_12], %12 {strides = array<i32>} : memref<32x128xf32, #tpu.memory_space<vmem>>, vector<32x128xf32>,
    } else {
    }
    %c0 = arith.constant 0 : index
    %c0_1 = arith.constant 0 : index
    %3 = vector.load %arg7[%c0, %c0_1] : memref<32x128xf32, #tpu.memory_space<vmem>>, vector<32x128xf32>
    %c0_2 = arith.constant 0 : index
    %c0_3 = arith.constant 0 : index
    %4 = vector.load %arg3[%c0_2, %c0_3] : memref<32x128xbf16, #tpu.memory_space<vmem>>, vector<32x128xbf16>
    %c0_4 = arith.constant 0 : index
    %c0_5 = arith.constant 0 : index
    %5 = vector.load %arg4[%c0_4, %c0_5] : memref<128x128xbf16, #tpu.memory_space<vmem>>, vector<128x128xbf16>
    %cst = arith.constant dense<0.000000e+00> : vector<32x128xf32>
    %6 = tpu.matmul %4, %5, %cst {dimension_numbers = #tpu.dot_dimension_numbers<[1], [0], [0], [1], [0, 0, 1, 1], [], []>} : vector<32x128xbf16>, vector<128x128xbf16>, vector<32x128xf32> -> vector<32x128xf32>
    %7 = arith.addf %3, %6 : vector<32x128xf32>
    %c0_6 = arith.constant 0 : index
    %c0_7 = arith.constant 0 : index
    %8 = vector.load %arg7[%c0_6, %c0_7] : memref<32x128xf32, #tpu.memory_space<vmem>>, vector<32x128xf32>
    tpu.vector_store %arg7[%c0_6, %c0_7], %7 {strides = array<i32>} : memref<32x128xf32, #tpu.memory_space<vmem>>, vector<32x128xf32>,
    %c0_i32_8 = arith.constant 0 : i32
    %9 = arith.cmpi eq, %arg2, %c0_i32_8 : i32
    %10 = arith.extui %9 : i1 to i32
    %c0_i32_9 = arith.constant 0 : i32
    %11 = arith.cmpi ne, %10, %c0_i32_9 : i32
    scf.if %11 {
      %c0_10 = arith.constant 0 : index
      %c0_11 = arith.constant 0 : index
      %12 = vector.load %arg7[%c0_10, %c0_11] : memref<32x128xf32, #tpu.memory_space<vmem>>, vector<32x128xf32>
      %c0_12 = arith.constant 0 : index
      %c0_13 = arith.constant 0 : index
      %13 = vector.load %arg5[%c0_12, %c0_13] : memref<1x128xf32, #tpu.memory_space<vmem>>, vector<1x128xf32>
      %14 = vector.broadcast %13 : vector<1x128xf32> to vector<32x128xf32>
      %15 = arith.addf %12, %14 : vector<32x128xf32>
      %16 = arith.truncf %15 : vector<32x128xf32> to vector<32x128xbf16>
      %c0_14 = arith.constant 0 : index
      %c0_15 = arith.constant 0 : index
      %17 = vector.load %arg6[%c0_14, %c0_15] : memref<32x128xbf16, #tpu.memory_space<vmem>>, vector<32x128xbf16>
      tpu.vector_store %arg6[%c0_14, %c0_15], %16 {strides = array<i32>} : memref<32x128xbf16, #tpu.memory_space<vmem>>, vector<32x128xbf16>,
    } else {
    }
    return
  }
  func.func @transform_0(%arg0: i32, %arg1: i32, %arg2: i32) -> (i32, i32) {
    %c0_i32 = arith.constant 0 : i32
    return %arg0, %arg2 : i32, i32
  }
  func.func @transform_1(%arg0: i32, %arg1: i32, %arg2: i32) -> (i32, i32) {
    %c0_i32 = arith.constant 0 : i32
    return %arg2, %arg1 : i32, i32
  }
  func.func @transform_2(%arg0: i32, %arg1: i32, %arg2: i32) -> (i32, i32) {
    %c0_i32 = arith.constant 0 : i32
    %c0_i32_0 = arith.constant 0 : i32
    return %c0_i32, %arg1 : i32, i32
  }
  func.func @transform_3(%arg0: i32, %arg1: i32, %arg2: i32) -> (i32, i32) {
    %c0_i32 = arith.constant 0 : i32
    return %arg0, %arg1 : i32, i32
  }
}

module attributes {stable_mosaic.version = 11 : i64} {
  func.func @_linear_kernel(%arg0: i32, %arg1: i32, %arg2: i32, %arg3: memref<32x128xbf16, #tpu.memory_space<vmem>>, %arg4: memref<128x128xbf16, #tpu.memory_space<vmem>>, %arg5: memref<1x128xf32, #tpu.memory_space<vmem>>, %arg6: memref<32x128xbf16, #tpu.memory_space<vmem>>, %arg7: memref<32x128xf32, #tpu.memory_space<vmem>>) attributes {dimension_semantics = [#tpu.dimension_semantics<parallel>, #tpu.dimension_semantics<parallel>, #tpu.dimension_semantics<arbitrary>], iteration_bounds = array<i64: 1, 2, 1>, scalar_prefetch = 0 : i64, scratch_operands = 1 : i64, tpu.core_type = #tpu.core_type<tc>, window_params = [{transform_indices = @transform_0, window_bounds = array<i64: 32, 128>}, {transform_indices = @transform_1, window_bounds = array<i64: 128, 128>}, {transform_indices = @transform_2, window_bounds = array<i64: 1, 128>}, {transform_indices = @transform_3, window_bounds = array<i64: 32, 128>}]} {
    %c0_i32 = arith.constant 0 : i32
    %0 = arith.cmpi eq, %arg2, %c0_i32 : i32
    %1 = arith.extui %0 : i1 to i32
    %c0_i32_0 = arith.constant 0 : i32
    %2 = arith.cmpi ne, %1, %c0_i32_0 : i32
    scf.if %2 {
      %cst_10 = arith.constant 0.000000e+00 : f32
      %12 = vector.broadcast %cst_10 : f32 to vector<32x128xf32>
      %c0_11 = arith.constant 0 : index
      %c0_12 = arith.constant 0 : index
      %13 = vector.load %arg7[%c0_11, %c0_12] : memref<32x128xf32, #tpu.memory_space<vmem>>, vector<32x128xf32>
      tpu.vector_store %arg7[%c0_11, %c0_12], %12 {strides = array<i32>} : memref<32x128xf32, #tpu.memory_space<vmem>>, vector<32x128xf32>,
    } else {
    }
    %c0 = arith.constant 0 : index
    %c0_1 = arith.constant 0 : index
    %3 = vector.load %arg7[%c0, %c0_1] : memref<32x128xf32, #tpu.memory_space<vmem>>, vector<32x128xf32>
    %c0_2 = arith.constant 0 : index
    %c0_3 = arith.constant 0 : index
    %4 = vector.load %arg3[%c0_2, %c0_3] : memref<32x128xbf16, #tpu.memory_space<vmem>>, vector<32x128xbf16>
    %c0_4 = arith.constant 0 : index
    %c0_5 = arith.constant 0 : index
    %5 = vector.load %arg4[%c0_4, %c0_5] : memref<128x128xbf16, #tpu.memory_space<vmem>>, vector<128x128xbf16>
    %cst = arith.constant dense<0.000000e+00> : vector<32x128xf32>
    %6 = tpu.matmul %4, %5, %cst {dimension_numbers = #tpu.dot_dimension_numbers<[1], [0], [0], [1], [0, 0, 1, 1], [], []>} : vector<32x128xbf16>, vector<128x128xbf16>, vector<32x128xf32> -> vector<32x128xf32>
    %7 = arith.addf %3, %6 : vector<32x128xf32>
    %c0_6 = arith.constant 0 : index
    %c0_7 = arith.constant 0 : index
    %8 = vector.load %arg7[%c0_6, %c0_7] : memref<32x128xf32, #tpu.memory_space<vmem>>, vector<32x128xf32>
    tpu.vector_store %arg7[%c0_6, %c0_7], %7 {strides = array<i32>} : memref<32x128xf32, #tpu.memory_space<vmem>>, vector<32x128xf32>,
    %c0_i32_8 = arith.constant 0 : i32
    %9 = arith.cmpi eq, %arg2, %c0_i32_8 : i32
    %10 = arith.extui %9 : i1 to i32
    %c0_i32_9 = arith.constant 0 : i32
    %11 = arith.cmpi ne, %10, %c0_i32_9 : i32
    scf.if %11 {
      %c0_10 = arith.constant 0 : index
      %c0_11 = arith.constant 0 : index
      %12 = vector.load %arg7[%c0_10, %c0_11] : memref<32x128xf32, #tpu.memory_space<vmem>>, vector<32x128xf32>
      %c0_12 = arith.constant 0 : index
      %c0_13 = arith.constant 0 : index
      %13 = vector.load %arg5[%c0_12, %c0_13] : memref<1x128xf32, #tpu.memory_space<vmem>>, vector<1x128xf32>
      %14 = vector.broadcast %13 : vector<1x128xf32> to vector<32x128xf32>
      %15 = arith.addf %12, %14 : vector<32x128xf32>
      %16 = arith.truncf %15 : vector<32x128xf32> to vector<32x128xbf16>
      %c0_14 = arith.constant 0 : index
      %c0_15 = arith.constant 0 : index
      %17 = vector.load %arg6[%c0_14, %c0_15] : memref<32x128xbf16, #tpu.memory_space<vmem>>, vector<32x128xbf16>
      tpu.vector_store %arg6[%c0_14, %c0_15], %16 {strides = array<i32>} : memref<32x128xbf16, #tpu.memory_space<vmem>>, vector<32x128xbf16>,
    } else {
    }
    return
  }
  func.func @transform_0(%arg0: i32, %arg1: i32, %arg2: i32) -> (i32, i32) {
    %c0_i32 = arith.constant 0 : i32
    return %arg0, %arg2 : i32, i32
  }
  func.func @transform_1(%arg0: i32, %arg1: i32, %arg2: i32) -> (i32, i32) {
    %c0_i32 = arith.constant 0 : i32
    return %arg2, %arg1 : i32, i32
  }
  func.func @transform_2(%arg0: i32, %arg1: i32, %arg2: i32) -> (i32, i32) {
    %c0_i32 = arith.constant 0 : i32
    %c0_i32_0 = arith.constant 0 : i32
    return %c0_i32, %arg1 : i32, i32
  }
  func.func @transform_3(%arg0: i32, %arg1: i32, %arg2: i32) -> (i32, i32) {
    %c0_i32 = arith.constant 0 : i32
    return %arg0, %arg1 : i32, i32
  }
}

module attributes {stable_mosaic.version = 11 : i64} {
  func.func @_flash_attn_kernel(%arg0: i32, %arg1: i32, %arg2: i32, %arg3: memref<1x8x128xbf16, #tpu.memory_space<vmem>>, %arg4: memref<1x16x256xbf16, #tpu.memory_space<vmem>>, %arg5: memref<1x8x128xbf16, #tpu.memory_space<vmem>>, %arg6: memref<4x8x1xf32, #tpu.memory_space<vmem>>, %arg7: memref<4x8x1xf32, #tpu.memory_space<vmem>>, %arg8: memref<8x128xf32, #tpu.memory_space<vmem>>) attributes {dimension_semantics = [#tpu.dimension_semantics<parallel>, #tpu.dimension_semantics<parallel>, #tpu.dimension_semantics<arbitrary>], iteration_bounds = array<i64: 2, 1, 1>, scalar_prefetch = 0 : i64, scratch_operands = 3 : i64, tpu.core_type = #tpu.core_type<tc>, window_params = [{transform_indices = @transform_0, window_bounds = array<i64: 1, 8, 128>}, {transform_indices = @transform_1, window_bounds = array<i64: 1, 16, 256>}, {transform_indices = @transform_2, window_bounds = array<i64: 1, 8, 128>}]} {
    %c0_i32 = arith.constant 0 : i32
    %0 = arith.cmpi eq, %arg2, %c0_i32 : i32
    %1 = arith.extui %0 : i1 to i32
    %c0_i32_0 = arith.constant 0 : i32
    %2 = arith.cmpi ne, %1, %c0_i32_0 : i32
    scf.if %2 {
      %cst_85 = arith.constant 0xFF800000 : f32
      %150 = vector.broadcast %cst_85 : f32 to vector<4x8x1xf32>
      %c0_86 = arith.constant 0 : index
      %c0_87 = arith.constant 0 : index
      %c0_88 = arith.constant 0 : index
      %151 = vector.load %arg6[%c0_86, %c0_87, %c0_88] : memref<4x8x1xf32, #tpu.memory_space<vmem>>, vector<4x8x1xf32>
      tpu.vector_store %arg6[%c0_86, %c0_87, %c0_88], %150 {strides = array<i32>} : memref<4x8x1xf32, #tpu.memory_space<vmem>>, vector<4x8x1xf32>,
      %cst_89 = arith.constant 0.000000e+00 : f32
      %152 = vector.broadcast %cst_89 : f32 to vector<4x8x1xf32>
      %c0_90 = arith.constant 0 : index
      %c0_91 = arith.constant 0 : index
      %c0_92 = arith.constant 0 : index
      %153 = vector.load %arg7[%c0_90, %c0_91, %c0_92] : memref<4x8x1xf32, #tpu.memory_space<vmem>>, vector<4x8x1xf32>
      tpu.vector_store %arg7[%c0_90, %c0_91, %c0_92], %152 {strides = array<i32>} : memref<4x8x1xf32, #tpu.memory_space<vmem>>, vector<4x8x1xf32>,
      %cst_93 = arith.constant 0.000000e+00 : f32
      %154 = vector.broadcast %cst_93 : f32 to vector<8x128xf32>
      %c0_94 = arith.constant 0 : index
      %c0_95 = arith.constant 0 : index
      %155 = vector.load %arg8[%c0_94, %c0_95] : memref<8x128xf32, #tpu.memory_space<vmem>>, vector<8x128xf32>
      tpu.vector_store %arg8[%c0_94, %c0_95], %154 {strides = array<i32>} : memref<8x128xf32, #tpu.memory_space<vmem>>, vector<8x128xf32>,
    } else {
    }
    %c0 = arith.constant 0 : index
    %c0_1 = arith.constant 0 : index
    %c0_2 = arith.constant 0 : index
    %3 = vector.load %arg3[%c0, %c0_1, %c0_2] : memref<1x8x128xbf16, #tpu.memory_space<vmem>>, vector<1x8x128xbf16>
    %4 = vector.shape_cast %3 : vector<1x8x128xbf16> to vector<8x128xbf16>
    %c0_3 = arith.constant 0 : index
    %c0_4 = arith.constant 0 : index
    %c0_5 = arith.constant 0 : index
    %5 = vector.load %arg4[%c0_3, %c0_4, %c0_5] : memref<1x16x256xbf16, #tpu.memory_space<vmem>>, vector<1x16x256xbf16>
    %6 = vector.shape_cast %5 : vector<1x16x256xbf16> to vector<16x256xbf16>
    %7 = vector.extract_strided_slice %4 {offsets = [0, 0], sizes = [8, 32], strides = [1, 1]} : vector<8x128xbf16> to vector<8x32xbf16>
    %8 = vector.extract_strided_slice %6 {offsets = [0, 0], sizes = [16, 32], strides = [1, 1]} : vector<16x256xbf16> to vector<16x32xbf16>
    %9 = vector.extract_strided_slice %6 {offsets = [0, 128], sizes = [16, 32], strides = [1, 1]} : vector<16x256xbf16> to vector<16x32xbf16>
    %cst = arith.constant dense<0.000000e+00> : vector<8x16xf32>
    %10 = tpu.matmul %7, %8, %cst {dimension_numbers = #tpu.dot_dimension_numbers<[1], [1], [0], [0], [0, 0, 1, 0], [], []>} : vector<8x32xbf16>, vector<16x32xbf16>, vector<8x16xf32> -> vector<8x16xf32>
    %cst_6 = arith.constant 0.176776692 : f32
    %11 = vector.broadcast %cst_6 : f32 to vector<8x16xf32>
    %12 = arith.mulf %10, %11 : vector<8x16xf32>
    %c0_7 = arith.constant 0 : index
    %c0_8 = arith.constant 0 : index
    %c0_9 = arith.constant 0 : index
    %13 = vector.load %arg6[%c0_7, %c0_8, %c0_9] : memref<4x8x1xf32, #tpu.memory_space<vmem>>, vector<1x8x1xf32>
    %14 = vector.shape_cast %13 : vector<1x8x1xf32> to vector<8x1xf32>
    %cst_10 = arith.constant dense<0xFF800000> : vector<8xf32>
    %15 = vector.multi_reduction <maximumf>, %12, %cst_10 [1] : vector<8x16xf32> to vector<8xf32>
    %16 = vector.shape_cast %15 : vector<8xf32> to vector<8x1xf32>
    %17 = arith.maximumf %14, %16 : vector<8x1xf32>
    %18 = arith.subf %14, %17 : vector<8x1xf32>
    %19 = math.exp %18 : vector<8x1xf32>
    %20 = vector.broadcast %17 : vector<8x1xf32> to vector<8x16xf32>
    %21 = arith.subf %12, %20 : vector<8x16xf32>
    %22 = math.exp %21 : vector<8x16xf32>
    %c0_11 = arith.constant 0 : index
    %c0_12 = arith.constant 0 : index
    %c0_13 = arith.constant 0 : index
    %23 = vector.load %arg7[%c0_11, %c0_12, %c0_13] : memref<4x8x1xf32, #tpu.memory_space<vmem>>, vector<1x8x1xf32>
    %24 = vector.shape_cast %23 : vector<1x8x1xf32> to vector<8x1xf32>
    %25 = arith.mulf %19, %24 : vector<8x1xf32>
    %cst_14 = arith.constant dense<0.000000e+00> : vector<8xf32>
    %26 = vector.multi_reduction <add>, %22, %cst_14 [1] : vector<8x16xf32> to vector<8xf32>
    %27 = vector.shape_cast %26 : vector<8xf32> to vector<8x1xf32>
    %28 = arith.addf %25, %27 : vector<8x1xf32>
    %c0_15 = arith.constant 0 : index
    %c0_16 = arith.constant 0 : index
    %c0_17 = arith.constant 0 : index
    %29 = vector.load %arg7[%c0_15, %c0_16, %c0_17] : memref<4x8x1xf32, #tpu.memory_space<vmem>>, vector<1x8x1xf32>
    %30 = vector.shape_cast %29 : vector<1x8x1xf32> to vector<8x1xf32>
    %31 = vector.shape_cast %28 : vector<8x1xf32> to vector<1x8x1xf32>
    tpu.vector_store %arg7[%c0_15, %c0_16, %c0_17], %31 {strides = array<i32>} : memref<4x8x1xf32, #tpu.memory_space<vmem>>, vector<1x8x1xf32>,
    %c0_18 = arith.constant 0 : index
    %c0_19 = arith.constant 0 : index
    %32 = vector.load %arg8[%c0_18, %c0_19] : memref<8x128xf32, #tpu.memory_space<vmem>>, vector<8x32xf32>
    %33 = vector.broadcast %19 : vector<8x1xf32> to vector<8x32xf32>
    %34 = arith.mulf %33, %32 : vector<8x32xf32>
    %35 = arith.truncf %22 : vector<8x16xf32> to vector<8x16xbf16>
    %cst_20 = arith.constant dense<0.000000e+00> : vector<8x32xf32>
    %36 = tpu.matmul %35, %9, %cst_20 {dimension_numbers = #tpu.dot_dimension_numbers<[1], [0], [0], [1], [0, 0, 1, 1], [], []>} : vector<8x16xbf16>, vector<16x32xbf16>, vector<8x32xf32> -> vector<8x32xf32>
    %37 = arith.addf %34, %36 : vector<8x32xf32>
    %c0_21 = arith.constant 0 : index
    %c0_22 = arith.constant 0 : index
    %38 = vector.load %arg8[%c0_21, %c0_22] : memref<8x128xf32, #tpu.memory_space<vmem>>, vector<8x32xf32>
    tpu.vector_store %arg8[%c0_21, %c0_22], %37 {strides = array<i32>} : memref<8x128xf32, #tpu.memory_space<vmem>>, vector<8x32xf32>,
    %c0_23 = arith.constant 0 : index
    %c0_24 = arith.constant 0 : index
    %c0_25 = arith.constant 0 : index
    %39 = vector.load %arg6[%c0_23, %c0_24, %c0_25] : memref<4x8x1xf32, #tpu.memory_space<vmem>>, vector<1x8x1xf32>
    %40 = vector.shape_cast %39 : vector<1x8x1xf32> to vector<8x1xf32>
    %41 = vector.shape_cast %17 : vector<8x1xf32> to vector<1x8x1xf32>
    tpu.vector_store %arg6[%c0_23, %c0_24, %c0_25], %41 {strides = array<i32>} : memref<4x8x1xf32, #tpu.memory_space<vmem>>, vector<1x8x1xf32>,
    %42 = vector.extract_strided_slice %4 {offsets = [0, 32], sizes = [8, 32], strides = [1, 1]} : vector<8x128xbf16> to vector<8x32xbf16>
    %43 = vector.extract_strided_slice %6 {offsets = [0, 32], sizes = [16, 32], strides = [1, 1]} : vector<16x256xbf16> to vector<16x32xbf16>
    %44 = vector.extract_strided_slice %6 {offsets = [0, 160], sizes = [16, 32], strides = [1, 1]} : vector<16x256xbf16> to vector<16x32xbf16>
    %cst_26 = arith.constant dense<0.000000e+00> : vector<8x16xf32>
    %45 = tpu.matmul %42, %43, %cst_26 {dimension_numbers = #tpu.dot_dimension_numbers<[1], [1], [0], [0], [0, 0, 1, 0], [], []>} : vector<8x32xbf16>, vector<16x32xbf16>, vector<8x16xf32> -> vector<8x16xf32>
    %cst_27 = arith.constant 0.176776692 : f32
    %46 = vector.broadcast %cst_27 : f32 to vector<8x16xf32>
    %47 = arith.mulf %45, %46 : vector<8x16xf32>
    %c1 = arith.constant 1 : index
    %c0_28 = arith.constant 0 : index
    %c0_29 = arith.constant 0 : index
    %48 = vector.load %arg6[%c1, %c0_28, %c0_29] : memref<4x8x1xf32, #tpu.memory_space<vmem>>, vector<1x8x1xf32>
    %49 = vector.shape_cast %48 : vector<1x8x1xf32> to vector<8x1xf32>
    %cst_30 = arith.constant dense<0xFF800000> : vector<8xf32>
    %50 = vector.multi_reduction <maximumf>, %47, %cst_30 [1] : vector<8x16xf32> to vector<8xf32>
    %51 = vector.shape_cast %50 : vector<8xf32> to vector<8x1xf32>
    %52 = arith.maximumf %49, %51 : vector<8x1xf32>
    %53 = arith.subf %49, %52 : vector<8x1xf32>
    %54 = math.exp %53 : vector<8x1xf32>
    %55 = vector.broadcast %52 : vector<8x1xf32> to vector<8x16xf32>
    %56 = arith.subf %47, %55 : vector<8x16xf32>
    %57 = math.exp %56 : vector<8x16xf32>
    %c1_31 = arith.constant 1 : index
    %c0_32 = arith.constant 0 : index
    %c0_33 = arith.constant 0 : index
    %58 = vector.load %arg7[%c1_31, %c0_32, %c0_33] : memref<4x8x1xf32, #tpu.memory_space<vmem>>, vector<1x8x1xf32>
    %59 = vector.shape_cast %58 : vector<1x8x1xf32> to vector<8x1xf32>
    %60 = arith.mulf %54, %59 : vector<8x1xf32>
    %cst_34 = arith.constant dense<0.000000e+00> : vector<8xf32>
    %61 = vector.multi_reduction <add>, %57, %cst_34 [1] : vector<8x16xf32> to vector<8xf32>
    %62 = vector.shape_cast %61 : vector<8xf32> to vector<8x1xf32>
    %63 = arith.addf %60, %62 : vector<8x1xf32>
    %c1_35 = arith.constant 1 : index
    %c0_36 = arith.constant 0 : index
    %c0_37 = arith.constant 0 : index
    %64 = vector.load %arg7[%c1_35, %c0_36, %c0_37] : memref<4x8x1xf32, #tpu.memory_space<vmem>>, vector<1x8x1xf32>
    %65 = vector.shape_cast %64 : vector<1x8x1xf32> to vector<8x1xf32>
    %66 = vector.shape_cast %63 : vector<8x1xf32> to vector<1x8x1xf32>
    tpu.vector_store %arg7[%c1_35, %c0_36, %c0_37], %66 {strides = array<i32>} : memref<4x8x1xf32, #tpu.memory_space<vmem>>, vector<1x8x1xf32>,
    %c0_38 = arith.constant 0 : index
    %c32 = arith.constant 32 : index
    %67 = vector.load %arg8[%c0_38, %c32] : memref<8x128xf32, #tpu.memory_space<vmem>>, vector<8x32xf32>
    %68 = vector.broadcast %54 : vector<8x1xf32> to vector<8x32xf32>
    %69 = arith.mulf %68, %67 : vector<8x32xf32>
    %70 = arith.truncf %57 : vector<8x16xf32> to vector<8x16xbf16>
    %cst_39 = arith.constant dense<0.000000e+00> : vector<8x32xf32>
    %71 = tpu.matmul %70, %44, %cst_39 {dimension_numbers = #tpu.dot_dimension_numbers<[1], [0], [0], [1], [0, 0, 1, 1], [], []>} : vector<8x16xbf16>, vector<16x32xbf16>, vector<8x32xf32> -> vector<8x32xf32>
    %72 = arith.addf %69, %71 : vector<8x32xf32>
    %c0_40 = arith.constant 0 : index
    %c32_41 = arith.constant 32 : index
    %73 = vector.load %arg8[%c0_40, %c32_41] : memref<8x128xf32, #tpu.memory_space<vmem>>, vector<8x32xf32>
    tpu.vector_store %arg8[%c0_40, %c32_41], %72 {strides = array<i32>} : memref<8x128xf32, #tpu.memory_space<vmem>>, vector<8x32xf32>,
    %c1_42 = arith.constant 1 : index
    %c0_43 = arith.constant 0 : index
    %c0_44 = arith.constant 0 : index
    %74 = vector.load %arg6[%c1_42, %c0_43, %c0_44] : memref<4x8x1xf32, #tpu.memory_space<vmem>>, vector<1x8x1xf32>
    %75 = vector.shape_cast %74 : vector<1x8x1xf32> to vector<8x1xf32>
    %76 = vector.shape_cast %52 : vector<8x1xf32> to vector<1x8x1xf32>
    tpu.vector_store %arg6[%c1_42, %c0_43, %c0_44], %76 {strides = array<i32>} : memref<4x8x1xf32, #tpu.memory_space<vmem>>, vector<1x8x1xf32>,
    %77 = vector.extract_strided_slice %4 {offsets = [0, 64], sizes = [8, 32], strides = [1, 1]} : vector<8x128xbf16> to vector<8x32xbf16>
    %78 = vector.extract_strided_slice %6 {offsets = [0, 64], sizes = [16, 32], strides = [1, 1]} : vector<16x256xbf16> to vector<16x32xbf16>
    %79 = vector.extract_strided_slice %6 {offsets = [0, 192], sizes = [16, 32], strides = [1, 1]} : vector<16x256xbf16> to vector<16x32xbf16>
    %cst_45 = arith.constant dense<0.000000e+00> : vector<8x16xf32>
    %80 = tpu.matmul %77, %78, %cst_45 {dimension_numbers = #tpu.dot_dimension_numbers<[1], [1], [0], [0], [0, 0, 1, 0], [], []>} : vector<8x32xbf16>, vector<16x32xbf16>, vector<8x16xf32> -> vector<8x16xf32>
    %cst_46 = arith.constant 0.176776692 : f32
    %81 = vector.broadcast %cst_46 : f32 to vector<8x16xf32>
    %82 = arith.mulf %80, %81 : vector<8x16xf32>
    %c2 = arith.constant 2 : index
    %c0_47 = arith.constant 0 : index
    %c0_48 = arith.constant 0 : index
    %83 = vector.load %arg6[%c2, %c0_47, %c0_48] : memref<4x8x1xf32, #tpu.memory_space<vmem>>, vector<1x8x1xf32>
    %84 = vector.shape_cast %83 : vector<1x8x1xf32> to vector<8x1xf32>
    %cst_49 = arith.constant dense<0xFF800000> : vector<8xf32>
    %85 = vector.multi_reduction <maximumf>, %82, %cst_49 [1] : vector<8x16xf32> to vector<8xf32>
    %86 = vector.shape_cast %85 : vector<8xf32> to vector<8x1xf32>
    %87 = arith.maximumf %84, %86 : vector<8x1xf32>
    %88 = arith.subf %84, %87 : vector<8x1xf32>
    %89 = math.exp %88 : vector<8x1xf32>
    %90 = vector.broadcast %87 : vector<8x1xf32> to vector<8x16xf32>
    %91 = arith.subf %82, %90 : vector<8x16xf32>
    %92 = math.exp %91 : vector<8x16xf32>
    %c2_50 = arith.constant 2 : index
    %c0_51 = arith.constant 0 : index
    %c0_52 = arith.constant 0 : index
    %93 = vector.load %arg7[%c2_50, %c0_51, %c0_52] : memref<4x8x1xf32, #tpu.memory_space<vmem>>, vector<1x8x1xf32>
    %94 = vector.shape_cast %93 : vector<1x8x1xf32> to vector<8x1xf32>
    %95 = arith.mulf %89, %94 : vector<8x1xf32>
    %cst_53 = arith.constant dense<0.000000e+00> : vector<8xf32>
    %96 = vector.multi_reduction <add>, %92, %cst_53 [1] : vector<8x16xf32> to vector<8xf32>
    %97 = vector.shape_cast %96 : vector<8xf32> to vector<8x1xf32>
    %98 = arith.addf %95, %97 : vector<8x1xf32>
    %c2_54 = arith.constant 2 : index
    %c0_55 = arith.constant 0 : index
    %c0_56 = arith.constant 0 : index
    %99 = vector.load %arg7[%c2_54, %c0_55, %c0_56] : memref<4x8x1xf32, #tpu.memory_space<vmem>>, vector<1x8x1xf32>
    %100 = vector.shape_cast %99 : vector<1x8x1xf32> to vector<8x1xf32>
    %101 = vector.shape_cast %98 : vector<8x1xf32> to vector<1x8x1xf32>
    tpu.vector_store %arg7[%c2_54, %c0_55, %c0_56], %101 {strides = array<i32>} : memref<4x8x1xf32, #tpu.memory_space<vmem>>, vector<1x8x1xf32>,
    %c0_57 = arith.constant 0 : index
    %c64 = arith.constant 64 : index
    %102 = vector.load %arg8[%c0_57, %c64] : memref<8x128xf32, #tpu.memory_space<vmem>>, vector<8x32xf32>
    %103 = vector.broadcast %89 : vector<8x1xf32> to vector<8x32xf32>
    %104 = arith.mulf %103, %102 : vector<8x32xf32>
    %105 = arith.truncf %92 : vector<8x16xf32> to vector<8x16xbf16>
    %cst_58 = arith.constant dense<0.000000e+00> : vector<8x32xf32>
    %106 = tpu.matmul %105, %79, %cst_58 {dimension_numbers = #tpu.dot_dimension_numbers<[1], [0], [0], [1], [0, 0, 1, 1], [], []>} : vector<8x16xbf16>, vector<16x32xbf16>, vector<8x32xf32> -> vector<8x32xf32>
    %107 = arith.addf %104, %106 : vector<8x32xf32>
    %c0_59 = arith.constant 0 : index
    %c64_60 = arith.constant 64 : index
    %108 = vector.load %arg8[%c0_59, %c64_60] : memref<8x128xf32, #tpu.memory_space<vmem>>, vector<8x32xf32>
    tpu.vector_store %arg8[%c0_59, %c64_60], %107 {strides = array<i32>} : memref<8x128xf32, #tpu.memory_space<vmem>>, vector<8x32xf32>,
    %c2_61 = arith.constant 2 : index
    %c0_62 = arith.constant 0 : index
    %c0_63 = arith.constant 0 : index
    %109 = vector.load %arg6[%c2_61, %c0_62, %c0_63] : memref<4x8x1xf32, #tpu.memory_space<vmem>>, vector<1x8x1xf32>
    %110 = vector.shape_cast %109 : vector<1x8x1xf32> to vector<8x1xf32>
    %111 = vector.shape_cast %87 : vector<8x1xf32> to vector<1x8x1xf32>
    tpu.vector_store %arg6[%c2_61, %c0_62, %c0_63], %111 {strides = array<i32>} : memref<4x8x1xf32, #tpu.memory_space<vmem>>, vector<1x8x1xf32>,
    %112 = vector.extract_strided_slice %4 {offsets = [0, 96], sizes = [8, 32], strides = [1, 1]} : vector<8x128xbf16> to vector<8x32xbf16>
    %113 = vector.extract_strided_slice %6 {offsets = [0, 96], sizes = [16, 32], strides = [1, 1]} : vector<16x256xbf16> to vector<16x32xbf16>
    %114 = vector.extract_strided_slice %6 {offsets = [0, 224], sizes = [16, 32], strides = [1, 1]} : vector<16x256xbf16> to vector<16x32xbf16>
    %cst_64 = arith.constant dense<0.000000e+00> : vector<8x16xf32>
    %115 = tpu.matmul %112, %113, %cst_64 {dimension_numbers = #tpu.dot_dimension_numbers<[1], [1], [0], [0], [0, 0, 1, 0], [], []>} : vector<8x32xbf16>, vector<16x32xbf16>, vector<8x16xf32> -> vector<8x16xf32>
    %cst_65 = arith.constant 0.176776692 : f32
    %116 = vector.broadcast %cst_65 : f32 to vector<8x16xf32>
    %117 = arith.mulf %115, %116 : vector<8x16xf32>
    %c3 = arith.constant 3 : index
    %c0_66 = arith.constant 0 : index
    %c0_67 = arith.constant 0 : index
    %118 = vector.load %arg6[%c3, %c0_66, %c0_67] : memref<4x8x1xf32, #tpu.memory_space<vmem>>, vector<1x8x1xf32>
    %119 = vector.shape_cast %118 : vector<1x8x1xf32> to vector<8x1xf32>
    %cst_68 = arith.constant dense<0xFF800000> : vector<8xf32>
    %120 = vector.multi_reduction <maximumf>, %117, %cst_68 [1] : vector<8x16xf32> to vector<8xf32>
    %121 = vector.shape_cast %120 : vector<8xf32> to vector<8x1xf32>
    %122 = arith.maximumf %119, %121 : vector<8x1xf32>
    %123 = arith.subf %119, %122 : vector<8x1xf32>
    %124 = math.exp %123 : vector<8x1xf32>
    %125 = vector.broadcast %122 : vector<8x1xf32> to vector<8x16xf32>
    %126 = arith.subf %117, %125 : vector<8x16xf32>
    %127 = math.exp %126 : vector<8x16xf32>
    %c3_69 = arith.constant 3 : index
    %c0_70 = arith.constant 0 : index
    %c0_71 = arith.constant 0 : index
    %128 = vector.load %arg7[%c3_69, %c0_70, %c0_71] : memref<4x8x1xf32, #tpu.memory_space<vmem>>, vector<1x8x1xf32>
    %129 = vector.shape_cast %128 : vector<1x8x1xf32> to vector<8x1xf32>
    %130 = arith.mulf %124, %129 : vector<8x1xf32>
    %cst_72 = arith.constant dense<0.000000e+00> : vector<8xf32>
    %131 = vector.multi_reduction <add>, %127, %cst_72 [1] : vector<8x16xf32> to vector<8xf32>
    %132 = vector.shape_cast %131 : vector<8xf32> to vector<8x1xf32>
    %133 = arith.addf %130, %132 : vector<8x1xf32>
    %c3_73 = arith.constant 3 : index
    %c0_74 = arith.constant 0 : index
    %c0_75 = arith.constant 0 : index
    %134 = vector.load %arg7[%c3_73, %c0_74, %c0_75] : memref<4x8x1xf32, #tpu.memory_space<vmem>>, vector<1x8x1xf32>
    %135 = vector.shape_cast %134 : vector<1x8x1xf32> to vector<8x1xf32>
    %136 = vector.shape_cast %133 : vector<8x1xf32> to vector<1x8x1xf32>
    tpu.vector_store %arg7[%c3_73, %c0_74, %c0_75], %136 {strides = array<i32>} : memref<4x8x1xf32, #tpu.memory_space<vmem>>, vector<1x8x1xf32>,
    %c0_76 = arith.constant 0 : index
    %c96 = arith.constant 96 : index
    %137 = vector.load %arg8[%c0_76, %c96] : memref<8x128xf32, #tpu.memory_space<vmem>>, vector<8x32xf32>
    %138 = vector.broadcast %124 : vector<8x1xf32> to vector<8x32xf32>
    %139 = arith.mulf %138, %137 : vector<8x32xf32>
    %140 = arith.truncf %127 : vector<8x16xf32> to vector<8x16xbf16>
    %cst_77 = arith.constant dense<0.000000e+00> : vector<8x32xf32>
    %141 = tpu.matmul %140, %114, %cst_77 {dimension_numbers = #tpu.dot_dimension_numbers<[1], [0], [0], [1], [0, 0, 1, 1], [], []>} : vector<8x16xbf16>, vector<16x32xbf16>, vector<8x32xf32> -> vector<8x32xf32>
    %142 = arith.addf %139, %141 : vector<8x32xf32>
    %c0_78 = arith.constant 0 : index
    %c96_79 = arith.constant 96 : index
    %143 = vector.load %arg8[%c0_78, %c96_79] : memref<8x128xf32, #tpu.memory_space<vmem>>, vector<8x32xf32>
    tpu.vector_store %arg8[%c0_78, %c96_79], %142 {strides = array<i32>} : memref<8x128xf32, #tpu.memory_space<vmem>>, vector<8x32xf32>,
    %c3_80 = arith.constant 3 : index
    %c0_81 = arith.constant 0 : index
    %c0_82 = arith.constant 0 : index
    %144 = vector.load %arg6[%c3_80, %c0_81, %c0_82] : memref<4x8x1xf32, #tpu.memory_space<vmem>>, vector<1x8x1xf32>
    %145 = vector.shape_cast %144 : vector<1x8x1xf32> to vector<8x1xf32>
    %146 = vector.shape_cast %122 : vector<8x1xf32> to vector<1x8x1xf32>
    tpu.vector_store %arg6[%c3_80, %c0_81, %c0_82], %146 {strides = array<i32>} : memref<4x8x1xf32, #tpu.memory_space<vmem>>, vector<1x8x1xf32>,
    %c0_i32_83 = arith.constant 0 : i32
    %147 = arith.cmpi eq, %arg2, %c0_i32_83 : i32
    %148 = arith.extui %147 : i1 to i32
    %c0_i32_84 = arith.constant 0 : i32
    %149 = arith.cmpi ne, %148, %c0_i32_84 : i32
    scf.if %149 {
      %c0_85 = arith.constant 0 : index
      %c0_86 = arith.constant 0 : index
      %c0_87 = arith.constant 0 : index
      %150 = vector.load %arg7[%c0_85, %c0_86, %c0_87] : memref<4x8x1xf32, #tpu.memory_space<vmem>>, vector<1x8x1xf32>
      %151 = vector.shape_cast %150 : vector<1x8x1xf32> to vector<8x1xf32>
      %152 = tpu.reciprocal %151 : vector<8x1xf32> -> vector<8x1xf32>
      %c0_88 = arith.constant 0 : index
      %c0_89 = arith.constant 0 : index
      %153 = vector.load %arg8[%c0_88, %c0_89] : memref<8x128xf32, #tpu.memory_space<vmem>>, vector<8x32xf32>
      %154 = vector.broadcast %152 : vector<8x1xf32> to vector<8x32xf32>
      %155 = arith.mulf %153, %154 : vector<8x32xf32>
      %156 = arith.truncf %155 : vector<8x32xf32> to vector<8x32xbf16>
      %c0_90 = arith.constant 0 : index
      %c0_91 = arith.constant 0 : index
      %c0_92 = arith.constant 0 : index
      %157 = vector.load %arg5[%c0_90, %c0_91, %c0_92] : memref<1x8x128xbf16, #tpu.memory_space<vmem>>, vector<1x8x32xbf16>
      %158 = vector.shape_cast %157 : vector<1x8x32xbf16> to vector<8x32xbf16>
      %159 = vector.shape_cast %156 : vector<8x32xbf16> to vector<1x8x32xbf16>
      tpu.vector_store %arg5[%c0_90, %c0_91, %c0_92], %159 {strides = array<i32>} : memref<1x8x128xbf16, #tpu.memory_space<vmem>>, vector<1x8x32xbf16>,
      %c1_93 = arith.constant 1 : index
      %c0_94 = arith.constant 0 : index
      %c0_95 = arith.constant 0 : index
      %160 = vector.load %arg7[%c1_93, %c0_94, %c0_95] : memref<4x8x1xf32, #tpu.memory_space<vmem>>, vector<1x8x1xf32>
      %161 = vector.shape_cast %160 : vector<1x8x1xf32> to vector<8x1xf32>
      %162 = tpu.reciprocal %161 : vector<8x1xf32> -> vector<8x1xf32>
      %c0_96 = arith.constant 0 : index
      %c32_97 = arith.constant 32 : index
      %163 = vector.load %arg8[%c0_96, %c32_97] : memref<8x128xf32, #tpu.memory_space<vmem>>, vector<8x32xf32>
      %164 = vector.broadcast %162 : vector<8x1xf32> to vector<8x32xf32>
      %165 = arith.mulf %163, %164 : vector<8x32xf32>
      %166 = arith.truncf %165 : vector<8x32xf32> to vector<8x32xbf16>
      %c0_98 = arith.constant 0 : index
      %c0_99 = arith.constant 0 : index
      %c32_100 = arith.constant 32 : index
      %167 = vector.load %arg5[%c0_98, %c0_99, %c32_100] : memref<1x8x128xbf16, #tpu.memory_space<vmem>>, vector<1x8x32xbf16>
      %168 = vector.shape_cast %167 : vector<1x8x32xbf16> to vector<8x32xbf16>
      %169 = vector.shape_cast %166 : vector<8x32xbf16> to vector<1x8x32xbf16>
      tpu.vector_store %arg5[%c0_98, %c0_99, %c32_100], %169 {strides = array<i32>} : memref<1x8x128xbf16, #tpu.memory_space<vmem>>, vector<1x8x32xbf16>,
      %c2_101 = arith.constant 2 : index
      %c0_102 = arith.constant 0 : index
      %c0_103 = arith.constant 0 : index
      %170 = vector.load %arg7[%c2_101, %c0_102, %c0_103] : memref<4x8x1xf32, #tpu.memory_space<vmem>>, vector<1x8x1xf32>
      %171 = vector.shape_cast %170 : vector<1x8x1xf32> to vector<8x1xf32>
      %172 = tpu.reciprocal %171 : vector<8x1xf32> -> vector<8x1xf32>
      %c0_104 = arith.constant 0 : index
      %c64_105 = arith.constant 64 : index
      %173 = vector.load %arg8[%c0_104, %c64_105] : memref<8x128xf32, #tpu.memory_space<vmem>>, vector<8x32xf32>
      %174 = vector.broadcast %172 : vector<8x1xf32> to vector<8x32xf32>
      %175 = arith.mulf %173, %174 : vector<8x32xf32>
      %176 = arith.truncf %175 : vector<8x32xf32> to vector<8x32xbf16>
      %c0_106 = arith.constant 0 : index
      %c0_107 = arith.constant 0 : index
      %c64_108 = arith.constant 64 : index
      %177 = vector.load %arg5[%c0_106, %c0_107, %c64_108] : memref<1x8x128xbf16, #tpu.memory_space<vmem>>, vector<1x8x32xbf16>
      %178 = vector.shape_cast %177 : vector<1x8x32xbf16> to vector<8x32xbf16>
      %179 = vector.shape_cast %176 : vector<8x32xbf16> to vector<1x8x32xbf16>
      tpu.vector_store %arg5[%c0_106, %c0_107, %c64_108], %179 {strides = array<i32>} : memref<1x8x128xbf16, #tpu.memory_space<vmem>>, vector<1x8x32xbf16>,
      %c3_109 = arith.constant 3 : index
      %c0_110 = arith.constant 0 : index
      %c0_111 = arith.constant 0 : index
      %180 = vector.load %arg7[%c3_109, %c0_110, %c0_111] : memref<4x8x1xf32, #tpu.memory_space<vmem>>, vector<1x8x1xf32>
      %181 = vector.shape_cast %180 : vector<1x8x1xf32> to vector<8x1xf32>
      %182 = tpu.reciprocal %181 : vector<8x1xf32> -> vector<8x1xf32>
      %c0_112 = arith.constant 0 : index
      %c96_113 = arith.constant 96 : index
      %183 = vector.load %arg8[%c0_112, %c96_113] : memref<8x128xf32, #tpu.memory_space<vmem>>, vector<8x32xf32>
      %184 = vector.broadcast %182 : vector<8x1xf32> to vector<8x32xf32>
      %185 = arith.mulf %183, %184 : vector<8x32xf32>
      %186 = arith.truncf %185 : vector<8x32xf32> to vector<8x32xbf16>
      %c0_114 = arith.constant 0 : index
      %c0_115 = arith.constant 0 : index
      %c96_116 = arith.constant 96 : index
      %187 = vector.load %arg5[%c0_114, %c0_115, %c96_116] : memref<1x8x128xbf16, #tpu.memory_space<vmem>>, vector<1x8x32xbf16>
      %188 = vector.shape_cast %187 : vector<1x8x32xbf16> to vector<8x32xbf16>
      %189 = vector.shape_cast %186 : vector<8x32xbf16> to vector<1x8x32xbf16>
      tpu.vector_store %arg5[%c0_114, %c0_115, %c96_116], %189 {strides = array<i32>} : memref<1x8x128xbf16, #tpu.memory_space<vmem>>, vector<1x8x32xbf16>,
    } else {
    }
    return
  }
  func.func @transform_0(%arg0: i32, %arg1: i32, %arg2: i32) -> (i32, i32, i32) {
    %c0_i32 = arith.constant 0 : i32
    %c0_i32_0 = arith.constant 0 : i32
    return %arg0, %arg1, %c0_i32 : i32, i32, i32
  }
  func.func @transform_1(%arg0: i32, %arg1: i32, %arg2: i32) -> (i32, i32, i32) {
    %c0_i32 = arith.constant 0 : i32
    %c0_i32_0 = arith.constant 0 : i32
    return %arg0, %arg2, %c0_i32 : i32, i32, i32
  }
  func.func @transform_2(%arg0: i32, %arg1: i32, %arg2: i32) -> (i32, i32, i32) {
    %c0_i32 = arith.constant 0 : i32
    %c0_i32_0 = arith.constant 0 : i32
    return %arg0, %arg1, %c0_i32 : i32, i32, i32
  }
}

module attributes {stable_mosaic.version = 11 : i64} {
  func.func @_head_kernel(%arg0: i32, %arg1: i32, %arg2: memref<16x128xbf16, #tpu.memory_space<vmem>>, %arg3: memref<128x128xbf16, #tpu.memory_space<vmem>>, %arg4: memref<1x128xf32, #tpu.memory_space<vmem>>, %arg5: memref<128x128xbf16, #tpu.memory_space<vmem>>, %arg6: memref<1x128xf32, #tpu.memory_space<vmem>>, %arg7: memref<16x128xf32, #tpu.memory_space<vmem>>, %arg8: memref<16x128xbf16, #tpu.memory_space<vmem>>) attributes {dimension_semantics = [#tpu.dimension_semantics<parallel>, #tpu.dimension_semantics<arbitrary>], iteration_bounds = array<i64: 1, 1>, scalar_prefetch = 0 : i64, scratch_operands = 1 : i64, tpu.core_type = #tpu.core_type<tc>, window_params = [{transform_indices = @transform_0, window_bounds = array<i64: 16, 128>}, {pipeline_mode = #tpu.pipeline_mode<synchronous>, transform_indices = @transform_1, window_bounds = array<i64: 128, 128>}, {pipeline_mode = #tpu.pipeline_mode<synchronous>, transform_indices = @transform_2, window_bounds = array<i64: 1, 128>}, {transform_indices = @transform_3, window_bounds = array<i64: 128, 128>}, {transform_indices = @transform_4, window_bounds = array<i64: 1, 128>}, {transform_indices = @transform_5, window_bounds = array<i64: 16, 128>}]} {
    %c0_i32 = arith.constant 0 : i32
    %0 = arith.cmpi eq, %arg1, %c0_i32 : i32
    %1 = arith.extui %0 : i1 to i32
    %c0_i32_0 = arith.constant 0 : i32
    %2 = arith.cmpi ne, %1, %c0_i32_0 : i32
    scf.if %2 {
      %c0_8 = arith.constant 0 : index
      %c0_9 = arith.constant 0 : index
      %10 = vector.load %arg2[%c0_8, %c0_9] : memref<16x128xbf16, #tpu.memory_space<vmem>>, vector<16x128xbf16>
      %c0_10 = arith.constant 0 : index
      %c0_11 = arith.constant 0 : index
      %11 = vector.load %arg3[%c0_10, %c0_11] : memref<128x128xbf16, #tpu.memory_space<vmem>>, vector<128x128xbf16>
      %cst_12 = arith.constant dense<0.000000e+00> : vector<16x128xf32>
      %12 = tpu.matmul %10, %11, %cst_12 {dimension_numbers = #tpu.dot_dimension_numbers<[1], [0], [0], [1], [0, 0, 1, 1], [], []>} : vector<16x128xbf16>, vector<128x128xbf16>, vector<16x128xf32> -> vector<16x128xf32>
      %c0_13 = arith.constant 0 : index
      %c0_14 = arith.constant 0 : index
      %13 = vector.load %arg4[%c0_13, %c0_14] : memref<1x128xf32, #tpu.memory_space<vmem>>, vector<1x128xf32>
      %14 = vector.broadcast %13 : vector<1x128xf32> to vector<16x128xf32>
      %15 = arith.addf %12, %14 : vector<16x128xf32>
      %cst_15 = arith.constant 0.000000e+00 : f32
      %16 = vector.broadcast %cst_15 : f32 to vector<16x128xf32>
      %17 = arith.maximumf %15, %16 : vector<16x128xf32>
      %18 = arith.truncf %17 : vector<16x128xf32> to vector<16x128xbf16>
      %c0_16 = arith.constant 0 : index
      %c0_17 = arith.constant 0 : index
      %19 = vector.load %arg8[%c0_16, %c0_17] : memref<16x128xbf16, #tpu.memory_space<vmem>>, vector<16x128xbf16>
      tpu.vector_store %arg8[%c0_16, %c0_17], %18 {strides = array<i32>} : memref<16x128xbf16, #tpu.memory_space<vmem>>, vector<16x128xbf16>,
    } else {
    }
    %c0 = arith.constant 0 : index
    %c0_1 = arith.constant 0 : index
    %3 = vector.load %arg8[%c0, %c0_1] : memref<16x128xbf16, #tpu.memory_space<vmem>>, vector<16x128xbf16>
    %c0_2 = arith.constant 0 : index
    %c0_3 = arith.constant 0 : index
    %4 = vector.load %arg5[%c0_2, %c0_3] : memref<128x128xbf16, #tpu.memory_space<vmem>>, vector<128x128xbf16>
    %cst = arith.constant dense<0.000000e+00> : vector<16x128xf32>
    %5 = tpu.matmul %3, %4, %cst {dimension_numbers = #tpu.dot_dimension_numbers<[1], [0], [0], [1], [0, 0, 1, 1], [], []>} : vector<16x128xbf16>, vector<128x128xbf16>, vector<16x128xf32> -> vector<16x128xf32>
    %c0_4 = arith.constant 0 : index
    %c0_5 = arith.constant 0 : index
    %6 = vector.load %arg6[%c0_4, %c0_5] : memref<1x128xf32, #tpu.memory_space<vmem>>, vector<1x128xf32>
    %7 = vector.broadcast %6 : vector<1x128xf32> to vector<16x128xf32>
    %8 = arith.addf %5, %7 : vector<16x128xf32>
    %c0_6 = arith.constant 0 : index
    %c0_7 = arith.constant 0 : index
    %9 = vector.load %arg7[%c0_6, %c0_7] : memref<16x128xf32, #tpu.memory_space<vmem>>, vector<16x128xf32>
    tpu.vector_store %arg7[%c0_6, %c0_7], %8 {strides = array<i32>} : memref<16x128xf32, #tpu.memory_space<vmem>>, vector<16x128xf32>,
    return
  }
  func.func @transform_0(%arg0: i32, %arg1: i32) -> (i32, i32) {
    %c0_i32 = arith.constant 0 : i32
    %c0_i32_0 = arith.constant 0 : i32
    return %arg0, %c0_i32 : i32, i32
  }
  func.func @transform_1(%arg0: i32, %arg1: i32) -> (i32, i32) {
    %c0_i32 = arith.constant 0 : i32
    %c0_i32_0 = arith.constant 0 : i32
    %c0_i32_1 = arith.constant 0 : i32
    return %c0_i32, %c0_i32_0 : i32, i32
  }
  func.func @transform_2(%arg0: i32, %arg1: i32) -> (i32, i32) {
    %c0_i32 = arith.constant 0 : i32
    %c0_i32_0 = arith.constant 0 : i32
    %c0_i32_1 = arith.constant 0 : i32
    return %c0_i32, %c0_i32_0 : i32, i32
  }
  func.func @transform_3(%arg0: i32, %arg1: i32) -> (i32, i32) {
    %c0_i32 = arith.constant 0 : i32
    %c0_i32_0 = arith.constant 0 : i32
    return %c0_i32, %arg1 : i32, i32
  }
  func.func @transform_4(%arg0: i32, %arg1: i32) -> (i32, i32) {
    %c0_i32 = arith.constant 0 : i32
    %c0_i32_0 = arith.constant 0 : i32
    return %c0_i32, %arg1 : i32, i32
  }
  func.func @transform_5(%arg0: i32, %arg1: i32) -> (i32, i32) {
    %c0_i32 = arith.constant 0 : i32
    return %arg0, %arg1 : i32, i32
  }
}

</mosaic_0001>

<llo_original>
// kernel: meta_bert_3d.27
$region0: #{meta_bert_3d.27}
  #allocation0 [shape = 'u32[]', space=smem, size = 0x4, offset = 0x4, fixed_abs, tag = 'smem constant byte address 0x4 - core index']
  #allocation1 [shape = 'u32[72,128]{1,0:T(1,128)}', space=vmem, size = 0x9000, scoped, tag = 'internal scratch']
  #allocation2 [shape = 'f32[16,128]{1,0:T(8,128)}', space=vmem, size = 0x2000, scoped, tag = 'scratch operand']
  %s0 = inlined_call_operand.vmem [shape: bf16[16,128], index: 0, kind: input, shape index: {}]
  %s1 = inlined_call_operand.hbm [shape: bf16[128,384], index: 1, kind: input, shape index: {}]
  %s2 = inlined_call_operand.vmem [shape: f32[1,384], index: 2, kind: input, shape index: {}]
  %s3 = inlined_call_operand.vmem [shape: bf16[16,384], index: 3, kind: output, shape index: {}]
  %s4 = sld [smem:[#allocation0]]
  $region94: #{meta_bert_3d.27} parent=0
    _
  %s6 = ssub.s32 1, %s4
  %s7 = scalar_select 0, %s6, %s4
  $region1: #{meta_bert_3d.27} parent=0
    #allocation3 [shape = 'u8[65536]{0}', space=vmem, size = 0x10000, scoped, tag = 'input window, operand 1']
    #allocation4 [shape = 's32[2]{0}', space=sflag, size = 0x8, scoped, tag = 'scoped memory for meta_bert_3d.27']
    #allocation5 [shape = 'u8[8192]{0}', space=vmem, size = 0x2000, scoped, tag = 'output window, operand 0']
    %8 = vsyncpa [#allocation4], 0
    %s9 = scalar_lea.sflag [#allocation4], 1
    %10 = vsyncpa %s9, 0
    loop: start=0, step=1, limit=5
    $region2: #{meta_bert_3d.27} parent=1 // loop_pre_header
      _
    $region3: #{meta_bert_3d.27} parent=1 // loop_header
      %s12 = sphi 0, %s16
      %p13 = scmp.ge.s32.totalorder %s12, 5
      %s19 = sphi 0, %s38
      %s20 = sphi 0, %s34
      %s21 = sphi 0, %s30
      %s22 = sphi 0, %s19
      %s23 = sphi 0, %s20
      %s24 = sphi 0, %s21
      %s25 = sphi 0, %s22
      %s26 = sphi 0, %s23
      %s27 = sphi 0, %s24
      %s43 = sphi 0, %s45
      %s46 = sphi 0, %s43
      %s47 = sphi 0, %s46
      %s63 = sphi 0, %s47
      %s71 = sphi 0, %s73
      %s74 = sphi 0, %s71
      %s75 = sphi 0, %s74
      %s91 = sphi 0, %s75
      %s97 = sphi 0, %s99
      %s100 = sphi 0, %s97
      %s101 = sphi 0, %s100
      %s117 = sphi 0, %s101
      %s125 = sphi 0, %s127
      %s128 = sphi 0, %s125
      %s129 = sphi 0, %s128
      %s145 = sphi 0, %s129
    $region4: #{meta_bert_3d.27} parent=1 // loop_header_branch
      %15 = sbr.rel (%p13) target = $region8
    $region5: #{meta_bert_3d.27} parent=1 // loop_body
      %s17 = ssub.s32 %s12, 1
      %s18 = ssub.s32 %s12, 2
      %s28 = sadd.s32 1, %s21
      %p29 = scmp.ge.s32.totalorder %s28, 1
      %s30 = scalar_select %p29, 0, %s28
      %s31 = sadd.s32 1, %s20
      %s32 = scalar_select %p29, %s31, %s20
      %p33 = scmp.ge.s32.totalorder %s32, 3
      %s34 = scalar_select %p33, 0, %s32
      %s35 = sadd.s32 1, %s19
      %s36 = scalar_select %p33, %s35, %s19
      %p37 = scmp.ge.s32.totalorder %s36, 1
      %s38 = scalar_select %p37, 0, %s36
      %s39 = ssub.s32 %s19, %s38
      %s40 = ssub.s32 %s21, %s30
      %s41 = sor.u32 %s39, %s40
      %p42 = scmp.eq.s32.totalorder %s41, 0
      %s44 = sadd.s32 %s43, 1
      %s45 = scalar_select %p42, %s43, %s44
      %p48 = pneg %p42
      %p49 = scmp.eq.s32.totalorder %s12, 2
      %p50 = por %p48, %p49
      %p51 = scmp.ne.s32.totalorder %s43, %s46
      %p52 = scmp.eq.s32.totalorder %s12, 0
      %p53 = por %p51, %p52
      %p54 = scmp.ne.s32.totalorder %s43, %s46
      %p55 = scmp.eq.s32.totalorder %s17, 2
      %p56 = por %p54, %p55
      %p57 = scmp.ne.s32.totalorder %s46, %s47
      %p58 = scmp.eq.s32.totalorder %s17, 0
      %p59 = por %p57, %p58
      %p60 = scmp.ne.s32.totalorder %s46, %s47
      %p61 = scmp.eq.s32.totalorder %s18, 2
      %p62 = por %p60, %p61
      %p64 = scmp.ne.s32.totalorder %s47, %s63
      %p65 = scmp.eq.s32.totalorder %s18, 0
      %p66 = por %p64, %p65
      %s67 = ssub.s32 %s21, %s30
      %s68 = ssub.s32 %s20, %s34
      %s69 = sor.u32 %s67, %s68
      %p70 = scmp.eq.s32.totalorder %s69, 0
      %s72 = sadd.s32 %s71, 1
      %s73 = scalar_select %p70, %s71, %s72
      %p76 = pneg %p70
      %p77 = scmp.eq.s32.totalorder %s12, 2
      %p78 = por %p76, %p77
      %p79 = scmp.ne.s32.totalorder %s71, %s74
      %p80 = scmp.eq.s32.totalorder %s12, 0
      %p81 = por %p79, %p80
      %p82 = scmp.ne.s32.totalorder %s71, %s74
      %p83 = scmp.eq.s32.totalorder %s17, 2
      %p84 = por %p82, %p83
      %p85 = scmp.ne.s32.totalorder %s74, %s75
      %p86 = scmp.eq.s32.totalorder %s17, 0
      %p87 = por %p85, %p86
      %p88 = scmp.ne.s32.totalorder %s74, %s75
      %p89 = scmp.eq.s32.totalorder %s18, 2
      %p90 = por %p88, %p89
      %p92 = scmp.ne.s32.totalorder %s75, %s91
      %p93 = scmp.eq.s32.totalorder %s18, 0
      %p94 = por %p92, %p93
      %s95 = ssub.s32 %s20, %s34
      %p96 = scmp.eq.s32.totalorder %s95, 0
      %s98 = sadd.s32 %s97, 1
      %s99 = scalar_select %p96, %s97, %s98
      %p102 = pneg %p96
      %p103 = scmp.eq.s32.totalorder %s12, 2
      %p104 = por %p102, %p103
      %p105 = scmp.ne.s32.totalorder %s97, %s100
      %p106 = scmp.eq.s32.totalorder %s12, 0
      %p107 = por %p105, %p106
      %p108 = scmp.ne.s32.totalorder %s97, %s100
      %p109 = scmp.eq.s32.totalorder %s17, 2
      %p110 = por %p108, %p109
      %p111 = scmp.ne.s32.totalorder %s100, %s101
      %p112 = scmp.eq.s32.totalorder %s17, 0
      %p113 = por %p111, %p112
      %p114 = scmp.ne.s32.totalorder %s100, %s101
      %p115 = scmp.eq.s32.totalorder %s18, 2
      %p116 = por %p114, %p115
      %p118 = scmp.ne.s32.totalorder %s101, %s117
      %p119 = scmp.eq.s32.totalorder %s18, 0
      %p120 = por %p118, %p119
      %s121 = ssub.s32 %s19, %s38
      %s122 = ssub.s32 %s20, %s34
      %s123 = sor.u32 %s121, %s122
      %p124 = scmp.eq.s32.totalorder %s123, 0
      %s126 = sadd.s32 %s125, 1
      %s127 = scalar_select %p124, %s125, %s126
      %p130 = pneg %p124
      %p131 = scmp.eq.s32.totalorder %s12, 2
      %p132 = por %p130, %p131
      %p133 = scmp.ne.s32.totalorder %s125, %s128
      %p134 = scmp.eq.s32.totalorder %s12, 0
      %p135 = por %p133, %p134
      %p136 = scmp.ne.s32.totalorder %s125, %s128
      %p137 = scmp.eq.s32.totalorder %s17, 2
      %p138 = por %p136, %p137
      %p139 = scmp.ne.s32.totalorder %s128, %s129
      %p140 = scmp.eq.s32.totalorder %s17, 0
      %p141 = por %p139, %p140
      %p142 = scmp.ne.s32.totalorder %s128, %s129
      %p143 = scmp.eq.s32.totalorder %s18, 2
      %p144 = por %p142, %p143
      %p146 = scmp.ne.s32.totalorder %s129, %s145
      %p147 = scmp.eq.s32.totalorder %s18, 0
      %p148 = por %p146, %p147
      %p149 = scmp.le.s32.totalorder 1, %s12
      %p150 = scmp.lt.s32.totalorder %s12, 4
      %p151 = pnand %p149, %p150
      %p152 = pneg %p151
      // Predicated region
      $region9: #{meta_bert_3d.27} parent=5 // pred_check
        _
      $region10: #{meta_bert_3d.27} parent=5 // pred_check_branch
        %154 = sbr.rel (%p151) target = $region12
      $region11: #{meta_bert_3d.27} parent=5 // pred_region
        %s155 = ssub.s32 %s12, 1
        // Predicated region
        $region13: #{meta_bert_3d.27} parent=11 // pred_check
          %p156 = pneg %p59
        $region14: #{meta_bert_3d.27} parent=11 // pred_check_branch
          %158 = sbr.rel (%p156) target = $region16
        $region15: #{meta_bert_3d.27} parent=11 // pred_region
          %s159 = smul.u32 2, %s22
          %p160 = scmp.lt.s32.totalorder %s159, 1
          %s161 = scalar_select %p160, %s159, 1
          %p162 = scmp.lt.s32.totalorder %s24, 0
          %s163 = scalar_select %p162, %s24, 0
          %s164 = sadd.s32 %s163, %s161
          %s165 = smul.addr %s164, 4
          %s166 = scalar_lea.vmem %s0, %s165
          %s167 = smul.u32 2, %s22
        $region16: #{meta_bert_3d.27} parent=11 // pred_fallthru
          _
      $region12: #{meta_bert_3d.27} parent=5 // pred_fallthru
        _
      %p168 = scmp.lt.s32.totalorder %s12, 3
      // Predicated region
      $region17: #{meta_bert_3d.27} parent=5 // pred_check
        %p169 = pneg %p168
      $region18: #{meta_bert_3d.27} parent=5 // pred_check_branch
        %171 = sbr.rel (%p169) target = $region20
      $region19: #{meta_bert_3d.27} parent=5 // pred_region
        // Predicated region
        $region21: #{meta_bert_3d.27} parent=19 // pred_check
          %p172 = pneg %p81
        $region22: #{meta_bert_3d.27} parent=19 // pred_check_branch
          %174 = sbr.rel (%p172) target = $region24
        $region23: #{meta_bert_3d.27} parent=19 // pred_region
          %s175 = sand.u32 %s71, 1
          %s176 = scalar_lea.sflag [#allocation4], %s175
          %s177 = sand.u32 %s71, 1
          %s178 = smul.addr %s177, 64
          %s179 = scalar_lea.vmem [#allocation3], %s178
          %s180 = smul.u32 16, %s21
          %182 = vsyncadd %s176, 0
          %s183 = smul.addr %s180, 3
          %s184 = sadd.s32 %s20, %s183
          %s185 = smul.addr %s184, 4
          %s186 = scalar_lea.hbm %s1, %s185
          %s187 = sshll.u32 %s186, 4
          %s188 = int_to_ptr.hbm [resolvable:$true] %s187
          %s189 = sshll.u32 %s179, 4
          %s190 = int_to_ptr.vmem [resolvable:$true] %s189
          %195 = dma.hbm_to_vmem [thread:$0]  %s188, 1024, %s190, %s176, 192, 64, 4
        $region24: #{meta_bert_3d.27} parent=19 // pred_fallthru
          _
        // Predicated region
        $region25: #{meta_bert_3d.27} parent=19 // pred_check
          %p196 = pneg %p107
        $region26: #{meta_bert_3d.27} parent=19 // pred_check_branch
          %198 = sbr.rel (%p196) target = $region28
        $region27: #{meta_bert_3d.27} parent=19 // pred_region
          %p199 = scmp.lt.s32.totalorder %s20, 2
          %s200 = scalar_select %p199, %s20, 2
          %s201 = scalar_lea.vmem %s2, %s200
        $region28: #{meta_bert_3d.27} parent=19 // pred_fallthru
          _
      $region20: #{meta_bert_3d.27} parent=5 // pred_fallthru
        _
      %p202 = scmp.le.s32.totalorder 1, %s12
      %p203 = scmp.lt.s32.totalorder %s12, 4
      %p204 = pnand %p202, %p203
      %p205 = pneg %p204
      // Predicated region
      $region29: #{meta_bert_3d.27} parent=5 // pred_check
        _
      $region30: #{meta_bert_3d.27} parent=5 // pred_check_branch
        %207 = sbr.rel (%p204) target = $region32
      $region31: #{meta_bert_3d.27} parent=5 // pred_region
        %s208 = ssub.s32 %s12, 1
        %s209 = sand.u32 %s74, 1
        %s210 = scalar_lea.sflag [#allocation4], %s209
        %s211 = sand.u32 %s74, 1
        %s212 = smul.addr %s211, 64
        %s213 = scalar_lea.vmem [#allocation3], %s212
        // Predicated region
        $region33: #{meta_bert_3d.27} parent=31 // pred_check
          %p214 = pneg %p87
        $region34: #{meta_bert_3d.27} parent=31 // pred_check_branch
          %216 = sbr.rel (%p214) target = $region36
        $region35: #{meta_bert_3d.27} parent=31 // pred_region
          %218 = dma.done %s210, 1024
        $region36: #{meta_bert_3d.27} parent=31 // pred_fallthru
          _
        %s219 = smul.u32 2, %s22
        %p220 = scmp.lt.s32.totalorder %s219, 1
        %s221 = scalar_select %p220, %s219, 1
        %p222 = scmp.lt.s32.totalorder %s24, 0
        %s223 = scalar_select %p222, %s24, 0
        %s224 = sadd.s32 %s223, %s221
        %s225 = smul.addr %s224, 4
        %s226 = scalar_lea.vmem %s0, %s225
        %p227 = pneg %p59
        %p228 = pneg %p56
        %s229 = sand.u32 %s74, 1
        %s230 = scalar_lea.sflag [#allocation4], %s229
        %s231 = sand.u32 %s74, 1
        %s232 = smul.addr %s231, 64
        %s233 = scalar_lea.vmem [#allocation3], %s232
        %p234 = pneg %p87
        %p235 = pneg %p84
        %p236 = scmp.lt.s32.totalorder %s23, 2
        %s237 = scalar_select %p236, %s23, 2
        %s238 = scalar_lea.vmem %s2, %s237
        %p239 = pneg %p113
        %p240 = pneg %p110
        %p241 = pneg %p141
        %p242 = pneg %p138
        %s243 = sand.u32 %s128, 1
        %s244 = sand.u32 %s128, 1
        %s245 = smul.addr %s244, 8
        %s246 = scalar_lea.vmem [#allocation5], %s245
        %s247 = smul.u32 2, %s22
        %p248 = scmp.lt.s32.totalorder %s247, 1
        %s249 = scalar_select %p248, %s247, 1
        %p250 = scmp.lt.s32.totalorder %s24, 0
        %s251 = scalar_select %p250, %s24, 0
        %s252 = sadd.s32 %s251, %s249
        %s253 = smul.addr %s252, 4
        %s254 = scalar_lea.vmem %s0, %s253
        %s255 = smul.u32 2, %s22
        %s256 = smul.u32 16, %s24
        %p257 = scmp.lt.s32.totalorder %s23, 2
        %s258 = scalar_select %p257, %s23, 2
        %s259 = scalar_lea.vmem %s2, %s258
        %s260 = smul.u32 2, %s22
        %p261 = scmp.eq.s32.totalorder %s24, 0
        // Predicated region
        $region37: #{meta_bert_3d.27} parent=31 // pred_check
          %p262 = pneg %p261
        $region38: #{meta_bert_3d.27} parent=31 // pred_check_branch
          %264 = sbr.rel (%p262) target = $region40
        $region39: #{meta_bert_3d.27} parent=31 // pred_region
          %265 = vst [vmem:[#allocation2] sm:$0xff] 0.0
          %266 = vst [vmem:[#allocation2 + $0x8] sm:$0xff] 0.0
        $region40: #{meta_bert_3d.27} parent=31 // pred_fallthru
          _
        %v267 = vld [vmem:[#allocation2] sm:$0xff]
        %v268 = vld [vmem:[#allocation2 + $0x8] sm:$0xff]
        %v269 = vld [vmem:[%s254] sm:$0xf]
        %v270 = vld [vmem:[%s254 + $0x4] sm:$0xf]
        %v271 = vld [vmem:[%s213] sm:$0xf]
        %v272 = vld [vmem:[%s213 + $0x4] sm:$0xf]
        %v273 = vld [vmem:[%s213 + $0x8] sm:$0xf]
        %v274 = vld [vmem:[%s213 + $0xc] sm:$0xf]
        %v275 = vld [vmem:[%s213 + $0x10] sm:$0xf]
        %v276 = vld [vmem:[%s213 + $0x14] sm:$0xf]
        %v277 = vld [vmem:[%s213 + $0x18] sm:$0xf]
        %v278 = vld [vmem:[%s213 + $0x1c] sm:$0xf]
        %v279 = vld [vmem:[%s213 + $0x20] sm:$0xf]
        %v280 = vld [vmem:[%s213 + $0x24] sm:$0xf]
        %v281 = vld [vmem:[%s213 + $0x28] sm:$0xf]
        %v282 = vld [vmem:[%s213 + $0x2c] sm:$0xf]
        %v283 = vld [vmem:[%s213 + $0x30] sm:$0xf]
        %v284 = vld [vmem:[%s213 + $0x34] sm:$0xf]
        %v285 = vld [vmem:[%s213 + $0x38] sm:$0xf]
        %v286 = vld [vmem:[%s213 + $0x3c] sm:$0xf]
        %v289 = vunpack.c.l.b16 %v269
        %v290 = vunpack.c.l.b16 %v270
        %v291 = vpack.c.b16 %v290, %v289
        %v309 = vunpack.c.l.b16 %v271
        %v310 = vunpack.c.l.b16 %v272
        %v311 = vunpack.c.l.b16 %v273
        %v312 = vunpack.c.l.b16 %v274
        %v313 = vunpack.c.l.b16 %v275
        %v314 = vunpack.c.l.b16 %v276
        %v315 = vunpack.c.l.b16 %v277
        %v316 = vunpack.c.l.b16 %v278
        %v317 = vunpack.c.l.b16 %v279
        %v318 = vunpack.c.l.b16 %v280
        %v319 = vunpack.c.l.b16 %v281
        %v320 = vunpack.c.l.b16 %v282
        %v321 = vunpack.c.l.b16 %v283
        %v322 = vunpack.c.l.b16 %v284
        %v323 = vunpack.c.l.b16 %v285
        %v324 = vunpack.c.l.b16 %v286
        %v325 = vpack.c.b16 %v310, %v309
        %v326 = vpack.c.b16 %v312, %v311
        %v327 = vpack.c.b16 %v314, %v313
        %v328 = vpack.c.b16 %v316, %v315
        %v329 = vpack.c.b16 %v318, %v317
        %v330 = vpack.c.b16 %v320, %v319
        %v331 = vpack.c.b16 %v322, %v321
        %v332 = vpack.c.b16 %v324, %v323
        %341 = vmatpush.bf16.msra.mxu0 %v332
        %342 = vmatpush.bf16.msra.mxu0 %v331
        %343 = vmatpush.bf16.msra.mxu0 %v330
        %344 = vmatpush.bf16.msra.mxu0 %v329
        %345 = vmatpush.bf16.msra.mxu0 %v328
        %346 = vmatpush.bf16.msra.mxu0 %v327
        %347 = vmatpush.bf16.msra.mxu0 %v326
        %348 = vmatpush.bf16.msra.mxu0 %v325
        %349 = vmatmul.bf16.gmra.mxu0 %v291
        %v350 = vpop.f32.mrf.mxu0
        %v351 = vadd.f32 0.0, %v350
        %v352 = vpop.f32.mrf.mxu0
        %v353 = vadd.f32 0.0, %v352
        %354 = vdwg.mxu0
        %v355 = vadd.f32 %v267, %v351
        %v356 = vadd.f32 %v268, %v353
        %357 = vst [vmem:[#allocation2] sm:$0xff] %v355
        %358 = vst [vmem:[#allocation2 + $0x8] sm:$0xff] %v356
        // Predicated region
        $region41: #{meta_bert_3d.27} parent=31 // pred_check
          %p359 = pneg %p261
        $region42: #{meta_bert_3d.27} parent=31 // pred_check_branch
          %361 = sbr.rel (%p359) target = $region44
        $region43: #{meta_bert_3d.27} parent=31 // pred_region
          %v362 = vld [vmem:[#allocation2] sm:$0xff]
          %v363 = vld [vmem:[#allocation2 + $0x8] sm:$0xff]
          %v364 = vld [vmem:[%s259] sm:$0x1]
          %v366 = vperm.slane %v364, 0
          %v368 = vadd.f32 %v362, %v366
          %v369 = vadd.f32 %v363, %v366
          %v370 = vpack.c.bf16 %v368, %v368
          %v371 = vpack.c.bf16 %v369, %v369
          %372 = vst [vmem:[%s246] sm:$0xf] %v370
          %373 = vst [vmem:[%s246 + $0x4] sm:$0xf] %v371
        $region44: #{meta_bert_3d.27} parent=31 // pred_fallthru
          _
        %s374 = sand.u32 %s128, 1
        %s375 = sand.u32 %s128, 1
        %s376 = smul.addr %s375, 8
        %s377 = scalar_lea.vmem [#allocation5], %s376
        // Predicated region
        $region45: #{meta_bert_3d.27} parent=31 // pred_check
          %p378 = pneg %p138
        $region46: #{meta_bert_3d.27} parent=31 // pred_check_branch
          %380 = sbr.rel (%p378) target = $region48
        $region47: #{meta_bert_3d.27} parent=31 // pred_region
          %s381 = smul.u32 2, %s22
          %s382 = smul.addr %s381, 3
          %s383 = sadd.s32 %s23, %s382
          %s384 = smul.addr %s383, 4
          %s385 = scalar_lea.vmem %s3, %s384
          // Predicated region
          $region49: #{meta_bert_3d.27} parent=47 // pred_check
            _
          $region50: #{meta_bert_3d.27} parent=47 // pred_check_branch
            %387 = sbr.rel (0) target = $region52
          $region51: #{meta_bert_3d.27} parent=47 // pred_region
            // Predicated region
            $region53: #{meta_bert_3d.27} parent=51 // pred_check
              _
            $region54: #{meta_bert_3d.27} parent=51 // pred_check_branch
              %389 = sbr.rel target = $region56
            $region55: #{meta_bert_3d.27} parent=51 // pred_region
              // Predicated region
              $region68: #{meta_bert_3d.27} parent=55 // pred_check
                _
              $region69: #{meta_bert_3d.27} parent=55 // pred_check_branch
                %407 = sbr.rel (0) target = $region71
              $region70: #{meta_bert_3d.27} parent=55 // pred_region
                loop: start=0, step=1, limit=1
                $region72: #{meta_bert_3d.27} parent=70 // loop_pre_header
                  _
                $region73: #{meta_bert_3d.27} parent=70 // loop_header
                  %s409 = sphi 0, %s413
                  %p410 = scmp.ge.s32.totalorder %s409, 1
                  %s414 = sphi %s377, %s377
                  %s415 = sphi %s385, %s385
                $region74: #{meta_bert_3d.27} parent=70 // loop_header_branch
                  %412 = sbr.rel (%p410) target = $region78
                $region75: #{meta_bert_3d.27} parent=70 // loop_body
                  _
                $region76: #{meta_bert_3d.27} parent=70 // loop_footer
                  %s413 = sadd.s32 1, %s409
                $region77: #{meta_bert_3d.27} parent=70 // loop_footer_branch
                  %408 = sbr.rel target = $region73
                $region78: #{meta_bert_3d.27} parent=70 // loop_exit
                  _
                %s417 = ssub.s32 16, 1
                loop: start=0, step=1, limit=1
                $region79: #{meta_bert_3d.27} parent=70 // loop_pre_header
                  _
                $region80: #{meta_bert_3d.27} parent=70 // loop_header
                  %s419 = sphi 0, %s423
                  %p420 = scmp.ge.s32.totalorder %s419, 1
                  %s424 = sphi %s377, %s377
                  %s425 = sphi %s385, %s385
                $region81: #{meta_bert_3d.27} parent=70 // loop_header_branch
                  %422 = sbr.rel (%p420) target = $region85
                $region82: #{meta_bert_3d.27} parent=70 // loop_body
                  %v426 = vld [vmem:[%s424] sm:%s417]
                  %427 = vst [vmem:[%s425] sm:%s417] %v426
                  %v428 = vld [vmem:[%s424 + $0x4] sm:%s417]
                  %429 = vst [vmem:[%s425 + $0xc] sm:%s417] %v428
                $region83: #{meta_bert_3d.27} parent=70 // loop_footer
                  %s423 = sadd.s32 1, %s419
                $region84: #{meta_bert_3d.27} parent=70 // loop_footer_branch
                  %418 = sbr.rel target = $region80
                $region85: #{meta_bert_3d.27} parent=70 // loop_exit
                  _
              $region71: #{meta_bert_3d.27} parent=55 // pred_fallthru
                _
            $region56: #{meta_bert_3d.27} parent=51 // pred_fallthru
              _
            // Predicated region
            $region57: #{meta_bert_3d.27} parent=51 // pred_check
              _
            $region58: #{meta_bert_3d.27} parent=51 // pred_check_branch
              %391 = sbr.rel (0) target = $region60
            $region59: #{meta_bert_3d.27} parent=51 // pred_region
              %s393 = ssub.s32 16, 1
              loop: start=0, step=1, limit=1
              $region61: #{meta_bert_3d.27} parent=59 // loop_pre_header
                _
              $region62: #{meta_bert_3d.27} parent=59 // loop_header
                %s395 = sphi 0, %s399
                %p396 = scmp.ge.s32.totalorder %s395, 1
                %s400 = sphi %s377, %s377
                %s401 = sphi %s385, %s385
              $region63: #{meta_bert_3d.27} parent=59 // loop_header_branch
                %398 = sbr.rel (%p396) target = $region67
              $region64: #{meta_bert_3d.27} parent=59 // loop_body
                %v402 = vld [vmem:[%s400] sm:%s393]
                %403 = vst [vmem:[%s401] sm:%s393] %v402
                %v404 = vld [vmem:[%s400 + $0x4] sm:%s393]
                %405 = vst [vmem:[%s401 + $0xc] sm:%s393] %v404
              $region65: #{meta_bert_3d.27} parent=59 // loop_footer
                %s399 = sadd.s32 1, %s395
              $region66: #{meta_bert_3d.27} parent=59 // loop_footer_branch
                %394 = sbr.rel target = $region62
              $region67: #{meta_bert_3d.27} parent=59 // loop_exit
                _
            $region60: #{meta_bert_3d.27} parent=51 // pred_fallthru
              _
          $region52: #{meta_bert_3d.27} parent=47 // pred_fallthru
            _
          %430 = vnop
        $region48: #{meta_bert_3d.27} parent=31 // pred_fallthru
          _
      $region32: #{meta_bert_3d.27} parent=5 // pred_fallthru
        _
      %p431 = scmp.le.s32.totalorder 2, %s12
      // Predicated region
      $region86: #{meta_bert_3d.27} parent=5 // pred_check
        %p432 = pneg %p431
      $region87: #{meta_bert_3d.27} parent=5 // pred_check_branch
        %434 = sbr.rel (%p432) target = $region89
      $region88: #{meta_bert_3d.27} parent=5 // pred_region
        %s435 = ssub.s32 %s12, 2
        // Predicated region
        $region90: #{meta_bert_3d.27} parent=88 // pred_check
          %p436 = pneg %p144
        $region91: #{meta_bert_3d.27} parent=88 // pred_check_branch
          %438 = sbr.rel (%p436) target = $region93
        $region92: #{meta_bert_3d.27} parent=88 // pred_region
          %s439 = sand.u32 %s129, 1
          %s440 = sand.u32 %s129, 1
          %s441 = smul.addr %s440, 8
          %s442 = scalar_lea.vmem [#allocation5], %s441
        $region93: #{meta_bert_3d.27} parent=88 // pred_fallthru
          _
      $region89: #{meta_bert_3d.27} parent=5 // pred_fallthru
        _
    $region6: #{meta_bert_3d.27} parent=1 // loop_footer
      %s16 = sadd.s32 1, %s12
    $region7: #{meta_bert_3d.27} parent=1 // loop_footer_branch
      %11 = sbr.rel target = $region3
    $region8: #{meta_bert_3d.27} parent=1 // loop_exit
      _
    %443 = vsyncpa [#allocation4], 1
    %s444 = scalar_lea.sflag [#allocation4], 1
    %445 = vsyncpa %s444, 1

// kernel: meta_bert_3d.26
$region0: #{meta_bert_3d.26}
  #allocation0 [shape = 'u32[]', space=smem, size = 0x4, offset = 0x4, fixed_abs, tag = 'smem constant byte address 0x4 - core index']
  #allocation1 [shape = 'u32[72,128]{1,0:T(1,128)}', space=vmem, size = 0x9000, scoped, tag = 'internal scratch']
  %s0 = inlined_call_operand.vmem [shape: bf16[16,128], index: 0, kind: input, shape index: {}]
  %s1 = inlined_call_operand.vmem [shape: f32[1,128], index: 1, kind: input, shape index: {}]
  %s2 = inlined_call_operand.vmem [shape: f32[1,128], index: 2, kind: input, shape index: {}]
  %s3 = inlined_call_operand.vmem [shape: bf16[16,128], index: 3, kind: output, shape index: {}]
  %s4 = sld [smem:[#allocation0]]
  $region22: #{meta_bert_3d.26} parent=0
    _
  %s6 = ssub.s32 1, %s4
  %s7 = scalar_select 0, %s6, %s4
  // Predicated region
  $region2: #{meta_bert_3d.26} parent=0 // pred_check
    _
  $region3: #{meta_bert_3d.26} parent=0 // pred_check_branch
    %9 = sbr.rel (0) target = $region5
  $region4: #{meta_bert_3d.26} parent=0 // pred_region
    _
  $region5: #{meta_bert_3d.26} parent=0 // pred_fallthru
    _
  // Predicated region
  $region6: #{meta_bert_3d.26} parent=0 // pred_check
    _
  $region7: #{meta_bert_3d.26} parent=0 // pred_check_branch
    %11 = sbr.rel (0) target = $region9
  $region8: #{meta_bert_3d.26} parent=0 // pred_region
    _
  $region9: #{meta_bert_3d.26} parent=0 // pred_fallthru
    _
  // Predicated region
  $region10: #{meta_bert_3d.26} parent=0 // pred_check
    _
  $region11: #{meta_bert_3d.26} parent=0 // pred_check_branch
    %13 = sbr.rel (0) target = $region13
  $region12: #{meta_bert_3d.26} parent=0 // pred_region
    _
  $region13: #{meta_bert_3d.26} parent=0 // pred_fallthru
    _
  %v14 = vld [vmem:[%s0] sm:$0xf]
  %v15 = vld [vmem:[%s0 + $0x4] sm:$0xf]
  %v16 = vunpack.c.l.bf16 %v14
  %v17 = vunpack.c.l.bf16 %v15
  %18 = vadd.xlane.f32.xlu0 %v16
  %v19 = vpop.xlane.xlu0 %18
  %20 = vadd.xlane.f32.xlu0 %v17
  %v21 = vpop.xlane.xlu0 %20
  %v22 = vrcp.pop 128.0
  %v23 = vmul.f32 128.0, %v22
  %v24 = vsub.f32 1.0, %v23
  %v25 = vmul.f32 %v22, %v24
  %v26 = vadd.f32 %v22, %v25
  %vm27 = vweird.f32 %v22
  %v28 = vsel %vm27, %v22, %v26
  %v29 = vmul.f32 %v19, %v28
  %v30 = vmul.f32 %v21, %v28
  %v31 = vsub.f32 %v16, %v29
  %v32 = vsub.f32 %v17, %v30
  %v33 = vmul.f32 %v31, %v31
  %v34 = vmul.f32 %v32, %v32
  %35 = vadd.xlane.f32.xlu0 %v33
  %v36 = vpop.xlane.xlu0 %35
  %37 = vadd.xlane.f32.xlu0 %v34
  %v38 = vpop.xlane.xlu0 %37
  %v39 = vmul.f32 %v36, %v28
  %v40 = vmul.f32 %v38, %v28
  %v41 = vadd.f32 %v39, 1e-05
  %v42 = vadd.f32 %v40, 1e-05
  %v43 = vrsqrt.pop %v41
  %v44 = vmul.f32 %v43, %v41
  %v45 = vmul.f32 %v44, %v43
  %v46 = vmul.f32 0.5, %v45
  %v47 = vsub.f32 1.5, %v46
  %v48 = vmul.f32 %v43, %v47
  %vm49 = vweird.f32 %v41
  %vm50 = vweird.f32 %v43
  %vm51 = vmor %vm49, %vm50
  %v52 = vsel %vm51, %v43, %v48
  %v53 = vrsqrt.pop %v42
  %v54 = vmul.f32 %v53, %v42
  %v55 = vmul.f32 %v54, %v53
  %v56 = vmul.f32 0.5, %v55
  %v57 = vsub.f32 1.5, %v56
  %v58 = vmul.f32 %v53, %v57
  %vm59 = vweird.f32 %v42
  %vm60 = vweird.f32 %v53
  %vm61 = vmor %vm59, %vm60
  %v62 = vsel %vm61, %v53, %v58
  %v63 = vmul.f32 %v31, %v52
  %v64 = vmul.f32 %v32, %v62
  %v65 = vld [vmem:[%s1] sm:$0x1]
  %v67 = vperm.slane %v65, 0
  %v69 = vmul.f32 %v63, %v67
  %v70 = vmul.f32 %v64, %v67
  %v71 = vld [vmem:[%s2] sm:$0x1]
  %v73 = vperm.slane %v71, 0
  %v75 = vadd.f32 %v69, %v73
  %v76 = vadd.f32 %v70, %v73
  %v77 = vpack.c.bf16 %v75, %v75
  %v78 = vpack.c.bf16 %v76, %v76
  %79 = vst [vmem:[%s3] sm:$0xf] %v77
  %80 = vst [vmem:[%s3 + $0x4] sm:$0xf] %v78
  // Predicated region
  $region14: #{meta_bert_3d.26} parent=0 // pred_check
    _
  $region15: #{meta_bert_3d.26} parent=0 // pred_check_branch
    %82 = sbr.rel (0) target = $region17
  $region16: #{meta_bert_3d.26} parent=0 // pred_region
    _
  $region17: #{meta_bert_3d.26} parent=0 // pred_fallthru
    _
  // Predicated region
  $region18: #{meta_bert_3d.26} parent=0 // pred_check
    _
  $region19: #{meta_bert_3d.26} parent=0 // pred_check_branch
    %84 = sbr.rel (0) target = $region21
  $region20: #{meta_bert_3d.26} parent=0 // pred_region
    _
  $region21: #{meta_bert_3d.26} parent=0 // pred_fallthru
    _

// kernel: meta_bert_3d.21
$region0: #{meta_bert_3d.21}
  #allocation0 [shape = 'u32[]', space=smem, size = 0x4, offset = 0x4, fixed_abs, tag = 'smem constant byte address 0x4 - core index']
  #allocation1 [shape = 'u32[72,128]{1,0:T(1,128)}', space=vmem, size = 0x9000, scoped, tag = 'internal scratch']
  #allocation2 [shape = 'f32[32,128]{1,0:T(8,128)}', space=vmem, size = 0x4000, scoped, tag = 'scratch operand']
  %s0 = inlined_call_operand.vmem [shape: bf16[32,3], index: 0, kind: input, shape index: {}]
  %s1 = inlined_call_operand.vmem [shape: bf16[3,128], index: 1, kind: input, shape index: {}]
  %s2 = inlined_call_operand.vmem [shape: f32[1,128], index: 2, kind: input, shape index: {}]
  %s3 = inlined_call_operand.vmem [shape: bf16[32,128], index: 3, kind: output, shape index: {}]
  %s4 = sld [smem:[#allocation0]]
  $region30: #{meta_bert_3d.21} parent=0
    _
  %s6 = ssub.s32 1, %s4
  %s7 = scalar_select 0, %s6, %s4
  // Predicated region
  $region2: #{meta_bert_3d.21} parent=0 // pred_check
    _
  $region3: #{meta_bert_3d.21} parent=0 // pred_check_branch
    %9 = sbr.rel (0) target = $region5
  $region4: #{meta_bert_3d.21} parent=0 // pred_region
    _
  $region5: #{meta_bert_3d.21} parent=0 // pred_fallthru
    _
  // Predicated region
  $region6: #{meta_bert_3d.21} parent=0 // pred_check
    _
  $region7: #{meta_bert_3d.21} parent=0 // pred_check_branch
    %11 = sbr.rel (0) target = $region9
  $region8: #{meta_bert_3d.21} parent=0 // pred_region
    _
  $region9: #{meta_bert_3d.21} parent=0 // pred_fallthru
    _
  // Predicated region
  $region10: #{meta_bert_3d.21} parent=0 // pred_check
    _
  $region11: #{meta_bert_3d.21} parent=0 // pred_check_branch
    %13 = sbr.rel (0) target = $region13
  $region12: #{meta_bert_3d.21} parent=0 // pred_region
    _
  $region13: #{meta_bert_3d.21} parent=0 // pred_fallthru
    _
  %p15 = scmp.eq.s32.totalorder 0, 0
  // Predicated region
  $region14: #{meta_bert_3d.21} parent=0 // pred_check
    %p16 = pneg %p15
  $region15: #{meta_bert_3d.21} parent=0 // pred_check_branch
    %18 = sbr.rel (%p16) target = $region17
  $region16: #{meta_bert_3d.21} parent=0 // pred_region
    %19 = vst [vmem:[#allocation2] sm:$0xff] 0.0
    %20 = vst [vmem:[#allocation2 + $0x8] sm:$0xff] 0.0
    %21 = vst [vmem:[#allocation2 + $0x10] sm:$0xff] 0.0
    %22 = vst [vmem:[#allocation2 + $0x18] sm:$0xff] 0.0
  $region17: #{meta_bert_3d.21} parent=0 // pred_fallthru
    _
  %v23 = vld [vmem:[#allocation2] sm:$0xff]
  %v24 = vld [vmem:[#allocation2 + $0x8] sm:$0xff]
  %v25 = vld [vmem:[#allocation2 + $0x10] sm:$0xff]
  %v26 = vld [vmem:[#allocation2 + $0x18] sm:$0xff]
  %v27 = vld [vmem:[%s0] sm:$0xf]
  %v28 = vld [vmem:[%s0 + $0x4] sm:$0xf]
  %v29 = vld [vmem:[%s0 + $0x8] sm:$0xf]
  %v30 = vld [vmem:[%s0 + $0xc] sm:$0xf]
  %v31 = vld [vmem:[%s1] sm:$0x3]
  %v36 = vunpack.c.l.b16 %v27
  %v37 = vunpack.c.l.b16 %v28
  %v38 = vunpack.c.l.b16 %v29
  %v39 = vunpack.c.l.b16 %v30
  %v40 = vpack.c.b16 %v37, %v36
  %v41 = vpack.c.b16 %v39, %v38
  %vm42 = vcmask 23552
  %v44 = vsel %vm42, %v40, 0
  %v47 = vsel %vm42, %v41, 0
  %vm49 = vcmask 1040384
  %vm50 = vcmask 1041408
  %v51 = vsel %vm49, 4294967295, 65535
  %v52 = vsel %vm50, %v51, 0
  %v54 = vand.u32 %v31, %v52
  %56 = vmatpush.bf16.msra.mxu0 0
  %57 = vmatpush.bf16.msra.mxu0 0
  %58 = vmatpush.bf16.msra.mxu0 0
  %59 = vmatpush.bf16.msra.mxu0 0
  %60 = vmatpush.bf16.msra.mxu0 0
  %61 = vmatpush.bf16.msra.mxu0 0
  %62 = vmatpush.bf16.msra.mxu0 0
  %63 = vmatpush.bf16.msra.mxu0 %v54
  %64 = vmatmul.bf16.gmra.mxu0 %v44
  %v65 = vpop.f32.mrf.mxu0
  %v66 = vadd.f32 0.0, %v65
  %v67 = vpop.f32.mrf.mxu0
  %v68 = vadd.f32 0.0, %v67
  %69 = vmatmul.bf16.gmra.mxu0 %v47
  %v70 = vpop.f32.mrf.mxu0
  %v71 = vadd.f32 0.0, %v70
  %v72 = vpop.f32.mrf.mxu0
  %v73 = vadd.f32 0.0, %v72
  %74 = vdwg.mxu0
  %v75 = vadd.f32 %v23, %v66
  %v76 = vadd.f32 %v24, %v68
  %v77 = vadd.f32 %v25, %v71
  %v78 = vadd.f32 %v26, %v73
  %79 = vst [vmem:[#allocation2] sm:$0xff] %v75
  %80 = vst [vmem:[#allocation2 + $0x8] sm:$0xff] %v76
  %81 = vst [vmem:[#allocation2 + $0x10] sm:$0xff] %v77
  %82 = vst [vmem:[#allocation2 + $0x18] sm:$0xff] %v78
  // Predicated region
  $region18: #{meta_bert_3d.21} parent=0 // pred_check
    %p83 = pneg %p15
  $region19: #{meta_bert_3d.21} parent=0 // pred_check_branch
    %85 = sbr.rel (%p83) target = $region21
  $region20: #{meta_bert_3d.21} parent=0 // pred_region
    %v86 = vld [vmem:[#allocation2] sm:$0xff]
    %v87 = vld [vmem:[#allocation2 + $0x8] sm:$0xff]
    %v88 = vld [vmem:[#allocation2 + $0x10] sm:$0xff]
    %v89 = vld [vmem:[#allocation2 + $0x18] sm:$0xff]
    %v90 = vld [vmem:[%s2] sm:$0x1]
    %v92 = vperm.slane %v90, 0
    %v94 = vadd.f32 %v86, %v92
    %v95 = vadd.f32 %v87, %v92
    %v96 = vadd.f32 %v88, %v92
    %v97 = vadd.f32 %v89, %v92
    %v98 = vpack.c.bf16 %v94, %v94
    %v99 = vpack.c.bf16 %v95, %v95
    %v100 = vpack.c.bf16 %v96, %v96
    %v101 = vpack.c.bf16 %v97, %v97
    %102 = vst [vmem:[%s3] sm:$0xf] %v98
    %103 = vst [vmem:[%s3 + $0x4] sm:$0xf] %v99
    %104 = vst [vmem:[%s3 + $0x8] sm:$0xf] %v100
    %105 = vst [vmem:[%s3 + $0xc] sm:$0xf] %v101
  $region21: #{meta_bert_3d.21} parent=0 // pred_fallthru
    _
  // Predicated region
  $region22: #{meta_bert_3d.21} parent=0 // pred_check
    _
  $region23: #{meta_bert_3d.21} parent=0 // pred_check_branch
    %107 = sbr.rel (0) target = $region25
  $region24: #{meta_bert_3d.21} parent=0 // pred_region
    _
  $region25: #{meta_bert_3d.21} parent=0 // pred_fallthru
    _
  // Predicated region
  $region26: #{meta_bert_3d.21} parent=0 // pred_check
    _
  $region27: #{meta_bert_3d.21} parent=0 // pred_check_branch
    %109 = sbr.rel (0) target = $region29
  $region28: #{meta_bert_3d.21} parent=0 // pred_region
    _
  $region29: #{meta_bert_3d.21} parent=0 // pred_fallthru
    _

// kernel: meta_bert_3d.28
$region0: #{meta_bert_3d.28}
  #allocation0 [shape = 'u32[]', space=smem, size = 0x4, offset = 0x4, fixed_abs, tag = 'smem constant byte address 0x4 - core index']
  #allocation1 [shape = 'u32[72,128]{1,0:T(1,128)}', space=vmem, size = 0x9000, scoped, tag = 'internal scratch']
  #allocation2 [shape = 'f32[4,8,1]{2,1,0:T(8,128)}', space=vmem, size = 0x4000, scoped, tag = 'scratch operand']
  #allocation3 [shape = 'f32[4,8,1]{2,1,0:T(8,128)}', space=vmem, size = 0x4000, scoped, tag = 'scratch operand']
  #allocation4 [shape = 'f32[8,128]{1,0:T(8,128)}', space=vmem, size = 0x1000, scoped, tag = 'scratch operand']
  %s0 = inlined_call_operand.vmem [shape: bf16[2,8,384], index: 0, kind: input, shape index: {}, may-alias: {0,1}]
  %s1 = inlined_call_operand.vmem [shape: bf16[2,8,384], index: 1, kind: input, shape index: {}, may-alias: {0,1}]
  %s2 = inlined_call_operand.vmem [shape: f32[2,1,8], index: 2, kind: input, shape index: {}]
  %s3 = inlined_call_operand.vmem [shape: bf16[2,8,128], index: 3, kind: output, shape index: {}]
  %s4 = sld [smem:[#allocation0]]
  $region53: #{meta_bert_3d.28} parent=0
    _
  %s6 = ssub.s32 1, %s4
  %s7 = scalar_select 0, %s6, %s4
  loop: start=0, step=1, limit=4
  $region2: #{meta_bert_3d.28} parent=0 // loop_pre_header
    _
  $region3: #{meta_bert_3d.28} parent=0 // loop_header
    %s9 = sphi 0, %s13
    %p10 = scmp.ge.s32.totalorder %s9, 4
    %s16 = sphi 0, %s35
    %s17 = sphi 0, %s31
    %s18 = sphi 0, %s27
    %s19 = sphi 0, %s16
    %s20 = sphi 0, %s17
    %s21 = sphi 0, %s18
    %s22 = sphi 0, %s19
    %s23 = sphi 0, %s20
    %s24 = sphi 0, %s21
    %s40 = sphi 0, %s42
    %s43 = sphi 0, %s40
    %s44 = sphi 0, %s43
    %s60 = sphi 0, %s44
    %s68 = sphi 0, %s70
    %s71 = sphi 0, %s68
    %s72 = sphi 0, %s71
    %s88 = sphi 0, %s72
    %s96 = sphi 0, %s98
    %s99 = sphi 0, %s96
    %s100 = sphi 0, %s99
    %s116 = sphi 0, %s100
    %s124 = sphi 0, %s126
    %s127 = sphi 0, %s124
    %s128 = sphi 0, %s127
    %s144 = sphi 0, %s128
  $region4: #{meta_bert_3d.28} parent=0 // loop_header_branch
    %12 = sbr.rel (%p10) target = $region8
  $region5: #{meta_bert_3d.28} parent=0 // loop_body
    %s14 = ssub.s32 %s9, 1
    %s15 = ssub.s32 %s9, 2
    %s25 = sadd.s32 1, %s18
    %p26 = scmp.ge.s32.totalorder %s25, 1
    %s27 = scalar_select %p26, 0, %s25
    %s28 = sadd.s32 1, %s17
    %s29 = scalar_select %p26, %s28, %s17
    %p30 = scmp.ge.s32.totalorder %s29, 1
    %s31 = scalar_select %p30, 0, %s29
    %s32 = sadd.s32 1, %s16
    %s33 = scalar_select %p30, %s32, %s16
    %p34 = scmp.ge.s32.totalorder %s33, 2
    %s35 = scalar_select %p34, 0, %s33
    %s36 = ssub.s32 %s16, %s35
    %s37 = ssub.s32 %s17, %s31
    %s38 = sor.u32 %s36, %s37
    %p39 = scmp.eq.s32.totalorder %s38, 0
    %s41 = sadd.s32 %s40, 1
    %s42 = scalar_select %p39, %s40, %s41
    %p45 = pneg %p39
    %p46 = scmp.eq.s32.totalorder %s9, 1
    %p47 = por %p45, %p46
    %p48 = scmp.ne.s32.totalorder %s40, %s43
    %p49 = scmp.eq.s32.totalorder %s9, 0
    %p50 = por %p48, %p49
    %p51 = scmp.ne.s32.totalorder %s40, %s43
    %p52 = scmp.eq.s32.totalorder %s14, 1
    %p53 = por %p51, %p52
    %p54 = scmp.ne.s32.totalorder %s43, %s44
    %p55 = scmp.eq.s32.totalorder %s14, 0
    %p56 = por %p54, %p55
    %p57 = scmp.ne.s32.totalorder %s43, %s44
    %p58 = scmp.eq.s32.totalorder %s15, 1
    %p59 = por %p57, %p58
    %p61 = scmp.ne.s32.totalorder %s44, %s60
    %p62 = scmp.eq.s32.totalorder %s15, 0
    %p63 = por %p61, %p62
    %s64 = ssub.s32 %s16, %s35
    %s65 = ssub.s32 %s18, %s27
    %s66 = sor.u32 %s64, %s65
    %p67 = scmp.eq.s32.totalorder %s66, 0
    %s69 = sadd.s32 %s68, 1
    %s70 = scalar_select %p67, %s68, %s69
    %p73 = pneg %p67
    %p74 = scmp.eq.s32.totalorder %s9, 1
    %p75 = por %p73, %p74
    %p76 = scmp.ne.s32.totalorder %s68, %s71
    %p77 = scmp.eq.s32.totalorder %s9, 0
    %p78 = por %p76, %p77
    %p79 = scmp.ne.s32.totalorder %s68, %s71
    %p80 = scmp.eq.s32.totalorder %s14, 1
    %p81 = por %p79, %p80
    %p82 = scmp.ne.s32.totalorder %s71, %s72
    %p83 = scmp.eq.s32.totalorder %s14, 0
    %p84 = por %p82, %p83
    %p85 = scmp.ne.s32.totalorder %s71, %s72
    %p86 = scmp.eq.s32.totalorder %s15, 1
    %p87 = por %p85, %p86
    %p89 = scmp.ne.s32.totalorder %s72, %s88
    %p90 = scmp.eq.s32.totalorder %s15, 0
    %p91 = por %p89, %p90
    %s92 = ssub.s32 %s16, %s35
    %s93 = ssub.s32 %s18, %s27
    %s94 = sor.u32 %s92, %s93
    %p95 = scmp.eq.s32.totalorder %s94, 0
    %s97 = sadd.s32 %s96, 1
    %s98 = scalar_select %p95, %s96, %s97
    %p101 = pneg %p95
    %p102 = scmp.eq.s32.totalorder %s9, 1
    %p103 = por %p101, %p102
    %p104 = scmp.ne.s32.totalorder %s96, %s99
    %p105 = scmp.eq.s32.totalorder %s9, 0
    %p106 = por %p104, %p105
    %p107 = scmp.ne.s32.totalorder %s96, %s99
    %p108 = scmp.eq.s32.totalorder %s14, 1
    %p109 = por %p107, %p108
    %p110 = scmp.ne.s32.totalorder %s99, %s100
    %p111 = scmp.eq.s32.totalorder %s14, 0
    %p112 = por %p110, %p111
    %p113 = scmp.ne.s32.totalorder %s99, %s100
    %p114 = scmp.eq.s32.totalorder %s15, 1
    %p115 = por %p113, %p114
    %p117 = scmp.ne.s32.totalorder %s100, %s116
    %p118 = scmp.eq.s32.totalorder %s15, 0
    %p119 = por %p117, %p118
    %s120 = ssub.s32 %s16, %s35
    %s121 = ssub.s32 %s17, %s31
    %s122 = sor.u32 %s120, %s121
    %p123 = scmp.eq.s32.totalorder %s122, 0
    %s125 = sadd.s32 %s124, 1
    %s126 = scalar_select %p123, %s124, %s125
    %p129 = pneg %p123
    %p130 = scmp.eq.s32.totalorder %s9, 1
    %p131 = por %p129, %p130
    %p132 = scmp.ne.s32.totalorder %s124, %s127
    %p133 = scmp.eq.s32.totalorder %s9, 0
    %p134 = por %p132, %p133
    %p135 = scmp.ne.s32.totalorder %s124, %s127
    %p136 = scmp.eq.s32.totalorder %s14, 1
    %p137 = por %p135, %p136
    %p138 = scmp.ne.s32.totalorder %s127, %s128
    %p139 = scmp.eq.s32.totalorder %s14, 0
    %p140 = por %p138, %p139
    %p141 = scmp.ne.s32.totalorder %s127, %s128
    %p142 = scmp.eq.s32.totalorder %s15, 1
    %p143 = por %p141, %p142
    %p145 = scmp.ne.s32.totalorder %s128, %s144
    %p146 = scmp.eq.s32.totalorder %s15, 0
    %p147 = por %p145, %p146
    %p148 = scmp.le.s32.totalorder 1, %s9
    %p149 = scmp.lt.s32.totalorder %s9, 3
    %p150 = pnand %p148, %p149
    %p151 = pneg %p150
    // Predicated region
    $region9: #{meta_bert_3d.28} parent=5 // pred_check
      _
    $region10: #{meta_bert_3d.28} parent=5 // pred_check_branch
      %153 = sbr.rel (%p150) target = $region12
    $region11: #{meta_bert_3d.28} parent=5 // pred_region
      %s154 = ssub.s32 %s9, 1
    $region12: #{meta_bert_3d.28} parent=5 // pred_fallthru
      _
    %p155 = scmp.lt.s32.totalorder %s9, 2
    // Predicated region
    $region13: #{meta_bert_3d.28} parent=5 // pred_check
      %p156 = pneg %p155
    $region14: #{meta_bert_3d.28} parent=5 // pred_check_branch
      %158 = sbr.rel (%p156) target = $region16
    $region15: #{meta_bert_3d.28} parent=5 // pred_region
      // Predicated region
      $region17: #{meta_bert_3d.28} parent=15 // pred_check
        %p159 = pneg %p50
      $region18: #{meta_bert_3d.28} parent=15 // pred_check_branch
        %161 = sbr.rel (%p159) target = $region20
      $region19: #{meta_bert_3d.28} parent=15 // pred_region
        %p162 = scmp.lt.s32.totalorder %s16, 1
        %s163 = scalar_select %p162, %s16, 1
        %p164 = scmp.lt.s32.totalorder %s17, 0
        %s165 = scalar_select %p164, %s17, 0
        %s166 = smul.addr %s165, 3
        %s167 = sadd.s32 2, %s166
        %s168 = smul.addr %s163, 3
        %s169 = sadd.s32 %s167, %s168
        %s170 = smul.addr %s169, 4
        %s171 = scalar_lea.vmem %s0, %s170
      $region20: #{meta_bert_3d.28} parent=15 // pred_fallthru
        _
      // Predicated region
      $region21: #{meta_bert_3d.28} parent=15 // pred_check
        %p172 = pneg %p78
      $region22: #{meta_bert_3d.28} parent=15 // pred_check_branch
        %174 = sbr.rel (%p172) target = $region24
      $region23: #{meta_bert_3d.28} parent=15 // pred_region
        %p175 = scmp.lt.s32.totalorder %s16, 1
        %s176 = scalar_select %p175, %s16, 1
        %p177 = scmp.lt.s32.totalorder %s18, 0
        %s178 = scalar_select %p177, %s18, 0
        %s179 = smul.addr %s178, 3
        %s180 = smul.addr %s176, 3
        %s181 = sadd.s32 %s179, %s180
        %s182 = smul.addr %s181, 4
        %s183 = scalar_lea.vmem %s1, %s182
      $region24: #{meta_bert_3d.28} parent=15 // pred_fallthru
        _
      // Predicated region
      $region25: #{meta_bert_3d.28} parent=15 // pred_check
        %p184 = pneg %p106
      $region26: #{meta_bert_3d.28} parent=15 // pred_check_branch
        %186 = sbr.rel (%p184) target = $region28
      $region27: #{meta_bert_3d.28} parent=15 // pred_region
        %p187 = scmp.lt.s32.totalorder %s16, 1
        %s188 = scalar_select %p187, %s16, 1
        %p189 = scmp.lt.s32.totalorder %s18, 0
        %s190 = scalar_select %p189, %s18, 0
        %s191 = sadd.s32 %s190, %s188
        %s192 = scalar_lea.vmem %s2, %s191
      $region28: #{meta_bert_3d.28} parent=15 // pred_fallthru
        _
    $region16: #{meta_bert_3d.28} parent=5 // pred_fallthru
      _
    %p193 = scmp.le.s32.totalorder 1, %s9
    %p194 = scmp.lt.s32.totalorder %s9, 3
    %p195 = pnand %p193, %p194
    %p196 = pneg %p195
    // Predicated region
    $region29: #{meta_bert_3d.28} parent=5 // pred_check
      _
    $region30: #{meta_bert_3d.28} parent=5 // pred_check_branch
      %198 = sbr.rel (%p195) target = $region32
    $region31: #{meta_bert_3d.28} parent=5 // pred_region
      %s199 = ssub.s32 %s9, 1
      %p200 = scmp.lt.s32.totalorder %s19, 1
      %s201 = scalar_select %p200, %s19, 1
      %p202 = scmp.lt.s32.totalorder %s20, 0
      %s203 = scalar_select %p202, %s20, 0
      %s204 = smul.addr %s203, 3
      %s205 = sadd.s32 2, %s204
      %s206 = smul.addr %s201, 3
      %s207 = sadd.s32 %s205, %s206
      %s208 = smul.addr %s207, 4
      %s209 = scalar_lea.vmem %s0, %s208
      %p210 = pneg %p56
      %p211 = pneg %p53
      %p212 = scmp.lt.s32.totalorder %s19, 1
      %s213 = scalar_select %p212, %s19, 1
      %p214 = scmp.lt.s32.totalorder %s21, 0
      %s215 = scalar_select %p214, %s21, 0
      %s216 = smul.addr %s215, 3
      %s217 = smul.addr %s213, 3
      %s218 = sadd.s32 %s216, %s217
      %s219 = smul.addr %s218, 4
      %s220 = scalar_lea.vmem %s1, %s219
      %p221 = pneg %p84
      %p222 = pneg %p81
      %p223 = scmp.lt.s32.totalorder %s19, 1
      %s224 = scalar_select %p223, %s19, 1
      %p225 = scmp.lt.s32.totalorder %s21, 0
      %s226 = scalar_select %p225, %s21, 0
      %s227 = sadd.s32 %s226, %s224
      %s228 = scalar_lea.vmem %s2, %s227
      %p229 = pneg %p112
      %p230 = pneg %p109
      %p231 = pneg %p140
      %p232 = pneg %p137
      %p233 = scmp.lt.s32.totalorder %s19, 1
      %s234 = scalar_select %p233, %s19, 1
      %p235 = scmp.lt.s32.totalorder %s20, 0
      %s236 = scalar_select %p235, %s20, 0
      %s237 = sadd.s32 %s236, %s234
      %s238 = smul.addr %s237, 4
      %s239 = scalar_lea.vmem %s3, %s238
      %p240 = scmp.lt.s32.totalorder %s19, 1
      %s241 = scalar_select %p240, %s19, 1
      %p242 = scmp.lt.s32.totalorder %s20, 0
      %s243 = scalar_select %p242, %s20, 0
      %s244 = smul.addr %s243, 3
      %s245 = sadd.s32 2, %s244
      %s246 = smul.addr %s241, 3
      %s247 = sadd.s32 %s245, %s246
      %s248 = smul.addr %s247, 4
      %s249 = scalar_lea.vmem %s0, %s248
      %p250 = scmp.lt.s32.totalorder %s19, 1
      %s251 = scalar_select %p250, %s19, 1
      %p252 = scmp.lt.s32.totalorder %s21, 0
      %s253 = scalar_select %p252, %s21, 0
      %s254 = smul.addr %s253, 3
      %s255 = smul.addr %s251, 3
      %s256 = sadd.s32 %s254, %s255
      %s257 = smul.addr %s256, 4
      %s258 = scalar_lea.vmem %s1, %s257
      %p259 = scmp.lt.s32.totalorder %s19, 1
      %s260 = scalar_select %p259, %s19, 1
      %p261 = scmp.lt.s32.totalorder %s21, 0
      %s262 = scalar_select %p261, %s21, 0
      %s263 = sadd.s32 %s262, %s260
      %s264 = scalar_lea.vmem %s2, %s263
      %p265 = scmp.lt.s32.totalorder %s19, 1
      %s266 = scalar_select %p265, %s19, 1
      %p267 = scmp.lt.s32.totalorder %s20, 0
      %s268 = scalar_select %p267, %s20, 0
      %s269 = sadd.s32 %s268, %s266
      %s270 = smul.addr %s269, 4
      %s271 = scalar_lea.vmem %s3, %s270
      %p273 = scmp.eq.s32.totalorder %s21, 0
      // Predicated region
      $region33: #{meta_bert_3d.28} parent=31 // pred_check
        %p274 = pneg %p273
      $region34: #{meta_bert_3d.28} parent=31 // pred_check_branch
        %276 = sbr.rel (%p274) target = $region36
      $region35: #{meta_bert_3d.28} parent=31 // pred_region
        %vm277 = vcmask 7168
        %278 = vst.msk [vmem:[#allocation2] sm:$0xff] %vm277, -inf
        %279 = vst.msk [vmem:[#allocation2 + $0x8] sm:$0xff] %vm277, -inf
        %280 = vst.msk [vmem:[#allocation2 + $0x10] sm:$0xff] %vm277, -inf
        %281 = vst.msk [vmem:[#allocation2 + $0x18] sm:$0xff] %vm277, -inf
        %282 = vst.msk [vmem:[#allocation3] sm:$0xff] %vm277, 0.0
        %283 = vst.msk [vmem:[#allocation3 + $0x8] sm:$0xff] %vm277, 0.0
        %284 = vst.msk [vmem:[#allocation3 + $0x10] sm:$0xff] %vm277, 0.0
        %285 = vst.msk [vmem:[#allocation3 + $0x18] sm:$0xff] %vm277, 0.0
        %286 = vst [vmem:[#allocation4] sm:$0xff] 0.0
      $region36: #{meta_bert_3d.28} parent=31 // pred_fallthru
        _
      %v287 = vld [vmem:[%s249] sm:$0xf]
      %v288 = vld [vmem:[%s258] sm:$0xff]
      %v289 = vld [vmem:[%s264] sm:$0x1]
      %v290 = vsub.f32 1.0, %v289
      %v291 = vmul.f32 %v290, -1e+09
      %vm292 = vcmask 261120
      %v294 = vsel %vm292, %v287, 0
      %v297 = vsel %vm292, %v288, 0
      %299 = vmatpush.bf16.xpose.msra.mxu0 0
      %300 = vmatpush.bf16.xpose.msra.mxu0 0
      %301 = vmatpush.bf16.xpose.msra.mxu0 0
      %302 = vmatpush.bf16.xpose.msra.mxu0 0
      %303 = vmatpush.bf16.xpose.msra.mxu0 0
      %304 = vmatpush.bf16.xpose.msra.mxu0 0
      %305 = vmatpush.bf16.xpose.msra.mxu0 0
      %306 = vmatpush.bf16.xpose.msra.mxu0 %v297
      %307 = vmatmul.bf16.gmra.mxu0 %v294
      %v308 = vpop.f32.mrf.mxu0
      %v309 = vadd.f32 0.0, %v308
      %v310 = vpop.f32.mrf.mxu0
      %311 = vdwg.mxu0
      %v312 = vmul.f32 %v309, 0.17677669
      %v314 = vperm.slane %v291, 0
      %v316 = vadd.f32 %v312, %v314
      %v317 = vld [vmem:[#allocation2] sm:$0xff]
      %vm318 = vcmask 64512
      %v319 = vsel %vm318, %v316, -inf
      %320 = vmax.xlane.f32.xlu0 %v319
      %v321 = vpop.xlane.xlu0 %320
      %v322 = vmax.f32 %v317, %v321
      %v323 = vsub.f32 %v317, %v322
      %v324 = vmul.f32 %v323, 1.442695
      %v325 = vpow.pop %v324
      %327 = vset.pattern.permute.xlu0 0
      %328 = vperm.xlu0 %327, %v322
      %v329 = vpop.permute.xlu0 %328
      %v331 = vsub.f32 %v316, %v329
      %v332 = vmul.f32 %v331, 1.442695
      %v333 = vpow.pop %v332
      %v334 = vld [vmem:[#allocation3] sm:$0xff]
      %v335 = vmul.f32 %v325, %v334
      %v336 = vsel %vm318, %v333, 0.0
      %337 = vadd.xlane.f32.xlu0 %v336
      %v338 = vpop.xlane.xlu0 %337
      %v339 = vadd.f32 %v335, %v338
      %vm340 = vcmask 7168
      %341 = vst.msk [vmem:[#allocation3] sm:$0xff] %vm340, %v339
      %v342 = vld [vmem:[#allocation4] sm:$0xff]
      %344 = vset.pattern.permute.xlu0 0
      %345 = vperm.xlu0 %344, %v325
      %v346 = vpop.permute.xlu0 %345
      %v348 = vmul.f32 %v346, %v342
      %v349 = vpack.c.bf16 %v333, %v333
      %v351 = vunpack.c.h.b16 %v288
      %v352 = vpack.c.b16 %v351, %v351
      %v354 = vsel %vm318, %v349, 0
      %vm356 = vcmask 1043456
      %v358 = vsel %vm356, %v352, 0
      %360 = vmatpush.bf16.msra.mxu0 0
      %361 = vmatpush.bf16.msra.mxu0 0
      %362 = vmatpush.bf16.msra.mxu0 0
      %363 = vmatpush.bf16.msra.mxu0 0
      %364 = vmatpush.bf16.msra.mxu0 0
      %365 = vmatpush.bf16.msra.mxu0 0
      %366 = vmatpush.bf16.msra.mxu0 0
      %367 = vmatpush.bf16.msra.mxu0 %v358
      %368 = vmatmul.bf16.gmra.mxu0 %v354
      %v369 = vpop.f32.mrf.mxu0
      %v370 = vadd.f32 0.0, %v369
      %v371 = vpop.f32.mrf.mxu0
      %372 = vdwg.mxu0
      %v373 = vadd.f32 %v348, %v370
      %374 = vst.msk [vmem:[#allocation4] sm:$0xff] %vm292, %v373
      %375 = vst.msk [vmem:[#allocation2] sm:$0xff] %vm340, %v322
      %v377 = vunpack.c.l.b16 %v287
      %v378 = vpack.c.b16 %v377, %v377
      %379 = vrot.lane.b32.xlu0 %v378, 96
      %v380 = vpop.permute.xlu0 %379
      %v381 = vunpack.c.l.b16 %v288
      %v382 = vpack.c.b16 %v381, %v381
      %383 = vrot.lane.b32.xlu0 %v382, 96
      %v384 = vpop.permute.xlu0 %383
      %v386 = vsel %vm292, %v380, 0
      %v389 = vsel %vm292, %v384, 0
      %391 = vmatpush.bf16.xpose.msra.mxu0 0
      %392 = vmatpush.bf16.xpose.msra.mxu0 0
      %393 = vmatpush.bf16.xpose.msra.mxu0 0
      %394 = vmatpush.bf16.xpose.msra.mxu0 0
      %395 = vmatpush.bf16.xpose.msra.mxu0 0
      %396 = vmatpush.bf16.xpose.msra.mxu0 0
      %397 = vmatpush.bf16.xpose.msra.mxu0 0
      %398 = vmatpush.bf16.xpose.msra.mxu0 %v389
      %399 = vmatmul.bf16.gmra.mxu0 %v386
      %v400 = vpop.f32.mrf.mxu0
      %v401 = vadd.f32 0.0, %v400
      %v402 = vpop.f32.mrf.mxu0
      %403 = vdwg.mxu0
      %v404 = vmul.f32 %v401, 0.17677669
      %v405 = vadd.f32 %v404, %v314
      %s406 = scalar_lea.vmem [#allocation2], 8
      %v407 = vld [vmem:[%s406] sm:$0xff]
      %v408 = vsel %vm318, %v405, -inf
      %409 = vmax.xlane.f32.xlu0 %v408
      %v410 = vpop.xlane.xlu0 %409
      %v411 = vmax.f32 %v407, %v410
      %v412 = vsub.f32 %v407, %v411
      %v413 = vmul.f32 %v412, 1.442695
      %v414 = vpow.pop %v413
      %416 = vset.pattern.permute.xlu0 0
      %417 = vperm.xlu0 %416, %v411
      %v418 = vpop.permute.xlu0 %417
      %v420 = vsub.f32 %v405, %v418
      %v421 = vmul.f32 %v420, 1.442695
      %v422 = vpow.pop %v421
      %s423 = scalar_lea.vmem [#allocation3], 8
      %v424 = vld [vmem:[%s423] sm:$0xff]
      %v425 = vmul.f32 %v414, %v424
      %v426 = vsel %vm318, %v422, 0.0
      %427 = vadd.xlane.f32.xlu0 %v426
      %v428 = vpop.xlane.xlu0 %427
      %v429 = vadd.f32 %v425, %v428
      %430 = vst.msk [vmem:[%s423] sm:$0xff] %vm340, %v429
      %v431 = vld [vmem:[#allocation4] sm:$0xff]
      %433 = vset.pattern.permute.xlu0 0
      %434 = vperm.xlu0 %433, %v414
      %v435 = vpop.permute.xlu0 %434
      %v437 = vmul.f32 %v435, %v431
      %v438 = vpack.c.bf16 %v422, %v422
      %439 = vrot.lane.b32.xlu0 %v352, 96
      %v440 = vpop.permute.xlu0 %439
      %v442 = vsel %vm318, %v438, 0
      %v445 = vsel %vm356, %v440, 0
      %447 = vmatpush.bf16.msra.mxu0 0
      %448 = vmatpush.bf16.msra.mxu0 0
      %449 = vmatpush.bf16.msra.mxu0 0
      %450 = vmatpush.bf16.msra.mxu0 0
      %451 = vmatpush.bf16.msra.mxu0 0
      %452 = vmatpush.bf16.msra.mxu0 0
      %453 = vmatpush.bf16.msra.mxu0 0
      %454 = vmatpush.bf16.msra.mxu0 %v445
      %455 = vmatmul.bf16.gmra.mxu0 %v442
      %v456 = vpop.f32.mrf.mxu0
      %v457 = vadd.f32 0.0, %v456
      %v458 = vpop.f32.mrf.mxu0
      %459 = vdwg.mxu0
      %461 = vrot.lane.b32.xlu0 %v457, 32
      %v462 = vpop.permute.xlu0 %461
      %v464 = vadd.f32 %v437, %v462
      %vm465 = vcmask 523520
      %466 = vst.msk [vmem:[#allocation4] sm:$0xff] %vm465, %v464
      %467 = vst.msk [vmem:[%s406] sm:$0xff] %vm340, %v411
      %468 = vrot.lane.b32.xlu0 %v378, 64
      %v469 = vpop.permute.xlu0 %468
      %470 = vrot.lane.b32.xlu0 %v382, 64
      %v471 = vpop.permute.xlu0 %470
      %v473 = vsel %vm292, %v469, 0
      %v476 = vsel %vm292, %v471, 0
      %478 = vmatpush.bf16.xpose.msra.mxu0 0
      %479 = vmatpush.bf16.xpose.msra.mxu0 0
      %480 = vmatpush.bf16.xpose.msra.mxu0 0
      %481 = vmatpush.bf16.xpose.msra.mxu0 0
      %482 = vmatpush.bf16.xpose.msra.mxu0 0
      %483 = vmatpush.bf16.xpose.msra.mxu0 0
      %484 = vmatpush.bf16.xpose.msra.mxu0 0
      %485 = vmatpush.bf16.xpose.msra.mxu0 %v476
      %486 = vmatmul.bf16.gmra.mxu0 %v473
      %v487 = vpop.f32.mrf.mxu0
      %v488 = vadd.f32 0.0, %v487
      %v489 = vpop.f32.mrf.mxu0
      %490 = vdwg.mxu0
      %v491 = vmul.f32 %v488, 0.17677669
      %v492 = vadd.f32 %v491, %v314
      %s493 = scalar_lea.vmem [#allocation2], 16
      %v494 = vld [vmem:[%s493] sm:$0xff]
      %v495 = vsel %vm318, %v492, -inf
      %496 = vmax.xlane.f32.xlu0 %v495
      %v497 = vpop.xlane.xlu0 %496
      %v498 = vmax.f32 %v494, %v497
      %v499 = vsub.f32 %v494, %v498
      %v500 = vmul.f32 %v499, 1.442695
      %v501 = vpow.pop %v500
      %503 = vset.pattern.permute.xlu0 0
      %504 = vperm.xlu0 %503, %v498
      %v505 = vpop.permute.xlu0 %504
      %v507 = vsub.f32 %v492, %v505
      %v508 = vmul.f32 %v507, 1.442695
      %v509 = vpow.pop %v508
      %s510 = scalar_lea.vmem [#allocation3], 16
      %v511 = vld [vmem:[%s510] sm:$0xff]
      %v512 = vmul.f32 %v501, %v511
      %v513 = vsel %vm318, %v509, 0.0
      %514 = vadd.xlane.f32.xlu0 %v513
      %v515 = vpop.xlane.xlu0 %514
      %v516 = vadd.f32 %v512, %v515
      %517 = vst.msk [vmem:[%s510] sm:$0xff] %vm340, %v516
      %v518 = vld [vmem:[#allocation4] sm:$0xff]
      %520 = vset.pattern.permute.xlu0 0
      %521 = vperm.xlu0 %520, %v501
      %v522 = vpop.permute.xlu0 %521
      %v524 = vmul.f32 %v522, %v518
      %v525 = vpack.c.bf16 %v509, %v509
      %526 = vrot.lane.b32.xlu0 %v352, 64
      %v527 = vpop.permute.xlu0 %526
      %v529 = vsel %vm318, %v525, 0
      %v532 = vsel %vm356, %v527, 0
      %534 = vmatpush.bf16.msra.mxu0 0
      %535 = vmatpush.bf16.msra.mxu0 0
      %536 = vmatpush.bf16.msra.mxu0 0
      %537 = vmatpush.bf16.msra.mxu0 0
      %538 = vmatpush.bf16.msra.mxu0 0
      %539 = vmatpush.bf16.msra.mxu0 0
      %540 = vmatpush.bf16.msra.mxu0 0
      %541 = vmatpush.bf16.msra.mxu0 %v532
      %542 = vmatmul.bf16.gmra.mxu0 %v529
      %v543 = vpop.f32.mrf.mxu0
      %v544 = vadd.f32 0.0, %v543
      %v545 = vpop.f32.mrf.mxu0
      %546 = vdwg.mxu0
      %548 = vrot.lane.b32.xlu0 %v544, 64
      %v549 = vpop.permute.xlu0 %548
      %v551 = vadd.f32 %v524, %v549
      %vm552 = vcmask 785920
      %553 = vst.msk [vmem:[#allocation4] sm:$0xff] %vm552, %v551
      %554 = vst.msk [vmem:[%s493] sm:$0xff] %vm340, %v498
      %555 = vrot.lane.b32.xlu0 %v378, 32
      %v556 = vpop.permute.xlu0 %555
      %557 = vrot.lane.b32.xlu0 %v382, 32
      %v558 = vpop.permute.xlu0 %557
      %v560 = vsel %vm292, %v556, 0
      %v563 = vsel %vm292, %v558, 0
      %565 = vmatpush.bf16.xpose.msra.mxu0 0
      %566 = vmatpush.bf16.xpose.msra.mxu0 0
      %567 = vmatpush.bf16.xpose.msra.mxu0 0
      %568 = vmatpush.bf16.xpose.msra.mxu0 0
      %569 = vmatpush.bf16.xpose.msra.mxu0 0
      %570 = vmatpush.bf16.xpose.msra.mxu0 0
      %571 = vmatpush.bf16.xpose.msra.mxu0 0
      %572 = vmatpush.bf16.xpose.msra.mxu0 %v563
      %573 = vmatmul.bf16.gmra.mxu0 %v560
      %v574 = vpop.f32.mrf.mxu0
      %v575 = vadd.f32 0.0, %v574
      %v576 = vpop.f32.mrf.mxu0
      %577 = vdwg.mxu0
      %v578 = vmul.f32 %v575, 0.17677669
      %v579 = vadd.f32 %v578, %v314
      %s580 = scalar_lea.vmem [#allocation2], 24
      %v581 = vld [vmem:[%s580] sm:$0xff]
      %v582 = vsel %vm318, %v579, -inf
      %583 = vmax.xlane.f32.xlu0 %v582
      %v584 = vpop.xlane.xlu0 %583
      %v585 = vmax.f32 %v581, %v584
      %v586 = vsub.f32 %v581, %v585
      %v587 = vmul.f32 %v586, 1.442695
      %v588 = vpow.pop %v587
      %590 = vset.pattern.permute.xlu0 0
      %591 = vperm.xlu0 %590, %v585
      %v592 = vpop.permute.xlu0 %591
      %v594 = vsub.f32 %v579, %v592
      %v595 = vmul.f32 %v594, 1.442695
      %v596 = vpow.pop %v595
      %s597 = scalar_lea.vmem [#allocation3], 24
      %v598 = vld [vmem:[%s597] sm:$0xff]
      %v599 = vmul.f32 %v588, %v598
      %v600 = vsel %vm318, %v596, 0.0
      %601 = vadd.xlane.f32.xlu0 %v600
      %v602 = vpop.xlane.xlu0 %601
      %v603 = vadd.f32 %v599, %v602
      %604 = vst.msk [vmem:[%s597] sm:$0xff] %vm340, %v603
      %v605 = vld [vmem:[#allocation4] sm:$0xff]
      %607 = vset.pattern.permute.xlu0 0
      %608 = vperm.xlu0 %607, %v588
      %v609 = vpop.permute.xlu0 %608
      %v611 = vmul.f32 %v609, %v605
      %v612 = vpack.c.bf16 %v596, %v596
      %613 = vrot.lane.b32.xlu0 %v352, 32
      %v614 = vpop.permute.xlu0 %613
      %v616 = vsel %vm318, %v612, 0
      %v619 = vsel %vm356, %v614, 0
      %621 = vmatpush.bf16.msra.mxu0 0
      %622 = vmatpush.bf16.msra.mxu0 0
      %623 = vmatpush.bf16.msra.mxu0 0
      %624 = vmatpush.bf16.msra.mxu0 0
      %625 = vmatpush.bf16.msra.mxu0 0
      %626 = vmatpush.bf16.msra.mxu0 0
      %627 = vmatpush.bf16.msra.mxu0 0
      %628 = vmatpush.bf16.msra.mxu0 %v619
      %629 = vmatmul.bf16.gmra.mxu0 %v616
      %v630 = vpop.f32.mrf.mxu0
      %v631 = vadd.f32 0.0, %v630
      %v632 = vpop.f32.mrf.mxu0
      %633 = vdwg.mxu0
      %635 = vrot.lane.b32.xlu0 %v631, 96
      %v636 = vpop.permute.xlu0 %635
      %v638 = vadd.f32 %v611, %v636
      %vm639 = vcmask 1048320
      %640 = vst.msk [vmem:[#allocation4] sm:$0xff] %vm639, %v638
      %641 = vst.msk [vmem:[%s580] sm:$0xff] %vm340, %v585
      // Predicated region
      $region37: #{meta_bert_3d.28} parent=31 // pred_check
        %p642 = pneg %p273
      $region38: #{meta_bert_3d.28} parent=31 // pred_check_branch
        %644 = sbr.rel (%p642) target = $region40
      $region39: #{meta_bert_3d.28} parent=31 // pred_region
        %v645 = vld [vmem:[#allocation3] sm:$0xff]
        %v646 = vrcp.pop %v645
        %v647 = vmul.f32 %v645, %v646
        %v648 = vsub.f32 1.0, %v647
        %v649 = vmul.f32 %v646, %v648
        %v650 = vadd.f32 %v646, %v649
        %vm651 = vweird.f32 %v645
        %vm652 = vweird.f32 %v646
        %vm653 = vmor %vm651, %vm652
        %v654 = vsel %vm653, %v646, %v650
        %v655 = vand.u32 2147483647, %v645
        %vm656 = vcmp.eq.f32.partialorder %v655, 8.507059e+37
        %v657 = vand.u32 %v645, 2147483648
        %v658 = vor.u32 1.1754944e-38, %v657
        %v659 = vsel %vm656, %v658, %v654
        %v660 = vld [vmem:[#allocation4] sm:$0xff]
        %662 = vset.pattern.permute.xlu0 0
        %663 = vperm.xlu0 %662, %v659
        %v664 = vpop.permute.xlu0 %663
        %v666 = vmul.f32 %v660, %v664
        %v667 = vpack.c.bf16 %v666, %v666
        %vm668 = vcmask 257024
        %669 = vst.msk [vmem:[%s271] sm:$0xf] %vm668, %v667
        %v670 = vld [vmem:[%s423] sm:$0xff]
        %v671 = vrcp.pop %v670
        %v672 = vmul.f32 %v670, %v671
        %v673 = vsub.f32 1.0, %v672
        %v674 = vmul.f32 %v671, %v673
        %v675 = vadd.f32 %v671, %v674
        %vm676 = vweird.f32 %v670
        %vm677 = vweird.f32 %v671
        %vm678 = vmor %vm676, %vm677
        %v679 = vsel %vm678, %v671, %v675
        %v680 = vand.u32 2147483647, %v670
        %vm681 = vcmp.eq.f32.partialorder %v680, 8.507059e+37
        %v682 = vand.u32 %v670, 2147483648
        %v683 = vor.u32 1.1754944e-38, %v682
        %v684 = vsel %vm681, %v683, %v679
        %v685 = vld [vmem:[#allocation4] sm:$0xff]
        %687 = vset.pattern.permute.xlu0 0
        %688 = vperm.xlu0 %687, %v684
        %v689 = vpop.permute.xlu0 %688
        %v691 = vmul.f32 %v685, %v689
        %v692 = vpack.c.bf16 %v691, %v691
        %vm693 = vcmask 519424
        %694 = vst.msk [vmem:[%s271] sm:$0xf] %vm693, %v692
        %v695 = vld [vmem:[%s510] sm:$0xff]
        %v696 = vrcp.pop %v695
        %v697 = vmul.f32 %v695, %v696
        %v698 = vsub.f32 1.0, %v697
        %v699 = vmul.f32 %v696, %v698
        %v700 = vadd.f32 %v696, %v699
        %vm701 = vweird.f32 %v695
        %vm702 = vweird.f32 %v696
        %vm703 = vmor %vm701, %vm702
        %v704 = vsel %vm703, %v696, %v700
        %v705 = vand.u32 2147483647, %v695
        %vm706 = vcmp.eq.f32.partialorder %v705, 8.507059e+37
        %v707 = vand.u32 %v695, 2147483648
        %v708 = vor.u32 1.1754944e-38, %v707
        %v709 = vsel %vm706, %v708, %v704
        %v710 = vld [vmem:[#allocation4] sm:$0xff]
        %712 = vset.pattern.permute.xlu0 0
        %713 = vperm.xlu0 %712, %v709
        %v714 = vpop.permute.xlu0 %713
        %v716 = vmul.f32 %v710, %v714
        %v717 = vpack.c.bf16 %v716, %v716
        %vm718 = vcmask 781824
        %719 = vst.msk [vmem:[%s271] sm:$0xf] %vm718, %v717
        %v720 = vld [vmem:[%s597] sm:$0xff]
        %v721 = vrcp.pop %v720
        %v722 = vmul.f32 %v720, %v721
        %v723 = vsub.f32 1.0, %v722
        %v724 = vmul.f32 %v721, %v723
        %v725 = vadd.f32 %v721, %v724
        %vm726 = vweird.f32 %v720
        %vm727 = vweird.f32 %v721
        %vm728 = vmor %vm726, %vm727
        %v729 = vsel %vm728, %v721, %v725
        %v730 = vand.u32 2147483647, %v720
        %vm731 = vcmp.eq.f32.partialorder %v730, 8.507059e+37
        %v732 = vand.u32 %v720, 2147483648
        %v733 = vor.u32 1.1754944e-38, %v732
        %v734 = vsel %vm731, %v733, %v729
        %v735 = vld [vmem:[#allocation4] sm:$0xff]
        %737 = vset.pattern.permute.xlu0 0
        %738 = vperm.xlu0 %737, %v734
        %v739 = vpop.permute.xlu0 %738
        %v741 = vmul.f32 %v735, %v739
        %v742 = vpack.c.bf16 %v741, %v741
        %vm743 = vcmask 1044224
        %744 = vst.msk [vmem:[%s271] sm:$0xf] %vm743, %v742
      $region40: #{meta_bert_3d.28} parent=31 // pred_fallthru
        _
      %p745 = scmp.lt.s32.totalorder %s19, 1
      %s746 = scalar_select %p745, %s19, 1
      %p747 = scmp.lt.s32.totalorder %s20, 0
      %s748 = scalar_select %p747, %s20, 0
      %s749 = sadd.s32 %s748, %s746
      %s750 = smul.addr %s749, 4
      %s751 = scalar_lea.vmem %s3, %s750
      // Predicated region
      $region41: #{meta_bert_3d.28} parent=31 // pred_check
        %p752 = pneg %p137
      $region42: #{meta_bert_3d.28} parent=31 // pred_check_branch
        %754 = sbr.rel (%p752) target = $region44
      $region43: #{meta_bert_3d.28} parent=31 // pred_region
        _
      $region44: #{meta_bert_3d.28} parent=31 // pred_fallthru
        _
    $region32: #{meta_bert_3d.28} parent=5 // pred_fallthru
      _
    %p755 = scmp.le.s32.totalorder 2, %s9
    // Predicated region
    $region45: #{meta_bert_3d.28} parent=5 // pred_check
      %p756 = pneg %p755
    $region46: #{meta_bert_3d.28} parent=5 // pred_check_branch
      %758 = sbr.rel (%p756) target = $region48
    $region47: #{meta_bert_3d.28} parent=5 // pred_region
      %s759 = ssub.s32 %s9, 2
      // Predicated region
      $region49: #{meta_bert_3d.28} parent=47 // pred_check
        %p760 = pneg %p143
      $region50: #{meta_bert_3d.28} parent=47 // pred_check_branch
        %762 = sbr.rel (%p760) target = $region52
      $region51: #{meta_bert_3d.28} parent=47 // pred_region
        %p763 = scmp.lt.s32.totalorder %s22, 1
        %s764 = scalar_select %p763, %s22, 1
        %p765 = scmp.lt.s32.totalorder %s23, 0
        %s766 = scalar_select %p765, %s23, 0
        %s767 = sadd.s32 %s766, %s764
        %s768 = smul.addr %s767, 4
        %s769 = scalar_lea.vmem %s3, %s768
      $region52: #{meta_bert_3d.28} parent=47 // pred_fallthru
        _
    $region48: #{meta_bert_3d.28} parent=5 // pred_fallthru
      _
  $region6: #{meta_bert_3d.28} parent=0 // loop_footer
    %s13 = sadd.s32 1, %s9
  $region7: #{meta_bert_3d.28} parent=0 // loop_footer_branch
    %8 = sbr.rel target = $region3
  $region8: #{meta_bert_3d.28} parent=0 // loop_exit
    _

// kernel: meta_bert_3d.29
$region0: #{meta_bert_3d.29}
  #allocation0 [shape = 'u32[]', space=smem, size = 0x4, offset = 0x4, fixed_abs, tag = 'smem constant byte address 0x4 - core index']
  #allocation1 [shape = 'u32[72,128]{1,0:T(1,128)}', space=vmem, size = 0x9000, scoped, tag = 'internal scratch']
  %s0 = inlined_call_operand.vmem [shape: bf16[16,128], index: 0, kind: input, shape index: {}]
  %s1 = inlined_call_operand.vmem [shape: bf16[16,128], index: 1, kind: input, shape index: {}]
  %s2 = inlined_call_operand.hbm [shape: bf16[128,128], index: 2, kind: input, shape index: {}]
  %s3 = inlined_call_operand.vmem [shape: f32[1,128], index: 3, kind: input, shape index: {}]
  %s4 = inlined_call_operand.vmem [shape: f32[1,128], index: 4, kind: input, shape index: {}]
  %s5 = inlined_call_operand.vmem [shape: f32[1,128], index: 5, kind: input, shape index: {}]
  %s6 = inlined_call_operand.vmem [shape: bf16[16,128], index: 6, kind: output, shape index: {}]
  %s7 = sld [smem:[#allocation0]]
  $region38: #{meta_bert_3d.29} parent=0
    _
  %s9 = ssub.s32 1, %s7
  %s10 = scalar_select 0, %s9, %s7
  $region1: #{meta_bert_3d.29} parent=0
    #allocation2 [shape = 'u8[32768]{0}', space=vmem, size = 0x8000, scoped, tag = 'input window, operand 2, single buffered']
    #allocation3 [shape = 's32[1]{0}', space=sflag, size = 0x4, scoped, tag = 'scoped memory for meta_bert_3d.29']
    %11 = vsyncpa [#allocation3], 0
    // Predicated region
    $region2: #{meta_bert_3d.29} parent=1 // pred_check
      _
    $region3: #{meta_bert_3d.29} parent=1 // pred_check_branch
      %13 = sbr.rel (0) target = $region5
    $region4: #{meta_bert_3d.29} parent=1 // pred_region
      _
    $region5: #{meta_bert_3d.29} parent=1 // pred_fallthru
      _
    // Predicated region
    $region6: #{meta_bert_3d.29} parent=1 // pred_check
      _
    $region7: #{meta_bert_3d.29} parent=1 // pred_check_branch
      %15 = sbr.rel (0) target = $region9
    $region8: #{meta_bert_3d.29} parent=1 // pred_region
      _
    $region9: #{meta_bert_3d.29} parent=1 // pred_fallthru
      _
    // Predicated region
    $region10: #{meta_bert_3d.29} parent=1 // pred_check
      _
    $region11: #{meta_bert_3d.29} parent=1 // pred_check_branch
      %17 = sbr.rel (0) target = $region13
    $region12: #{meta_bert_3d.29} parent=1 // pred_region
      %19 = vsyncadd [#allocation3], 0
      %s20 = sshll.u32 %s2, 4
      %s21 = int_to_ptr.hbm [resolvable:$true] %s20
      %s22 = sshll.u32 [#allocation2], 4
      %s23 = int_to_ptr.vmem [resolvable:$true] %s22
      %28 = dma.hbm_to_vmem [thread:$0]  %s21, 1024, %s23, [#allocation3], 64, 64, 4
    $region13: #{meta_bert_3d.29} parent=1 // pred_fallthru
      _
    // Predicated region
    $region14: #{meta_bert_3d.29} parent=1 // pred_check
      _
    $region15: #{meta_bert_3d.29} parent=1 // pred_check_branch
      %30 = sbr.rel (0) target = $region17
    $region16: #{meta_bert_3d.29} parent=1 // pred_region
      _
    $region17: #{meta_bert_3d.29} parent=1 // pred_fallthru
      _
    // Predicated region
    $region18: #{meta_bert_3d.29} parent=1 // pred_check
      _
    $region19: #{meta_bert_3d.29} parent=1 // pred_check_branch
      %32 = sbr.rel (0) target = $region21
    $region20: #{meta_bert_3d.29} parent=1 // pred_region
      _
    $region21: #{meta_bert_3d.29} parent=1 // pred_fallthru
      _
    // Predicated region
    $region22: #{meta_bert_3d.29} parent=1 // pred_check
      _
    $region23: #{meta_bert_3d.29} parent=1 // pred_check_branch
      %34 = sbr.rel (0) target = $region25
    $region24: #{meta_bert_3d.29} parent=1 // pred_region
      _
    $region25: #{meta_bert_3d.29} parent=1 // pred_fallthru
      _
    // Predicated region
    $region26: #{meta_bert_3d.29} parent=1 // pred_check
      _
    $region27: #{meta_bert_3d.29} parent=1 // pred_check_branch
      %36 = sbr.rel (0) target = $region29
    $region28: #{meta_bert_3d.29} parent=1 // pred_region
      %38 = dma.done [#allocation3], 1024
    $region29: #{meta_bert_3d.29} parent=1 // pred_fallthru
      _
    %v39 = vld [vmem:[%s0] sm:$0xf]
    %v40 = vld [vmem:[%s0 + $0x4] sm:$0xf]
    %v41 = vld [vmem:[#allocation2] sm:$0xf]
    %v42 = vld [vmem:[#allocation2 + $0x4] sm:$0xf]
    %v43 = vld [vmem:[#allocation2 + $0x8] sm:$0xf]
    %v44 = vld [vmem:[#allocation2 + $0xc] sm:$0xf]
    %v45 = vld [vmem:[#allocation2 + $0x10] sm:$0xf]
    %v46 = vld [vmem:[#allocation2 + $0x14] sm:$0xf]
    %v47 = vld [vmem:[#allocation2 + $0x18] sm:$0xf]
    %v48 = vld [vmem:[#allocation2 + $0x1c] sm:$0xf]
    %v49 = vld [vmem:[#allocation2 + $0x20] sm:$0xf]
    %v50 = vld [vmem:[#allocation2 + $0x24] sm:$0xf]
    %v51 = vld [vmem:[#allocation2 + $0x28] sm:$0xf]
    %v52 = vld [vmem:[#allocation2 + $0x2c] sm:$0xf]
    %v53 = vld [vmem:[#allocation2 + $0x30] sm:$0xf]
    %v54 = vld [vmem:[#allocation2 + $0x34] sm:$0xf]
    %v55 = vld [vmem:[#allocation2 + $0x38] sm:$0xf]
    %v56 = vld [vmem:[#allocation2 + $0x3c] sm:$0xf]
    %v57 = vld [vmem:[%s3] sm:$0x1]
    %v59 = vperm.slane %v57, 0
    %v63 = vunpack.c.l.b16 %v39
    %v64 = vunpack.c.l.b16 %v40
    %v65 = vpack.c.b16 %v64, %v63
    %v83 = vunpack.c.l.b16 %v41
    %v84 = vunpack.c.l.b16 %v42
    %v85 = vunpack.c.l.b16 %v43
    %v86 = vunpack.c.l.b16 %v44
    %v87 = vunpack.c.l.b16 %v45
    %v88 = vunpack.c.l.b16 %v46
    %v89 = vunpack.c.l.b16 %v47
    %v90 = vunpack.c.l.b16 %v48
    %v91 = vunpack.c.l.b16 %v49
    %v92 = vunpack.c.l.b16 %v50
    %v93 = vunpack.c.l.b16 %v51
    %v94 = vunpack.c.l.b16 %v52
    %v95 = vunpack.c.l.b16 %v53
    %v96 = vunpack.c.l.b16 %v54
    %v97 = vunpack.c.l.b16 %v55
    %v98 = vunpack.c.l.b16 %v56
    %v99 = vpack.c.b16 %v84, %v83
    %v100 = vpack.c.b16 %v86, %v85
    %v101 = vpack.c.b16 %v88, %v87
    %v102 = vpack.c.b16 %v90, %v89
    %v103 = vpack.c.b16 %v92, %v91
    %v104 = vpack.c.b16 %v94, %v93
    %v105 = vpack.c.b16 %v96, %v95
    %v106 = vpack.c.b16 %v98, %v97
    %115 = vmatpush.bf16.msra.mxu0 %v106
    %116 = vmatpush.bf16.msra.mxu0 %v105
    %117 = vmatpush.bf16.msra.mxu0 %v104
    %118 = vmatpush.bf16.msra.mxu0 %v103
    %119 = vmatpush.bf16.msra.mxu0 %v102
    %120 = vmatpush.bf16.msra.mxu0 %v101
    %121 = vmatpush.bf16.msra.mxu0 %v100
    %122 = vmatpush.bf16.msra.mxu0 %v99
    %123 = vmatmul.bf16.gmra.mxu0 %v65
    %v124 = vpop.f32.mrf.mxu0
    %v125 = vadd.f32 %v59, %v124
    %v126 = vpop.f32.mrf.mxu0
    %v127 = vadd.f32 %v59, %v126
    %128 = vdwg.mxu0
    %v129 = vld [vmem:[%s1] sm:$0xf]
    %v130 = vld [vmem:[%s1 + $0x4] sm:$0xf]
    %v131 = vunpack.c.l.bf16 %v129
    %v132 = vunpack.c.l.bf16 %v130
    %v133 = vadd.f32 %v125, %v131
    %v134 = vadd.f32 %v127, %v132
    %135 = vadd.xlane.f32.xlu0 %v133
    %v136 = vpop.xlane.xlu0 %135
    %137 = vadd.xlane.f32.xlu0 %v134
    %v138 = vpop.xlane.xlu0 %137
    %v139 = vrcp.pop 128.0
    %v140 = vmul.f32 128.0, %v139
    %v141 = vsub.f32 1.0, %v140
    %v142 = vmul.f32 %v139, %v141
    %v143 = vadd.f32 %v139, %v142
    %vm144 = vweird.f32 %v139
    %v145 = vsel %vm144, %v139, %v143
    %v146 = vmul.f32 %v136, %v145
    %v147 = vmul.f32 %v138, %v145
    %v148 = vsub.f32 %v133, %v146
    %v149 = vsub.f32 %v134, %v147
    %v150 = vmul.f32 %v148, %v148
    %v151 = vmul.f32 %v149, %v149
    %152 = vadd.xlane.f32.xlu0 %v150
    %v153 = vpop.xlane.xlu0 %152
    %154 = vadd.xlane.f32.xlu0 %v151
    %v155 = vpop.xlane.xlu0 %154
    %v156 = vmul.f32 %v153, %v145
    %v157 = vmul.f32 %v155, %v145
    %v158 = vadd.f32 %v156, 1e-05
    %v159 = vadd.f32 %v157, 1e-05
    %v160 = vrsqrt.pop %v158
    %v161 = vmul.f32 %v160, %v158
    %v162 = vmul.f32 %v161, %v160
    %v163 = vmul.f32 0.5, %v162
    %v164 = vsub.f32 1.5, %v163
    %v165 = vmul.f32 %v160, %v164
    %vm166 = vweird.f32 %v158
    %vm167 = vweird.f32 %v160
    %vm168 = vmor %vm166, %vm167
    %v169 = vsel %vm168, %v160, %v165
    %v170 = vrsqrt.pop %v159
    %v171 = vmul.f32 %v170, %v159
    %v172 = vmul.f32 %v171, %v170
    %v173 = vmul.f32 0.5, %v172
    %v174 = vsub.f32 1.5, %v173
    %v175 = vmul.f32 %v170, %v174
    %vm176 = vweird.f32 %v159
    %vm177 = vweird.f32 %v170
    %vm178 = vmor %vm176, %vm177
    %v179 = vsel %vm178, %v170, %v175
    %v180 = vmul.f32 %v148, %v169
    %v181 = vmul.f32 %v149, %v179
    %v182 = vld [vmem:[%s4] sm:$0x1]
    %v184 = vperm.slane %v182, 0
    %v186 = vmul.f32 %v180, %v184
    %v187 = vmul.f32 %v181, %v184
    %v188 = vld [vmem:[%s5] sm:$0x1]
    %v190 = vperm.slane %v188, 0
    %v192 = vadd.f32 %v186, %v190
    %v193 = vadd.f32 %v187, %v190
    %v194 = vpack.c.bf16 %v192, %v192
    %v195 = vpack.c.bf16 %v193, %v193
    %196 = vst [vmem:[%s6] sm:$0xf] %v194
    %197 = vst [vmem:[%s6 + $0x4] sm:$0xf] %v195
    // Predicated region
    $region30: #{meta_bert_3d.29} parent=1 // pred_check
      _
    $region31: #{meta_bert_3d.29} parent=1 // pred_check_branch
      %199 = sbr.rel (0) target = $region33
    $region32: #{meta_bert_3d.29} parent=1 // pred_region
      _
    $region33: #{meta_bert_3d.29} parent=1 // pred_fallthru
      _
    // Predicated region
    $region34: #{meta_bert_3d.29} parent=1 // pred_check
      _
    $region35: #{meta_bert_3d.29} parent=1 // pred_check_branch
      %201 = sbr.rel (0) target = $region37
    $region36: #{meta_bert_3d.29} parent=1 // pred_region
      _
    $region37: #{meta_bert_3d.29} parent=1 // pred_fallthru
      _
    %202 = vsyncpa [#allocation3], 1

// kernel: meta_bert_3d.37
$region0: #{meta_bert_3d.37}
  #allocation0 [shape = 'u32[]', space=smem, size = 0x4, offset = 0x4, fixed_abs, tag = 'smem constant byte address 0x4 - core index']
  #allocation1 [shape = 'u32[72,128]{1,0:T(1,128)}', space=vmem, size = 0x9000, scoped, tag = 'internal scratch']
  #allocation2 [shape = 'f32[16,128]{1,0:T(8,128)}', space=vmem, size = 0x2000, scoped, tag = 'scratch operand']
  %s0 = inlined_call_operand.vmem [shape: bf16[16,128], index: 0, kind: input, shape index: {}]
  %s1 = inlined_call_operand.hbm [shape: bf16[128,128], index: 1, kind: input, shape index: {}]
  %s2 = inlined_call_operand.vmem [shape: f32[1,128], index: 2, kind: input, shape index: {}]
  %s3 = inlined_call_operand.vmem [shape: bf16[16,128], index: 3, kind: output, shape index: {}]
  %s4 = sld [smem:[#allocation0]]
  $region34: #{meta_bert_3d.37} parent=0
    _
  %s6 = ssub.s32 1, %s4
  %s7 = scalar_select 0, %s6, %s4
  $region1: #{meta_bert_3d.37} parent=0
    #allocation3 [shape = 'u8[32768]{0}', space=vmem, size = 0x8000, scoped, tag = 'input window, operand 1, single buffered']
    #allocation4 [shape = 's32[1]{0}', space=sflag, size = 0x4, scoped, tag = 'scoped memory for meta_bert_3d.37']
    %8 = vsyncpa [#allocation4], 0
    // Predicated region
    $region2: #{meta_bert_3d.37} parent=1 // pred_check
      _
    $region3: #{meta_bert_3d.37} parent=1 // pred_check_branch
      %10 = sbr.rel (0) target = $region5
    $region4: #{meta_bert_3d.37} parent=1 // pred_region
      _
    $region5: #{meta_bert_3d.37} parent=1 // pred_fallthru
      _
    // Predicated region
    $region6: #{meta_bert_3d.37} parent=1 // pred_check
      _
    $region7: #{meta_bert_3d.37} parent=1 // pred_check_branch
      %12 = sbr.rel (0) target = $region9
    $region8: #{meta_bert_3d.37} parent=1 // pred_region
      %14 = vsyncadd [#allocation4], 0
      %s15 = sshll.u32 %s1, 4
      %s16 = int_to_ptr.hbm [resolvable:$true] %s15
      %s17 = sshll.u32 [#allocation3], 4
      %s18 = int_to_ptr.vmem [resolvable:$true] %s17
      %23 = dma.hbm_to_vmem [thread:$0]  %s16, 1024, %s18, [#allocation4], 64, 64, 4
    $region9: #{meta_bert_3d.37} parent=1 // pred_fallthru
      _
    // Predicated region
    $region10: #{meta_bert_3d.37} parent=1 // pred_check
      _
    $region11: #{meta_bert_3d.37} parent=1 // pred_check_branch
      %25 = sbr.rel (0) target = $region13
    $region12: #{meta_bert_3d.37} parent=1 // pred_region
      _
    $region13: #{meta_bert_3d.37} parent=1 // pred_fallthru
      _
    // Predicated region
    $region14: #{meta_bert_3d.37} parent=1 // pred_check
      _
    $region15: #{meta_bert_3d.37} parent=1 // pred_check_branch
      %27 = sbr.rel (0) target = $region17
    $region16: #{meta_bert_3d.37} parent=1 // pred_region
      %29 = dma.done [#allocation4], 1024
    $region17: #{meta_bert_3d.37} parent=1 // pred_fallthru
      _
    %p30 = scmp.eq.s32.totalorder 0, 0
    // Predicated region
    $region18: #{meta_bert_3d.37} parent=1 // pred_check
      %p31 = pneg %p30
    $region19: #{meta_bert_3d.37} parent=1 // pred_check_branch
      %33 = sbr.rel (%p31) target = $region21
    $region20: #{meta_bert_3d.37} parent=1 // pred_region
      %34 = vst [vmem:[#allocation2] sm:$0xff] 0.0
      %35 = vst [vmem:[#allocation2 + $0x8] sm:$0xff] 0.0
    $region21: #{meta_bert_3d.37} parent=1 // pred_fallthru
      _
    %v36 = vld [vmem:[#allocation2] sm:$0xff]
    %v37 = vld [vmem:[#allocation2 + $0x8] sm:$0xff]
    %v38 = vld [vmem:[%s0] sm:$0xf]
    %v39 = vld [vmem:[%s0 + $0x4] sm:$0xf]
    %v40 = vld [vmem:[#allocation3] sm:$0xf]
    %v41 = vld [vmem:[#allocation3 + $0x4] sm:$0xf]
    %v42 = vld [vmem:[#allocation3 + $0x8] sm:$0xf]
    %v43 = vld [vmem:[#allocation3 + $0xc] sm:$0xf]
    %v44 = vld [vmem:[#allocation3 + $0x10] sm:$0xf]
    %v45 = vld [vmem:[#allocation3 + $0x14] sm:$0xf]
    %v46 = vld [vmem:[#allocation3 + $0x18] sm:$0xf]
    %v47 = vld [vmem:[#allocation3 + $0x1c] sm:$0xf]
    %v48 = vld [vmem:[#allocation3 + $0x20] sm:$0xf]
    %v49 = vld [vmem:[#allocation3 + $0x24] sm:$0xf]
    %v50 = vld [vmem:[#allocation3 + $0x28] sm:$0xf]
    %v51 = vld [vmem:[#allocation3 + $0x2c] sm:$0xf]
    %v52 = vld [vmem:[#allocation3 + $0x30] sm:$0xf]
    %v53 = vld [vmem:[#allocation3 + $0x34] sm:$0xf]
    %v54 = vld [vmem:[#allocation3 + $0x38] sm:$0xf]
    %v55 = vld [vmem:[#allocation3 + $0x3c] sm:$0xf]
    %v58 = vunpack.c.l.b16 %v38
    %v59 = vunpack.c.l.b16 %v39
    %v60 = vpack.c.b16 %v59, %v58
    %v78 = vunpack.c.l.b16 %v40
    %v79 = vunpack.c.l.b16 %v41
    %v80 = vunpack.c.l.b16 %v42
    %v81 = vunpack.c.l.b16 %v43
    %v82 = vunpack.c.l.b16 %v44
    %v83 = vunpack.c.l.b16 %v45
    %v84 = vunpack.c.l.b16 %v46
    %v85 = vunpack.c.l.b16 %v47
    %v86 = vunpack.c.l.b16 %v48
    %v87 = vunpack.c.l.b16 %v49
    %v88 = vunpack.c.l.b16 %v50
    %v89 = vunpack.c.l.b16 %v51
    %v90 = vunpack.c.l.b16 %v52
    %v91 = vunpack.c.l.b16 %v53
    %v92 = vunpack.c.l.b16 %v54
    %v93 = vunpack.c.l.b16 %v55
    %v94 = vpack.c.b16 %v79, %v78
    %v95 = vpack.c.b16 %v81, %v80
    %v96 = vpack.c.b16 %v83, %v82
    %v97 = vpack.c.b16 %v85, %v84
    %v98 = vpack.c.b16 %v87, %v86
    %v99 = vpack.c.b16 %v89, %v88
    %v100 = vpack.c.b16 %v91, %v90
    %v101 = vpack.c.b16 %v93, %v92
    %110 = vmatpush.bf16.msra.mxu0 %v101
    %111 = vmatpush.bf16.msra.mxu0 %v100
    %112 = vmatpush.bf16.msra.mxu0 %v99
    %113 = vmatpush.bf16.msra.mxu0 %v98
    %114 = vmatpush.bf16.msra.mxu0 %v97
    %115 = vmatpush.bf16.msra.mxu0 %v96
    %116 = vmatpush.bf16.msra.mxu0 %v95
    %117 = vmatpush.bf16.msra.mxu0 %v94
    %118 = vmatmul.bf16.gmra.mxu0 %v60
    %v119 = vpop.f32.mrf.mxu0
    %v120 = vadd.f32 0.0, %v119
    %v121 = vpop.f32.mrf.mxu0
    %v122 = vadd.f32 0.0, %v121
    %123 = vdwg.mxu0
    %v124 = vadd.f32 %v36, %v120
    %v125 = vadd.f32 %v37, %v122
    %126 = vst [vmem:[#allocation2] sm:$0xff] %v124
    %127 = vst [vmem:[#allocation2 + $0x8] sm:$0xff] %v125
    // Predicated region
    $region22: #{meta_bert_3d.37} parent=1 // pred_check
      %p128 = pneg %p30
    $region23: #{meta_bert_3d.37} parent=1 // pred_check_branch
      %130 = sbr.rel (%p128) target = $region25
    $region24: #{meta_bert_3d.37} parent=1 // pred_region
      %v131 = vld [vmem:[#allocation2] sm:$0xff]
      %v132 = vld [vmem:[#allocation2 + $0x8] sm:$0xff]
      %v133 = vld [vmem:[%s2] sm:$0x1]
      %v135 = vperm.slane %v133, 0
      %v137 = vadd.f32 %v131, %v135
      %v138 = vadd.f32 %v132, %v135
      %v139 = vpack.c.bf16 %v137, %v137
      %v140 = vpack.c.bf16 %v138, %v138
      %141 = vst [vmem:[%s3] sm:$0xf] %v139
      %142 = vst [vmem:[%s3 + $0x4] sm:$0xf] %v140
    $region25: #{meta_bert_3d.37} parent=1 // pred_fallthru
      _
    // Predicated region
    $region26: #{meta_bert_3d.37} parent=1 // pred_check
      _
    $region27: #{meta_bert_3d.37} parent=1 // pred_check_branch
      %144 = sbr.rel (0) target = $region29
    $region28: #{meta_bert_3d.37} parent=1 // pred_region
      _
    $region29: #{meta_bert_3d.37} parent=1 // pred_fallthru
      _
    // Predicated region
    $region30: #{meta_bert_3d.37} parent=1 // pred_check
      _
    $region31: #{meta_bert_3d.37} parent=1 // pred_check_branch
      %146 = sbr.rel (0) target = $region33
    $region32: #{meta_bert_3d.37} parent=1 // pred_region
      _
    $region33: #{meta_bert_3d.37} parent=1 // pred_fallthru
      _
    %147 = vsyncpa [#allocation4], 1

// kernel: meta_bert_3d.36
$region0: #{meta_bert_3d.36}
  #allocation0 [shape = 'u32[]', space=smem, size = 0x4, offset = 0x4, fixed_abs, tag = 'smem constant byte address 0x4 - core index']
  #allocation1 [shape = 'u32[72,128]{1,0:T(1,128)}', space=vmem, size = 0x9000, scoped, tag = 'internal scratch']
  #allocation2 [shape = 'f32[16,128]{1,0:T(8,128)}', space=vmem, size = 0x2000, scoped, tag = 'scratch operand']
  %s0 = inlined_call_operand.vmem [shape: bf16[16,128], index: 0, kind: input, shape index: {}]
  %s1 = inlined_call_operand.vmem [shape: bf16[128,128], index: 1, kind: input, shape index: {}]
  %s2 = inlined_call_operand.vmem [shape: f32[1,128], index: 2, kind: input, shape index: {}]
  %s3 = inlined_call_operand.vmem [shape: bf16[16,128], index: 3, kind: output, shape index: {}]
  %s4 = sld [smem:[#allocation0]]
  $region30: #{meta_bert_3d.36} parent=0
    _
  %s6 = ssub.s32 1, %s4
  %s7 = scalar_select 0, %s6, %s4
  // Predicated region
  $region2: #{meta_bert_3d.36} parent=0 // pred_check
    _
  $region3: #{meta_bert_3d.36} parent=0 // pred_check_branch
    %9 = sbr.rel (0) target = $region5
  $region4: #{meta_bert_3d.36} parent=0 // pred_region
    _
  $region5: #{meta_bert_3d.36} parent=0 // pred_fallthru
    _
  // Predicated region
  $region6: #{meta_bert_3d.36} parent=0 // pred_check
    _
  $region7: #{meta_bert_3d.36} parent=0 // pred_check_branch
    %11 = sbr.rel (0) target = $region9
  $region8: #{meta_bert_3d.36} parent=0 // pred_region
    _
  $region9: #{meta_bert_3d.36} parent=0 // pred_fallthru
    _
  // Predicated region
  $region10: #{meta_bert_3d.36} parent=0 // pred_check
    _
  $region11: #{meta_bert_3d.36} parent=0 // pred_check_branch
    %13 = sbr.rel (0) target = $region13
  $region12: #{meta_bert_3d.36} parent=0 // pred_region
    _
  $region13: #{meta_bert_3d.36} parent=0 // pred_fallthru
    _
  %p14 = scmp.eq.s32.totalorder 0, 0
  // Predicated region
  $region14: #{meta_bert_3d.36} parent=0 // pred_check
    %p15 = pneg %p14
  $region15: #{meta_bert_3d.36} parent=0 // pred_check_branch
    %17 = sbr.rel (%p15) target = $region17
  $region16: #{meta_bert_3d.36} parent=0 // pred_region
    %18 = vst [vmem:[#allocation2] sm:$0xff] 0.0
    %19 = vst [vmem:[#allocation2 + $0x8] sm:$0xff] 0.0
  $region17: #{meta_bert_3d.36} parent=0 // pred_fallthru
    _
  %v20 = vld [vmem:[#allocation2] sm:$0xff]
  %v21 = vld [vmem:[#allocation2 + $0x8] sm:$0xff]
  %v22 = vld [vmem:[%s0] sm:$0xf]
  %v23 = vld [vmem:[%s0 + $0x4] sm:$0xf]
  %v24 = vld [vmem:[%s1] sm:$0xf]
  %v25 = vld [vmem:[%s1 + $0x4] sm:$0xf]
  %v26 = vld [vmem:[%s1 + $0x8] sm:$0xf]
  %v27 = vld [vmem:[%s1 + $0xc] sm:$0xf]
  %v28 = vld [vmem:[%s1 + $0x10] sm:$0xf]
  %v29 = vld [vmem:[%s1 + $0x14] sm:$0xf]
  %v30 = vld [vmem:[%s1 + $0x18] sm:$0xf]
  %v31 = vld [vmem:[%s1 + $0x1c] sm:$0xf]
  %v32 = vld [vmem:[%s1 + $0x20] sm:$0xf]
  %v33 = vld [vmem:[%s1 + $0x24] sm:$0xf]
  %v34 = vld [vmem:[%s1 + $0x28] sm:$0xf]
  %v35 = vld [vmem:[%s1 + $0x2c] sm:$0xf]
  %v36 = vld [vmem:[%s1 + $0x30] sm:$0xf]
  %v37 = vld [vmem:[%s1 + $0x34] sm:$0xf]
  %v38 = vld [vmem:[%s1 + $0x38] sm:$0xf]
  %v39 = vld [vmem:[%s1 + $0x3c] sm:$0xf]
  %v42 = vunpack.c.l.b16 %v22
  %v43 = vunpack.c.l.b16 %v23
  %v44 = vpack.c.b16 %v43, %v42
  %v62 = vunpack.c.l.b16 %v24
  %v63 = vunpack.c.l.b16 %v25
  %v64 = vunpack.c.l.b16 %v26
  %v65 = vunpack.c.l.b16 %v27
  %v66 = vunpack.c.l.b16 %v28
  %v67 = vunpack.c.l.b16 %v29
  %v68 = vunpack.c.l.b16 %v30
  %v69 = vunpack.c.l.b16 %v31
  %v70 = vunpack.c.l.b16 %v32
  %v71 = vunpack.c.l.b16 %v33
  %v72 = vunpack.c.l.b16 %v34
  %v73 = vunpack.c.l.b16 %v35
  %v74 = vunpack.c.l.b16 %v36
  %v75 = vunpack.c.l.b16 %v37
  %v76 = vunpack.c.l.b16 %v38
  %v77 = vunpack.c.l.b16 %v39
  %v78 = vpack.c.b16 %v63, %v62
  %v79 = vpack.c.b16 %v65, %v64
  %v80 = vpack.c.b16 %v67, %v66
  %v81 = vpack.c.b16 %v69, %v68
  %v82 = vpack.c.b16 %v71, %v70
  %v83 = vpack.c.b16 %v73, %v72
  %v84 = vpack.c.b16 %v75, %v74
  %v85 = vpack.c.b16 %v77, %v76
  %94 = vmatpush.bf16.msra.mxu0 %v85
  %95 = vmatpush.bf16.msra.mxu0 %v84
  %96 = vmatpush.bf16.msra.mxu0 %v83
  %97 = vmatpush.bf16.msra.mxu0 %v82
  %98 = vmatpush.bf16.msra.mxu0 %v81
  %99 = vmatpush.bf16.msra.mxu0 %v80
  %100 = vmatpush.bf16.msra.mxu0 %v79
  %101 = vmatpush.bf16.msra.mxu0 %v78
  %102 = vmatmul.bf16.gmra.mxu0 %v44
  %v103 = vpop.f32.mrf.mxu0
  %v104 = vadd.f32 0.0, %v103
  %v105 = vpop.f32.mrf.mxu0
  %v106 = vadd.f32 0.0, %v105
  %107 = vdwg.mxu0
  %v108 = vadd.f32 %v20, %v104
  %v109 = vadd.f32 %v21, %v106
  %110 = vst [vmem:[#allocation2] sm:$0xff] %v108
  %111 = vst [vmem:[#allocation2 + $0x8] sm:$0xff] %v109
  // Predicated region
  $region18: #{meta_bert_3d.36} parent=0 // pred_check
    %p112 = pneg %p14
  $region19: #{meta_bert_3d.36} parent=0 // pred_check_branch
    %114 = sbr.rel (%p112) target = $region21
  $region20: #{meta_bert_3d.36} parent=0 // pred_region
    %v115 = vld [vmem:[#allocation2] sm:$0xff]
    %v116 = vld [vmem:[#allocation2 + $0x8] sm:$0xff]
    %v117 = vld [vmem:[%s2] sm:$0x1]
    %v119 = vperm.slane %v117, 0
    %v121 = vadd.f32 %v115, %v119
    %v122 = vadd.f32 %v116, %v119
    %v123 = vpack.c.bf16 %v121, %v121
    %v124 = vpack.c.bf16 %v122, %v122
    %125 = vst [vmem:[%s3] sm:$0xf] %v123
    %126 = vst [vmem:[%s3 + $0x4] sm:$0xf] %v124
  $region21: #{meta_bert_3d.36} parent=0 // pred_fallthru
    _
  // Predicated region
  $region22: #{meta_bert_3d.36} parent=0 // pred_check
    _
  $region23: #{meta_bert_3d.36} parent=0 // pred_check_branch
    %128 = sbr.rel (0) target = $region25
  $region24: #{meta_bert_3d.36} parent=0 // pred_region
    _
  $region25: #{meta_bert_3d.36} parent=0 // pred_fallthru
    _
  // Predicated region
  $region26: #{meta_bert_3d.36} parent=0 // pred_check
    _
  $region27: #{meta_bert_3d.36} parent=0 // pred_check_branch
    %130 = sbr.rel (0) target = $region29
  $region28: #{meta_bert_3d.36} parent=0 // pred_region
    _
  $region29: #{meta_bert_3d.36} parent=0 // pred_fallthru
    _

// kernel: meta_bert_3d.30
$region0: #{meta_bert_3d.30}
  #allocation0 [shape = 'u32[]', space=smem, size = 0x4, offset = 0x4, fixed_abs, tag = 'smem constant byte address 0x4 - core index']
  #allocation1 [shape = 'u32[72,128]{1,0:T(1,128)}', space=vmem, size = 0x9000, scoped, tag = 'internal scratch']
  %s0 = inlined_call_operand.vmem [shape: bf16[16,128], index: 0, kind: input, shape index: {}]
  %s1 = inlined_call_operand.hbm [shape: bf16[128,512], index: 1, kind: input, shape index: {}]
  %s2 = inlined_call_operand.vmem [shape: f32[1,512], index: 2, kind: input, shape index: {}]
  %s3 = inlined_call_operand.hbm [shape: bf16[512,128], index: 3, kind: input, shape index: {}]
  %s4 = inlined_call_operand.vmem [shape: f32[1,128], index: 4, kind: input, shape index: {}]
  %s5 = inlined_call_operand.vmem [shape: f32[1,128], index: 5, kind: input, shape index: {}]
  %s6 = inlined_call_operand.vmem [shape: f32[1,128], index: 6, kind: input, shape index: {}]
  %s7 = inlined_call_operand.vmem [shape: bf16[16,128], index: 7, kind: output, shape index: {}]
  %s8 = sld [smem:[#allocation0]]
  $region46: #{meta_bert_3d.30} parent=0
    _
  %s10 = ssub.s32 1, %s8
  %s11 = scalar_select 0, %s10, %s8
  $region1: #{meta_bert_3d.30} parent=0
    #allocation2 [shape = 'u8[131072]{0}', space=vmem, size = 0x20000, scoped, tag = 'input window, operand 1, single buffered']
    #allocation3 [shape = 's32[1]{0}', space=sflag, size = 0x4, scoped, tag = 'scoped memory for meta_bert_3d.30']
    #allocation4 [shape = 'u8[131072]{0}', space=vmem, size = 0x20000, scoped, tag = 'input window, operand 3, single buffered']
    #allocation5 [shape = 's32[1]{0}', space=sflag, size = 0x4, scoped, tag = 'scoped memory for meta_bert_3d.30']
    %12 = vsyncpa [#allocation3], 0
    %13 = vsyncpa [#allocation5], 0
    // Predicated region
    $region2: #{meta_bert_3d.30} parent=1 // pred_check
      _
    $region3: #{meta_bert_3d.30} parent=1 // pred_check_branch
      %15 = sbr.rel (0) target = $region5
    $region4: #{meta_bert_3d.30} parent=1 // pred_region
      _
    $region5: #{meta_bert_3d.30} parent=1 // pred_fallthru
      _
    // Predicated region
    $region6: #{meta_bert_3d.30} parent=1 // pred_check
      _
    $region7: #{meta_bert_3d.30} parent=1 // pred_check_branch
      %17 = sbr.rel (0) target = $region9
    $region8: #{meta_bert_3d.30} parent=1 // pred_region
      %19 = vsyncadd [#allocation3], 0
      %s20 = sshll.u32 %s1, 4
      %s21 = int_to_ptr.hbm [resolvable:$true] %s20
      %s22 = sshll.u32 [#allocation2], 4
      %s23 = int_to_ptr.vmem [resolvable:$true] %s22
      %28 = dma.hbm_to_vmem [thread:$0]  %s21, 4096, %s23, [#allocation3], 256, 256, 16
    $region9: #{meta_bert_3d.30} parent=1 // pred_fallthru
      _
    // Predicated region
    $region10: #{meta_bert_3d.30} parent=1 // pred_check
      _
    $region11: #{meta_bert_3d.30} parent=1 // pred_check_branch
      %30 = sbr.rel (0) target = $region13
    $region12: #{meta_bert_3d.30} parent=1 // pred_region
      _
    $region13: #{meta_bert_3d.30} parent=1 // pred_fallthru
      _
    // Predicated region
    $region14: #{meta_bert_3d.30} parent=1 // pred_check
      _
    $region15: #{meta_bert_3d.30} parent=1 // pred_check_branch
      %32 = sbr.rel (0) target = $region17
    $region16: #{meta_bert_3d.30} parent=1 // pred_region
      %34 = vsyncadd [#allocation5], 0
      %s35 = sshll.u32 %s3, 4
      %s36 = int_to_ptr.hbm [resolvable:$true] %s35
      %s37 = sshll.u32 [#allocation4], 4
      %s38 = int_to_ptr.vmem [resolvable:$true] %s37
      %43 = dma.hbm_to_vmem [thread:$0]  %s36, 4096, %s38, [#allocation5], 64, 64, 4
    $region17: #{meta_bert_3d.30} parent=1 // pred_fallthru
      _
    // Predicated region
    $region18: #{meta_bert_3d.30} parent=1 // pred_check
      _
    $region19: #{meta_bert_3d.30} parent=1 // pred_check_branch
      %45 = sbr.rel (0) target = $region21
    $region20: #{meta_bert_3d.30} parent=1 // pred_region
      _
    $region21: #{meta_bert_3d.30} parent=1 // pred_fallthru
      _
    // Predicated region
    $region22: #{meta_bert_3d.30} parent=1 // pred_check
      _
    $region23: #{meta_bert_3d.30} parent=1 // pred_check_branch
      %47 = sbr.rel (0) target = $region25
    $region24: #{meta_bert_3d.30} parent=1 // pred_region
      _
    $region25: #{meta_bert_3d.30} parent=1 // pred_fallthru
      _
    // Predicated region
    $region26: #{meta_bert_3d.30} parent=1 // pred_check
      _
    $region27: #{meta_bert_3d.30} parent=1 // pred_check_branch
      %49 = sbr.rel (0) target = $region29
    $region28: #{meta_bert_3d.30} parent=1 // pred_region
      _
    $region29: #{meta_bert_3d.30} parent=1 // pred_fallthru
      _
    // Predicated region
    $region30: #{meta_bert_3d.30} parent=1 // pred_check
      _
    $region31: #{meta_bert_3d.30} parent=1 // pred_check_branch
      %51 = sbr.rel (0) target = $region33
    $region32: #{meta_bert_3d.30} parent=1 // pred_region
      %53 = dma.done [#allocation3], 4096
    $region33: #{meta_bert_3d.30} parent=1 // pred_fallthru
      _
    // Predicated region
    $region34: #{meta_bert_3d.30} parent=1 // pred_check
      _
    $region35: #{meta_bert_3d.30} parent=1 // pred_check_branch
      %55 = sbr.rel (0) target = $region37
    $region36: #{meta_bert_3d.30} parent=1 // pred_region
      %57 = dma.done [#allocation5], 4096
    $region37: #{meta_bert_3d.30} parent=1 // pred_fallthru
      _
    %v58 = vld [vmem:[%s0] sm:$0xf]
    %v59 = vld [vmem:[%s0 + $0x4] sm:$0xf]
    %v60 = vld [vmem:[#allocation2] sm:$0xff]
    %v61 = vld [vmem:[#allocation2 + $0x8] sm:$0xff]
    %v62 = vld [vmem:[#allocation2 + $0x10] sm:$0xff]
    %v63 = vld [vmem:[#allocation2 + $0x18] sm:$0xff]
    %v64 = vld [vmem:[#allocation2 + $0x20] sm:$0xff]
    %v65 = vld [vmem:[#allocation2 + $0x28] sm:$0xff]
    %v66 = vld [vmem:[#allocation2 + $0x30] sm:$0xff]
    %v67 = vld [vmem:[#allocation2 + $0x38] sm:$0xff]
    %v68 = vld [vmem:[#allocation2 + $0x40] sm:$0xff]
    %v69 = vld [vmem:[#allocation2 + $0x48] sm:$0xff]
    %v70 = vld [vmem:[#allocation2 + $0x50] sm:$0xff]
    %v71 = vld [vmem:[#allocation2 + $0x58] sm:$0xff]
    %v72 = vld [vmem:[#allocation2 + $0x60] sm:$0xff]
    %v73 = vld [vmem:[#allocation2 + $0x68] sm:$0xff]
    %v74 = vld [vmem:[#allocation2 + $0x70] sm:$0xff]
    %v75 = vld [vmem:[#allocation2 + $0x78] sm:$0xff]
    %v76 = vld [vmem:[#allocation2 + $0x80] sm:$0xff]
    %v77 = vld [vmem:[#allocation2 + $0x88] sm:$0xff]
    %v78 = vld [vmem:[#allocation2 + $0x90] sm:$0xff]
    %v79 = vld [vmem:[#allocation2 + $0x98] sm:$0xff]
    %v80 = vld [vmem:[#allocation2 + $0xa0] sm:$0xff]
    %v81 = vld [vmem:[#allocation2 + $0xa8] sm:$0xff]
    %v82 = vld [vmem:[#allocation2 + $0xb0] sm:$0xff]
    %v83 = vld [vmem:[#allocation2 + $0xb8] sm:$0xff]
    %v84 = vld [vmem:[#allocation2 + $0xc0] sm:$0xff]
    %v85 = vld [vmem:[#allocation2 + $0xc8] sm:$0xff]
    %v86 = vld [vmem:[#allocation2 + $0xd0] sm:$0xff]
    %v87 = vld [vmem:[#allocation2 + $0xd8] sm:$0xff]
    %v88 = vld [vmem:[#allocation2 + $0xe0] sm:$0xff]
    %v89 = vld [vmem:[#allocation2 + $0xe8] sm:$0xff]
    %v90 = vld [vmem:[#allocation2 + $0xf0] sm:$0xff]
    %v91 = vld [vmem:[#allocation2 + $0xf8] sm:$0xff]
    %v92 = vld [vmem:[%s2] sm:$0xf]
    %v94 = vperm.slane %v92, 0
    %v95 = vperm.slane %v92, 1
    %v96 = vperm.slane %v92, 2
    %v97 = vperm.slane %v92, 3
    %v104 = vunpack.c.l.b16 %v58
    %v105 = vunpack.c.l.b16 %v59
    %v106 = vpack.c.b16 %v105, %v104
    %v140 = vunpack.c.l.b16 %v60
    %v141 = vunpack.c.h.b16 %v60
    %v142 = vunpack.c.l.b16 %v61
    %v143 = vunpack.c.h.b16 %v61
    %v144 = vunpack.c.l.b16 %v62
    %v145 = vunpack.c.h.b16 %v62
    %v146 = vunpack.c.l.b16 %v63
    %v147 = vunpack.c.h.b16 %v63
    %v148 = vunpack.c.l.b16 %v64
    %v149 = vunpack.c.h.b16 %v64
    %v150 = vunpack.c.l.b16 %v65
    %v151 = vunpack.c.h.b16 %v65
    %v152 = vunpack.c.l.b16 %v66
    %v153 = vunpack.c.h.b16 %v66
    %v154 = vunpack.c.l.b16 %v67
    %v155 = vunpack.c.h.b16 %v67
    %v156 = vunpack.c.l.b16 %v68
    %v157 = vunpack.c.h.b16 %v68
    %v158 = vunpack.c.l.b16 %v69
    %v159 = vunpack.c.h.b16 %v69
    %v160 = vunpack.c.l.b16 %v70
    %v161 = vunpack.c.h.b16 %v70
    %v162 = vunpack.c.l.b16 %v71
    %v163 = vunpack.c.h.b16 %v71
    %v164 = vunpack.c.l.b16 %v72
    %v165 = vunpack.c.h.b16 %v72
    %v166 = vunpack.c.l.b16 %v73
    %v167 = vunpack.c.h.b16 %v73
    %v168 = vunpack.c.l.b16 %v74
    %v169 = vunpack.c.h.b16 %v74
    %v170 = vunpack.c.l.b16 %v75
    %v171 = vunpack.c.h.b16 %v75
    %v172 = vunpack.c.l.b16 %v76
    %v173 = vunpack.c.h.b16 %v76
    %v174 = vunpack.c.l.b16 %v77
    %v175 = vunpack.c.h.b16 %v77
    %v176 = vunpack.c.l.b16 %v78
    %v177 = vunpack.c.h.b16 %v78
    %v178 = vunpack.c.l.b16 %v79
    %v179 = vunpack.c.h.b16 %v79
    %v180 = vunpack.c.l.b16 %v80
    %v181 = vunpack.c.h.b16 %v80
    %v182 = vunpack.c.l.b16 %v81
    %v183 = vunpack.c.h.b16 %v81
    %v184 = vunpack.c.l.b16 %v82
    %v185 = vunpack.c.h.b16 %v82
    %v186 = vunpack.c.l.b16 %v83
    %v187 = vunpack.c.h.b16 %v83
    %v188 = vunpack.c.l.b16 %v84
    %v189 = vunpack.c.h.b16 %v84
    %v190 = vunpack.c.l.b16 %v85
    %v191 = vunpack.c.h.b16 %v85
    %v192 = vunpack.c.l.b16 %v86
    %v193 = vunpack.c.h.b16 %v86
    %v194 = vunpack.c.l.b16 %v87
    %v195 = vunpack.c.h.b16 %v87
    %v196 = vunpack.c.l.b16 %v88
    %v197 = vunpack.c.h.b16 %v88
    %v198 = vunpack.c.l.b16 %v89
    %v199 = vunpack.c.h.b16 %v89
    %v200 = vunpack.c.l.b16 %v90
    %v201 = vunpack.c.h.b16 %v90
    %v202 = vunpack.c.l.b16 %v91
    %v203 = vunpack.c.h.b16 %v91
    %v204 = vpack.c.b16 %v144, %v140
    %v205 = vpack.c.b16 %v145, %v141
    %v206 = vpack.c.b16 %v146, %v142
    %v207 = vpack.c.b16 %v147, %v143
    %v208 = vpack.c.b16 %v152, %v148
    %v209 = vpack.c.b16 %v153, %v149
    %v210 = vpack.c.b16 %v154, %v150
    %v211 = vpack.c.b16 %v155, %v151
    %v212 = vpack.c.b16 %v160, %v156
    %v213 = vpack.c.b16 %v161, %v157
    %v214 = vpack.c.b16 %v162, %v158
    %v215 = vpack.c.b16 %v163, %v159
    %v216 = vpack.c.b16 %v168, %v164
    %v217 = vpack.c.b16 %v169, %v165
    %v218 = vpack.c.b16 %v170, %v166
    %v219 = vpack.c.b16 %v171, %v167
    %v220 = vpack.c.b16 %v176, %v172
    %v221 = vpack.c.b16 %v177, %v173
    %v222 = vpack.c.b16 %v178, %v174
    %v223 = vpack.c.b16 %v179, %v175
    %v224 = vpack.c.b16 %v184, %v180
    %v225 = vpack.c.b16 %v185, %v181
    %v226 = vpack.c.b16 %v186, %v182
    %v227 = vpack.c.b16 %v187, %v183
    %v228 = vpack.c.b16 %v192, %v188
    %v229 = vpack.c.b16 %v193, %v189
    %v230 = vpack.c.b16 %v194, %v190
    %v231 = vpack.c.b16 %v195, %v191
    %v232 = vpack.c.b16 %v200, %v196
    %v233 = vpack.c.b16 %v201, %v197
    %v234 = vpack.c.b16 %v202, %v198
    %v235 = vpack.c.b16 %v203, %v199
    %268 = vmatpush.bf16.msra.mxu0 %v232
    %269 = vmatpush.bf16.msra.mxu0 %v228
    %270 = vmatpush.bf16.msra.mxu0 %v224
    %271 = vmatpush.bf16.msra.mxu0 %v220
    %272 = vmatpush.bf16.msra.mxu0 %v216
    %273 = vmatpush.bf16.msra.mxu0 %v212
    %274 = vmatpush.bf16.msra.mxu0 %v208
    %275 = vmatpush.bf16.msra.mxu0 %v204
    %276 = vmatmul.bf16.gmra.mxu0 %v106
    %v277 = vpop.f32.mrf.mxu0
    %v278 = vadd.f32 %v94, %v277
    %v279 = vpop.f32.mrf.mxu0
    %v280 = vadd.f32 %v94, %v279
    %281 = vdwg.mxu0
    %282 = vmatpush.bf16.msra.mxu0 %v233
    %283 = vmatpush.bf16.msra.mxu0 %v229
    %284 = vmatpush.bf16.msra.mxu0 %v225
    %285 = vmatpush.bf16.msra.mxu0 %v221
    %286 = vmatpush.bf16.msra.mxu0 %v217
    %287 = vmatpush.bf16.msra.mxu0 %v213
    %288 = vmatpush.bf16.msra.mxu0 %v209
    %289 = vmatpush.bf16.msra.mxu0 %v205
    %290 = vmatmul.bf16.gmra.mxu0 %v106
    %v291 = vpop.f32.mrf.mxu0
    %v292 = vadd.f32 %v95, %v291
    %v293 = vpop.f32.mrf.mxu0
    %v294 = vadd.f32 %v95, %v293
    %295 = vdwg.mxu0
    %296 = vmatpush.bf16.msra.mxu0 %v234
    %297 = vmatpush.bf16.msra.mxu0 %v230
    %298 = vmatpush.bf16.msra.mxu0 %v226
    %299 = vmatpush.bf16.msra.mxu0 %v222
    %300 = vmatpush.bf16.msra.mxu0 %v218
    %301 = vmatpush.bf16.msra.mxu0 %v214
    %302 = vmatpush.bf16.msra.mxu0 %v210
    %303 = vmatpush.bf16.msra.mxu0 %v206
    %304 = vmatmul.bf16.gmra.mxu0 %v106
    %v305 = vpop.f32.mrf.mxu0
    %v306 = vadd.f32 %v96, %v305
    %v307 = vpop.f32.mrf.mxu0
    %v308 = vadd.f32 %v96, %v307
    %309 = vdwg.mxu0
    %310 = vmatpush.bf16.msra.mxu0 %v235
    %311 = vmatpush.bf16.msra.mxu0 %v231
    %312 = vmatpush.bf16.msra.mxu0 %v227
    %313 = vmatpush.bf16.msra.mxu0 %v223
    %314 = vmatpush.bf16.msra.mxu0 %v219
    %315 = vmatpush.bf16.msra.mxu0 %v215
    %316 = vmatpush.bf16.msra.mxu0 %v211
    %317 = vmatpush.bf16.msra.mxu0 %v207
    %318 = vmatmul.bf16.gmra.mxu0 %v106
    %v319 = vpop.f32.mrf.mxu0
    %v320 = vadd.f32 %v97, %v319
    %v321 = vpop.f32.mrf.mxu0
    %v322 = vadd.f32 %v97, %v321
    %323 = vdwg.mxu0
    %v324 = vmax.f32 %v278, 0.0
    %v325 = vmax.f32 %v292, 0.0
    %v326 = vmax.f32 %v306, 0.0
    %v327 = vmax.f32 %v320, 0.0
    %v328 = vmax.f32 %v280, 0.0
    %v329 = vmax.f32 %v294, 0.0
    %v330 = vmax.f32 %v308, 0.0
    %v331 = vmax.f32 %v322, 0.0
    %v332 = vpack.c.bf16 %v328, %v324
    %v333 = vpack.c.bf16 %v329, %v325
    %v334 = vpack.c.bf16 %v330, %v326
    %v335 = vpack.c.bf16 %v331, %v327
    %v336 = vld [vmem:[#allocation4] sm:$0xf]
    %v337 = vld [vmem:[#allocation4 + $0x4] sm:$0xf]
    %v338 = vld [vmem:[#allocation4 + $0x8] sm:$0xf]
    %v339 = vld [vmem:[#allocation4 + $0xc] sm:$0xf]
    %v340 = vld [vmem:[#allocation4 + $0x10] sm:$0xf]
    %v341 = vld [vmem:[#allocation4 + $0x14] sm:$0xf]
    %v342 = vld [vmem:[#allocation4 + $0x18] sm:$0xf]
    %v343 = vld [vmem:[#allocation4 + $0x1c] sm:$0xf]
    %v344 = vld [vmem:[#allocation4 + $0x20] sm:$0xf]
    %v345 = vld [vmem:[#allocation4 + $0x24] sm:$0xf]
    %v346 = vld [vmem:[#allocation4 + $0x28] sm:$0xf]
    %v347 = vld [vmem:[#allocation4 + $0x2c] sm:$0xf]
    %v348 = vld [vmem:[#allocation4 + $0x30] sm:$0xf]
    %v349 = vld [vmem:[#allocation4 + $0x34] sm:$0xf]
    %v350 = vld [vmem:[#allocation4 + $0x38] sm:$0xf]
    %v351 = vld [vmem:[#allocation4 + $0x3c] sm:$0xf]
    %v352 = vld [vmem:[#allocation4 + $0x40] sm:$0xf]
    %v353 = vld [vmem:[#allocation4 + $0x44] sm:$0xf]
    %v354 = vld [vmem:[#allocation4 + $0x48] sm:$0xf]
    %v355 = vld [vmem:[#allocation4 + $0x4c] sm:$0xf]
    %v356 = vld [vmem:[#allocation4 + $0x50] sm:$0xf]
    %v357 = vld [vmem:[#allocation4 + $0x54] sm:$0xf]
    %v358 = vld [vmem:[#allocation4 + $0x58] sm:$0xf]
    %v359 = vld [vmem:[#allocation4 + $0x5c] sm:$0xf]
    %v360 = vld [vmem:[#allocation4 + $0x60] sm:$0xf]
    %v361 = vld [vmem:[#allocation4 + $0x64] sm:$0xf]
    %v362 = vld [vmem:[#allocation4 + $0x68] sm:$0xf]
    %v363 = vld [vmem:[#allocation4 + $0x6c] sm:$0xf]
    %v364 = vld [vmem:[#allocation4 + $0x70] sm:$0xf]
    %v365 = vld [vmem:[#allocation4 + $0x74] sm:$0xf]
    %v366 = vld [vmem:[#allocation4 + $0x78] sm:$0xf]
    %v367 = vld [vmem:[#allocation4 + $0x7c] sm:$0xf]
    %v368 = vld [vmem:[#allocation4 + $0x80] sm:$0xf]
    %v369 = vld [vmem:[#allocation4 + $0x84] sm:$0xf]
    %v370 = vld [vmem:[#allocation4 + $0x88] sm:$0xf]
    %v371 = vld [vmem:[#allocation4 + $0x8c] sm:$0xf]
    %v372 = vld [vmem:[#allocation4 + $0x90] sm:$0xf]
    %v373 = vld [vmem:[#allocation4 + $0x94] sm:$0xf]
    %v374 = vld [vmem:[#allocation4 + $0x98] sm:$0xf]
    %v375 = vld [vmem:[#allocation4 + $0x9c] sm:$0xf]
    %v376 = vld [vmem:[#allocation4 + $0xa0] sm:$0xf]
    %v377 = vld [vmem:[#allocation4 + $0xa4] sm:$0xf]
    %v378 = vld [vmem:[#allocation4 + $0xa8] sm:$0xf]
    %v379 = vld [vmem:[#allocation4 + $0xac] sm:$0xf]
    %v380 = vld [vmem:[#allocation4 + $0xb0] sm:$0xf]
    %v381 = vld [vmem:[#allocation4 + $0xb4] sm:$0xf]
    %v382 = vld [vmem:[#allocation4 + $0xb8] sm:$0xf]
    %v383 = vld [vmem:[#allocation4 + $0xbc] sm:$0xf]
    %v384 = vld [vmem:[#allocation4 + $0xc0] sm:$0xf]
    %v385 = vld [vmem:[#allocation4 + $0xc4] sm:$0xf]
    %v386 = vld [vmem:[#allocation4 + $0xc8] sm:$0xf]
    %v387 = vld [vmem:[#allocation4 + $0xcc] sm:$0xf]
    %v388 = vld [vmem:[#allocation4 + $0xd0] sm:$0xf]
    %v389 = vld [vmem:[#allocation4 + $0xd4] sm:$0xf]
    %v390 = vld [vmem:[#allocation4 + $0xd8] sm:$0xf]
    %v391 = vld [vmem:[#allocation4 + $0xdc] sm:$0xf]
    %v392 = vld [vmem:[#allocation4 + $0xe0] sm:$0xf]
    %v393 = vld [vmem:[#allocation4 + $0xe4] sm:$0xf]
    %v394 = vld [vmem:[#allocation4 + $0xe8] sm:$0xf]
    %v395 = vld [vmem:[#allocation4 + $0xec] sm:$0xf]
    %v396 = vld [vmem:[#allocation4 + $0xf0] sm:$0xf]
    %v397 = vld [vmem:[#allocation4 + $0xf4] sm:$0xf]
    %v398 = vld [vmem:[#allocation4 + $0xf8] sm:$0xf]
    %v399 = vld [vmem:[#allocation4 + $0xfc] sm:$0xf]
    %v400 = vld [vmem:[%s4] sm:$0x1]
    %v402 = vperm.slane %v400, 0
    %v468 = vunpack.c.l.b16 %v336
    %v469 = vunpack.c.l.b16 %v337
    %v470 = vunpack.c.l.b16 %v338
    %v471 = vunpack.c.l.b16 %v339
    %v472 = vunpack.c.l.b16 %v340
    %v473 = vunpack.c.l.b16 %v341
    %v474 = vunpack.c.l.b16 %v342
    %v475 = vunpack.c.l.b16 %v343
    %v476 = vunpack.c.l.b16 %v344
    %v477 = vunpack.c.l.b16 %v345
    %v478 = vunpack.c.l.b16 %v346
    %v479 = vunpack.c.l.b16 %v347
    %v480 = vunpack.c.l.b16 %v348
    %v481 = vunpack.c.l.b16 %v349
    %v482 = vunpack.c.l.b16 %v350
    %v483 = vunpack.c.l.b16 %v351
    %v484 = vunpack.c.l.b16 %v352
    %v485 = vunpack.c.l.b16 %v353
    %v486 = vunpack.c.l.b16 %v354
    %v487 = vunpack.c.l.b16 %v355
    %v488 = vunpack.c.l.b16 %v356
    %v489 = vunpack.c.l.b16 %v357
    %v490 = vunpack.c.l.b16 %v358
    %v491 = vunpack.c.l.b16 %v359
    %v492 = vunpack.c.l.b16 %v360
    %v493 = vunpack.c.l.b16 %v361
    %v494 = vunpack.c.l.b16 %v362
    %v495 = vunpack.c.l.b16 %v363
    %v496 = vunpack.c.l.b16 %v364
    %v497 = vunpack.c.l.b16 %v365
    %v498 = vunpack.c.l.b16 %v366
    %v499 = vunpack.c.l.b16 %v367
    %v500 = vunpack.c.l.b16 %v368
    %v501 = vunpack.c.l.b16 %v369
    %v502 = vunpack.c.l.b16 %v370
    %v503 = vunpack.c.l.b16 %v371
    %v504 = vunpack.c.l.b16 %v372
    %v505 = vunpack.c.l.b16 %v373
    %v506 = vunpack.c.l.b16 %v374
    %v507 = vunpack.c.l.b16 %v375
    %v508 = vunpack.c.l.b16 %v376
    %v509 = vunpack.c.l.b16 %v377
    %v510 = vunpack.c.l.b16 %v378
    %v511 = vunpack.c.l.b16 %v379
    %v512 = vunpack.c.l.b16 %v380
    %v513 = vunpack.c.l.b16 %v381
    %v514 = vunpack.c.l.b16 %v382
    %v515 = vunpack.c.l.b16 %v383
    %v516 = vunpack.c.l.b16 %v384
    %v517 = vunpack.c.l.b16 %v385
    %v518 = vunpack.c.l.b16 %v386
    %v519 = vunpack.c.l.b16 %v387
    %v520 = vunpack.c.l.b16 %v388
    %v521 = vunpack.c.l.b16 %v389
    %v522 = vunpack.c.l.b16 %v390
    %v523 = vunpack.c.l.b16 %v391
    %v524 = vunpack.c.l.b16 %v392
    %v525 = vunpack.c.l.b16 %v393
    %v526 = vunpack.c.l.b16 %v394
    %v527 = vunpack.c.l.b16 %v395
    %v528 = vunpack.c.l.b16 %v396
    %v529 = vunpack.c.l.b16 %v397
    %v530 = vunpack.c.l.b16 %v398
    %v531 = vunpack.c.l.b16 %v399
    %v532 = vpack.c.b16 %v469, %v468
    %v533 = vpack.c.b16 %v471, %v470
    %v534 = vpack.c.b16 %v473, %v472
    %v535 = vpack.c.b16 %v475, %v474
    %v536 = vpack.c.b16 %v477, %v476
    %v537 = vpack.c.b16 %v479, %v478
    %v538 = vpack.c.b16 %v481, %v480
    %v539 = vpack.c.b16 %v483, %v482
    %v540 = vpack.c.b16 %v485, %v484
    %v541 = vpack.c.b16 %v487, %v486
    %v542 = vpack.c.b16 %v489, %v488
    %v543 = vpack.c.b16 %v491, %v490
    %v544 = vpack.c.b16 %v493, %v492
    %v545 = vpack.c.b16 %v495, %v494
    %v546 = vpack.c.b16 %v497, %v496
    %v547 = vpack.c.b16 %v499, %v498
    %v548 = vpack.c.b16 %v501, %v500
    %v549 = vpack.c.b16 %v503, %v502
    %v550 = vpack.c.b16 %v505, %v504
    %v551 = vpack.c.b16 %v507, %v506
    %v552 = vpack.c.b16 %v509, %v508
    %v553 = vpack.c.b16 %v511, %v510
    %v554 = vpack.c.b16 %v513, %v512
    %v555 = vpack.c.b16 %v515, %v514
    %v556 = vpack.c.b16 %v517, %v516
    %v557 = vpack.c.b16 %v519, %v518
    %v558 = vpack.c.b16 %v521, %v520
    %v559 = vpack.c.b16 %v523, %v522
    %v560 = vpack.c.b16 %v525, %v524
    %v561 = vpack.c.b16 %v527, %v526
    %v562 = vpack.c.b16 %v529, %v528
    %v563 = vpack.c.b16 %v531, %v530
    %596 = vmatpush.bf16.msra.mxu0 %v539
    %597 = vmatpush.bf16.msra.mxu0 %v538
    %598 = vmatpush.bf16.msra.mxu0 %v537
    %599 = vmatpush.bf16.msra.mxu0 %v536
    %600 = vmatpush.bf16.msra.mxu0 %v535
    %601 = vmatpush.bf16.msra.mxu0 %v534
    %602 = vmatpush.bf16.msra.mxu0 %v533
    %603 = vmatpush.bf16.msra.mxu0 %v532
    %604 = vmatmul.bf16.gmra.mxu0 %v332
    %v605 = vpop.f32.mrf.mxu0
    %v606 = vadd.f32 %v402, %v605
    %v607 = vpop.f32.mrf.mxu0
    %v608 = vadd.f32 %v402, %v607
    %609 = vdwg.mxu0
    %610 = vmatpush.bf16.msra.mxu0 %v547
    %611 = vmatpush.bf16.msra.mxu0 %v546
    %612 = vmatpush.bf16.msra.mxu0 %v545
    %613 = vmatpush.bf16.msra.mxu0 %v544
    %614 = vmatpush.bf16.msra.mxu0 %v543
    %615 = vmatpush.bf16.msra.mxu0 %v542
    %616 = vmatpush.bf16.msra.mxu0 %v541
    %617 = vmatpush.bf16.msra.mxu0 %v540
    %618 = vmatmul.bf16.gmra.mxu0 %v333
    %v619 = vpop.f32.mrf.mxu0
    %v620 = vadd.f32 %v606, %v619
    %v621 = vpop.f32.mrf.mxu0
    %v622 = vadd.f32 %v608, %v621
    %623 = vdwg.mxu0
    %624 = vmatpush.bf16.msra.mxu0 %v555
    %625 = vmatpush.bf16.msra.mxu0 %v554
    %626 = vmatpush.bf16.msra.mxu0 %v553
    %627 = vmatpush.bf16.msra.mxu0 %v552
    %628 = vmatpush.bf16.msra.mxu0 %v551
    %629 = vmatpush.bf16.msra.mxu0 %v550
    %630 = vmatpush.bf16.msra.mxu0 %v549
    %631 = vmatpush.bf16.msra.mxu0 %v548
    %632 = vmatmul.bf16.gmra.mxu0 %v334
    %v633 = vpop.f32.mrf.mxu0
    %v634 = vadd.f32 %v620, %v633
    %v635 = vpop.f32.mrf.mxu0
    %v636 = vadd.f32 %v622, %v635
    %637 = vdwg.mxu0
    %638 = vmatpush.bf16.msra.mxu0 %v563
    %639 = vmatpush.bf16.msra.mxu0 %v562
    %640 = vmatpush.bf16.msra.mxu0 %v561
    %641 = vmatpush.bf16.msra.mxu0 %v560
    %642 = vmatpush.bf16.msra.mxu0 %v559
    %643 = vmatpush.bf16.msra.mxu0 %v558
    %644 = vmatpush.bf16.msra.mxu0 %v557
    %645 = vmatpush.bf16.msra.mxu0 %v556
    %646 = vmatmul.bf16.gmra.mxu0 %v335
    %v647 = vpop.f32.mrf.mxu0
    %v648 = vadd.f32 %v634, %v647
    %v649 = vpop.f32.mrf.mxu0
    %v650 = vadd.f32 %v636, %v649
    %651 = vdwg.mxu0
    %v652 = vunpack.c.l.bf16 %v58
    %v653 = vunpack.c.l.bf16 %v59
    %v654 = vadd.f32 %v648, %v652
    %v655 = vadd.f32 %v650, %v653
    %656 = vadd.xlane.f32.xlu0 %v654
    %v657 = vpop.xlane.xlu0 %656
    %658 = vadd.xlane.f32.xlu0 %v655
    %v659 = vpop.xlane.xlu0 %658
    %v660 = vrcp.pop 128.0
    %v661 = vmul.f32 128.0, %v660
    %v662 = vsub.f32 1.0, %v661
    %v663 = vmul.f32 %v660, %v662
    %v664 = vadd.f32 %v660, %v663
    %vm665 = vweird.f32 %v660
    %v666 = vsel %vm665, %v660, %v664
    %v667 = vmul.f32 %v657, %v666
    %v668 = vmul.f32 %v659, %v666
    %v669 = vsub.f32 %v654, %v667
    %v670 = vsub.f32 %v655, %v668
    %v671 = vmul.f32 %v669, %v669
    %v672 = vmul.f32 %v670, %v670
    %673 = vadd.xlane.f32.xlu0 %v671
    %v674 = vpop.xlane.xlu0 %673
    %675 = vadd.xlane.f32.xlu0 %v672
    %v676 = vpop.xlane.xlu0 %675
    %v677 = vmul.f32 %v674, %v666
    %v678 = vmul.f32 %v676, %v666
    %v679 = vadd.f32 %v677, 1e-05
    %v680 = vadd.f32 %v678, 1e-05
    %v681 = vrsqrt.pop %v679
    %v682 = vmul.f32 %v681, %v679
    %v683 = vmul.f32 %v682, %v681
    %v684 = vmul.f32 0.5, %v683
    %v685 = vsub.f32 1.5, %v684
    %v686 = vmul.f32 %v681, %v685
    %vm687 = vweird.f32 %v679
    %vm688 = vweird.f32 %v681
    %vm689 = vmor %vm687, %vm688
    %v690 = vsel %vm689, %v681, %v686
    %v691 = vrsqrt.pop %v680
    %v692 = vmul.f32 %v691, %v680
    %v693 = vmul.f32 %v692, %v691
    %v694 = vmul.f32 0.5, %v693
    %v695 = vsub.f32 1.5, %v694
    %v696 = vmul.f32 %v691, %v695
    %vm697 = vweird.f32 %v680
    %vm698 = vweird.f32 %v691
    %vm699 = vmor %vm697, %vm698
    %v700 = vsel %vm699, %v691, %v696
    %v701 = vmul.f32 %v669, %v690
    %v702 = vmul.f32 %v670, %v700
    %v703 = vld [vmem:[%s5] sm:$0x1]
    %v705 = vperm.slane %v703, 0
    %v707 = vmul.f32 %v701, %v705
    %v708 = vmul.f32 %v702, %v705
    %v709 = vld [vmem:[%s6] sm:$0x1]
    %v711 = vperm.slane %v709, 0
    %v713 = vadd.f32 %v707, %v711
    %v714 = vadd.f32 %v708, %v711
    %v715 = vpack.c.bf16 %v713, %v713
    %v716 = vpack.c.bf16 %v714, %v714
    %717 = vst [vmem:[%s7] sm:$0xf] %v715
    %718 = vst [vmem:[%s7 + $0x4] sm:$0xf] %v716
    // Predicated region
    $region38: #{meta_bert_3d.30} parent=1 // pred_check
      _
    $region39: #{meta_bert_3d.30} parent=1 // pred_check_branch
      %720 = sbr.rel (0) target = $region41
    $region40: #{meta_bert_3d.30} parent=1 // pred_region
      _
    $region41: #{meta_bert_3d.30} parent=1 // pred_fallthru
      _
    // Predicated region
    $region42: #{meta_bert_3d.30} parent=1 // pred_check
      _
    $region43: #{meta_bert_3d.30} parent=1 // pred_check_branch
      %722 = sbr.rel (0) target = $region45
    $region44: #{meta_bert_3d.30} parent=1 // pred_region
      _
    $region45: #{meta_bert_3d.30} parent=1 // pred_fallthru
      _
    %723 = vsyncpa [#allocation3], 1
    %724 = vsyncpa [#allocation5], 1

// kernel: meta_bert_3d.22
$region0: #{meta_bert_3d.22}
  #allocation0 [shape = 'u32[]', space=smem, size = 0x4, offset = 0x4, fixed_abs, tag = 'smem constant byte address 0x4 - core index']
  #allocation1 [shape = 'u32[72,128]{1,0:T(1,128)}', space=vmem, size = 0x9000, scoped, tag = 'internal scratch']
  #allocation2 [shape = 'f32[32,128]{1,0:T(8,128)}', space=vmem, size = 0x4000, scoped, tag = 'scratch operand']
  %s0 = inlined_call_operand.vmem [shape: bf16[32,128], index: 0, kind: input, shape index: {}]
  %s1 = inlined_call_operand.hbm [shape: bf16[128,384], index: 1, kind: input, shape index: {}]
  %s2 = inlined_call_operand.vmem [shape: f32[1,384], index: 2, kind: input, shape index: {}]
  %s3 = inlined_call_operand.vmem [shape: bf16[32,384], index: 3, kind: output, shape index: {}]
  %s4 = sld [smem:[#allocation0]]
  $region94: #{meta_bert_3d.22} parent=0
    _
  %s6 = ssub.s32 1, %s4
  %s7 = scalar_select 0, %s6, %s4
  $region1: #{meta_bert_3d.22} parent=0
    #allocation3 [shape = 'u8[65536]{0}', space=vmem, size = 0x10000, scoped, tag = 'input window, operand 1']
    #allocation4 [shape = 's32[2]{0}', space=sflag, size = 0x8, scoped, tag = 'scoped memory for meta_bert_3d.22']
    #allocation5 [shape = 'u8[16384]{0}', space=vmem, size = 0x4000, scoped, tag = 'output window, operand 0']
    %8 = vsyncpa [#allocation4], 0
    %s9 = scalar_lea.sflag [#allocation4], 1
    %10 = vsyncpa %s9, 0
    loop: start=0, step=1, limit=5
    $region2: #{meta_bert_3d.22} parent=1 // loop_pre_header
      _
    $region3: #{meta_bert_3d.22} parent=1 // loop_header
      %s12 = sphi 0, %s16
      %p13 = scmp.ge.s32.totalorder %s12, 5
      %s19 = sphi 0, %s38
      %s20 = sphi 0, %s34
      %s21 = sphi 0, %s30
      %s22 = sphi 0, %s19
      %s23 = sphi 0, %s20
      %s24 = sphi 0, %s21
      %s25 = sphi 0, %s22
      %s26 = sphi 0, %s23
      %s27 = sphi 0, %s24
      %s43 = sphi 0, %s45
      %s46 = sphi 0, %s43
      %s47 = sphi 0, %s46
      %s63 = sphi 0, %s47
      %s71 = sphi 0, %s73
      %s74 = sphi 0, %s71
      %s75 = sphi 0, %s74
      %s91 = sphi 0, %s75
      %s97 = sphi 0, %s99
      %s100 = sphi 0, %s97
      %s101 = sphi 0, %s100
      %s117 = sphi 0, %s101
      %s125 = sphi 0, %s127
      %s128 = sphi 0, %s125
      %s129 = sphi 0, %s128
      %s145 = sphi 0, %s129
    $region4: #{meta_bert_3d.22} parent=1 // loop_header_branch
      %15 = sbr.rel (%p13) target = $region8
    $region5: #{meta_bert_3d.22} parent=1 // loop_body
      %s17 = ssub.s32 %s12, 1
      %s18 = ssub.s32 %s12, 2
      %s28 = sadd.s32 1, %s21
      %p29 = scmp.ge.s32.totalorder %s28, 1
      %s30 = scalar_select %p29, 0, %s28
      %s31 = sadd.s32 1, %s20
      %s32 = scalar_select %p29, %s31, %s20
      %p33 = scmp.ge.s32.totalorder %s32, 3
      %s34 = scalar_select %p33, 0, %s32
      %s35 = sadd.s32 1, %s19
      %s36 = scalar_select %p33, %s35, %s19
      %p37 = scmp.ge.s32.totalorder %s36, 1
      %s38 = scalar_select %p37, 0, %s36
      %s39 = ssub.s32 %s19, %s38
      %s40 = ssub.s32 %s21, %s30
      %s41 = sor.u32 %s39, %s40
      %p42 = scmp.eq.s32.totalorder %s41, 0
      %s44 = sadd.s32 %s43, 1
      %s45 = scalar_select %p42, %s43, %s44
      %p48 = pneg %p42
      %p49 = scmp.eq.s32.totalorder %s12, 2
      %p50 = por %p48, %p49
      %p51 = scmp.ne.s32.totalorder %s43, %s46
      %p52 = scmp.eq.s32.totalorder %s12, 0
      %p53 = por %p51, %p52
      %p54 = scmp.ne.s32.totalorder %s43, %s46
      %p55 = scmp.eq.s32.totalorder %s17, 2
      %p56 = por %p54, %p55
      %p57 = scmp.ne.s32.totalorder %s46, %s47
      %p58 = scmp.eq.s32.totalorder %s17, 0
      %p59 = por %p57, %p58
      %p60 = scmp.ne.s32.totalorder %s46, %s47
      %p61 = scmp.eq.s32.totalorder %s18, 2
      %p62 = por %p60, %p61
      %p64 = scmp.ne.s32.totalorder %s47, %s63
      %p65 = scmp.eq.s32.totalorder %s18, 0
      %p66 = por %p64, %p65
      %s67 = ssub.s32 %s21, %s30
      %s68 = ssub.s32 %s20, %s34
      %s69 = sor.u32 %s67, %s68
      %p70 = scmp.eq.s32.totalorder %s69, 0
      %s72 = sadd.s32 %s71, 1
      %s73 = scalar_select %p70, %s71, %s72
      %p76 = pneg %p70
      %p77 = scmp.eq.s32.totalorder %s12, 2
      %p78 = por %p76, %p77
      %p79 = scmp.ne.s32.totalorder %s71, %s74
      %p80 = scmp.eq.s32.totalorder %s12, 0
      %p81 = por %p79, %p80
      %p82 = scmp.ne.s32.totalorder %s71, %s74
      %p83 = scmp.eq.s32.totalorder %s17, 2
      %p84 = por %p82, %p83
      %p85 = scmp.ne.s32.totalorder %s74, %s75
      %p86 = scmp.eq.s32.totalorder %s17, 0
      %p87 = por %p85, %p86
      %p88 = scmp.ne.s32.totalorder %s74, %s75
      %p89 = scmp.eq.s32.totalorder %s18, 2
      %p90 = por %p88, %p89
      %p92 = scmp.ne.s32.totalorder %s75, %s91
      %p93 = scmp.eq.s32.totalorder %s18, 0
      %p94 = por %p92, %p93
      %s95 = ssub.s32 %s20, %s34
      %p96 = scmp.eq.s32.totalorder %s95, 0
      %s98 = sadd.s32 %s97, 1
      %s99 = scalar_select %p96, %s97, %s98
      %p102 = pneg %p96
      %p103 = scmp.eq.s32.totalorder %s12, 2
      %p104 = por %p102, %p103
      %p105 = scmp.ne.s32.totalorder %s97, %s100
      %p106 = scmp.eq.s32.totalorder %s12, 0
      %p107 = por %p105, %p106
      %p108 = scmp.ne.s32.totalorder %s97, %s100
      %p109 = scmp.eq.s32.totalorder %s17, 2
      %p110 = por %p108, %p109
      %p111 = scmp.ne.s32.totalorder %s100, %s101
      %p112 = scmp.eq.s32.totalorder %s17, 0
      %p113 = por %p111, %p112
      %p114 = scmp.ne.s32.totalorder %s100, %s101
      %p115 = scmp.eq.s32.totalorder %s18, 2
      %p116 = por %p114, %p115
      %p118 = scmp.ne.s32.totalorder %s101, %s117
      %p119 = scmp.eq.s32.totalorder %s18, 0
      %p120 = por %p118, %p119
      %s121 = ssub.s32 %s19, %s38
      %s122 = ssub.s32 %s20, %s34
      %s123 = sor.u32 %s121, %s122
      %p124 = scmp.eq.s32.totalorder %s123, 0
      %s126 = sadd.s32 %s125, 1
      %s127 = scalar_select %p124, %s125, %s126
      %p130 = pneg %p124
      %p131 = scmp.eq.s32.totalorder %s12, 2
      %p132 = por %p130, %p131
      %p133 = scmp.ne.s32.totalorder %s125, %s128
      %p134 = scmp.eq.s32.totalorder %s12, 0
      %p135 = por %p133, %p134
      %p136 = scmp.ne.s32.totalorder %s125, %s128
      %p137 = scmp.eq.s32.totalorder %s17, 2
      %p138 = por %p136, %p137
      %p139 = scmp.ne.s32.totalorder %s128, %s129
      %p140 = scmp.eq.s32.totalorder %s17, 0
      %p141 = por %p139, %p140
      %p142 = scmp.ne.s32.totalorder %s128, %s129
      %p143 = scmp.eq.s32.totalorder %s18, 2
      %p144 = por %p142, %p143
      %p146 = scmp.ne.s32.totalorder %s129, %s145
      %p147 = scmp.eq.s32.totalorder %s18, 0
      %p148 = por %p146, %p147
      %p149 = scmp.le.s32.totalorder 1, %s12
      %p150 = scmp.lt.s32.totalorder %s12, 4
      %p151 = pnand %p149, %p150
      %p152 = pneg %p151
      // Predicated region
      $region9: #{meta_bert_3d.22} parent=5 // pred_check
        _
      $region10: #{meta_bert_3d.22} parent=5 // pred_check_branch
        %154 = sbr.rel (%p151) target = $region12
      $region11: #{meta_bert_3d.22} parent=5 // pred_region
        %s155 = ssub.s32 %s12, 1
        // Predicated region
        $region13: #{meta_bert_3d.22} parent=11 // pred_check
          %p156 = pneg %p59
        $region14: #{meta_bert_3d.22} parent=11 // pred_check_branch
          %158 = sbr.rel (%p156) target = $region16
        $region15: #{meta_bert_3d.22} parent=11 // pred_region
          %s159 = smul.u32 4, %s22
          %p160 = scmp.lt.s32.totalorder %s159, 3
          %s161 = scalar_select %p160, %s159, 3
          %p162 = scmp.lt.s32.totalorder %s24, 0
          %s163 = scalar_select %p162, %s24, 0
          %s164 = sadd.s32 %s163, %s161
          %s165 = smul.addr %s164, 4
          %s166 = scalar_lea.vmem %s0, %s165
          %s167 = smul.u32 4, %s22
        $region16: #{meta_bert_3d.22} parent=11 // pred_fallthru
          _
      $region12: #{meta_bert_3d.22} parent=5 // pred_fallthru
        _
      %p168 = scmp.lt.s32.totalorder %s12, 3
      // Predicated region
      $region17: #{meta_bert_3d.22} parent=5 // pred_check
        %p169 = pneg %p168
      $region18: #{meta_bert_3d.22} parent=5 // pred_check_branch
        %171 = sbr.rel (%p169) target = $region20
      $region19: #{meta_bert_3d.22} parent=5 // pred_region
        // Predicated region
        $region21: #{meta_bert_3d.22} parent=19 // pred_check
          %p172 = pneg %p81
        $region22: #{meta_bert_3d.22} parent=19 // pred_check_branch
          %174 = sbr.rel (%p172) target = $region24
        $region23: #{meta_bert_3d.22} parent=19 // pred_region
          %s175 = sand.u32 %s71, 1
          %s176 = scalar_lea.sflag [#allocation4], %s175
          %s177 = sand.u32 %s71, 1
          %s178 = smul.addr %s177, 64
          %s179 = scalar_lea.vmem [#allocation3], %s178
          %s180 = smul.u32 16, %s21
          %182 = vsyncadd %s176, 0
          %s183 = smul.addr %s180, 3
          %s184 = sadd.s32 %s20, %s183
          %s185 = smul.addr %s184, 4
          %s186 = scalar_lea.hbm %s1, %s185
          %s187 = sshll.u32 %s186, 4
          %s188 = int_to_ptr.hbm [resolvable:$true] %s187
          %s189 = sshll.u32 %s179, 4
          %s190 = int_to_ptr.vmem [resolvable:$true] %s189
          %195 = dma.hbm_to_vmem [thread:$0]  %s188, 1024, %s190, %s176, 192, 64, 4
        $region24: #{meta_bert_3d.22} parent=19 // pred_fallthru
          _
        // Predicated region
        $region25: #{meta_bert_3d.22} parent=19 // pred_check
          %p196 = pneg %p107
        $region26: #{meta_bert_3d.22} parent=19 // pred_check_branch
          %198 = sbr.rel (%p196) target = $region28
        $region27: #{meta_bert_3d.22} parent=19 // pred_region
          %p199 = scmp.lt.s32.totalorder %s20, 2
          %s200 = scalar_select %p199, %s20, 2
          %s201 = scalar_lea.vmem %s2, %s200
        $region28: #{meta_bert_3d.22} parent=19 // pred_fallthru
          _
      $region20: #{meta_bert_3d.22} parent=5 // pred_fallthru
        _
      %p202 = scmp.le.s32.totalorder 1, %s12
      %p203 = scmp.lt.s32.totalorder %s12, 4
      %p204 = pnand %p202, %p203
      %p205 = pneg %p204
      // Predicated region
      $region29: #{meta_bert_3d.22} parent=5 // pred_check
        _
      $region30: #{meta_bert_3d.22} parent=5 // pred_check_branch
        %207 = sbr.rel (%p204) target = $region32
      $region31: #{meta_bert_3d.22} parent=5 // pred_region
        %s208 = ssub.s32 %s12, 1
        %s209 = sand.u32 %s74, 1
        %s210 = scalar_lea.sflag [#allocation4], %s209
        %s211 = sand.u32 %s74, 1
        %s212 = smul.addr %s211, 64
        %s213 = scalar_lea.vmem [#allocation3], %s212
        // Predicated region
        $region33: #{meta_bert_3d.22} parent=31 // pred_check
          %p214 = pneg %p87
        $region34: #{meta_bert_3d.22} parent=31 // pred_check_branch
          %216 = sbr.rel (%p214) target = $region36
        $region35: #{meta_bert_3d.22} parent=31 // pred_region
          %218 = dma.done %s210, 1024
        $region36: #{meta_bert_3d.22} parent=31 // pred_fallthru
          _
        %s219 = smul.u32 4, %s22
        %p220 = scmp.lt.s32.totalorder %s219, 3
        %s221 = scalar_select %p220, %s219, 3
        %p222 = scmp.lt.s32.totalorder %s24, 0
        %s223 = scalar_select %p222, %s24, 0
        %s224 = sadd.s32 %s223, %s221
        %s225 = smul.addr %s224, 4
        %s226 = scalar_lea.vmem %s0, %s225
        %p227 = pneg %p59
        %p228 = pneg %p56
        %s229 = sand.u32 %s74, 1
        %s230 = scalar_lea.sflag [#allocation4], %s229
        %s231 = sand.u32 %s74, 1
        %s232 = smul.addr %s231, 64
        %s233 = scalar_lea.vmem [#allocation3], %s232
        %p234 = pneg %p87
        %p235 = pneg %p84
        %p236 = scmp.lt.s32.totalorder %s23, 2
        %s237 = scalar_select %p236, %s23, 2
        %s238 = scalar_lea.vmem %s2, %s237
        %p239 = pneg %p113
        %p240 = pneg %p110
        %p241 = pneg %p141
        %p242 = pneg %p138
        %s243 = sand.u32 %s128, 1
        %s244 = sand.u32 %s128, 1
        %s245 = smul.addr %s244, 16
        %s246 = scalar_lea.vmem [#allocation5], %s245
        %s247 = smul.u32 4, %s22
        %p248 = scmp.lt.s32.totalorder %s247, 3
        %s249 = scalar_select %p248, %s247, 3
        %p250 = scmp.lt.s32.totalorder %s24, 0
        %s251 = scalar_select %p250, %s24, 0
        %s252 = sadd.s32 %s251, %s249
        %s253 = smul.addr %s252, 4
        %s254 = scalar_lea.vmem %s0, %s253
        %s255 = smul.u32 4, %s22
        %s256 = smul.u32 16, %s24
        %p257 = scmp.lt.s32.totalorder %s23, 2
        %s258 = scalar_select %p257, %s23, 2
        %s259 = scalar_lea.vmem %s2, %s258
        %s260 = smul.u32 4, %s22
        %p261 = scmp.eq.s32.totalorder %s24, 0
        // Predicated region
        $region37: #{meta_bert_3d.22} parent=31 // pred_check
          %p262 = pneg %p261
        $region38: #{meta_bert_3d.22} parent=31 // pred_check_branch
          %264 = sbr.rel (%p262) target = $region40
        $region39: #{meta_bert_3d.22} parent=31 // pred_region
          %265 = vst [vmem:[#allocation2] sm:$0xff] 0.0
          %266 = vst [vmem:[#allocation2 + $0x8] sm:$0xff] 0.0
          %267 = vst [vmem:[#allocation2 + $0x10] sm:$0xff] 0.0
          %268 = vst [vmem:[#allocation2 + $0x18] sm:$0xff] 0.0
        $region40: #{meta_bert_3d.22} parent=31 // pred_fallthru
          _
        %v269 = vld [vmem:[#allocation2] sm:$0xff]
        %v270 = vld [vmem:[#allocation2 + $0x8] sm:$0xff]
        %v271 = vld [vmem:[#allocation2 + $0x10] sm:$0xff]
        %v272 = vld [vmem:[#allocation2 + $0x18] sm:$0xff]
        %v273 = vld [vmem:[%s254] sm:$0xf]
        %v274 = vld [vmem:[%s254 + $0x4] sm:$0xf]
        %v275 = vld [vmem:[%s254 + $0x8] sm:$0xf]
        %v276 = vld [vmem:[%s254 + $0xc] sm:$0xf]
        %v277 = vld [vmem:[%s213] sm:$0xf]
        %v278 = vld [vmem:[%s213 + $0x4] sm:$0xf]
        %v279 = vld [vmem:[%s213 + $0x8] sm:$0xf]
        %v280 = vld [vmem:[%s213 + $0xc] sm:$0xf]
        %v281 = vld [vmem:[%s213 + $0x10] sm:$0xf]
        %v282 = vld [vmem:[%s213 + $0x14] sm:$0xf]
        %v283 = vld [vmem:[%s213 + $0x18] sm:$0xf]
        %v284 = vld [vmem:[%s213 + $0x1c] sm:$0xf]
        %v285 = vld [vmem:[%s213 + $0x20] sm:$0xf]
        %v286 = vld [vmem:[%s213 + $0x24] sm:$0xf]
        %v287 = vld [vmem:[%s213 + $0x28] sm:$0xf]
        %v288 = vld [vmem:[%s213 + $0x2c] sm:$0xf]
        %v289 = vld [vmem:[%s213 + $0x30] sm:$0xf]
        %v290 = vld [vmem:[%s213 + $0x34] sm:$0xf]
        %v291 = vld [vmem:[%s213 + $0x38] sm:$0xf]
        %v292 = vld [vmem:[%s213 + $0x3c] sm:$0xf]
        %v297 = vunpack.c.l.b16 %v273
        %v298 = vunpack.c.l.b16 %v274
        %v299 = vunpack.c.l.b16 %v275
        %v300 = vunpack.c.l.b16 %v276
        %v301 = vpack.c.b16 %v298, %v297
        %v302 = vpack.c.b16 %v300, %v299
        %v321 = vunpack.c.l.b16 %v277
        %v322 = vunpack.c.l.b16 %v278
        %v323 = vunpack.c.l.b16 %v279
        %v324 = vunpack.c.l.b16 %v280
        %v325 = vunpack.c.l.b16 %v281
        %v326 = vunpack.c.l.b16 %v282
        %v327 = vunpack.c.l.b16 %v283
        %v328 = vunpack.c.l.b16 %v284
        %v329 = vunpack.c.l.b16 %v285
        %v330 = vunpack.c.l.b16 %v286
        %v331 = vunpack.c.l.b16 %v287
        %v332 = vunpack.c.l.b16 %v288
        %v333 = vunpack.c.l.b16 %v289
        %v334 = vunpack.c.l.b16 %v290
        %v335 = vunpack.c.l.b16 %v291
        %v336 = vunpack.c.l.b16 %v292
        %v337 = vpack.c.b16 %v322, %v321
        %v338 = vpack.c.b16 %v324, %v323
        %v339 = vpack.c.b16 %v326, %v325
        %v340 = vpack.c.b16 %v328, %v327
        %v341 = vpack.c.b16 %v330, %v329
        %v342 = vpack.c.b16 %v332, %v331
        %v343 = vpack.c.b16 %v334, %v333
        %v344 = vpack.c.b16 %v336, %v335
        %353 = vmatpush.bf16.msra.mxu0 %v344
        %354 = vmatpush.bf16.msra.mxu0 %v343
        %355 = vmatpush.bf16.msra.mxu0 %v342
        %356 = vmatpush.bf16.msra.mxu0 %v341
        %357 = vmatpush.bf16.msra.mxu0 %v340
        %358 = vmatpush.bf16.msra.mxu0 %v339
        %359 = vmatpush.bf16.msra.mxu0 %v338
        %360 = vmatpush.bf16.msra.mxu0 %v337
        %361 = vmatmul.bf16.gmra.mxu0 %v301
        %v362 = vpop.f32.mrf.mxu0
        %v363 = vadd.f32 0.0, %v362
        %v364 = vpop.f32.mrf.mxu0
        %v365 = vadd.f32 0.0, %v364
        %366 = vmatmul.bf16.gmra.mxu0 %v302
        %v367 = vpop.f32.mrf.mxu0
        %v368 = vadd.f32 0.0, %v367
        %v369 = vpop.f32.mrf.mxu0
        %v370 = vadd.f32 0.0, %v369
        %371 = vdwg.mxu0
        %v372 = vadd.f32 %v269, %v363
        %v373 = vadd.f32 %v270, %v365
        %v374 = vadd.f32 %v271, %v368
        %v375 = vadd.f32 %v272, %v370
        %376 = vst [vmem:[#allocation2] sm:$0xff] %v372
        %377 = vst [vmem:[#allocation2 + $0x8] sm:$0xff] %v373
        %378 = vst [vmem:[#allocation2 + $0x10] sm:$0xff] %v374
        %379 = vst [vmem:[#allocation2 + $0x18] sm:$0xff] %v375
        // Predicated region
        $region41: #{meta_bert_3d.22} parent=31 // pred_check
          %p380 = pneg %p261
        $region42: #{meta_bert_3d.22} parent=31 // pred_check_branch
          %382 = sbr.rel (%p380) target = $region44
        $region43: #{meta_bert_3d.22} parent=31 // pred_region
          %v383 = vld [vmem:[#allocation2] sm:$0xff]
          %v384 = vld [vmem:[#allocation2 + $0x8] sm:$0xff]
          %v385 = vld [vmem:[#allocation2 + $0x10] sm:$0xff]
          %v386 = vld [vmem:[#allocation2 + $0x18] sm:$0xff]
          %v387 = vld [vmem:[%s259] sm:$0x1]
          %v389 = vperm.slane %v387, 0
          %v391 = vadd.f32 %v383, %v389
          %v392 = vadd.f32 %v384, %v389
          %v393 = vadd.f32 %v385, %v389
          %v394 = vadd.f32 %v386, %v389
          %v395 = vpack.c.bf16 %v391, %v391
          %v396 = vpack.c.bf16 %v392, %v392
          %v397 = vpack.c.bf16 %v393, %v393
          %v398 = vpack.c.bf16 %v394, %v394
          %399 = vst [vmem:[%s246] sm:$0xf] %v395
          %400 = vst [vmem:[%s246 + $0x4] sm:$0xf] %v396
          %401 = vst [vmem:[%s246 + $0x8] sm:$0xf] %v397
          %402 = vst [vmem:[%s246 + $0xc] sm:$0xf] %v398
        $region44: #{meta_bert_3d.22} parent=31 // pred_fallthru
          _
        %s403 = sand.u32 %s128, 1
        %s404 = sand.u32 %s128, 1
        %s405 = smul.addr %s404, 16
        %s406 = scalar_lea.vmem [#allocation5], %s405
        // Predicated region
        $region45: #{meta_bert_3d.22} parent=31 // pred_check
          %p407 = pneg %p138
        $region46: #{meta_bert_3d.22} parent=31 // pred_check_branch
          %409 = sbr.rel (%p407) target = $region48
        $region47: #{meta_bert_3d.22} parent=31 // pred_region
          %s410 = smul.u32 4, %s22
          %s411 = smul.addr %s410, 3
          %s412 = sadd.s32 %s23, %s411
          %s413 = smul.addr %s412, 4
          %s414 = scalar_lea.vmem %s3, %s413
          // Predicated region
          $region49: #{meta_bert_3d.22} parent=47 // pred_check
            _
          $region50: #{meta_bert_3d.22} parent=47 // pred_check_branch
            %416 = sbr.rel (0) target = $region52
          $region51: #{meta_bert_3d.22} parent=47 // pred_region
            // Predicated region
            $region53: #{meta_bert_3d.22} parent=51 // pred_check
              _
            $region54: #{meta_bert_3d.22} parent=51 // pred_check_branch
              %418 = sbr.rel target = $region56
            $region55: #{meta_bert_3d.22} parent=51 // pred_region
              // Predicated region
              $region68: #{meta_bert_3d.22} parent=55 // pred_check
                _
              $region69: #{meta_bert_3d.22} parent=55 // pred_check_branch
                %440 = sbr.rel (0) target = $region71
              $region70: #{meta_bert_3d.22} parent=55 // pred_region
                loop: start=0, step=1, limit=1
                $region72: #{meta_bert_3d.22} parent=70 // loop_pre_header
                  _
                $region73: #{meta_bert_3d.22} parent=70 // loop_header
                  %s442 = sphi 0, %s446
                  %p443 = scmp.ge.s32.totalorder %s442, 1
                  %s447 = sphi %s406, %s406
                  %s448 = sphi %s414, %s414
                $region74: #{meta_bert_3d.22} parent=70 // loop_header_branch
                  %445 = sbr.rel (%p443) target = $region78
                $region75: #{meta_bert_3d.22} parent=70 // loop_body
                  _
                $region76: #{meta_bert_3d.22} parent=70 // loop_footer
                  %s446 = sadd.s32 1, %s442
                $region77: #{meta_bert_3d.22} parent=70 // loop_footer_branch
                  %441 = sbr.rel target = $region73
                $region78: #{meta_bert_3d.22} parent=70 // loop_exit
                  _
                %s450 = ssub.s32 16, 1
                loop: start=0, step=1, limit=1
                $region79: #{meta_bert_3d.22} parent=70 // loop_pre_header
                  _
                $region80: #{meta_bert_3d.22} parent=70 // loop_header
                  %s452 = sphi 0, %s456
                  %p453 = scmp.ge.s32.totalorder %s452, 1
                  %s457 = sphi %s406, %s406
                  %s458 = sphi %s414, %s414
                $region81: #{meta_bert_3d.22} parent=70 // loop_header_branch
                  %455 = sbr.rel (%p453) target = $region85
                $region82: #{meta_bert_3d.22} parent=70 // loop_body
                  %v459 = vld [vmem:[%s457] sm:%s450]
                  %460 = vst [vmem:[%s458] sm:%s450] %v459
                  %v461 = vld [vmem:[%s457 + $0x4] sm:%s450]
                  %462 = vst [vmem:[%s458 + $0xc] sm:%s450] %v461
                  %v463 = vld [vmem:[%s457 + $0x8] sm:%s450]
                  %464 = vst [vmem:[%s458 + $0x18] sm:%s450] %v463
                  %v465 = vld [vmem:[%s457 + $0xc] sm:%s450]
                  %466 = vst [vmem:[%s458 + $0x24] sm:%s450] %v465
                $region83: #{meta_bert_3d.22} parent=70 // loop_footer
                  %s456 = sadd.s32 1, %s452
                $region84: #{meta_bert_3d.22} parent=70 // loop_footer_branch
                  %451 = sbr.rel target = $region80
                $region85: #{meta_bert_3d.22} parent=70 // loop_exit
                  _
              $region71: #{meta_bert_3d.22} parent=55 // pred_fallthru
                _
            $region56: #{meta_bert_3d.22} parent=51 // pred_fallthru
              _
            // Predicated region
            $region57: #{meta_bert_3d.22} parent=51 // pred_check
              _
            $region58: #{meta_bert_3d.22} parent=51 // pred_check_branch
              %420 = sbr.rel (0) target = $region60
            $region59: #{meta_bert_3d.22} parent=51 // pred_region
              %s422 = ssub.s32 16, 1
              loop: start=0, step=1, limit=1
              $region61: #{meta_bert_3d.22} parent=59 // loop_pre_header
                _
              $region62: #{meta_bert_3d.22} parent=59 // loop_header
                %s424 = sphi 0, %s428
                %p425 = scmp.ge.s32.totalorder %s424, 1
                %s429 = sphi %s406, %s406
                %s430 = sphi %s414, %s414
              $region63: #{meta_bert_3d.22} parent=59 // loop_header_branch
                %427 = sbr.rel (%p425) target = $region67
              $region64: #{meta_bert_3d.22} parent=59 // loop_body
                %v431 = vld [vmem:[%s429] sm:%s422]
                %432 = vst [vmem:[%s430] sm:%s422] %v431
                %v433 = vld [vmem:[%s429 + $0x4] sm:%s422]
                %434 = vst [vmem:[%s430 + $0xc] sm:%s422] %v433
                %v435 = vld [vmem:[%s429 + $0x8] sm:%s422]
                %436 = vst [vmem:[%s430 + $0x18] sm:%s422] %v435
                %v437 = vld [vmem:[%s429 + $0xc] sm:%s422]
                %438 = vst [vmem:[%s430 + $0x24] sm:%s422] %v437
              $region65: #{meta_bert_3d.22} parent=59 // loop_footer
                %s428 = sadd.s32 1, %s424
              $region66: #{meta_bert_3d.22} parent=59 // loop_footer_branch
                %423 = sbr.rel target = $region62
              $region67: #{meta_bert_3d.22} parent=59 // loop_exit
                _
            $region60: #{meta_bert_3d.22} parent=51 // pred_fallthru
              _
          $region52: #{meta_bert_3d.22} parent=47 // pred_fallthru
            _
          %467 = vnop
        $region48: #{meta_bert_3d.22} parent=31 // pred_fallthru
          _
      $region32: #{meta_bert_3d.22} parent=5 // pred_fallthru
        _
      %p468 = scmp.le.s32.totalorder 2, %s12
      // Predicated region
      $region86: #{meta_bert_3d.22} parent=5 // pred_check
        %p469 = pneg %p468
      $region87: #{meta_bert_3d.22} parent=5 // pred_check_branch
        %471 = sbr.rel (%p469) target = $region89
      $region88: #{meta_bert_3d.22} parent=5 // pred_region
        %s472 = ssub.s32 %s12, 2
        // Predicated region
        $region90: #{meta_bert_3d.22} parent=88 // pred_check
          %p473 = pneg %p144
        $region91: #{meta_bert_3d.22} parent=88 // pred_check_branch
          %475 = sbr.rel (%p473) target = $region93
        $region92: #{meta_bert_3d.22} parent=88 // pred_region
          %s476 = sand.u32 %s129, 1
          %s477 = sand.u32 %s129, 1
          %s478 = smul.addr %s477, 16
          %s479 = scalar_lea.vmem [#allocation5], %s478
        $region93: #{meta_bert_3d.22} parent=88 // pred_fallthru
          _
      $region89: #{meta_bert_3d.22} parent=5 // pred_fallthru
        _
    $region6: #{meta_bert_3d.22} parent=1 // loop_footer
      %s16 = sadd.s32 1, %s12
    $region7: #{meta_bert_3d.22} parent=1 // loop_footer_branch
      %11 = sbr.rel target = $region3
    $region8: #{meta_bert_3d.22} parent=1 // loop_exit
      _
    %480 = vsyncpa [#allocation4], 1
    %s481 = scalar_lea.sflag [#allocation4], 1
    %482 = vsyncpa %s481, 1

// kernel: meta_bert_3d.24
$region0: #{meta_bert_3d.24}
  #allocation0 [shape = 'u32[]', space=smem, size = 0x4, offset = 0x4, fixed_abs, tag = 'smem constant byte address 0x4 - core index']
  #allocation1 [shape = 'u32[72,128]{1,0:T(1,128)}', space=vmem, size = 0x9000, scoped, tag = 'internal scratch']
  %s0 = inlined_call_operand.vmem [shape: bf16[32,128], index: 0, kind: input, shape index: {}]
  %s1 = inlined_call_operand.vmem [shape: bf16[32,128], index: 1, kind: input, shape index: {}]
  %s2 = inlined_call_operand.hbm [shape: bf16[128,128], index: 2, kind: input, shape index: {}]
  %s3 = inlined_call_operand.vmem [shape: f32[1,128], index: 3, kind: input, shape index: {}]
  %s4 = inlined_call_operand.vmem [shape: f32[1,128], index: 4, kind: input, shape index: {}]
  %s5 = inlined_call_operand.vmem [shape: f32[1,128], index: 5, kind: input, shape index: {}]
  %s6 = inlined_call_operand.vmem [shape: bf16[32,128], index: 6, kind: output, shape index: {}]
  %s7 = sld [smem:[#allocation0]]
  $region38: #{meta_bert_3d.24} parent=0
    _
  %s9 = ssub.s32 1, %s7
  %s10 = scalar_select 0, %s9, %s7
  $region1: #{meta_bert_3d.24} parent=0
    #allocation2 [shape = 'u8[32768]{0}', space=vmem, size = 0x8000, scoped, tag = 'input window, operand 2, single buffered']
    #allocation3 [shape = 's32[1]{0}', space=sflag, size = 0x4, scoped, tag = 'scoped memory for meta_bert_3d.24']
    %11 = vsyncpa [#allocation3], 0
    // Predicated region
    $region2: #{meta_bert_3d.24} parent=1 // pred_check
      _
    $region3: #{meta_bert_3d.24} parent=1 // pred_check_branch
      %13 = sbr.rel (0) target = $region5
    $region4: #{meta_bert_3d.24} parent=1 // pred_region
      _
    $region5: #{meta_bert_3d.24} parent=1 // pred_fallthru
      _
    // Predicated region
    $region6: #{meta_bert_3d.24} parent=1 // pred_check
      _
    $region7: #{meta_bert_3d.24} parent=1 // pred_check_branch
      %15 = sbr.rel (0) target = $region9
    $region8: #{meta_bert_3d.24} parent=1 // pred_region
      _
    $region9: #{meta_bert_3d.24} parent=1 // pred_fallthru
      _
    // Predicated region
    $region10: #{meta_bert_3d.24} parent=1 // pred_check
      _
    $region11: #{meta_bert_3d.24} parent=1 // pred_check_branch
      %17 = sbr.rel (0) target = $region13
    $region12: #{meta_bert_3d.24} parent=1 // pred_region
      %19 = vsyncadd [#allocation3], 0
      %s20 = sshll.u32 %s2, 4
      %s21 = int_to_ptr.hbm [resolvable:$true] %s20
      %s22 = sshll.u32 [#allocation2], 4
      %s23 = int_to_ptr.vmem [resolvable:$true] %s22
      %28 = dma.hbm_to_vmem [thread:$0]  %s21, 1024, %s23, [#allocation3], 64, 64, 4
    $region13: #{meta_bert_3d.24} parent=1 // pred_fallthru
      _
    // Predicated region
    $region14: #{meta_bert_3d.24} parent=1 // pred_check
      _
    $region15: #{meta_bert_3d.24} parent=1 // pred_check_branch
      %30 = sbr.rel (0) target = $region17
    $region16: #{meta_bert_3d.24} parent=1 // pred_region
      _
    $region17: #{meta_bert_3d.24} parent=1 // pred_fallthru
      _
    // Predicated region
    $region18: #{meta_bert_3d.24} parent=1 // pred_check
      _
    $region19: #{meta_bert_3d.24} parent=1 // pred_check_branch
      %32 = sbr.rel (0) target = $region21
    $region20: #{meta_bert_3d.24} parent=1 // pred_region
      _
    $region21: #{meta_bert_3d.24} parent=1 // pred_fallthru
      _
    // Predicated region
    $region22: #{meta_bert_3d.24} parent=1 // pred_check
      _
    $region23: #{meta_bert_3d.24} parent=1 // pred_check_branch
      %34 = sbr.rel (0) target = $region25
    $region24: #{meta_bert_3d.24} parent=1 // pred_region
      _
    $region25: #{meta_bert_3d.24} parent=1 // pred_fallthru
      _
    // Predicated region
    $region26: #{meta_bert_3d.24} parent=1 // pred_check
      _
    $region27: #{meta_bert_3d.24} parent=1 // pred_check_branch
      %36 = sbr.rel (0) target = $region29
    $region28: #{meta_bert_3d.24} parent=1 // pred_region
      %38 = dma.done [#allocation3], 1024
    $region29: #{meta_bert_3d.24} parent=1 // pred_fallthru
      _
    %v39 = vld [vmem:[%s0] sm:$0xf]
    %v40 = vld [vmem:[%s0 + $0x4] sm:$0xf]
    %v41 = vld [vmem:[%s0 + $0x8] sm:$0xf]
    %v42 = vld [vmem:[%s0 + $0xc] sm:$0xf]
    %v43 = vld [vmem:[#allocation2] sm:$0xf]
    %v44 = vld [vmem:[#allocation2 + $0x4] sm:$0xf]
    %v45 = vld [vmem:[#allocation2 + $0x8] sm:$0xf]
    %v46 = vld [vmem:[#allocation2 + $0xc] sm:$0xf]
    %v47 = vld [vmem:[#allocation2 + $0x10] sm:$0xf]
    %v48 = vld [vmem:[#allocation2 + $0x14] sm:$0xf]
    %v49 = vld [vmem:[#allocation2 + $0x18] sm:$0xf]
    %v50 = vld [vmem:[#allocation2 + $0x1c] sm:$0xf]
    %v51 = vld [vmem:[#allocation2 + $0x20] sm:$0xf]
    %v52 = vld [vmem:[#allocation2 + $0x24] sm:$0xf]
    %v53 = vld [vmem:[#allocation2 + $0x28] sm:$0xf]
    %v54 = vld [vmem:[#allocation2 + $0x2c] sm:$0xf]
    %v55 = vld [vmem:[#allocation2 + $0x30] sm:$0xf]
    %v56 = vld [vmem:[#allocation2 + $0x34] sm:$0xf]
    %v57 = vld [vmem:[#allocation2 + $0x38] sm:$0xf]
    %v58 = vld [vmem:[#allocation2 + $0x3c] sm:$0xf]
    %v59 = vld [vmem:[%s3] sm:$0x1]
    %v61 = vperm.slane %v59, 0
    %v67 = vunpack.c.l.b16 %v39
    %v68 = vunpack.c.l.b16 %v40
    %v69 = vunpack.c.l.b16 %v41
    %v70 = vunpack.c.l.b16 %v42
    %v71 = vpack.c.b16 %v68, %v67
    %v72 = vpack.c.b16 %v70, %v69
    %v91 = vunpack.c.l.b16 %v43
    %v92 = vunpack.c.l.b16 %v44
    %v93 = vunpack.c.l.b16 %v45
    %v94 = vunpack.c.l.b16 %v46
    %v95 = vunpack.c.l.b16 %v47
    %v96 = vunpack.c.l.b16 %v48
    %v97 = vunpack.c.l.b16 %v49
    %v98 = vunpack.c.l.b16 %v50
    %v99 = vunpack.c.l.b16 %v51
    %v100 = vunpack.c.l.b16 %v52
    %v101 = vunpack.c.l.b16 %v53
    %v102 = vunpack.c.l.b16 %v54
    %v103 = vunpack.c.l.b16 %v55
    %v104 = vunpack.c.l.b16 %v56
    %v105 = vunpack.c.l.b16 %v57
    %v106 = vunpack.c.l.b16 %v58
    %v107 = vpack.c.b16 %v92, %v91
    %v108 = vpack.c.b16 %v94, %v93
    %v109 = vpack.c.b16 %v96, %v95
    %v110 = vpack.c.b16 %v98, %v97
    %v111 = vpack.c.b16 %v100, %v99
    %v112 = vpack.c.b16 %v102, %v101
    %v113 = vpack.c.b16 %v104, %v103
    %v114 = vpack.c.b16 %v106, %v105
    %123 = vmatpush.bf16.msra.mxu0 %v114
    %124 = vmatpush.bf16.msra.mxu0 %v113
    %125 = vmatpush.bf16.msra.mxu0 %v112
    %126 = vmatpush.bf16.msra.mxu0 %v111
    %127 = vmatpush.bf16.msra.mxu0 %v110
    %128 = vmatpush.bf16.msra.mxu0 %v109
    %129 = vmatpush.bf16.msra.mxu0 %v108
    %130 = vmatpush.bf16.msra.mxu0 %v107
    %131 = vmatmul.bf16.gmra.mxu0 %v71
    %v132 = vpop.f32.mrf.mxu0
    %v133 = vadd.f32 %v61, %v132
    %v134 = vpop.f32.mrf.mxu0
    %v135 = vadd.f32 %v61, %v134
    %136 = vmatmul.bf16.gmra.mxu0 %v72
    %v137 = vpop.f32.mrf.mxu0
    %v138 = vadd.f32 %v61, %v137
    %v139 = vpop.f32.mrf.mxu0
    %v140 = vadd.f32 %v61, %v139
    %141 = vdwg.mxu0
    %v142 = vld [vmem:[%s1] sm:$0xf]
    %v143 = vld [vmem:[%s1 + $0x4] sm:$0xf]
    %v144 = vld [vmem:[%s1 + $0x8] sm:$0xf]
    %v145 = vld [vmem:[%s1 + $0xc] sm:$0xf]
    %v146 = vunpack.c.l.bf16 %v142
    %v147 = vunpack.c.l.bf16 %v143
    %v148 = vunpack.c.l.bf16 %v144
    %v149 = vunpack.c.l.bf16 %v145
    %v150 = vadd.f32 %v133, %v146
    %v151 = vadd.f32 %v135, %v147
    %v152 = vadd.f32 %v138, %v148
    %v153 = vadd.f32 %v140, %v149
    %154 = vadd.xlane.f32.xlu0 %v150
    %v155 = vpop.xlane.xlu0 %154
    %156 = vadd.xlane.f32.xlu0 %v151
    %v157 = vpop.xlane.xlu0 %156
    %158 = vadd.xlane.f32.xlu0 %v152
    %v159 = vpop.xlane.xlu0 %158
    %160 = vadd.xlane.f32.xlu0 %v153
    %v161 = vpop.xlane.xlu0 %160
    %v162 = vrcp.pop 128.0
    %v163 = vmul.f32 128.0, %v162
    %v164 = vsub.f32 1.0, %v163
    %v165 = vmul.f32 %v162, %v164
    %v166 = vadd.f32 %v162, %v165
    %vm167 = vweird.f32 %v162
    %v168 = vsel %vm167, %v162, %v166
    %v169 = vmul.f32 %v155, %v168
    %v170 = vmul.f32 %v157, %v168
    %v171 = vmul.f32 %v159, %v168
    %v172 = vmul.f32 %v161, %v168
    %v173 = vsub.f32 %v150, %v169
    %v174 = vsub.f32 %v151, %v170
    %v175 = vsub.f32 %v152, %v171
    %v176 = vsub.f32 %v153, %v172
    %v177 = vmul.f32 %v173, %v173
    %v178 = vmul.f32 %v174, %v174
    %v179 = vmul.f32 %v175, %v175
    %v180 = vmul.f32 %v176, %v176
    %181 = vadd.xlane.f32.xlu0 %v177
    %v182 = vpop.xlane.xlu0 %181
    %183 = vadd.xlane.f32.xlu0 %v178
    %v184 = vpop.xlane.xlu0 %183
    %185 = vadd.xlane.f32.xlu0 %v179
    %v186 = vpop.xlane.xlu0 %185
    %187 = vadd.xlane.f32.xlu0 %v180
    %v188 = vpop.xlane.xlu0 %187
    %v189 = vmul.f32 %v182, %v168
    %v190 = vmul.f32 %v184, %v168
    %v191 = vmul.f32 %v186, %v168
    %v192 = vmul.f32 %v188, %v168
    %v193 = vadd.f32 %v189, 1e-05
    %v194 = vadd.f32 %v190, 1e-05
    %v195 = vadd.f32 %v191, 1e-05
    %v196 = vadd.f32 %v192, 1e-05
    %v197 = vrsqrt.pop %v193
    %v198 = vmul.f32 %v197, %v193
    %v199 = vmul.f32 %v198, %v197
    %v200 = vmul.f32 0.5, %v199
    %v201 = vsub.f32 1.5, %v200
    %v202 = vmul.f32 %v197, %v201
    %vm203 = vweird.f32 %v193
    %vm204 = vweird.f32 %v197
    %vm205 = vmor %vm203, %vm204
    %v206 = vsel %vm205, %v197, %v202
    %v207 = vrsqrt.pop %v194
    %v208 = vmul.f32 %v207, %v194
    %v209 = vmul.f32 %v208, %v207
    %v210 = vmul.f32 0.5, %v209
    %v211 = vsub.f32 1.5, %v210
    %v212 = vmul.f32 %v207, %v211
    %vm213 = vweird.f32 %v194
    %vm214 = vweird.f32 %v207
    %vm215 = vmor %vm213, %vm214
    %v216 = vsel %vm215, %v207, %v212
    %v217 = vrsqrt.pop %v195
    %v218 = vmul.f32 %v217, %v195
    %v219 = vmul.f32 %v218, %v217
    %v220 = vmul.f32 0.5, %v219
    %v221 = vsub.f32 1.5, %v220
    %v222 = vmul.f32 %v217, %v221
    %vm223 = vweird.f32 %v195
    %vm224 = vweird.f32 %v217
    %vm225 = vmor %vm223, %vm224
    %v226 = vsel %vm225, %v217, %v222
    %v227 = vrsqrt.pop %v196
    %v228 = vmul.f32 %v227, %v196
    %v229 = vmul.f32 %v228, %v227
    %v230 = vmul.f32 0.5, %v229
    %v231 = vsub.f32 1.5, %v230
    %v232 = vmul.f32 %v227, %v231
    %vm233 = vweird.f32 %v196
    %vm234 = vweird.f32 %v227
    %vm235 = vmor %vm233, %vm234
    %v236 = vsel %vm235, %v227, %v232
    %v237 = vmul.f32 %v173, %v206
    %v238 = vmul.f32 %v174, %v216
    %v239 = vmul.f32 %v175, %v226
    %v240 = vmul.f32 %v176, %v236
    %v241 = vld [vmem:[%s4] sm:$0x1]
    %v243 = vperm.slane %v241, 0
    %v245 = vmul.f32 %v237, %v243
    %v246 = vmul.f32 %v238, %v243
    %v247 = vmul.f32 %v239, %v243
    %v248 = vmul.f32 %v240, %v243
    %v249 = vld [vmem:[%s5] sm:$0x1]
    %v251 = vperm.slane %v249, 0
    %v253 = vadd.f32 %v245, %v251
    %v254 = vadd.f32 %v246, %v251
    %v255 = vadd.f32 %v247, %v251
    %v256 = vadd.f32 %v248, %v251
    %v257 = vpack.c.bf16 %v253, %v253
    %v258 = vpack.c.bf16 %v254, %v254
    %v259 = vpack.c.bf16 %v255, %v255
    %v260 = vpack.c.bf16 %v256, %v256
    %261 = vst [vmem:[%s6] sm:$0xf] %v257
    %262 = vst [vmem:[%s6 + $0x4] sm:$0xf] %v258
    %263 = vst [vmem:[%s6 + $0x8] sm:$0xf] %v259
    %264 = vst [vmem:[%s6 + $0xc] sm:$0xf] %v260
    // Predicated region
    $region30: #{meta_bert_3d.24} parent=1 // pred_check
      _
    $region31: #{meta_bert_3d.24} parent=1 // pred_check_branch
      %266 = sbr.rel (0) target = $region33
    $region32: #{meta_bert_3d.24} parent=1 // pred_region
      _
    $region33: #{meta_bert_3d.24} parent=1 // pred_fallthru
      _
    // Predicated region
    $region34: #{meta_bert_3d.24} parent=1 // pred_check
      _
    $region35: #{meta_bert_3d.24} parent=1 // pred_check_branch
      %268 = sbr.rel (0) target = $region37
    $region36: #{meta_bert_3d.24} parent=1 // pred_region
      _
    $region37: #{meta_bert_3d.24} parent=1 // pred_fallthru
      _
    %269 = vsyncpa [#allocation3], 1

// kernel: meta_bert_3d.23
$region0: #{meta_bert_3d.23}
  #allocation0 [shape = 'u32[]', space=smem, size = 0x4, offset = 0x4, fixed_abs, tag = 'smem constant byte address 0x4 - core index']
  #allocation1 [shape = 'u32[72,128]{1,0:T(1,128)}', space=vmem, size = 0x9000, scoped, tag = 'internal scratch']
  #allocation2 [shape = 'f32[4,16,1]{2,1,0:T(8,128)}', space=vmem, size = 0x8000, scoped, tag = 'scratch operand']
  #allocation3 [shape = 'f32[4,16,1]{2,1,0:T(8,128)}', space=vmem, size = 0x8000, scoped, tag = 'scratch operand']
  #allocation4 [shape = 'f32[16,128]{1,0:T(8,128)}', space=vmem, size = 0x2000, scoped, tag = 'scratch operand']
  %s0 = inlined_call_operand.vmem [shape: bf16[2,16,384], index: 0, kind: input, shape index: {}, may-alias: {0,1}]
  %s1 = inlined_call_operand.vmem [shape: bf16[2,16,384], index: 1, kind: input, shape index: {}, may-alias: {0,1}]
  %s2 = inlined_call_operand.vmem [shape: bf16[2,16,128], index: 2, kind: output, shape index: {}]
  %s3 = sld [smem:[#allocation0]]
  $region128: #{meta_bert_3d.23} parent=0
    _
  %s5 = ssub.s32 1, %s3
  %s6 = scalar_select 0, %s5, %s3
  $region1: #{meta_bert_3d.23} parent=0
    #allocation5 [shape = 'u8[8192]{0}', space=vmem, size = 0x2000, scoped, tag = 'input window, operand 0']
    #allocation6 [shape = 'u8[16384]{0}', space=vmem, size = 0x4000, scoped, tag = 'input window, operand 1']
    loop: start=0, step=1, limit=4
    $region2: #{meta_bert_3d.23} parent=1 // loop_pre_header
      _
    $region3: #{meta_bert_3d.23} parent=1 // loop_header
      %s8 = sphi 0, %s12
      %p9 = scmp.ge.s32.totalorder %s8, 4
      %s15 = sphi 0, %s34
      %s16 = sphi 0, %s30
      %s17 = sphi 0, %s26
      %s18 = sphi 0, %s15
      %s19 = sphi 0, %s16
      %s20 = sphi 0, %s17
      %s21 = sphi 0, %s18
      %s22 = sphi 0, %s19
      %s23 = sphi 0, %s20
      %s39 = sphi 0, %s41
      %s42 = sphi 0, %s39
      %s43 = sphi 0, %s42
      %s59 = sphi 0, %s43
      %s67 = sphi 0, %s69
      %s70 = sphi 0, %s67
      %s71 = sphi 0, %s70
      %s87 = sphi 0, %s71
      %s95 = sphi 0, %s97
      %s98 = sphi 0, %s95
      %s99 = sphi 0, %s98
      %s115 = sphi 0, %s99
    $region4: #{meta_bert_3d.23} parent=1 // loop_header_branch
      %11 = sbr.rel (%p9) target = $region8
    $region5: #{meta_bert_3d.23} parent=1 // loop_body
      %s13 = ssub.s32 %s8, 1
      %s14 = ssub.s32 %s8, 2
      %s24 = sadd.s32 1, %s17
      %p25 = scmp.ge.s32.totalorder %s24, 1
      %s26 = scalar_select %p25, 0, %s24
      %s27 = sadd.s32 1, %s16
      %s28 = scalar_select %p25, %s27, %s16
      %p29 = scmp.ge.s32.totalorder %s28, 1
      %s30 = scalar_select %p29, 0, %s28
      %s31 = sadd.s32 1, %s15
      %s32 = scalar_select %p29, %s31, %s15
      %p33 = scmp.ge.s32.totalorder %s32, 2
      %s34 = scalar_select %p33, 0, %s32
      %s35 = ssub.s32 %s15, %s34
      %s36 = ssub.s32 %s16, %s30
      %s37 = sor.u32 %s35, %s36
      %p38 = scmp.eq.s32.totalorder %s37, 0
      %s40 = sadd.s32 %s39, 1
      %s41 = scalar_select %p38, %s39, %s40
      %p44 = pneg %p38
      %p45 = scmp.eq.s32.totalorder %s8, 1
      %p46 = por %p44, %p45
      %p47 = scmp.ne.s32.totalorder %s39, %s42
      %p48 = scmp.eq.s32.totalorder %s8, 0
      %p49 = por %p47, %p48
      %p50 = scmp.ne.s32.totalorder %s39, %s42
      %p51 = scmp.eq.s32.totalorder %s13, 1
      %p52 = por %p50, %p51
      %p53 = scmp.ne.s32.totalorder %s42, %s43
      %p54 = scmp.eq.s32.totalorder %s13, 0
      %p55 = por %p53, %p54
      %p56 = scmp.ne.s32.totalorder %s42, %s43
      %p57 = scmp.eq.s32.totalorder %s14, 1
      %p58 = por %p56, %p57
      %p60 = scmp.ne.s32.totalorder %s43, %s59
      %p61 = scmp.eq.s32.totalorder %s14, 0
      %p62 = por %p60, %p61
      %s63 = ssub.s32 %s15, %s34
      %s64 = ssub.s32 %s17, %s26
      %s65 = sor.u32 %s63, %s64
      %p66 = scmp.eq.s32.totalorder %s65, 0
      %s68 = sadd.s32 %s67, 1
      %s69 = scalar_select %p66, %s67, %s68
      %p72 = pneg %p66
      %p73 = scmp.eq.s32.totalorder %s8, 1
      %p74 = por %p72, %p73
      %p75 = scmp.ne.s32.totalorder %s67, %s70
      %p76 = scmp.eq.s32.totalorder %s8, 0
      %p77 = por %p75, %p76
      %p78 = scmp.ne.s32.totalorder %s67, %s70
      %p79 = scmp.eq.s32.totalorder %s13, 1
      %p80 = por %p78, %p79
      %p81 = scmp.ne.s32.totalorder %s70, %s71
      %p82 = scmp.eq.s32.totalorder %s13, 0
      %p83 = por %p81, %p82
      %p84 = scmp.ne.s32.totalorder %s70, %s71
      %p85 = scmp.eq.s32.totalorder %s14, 1
      %p86 = por %p84, %p85
      %p88 = scmp.ne.s32.totalorder %s71, %s87
      %p89 = scmp.eq.s32.totalorder %s14, 0
      %p90 = por %p88, %p89
      %s91 = ssub.s32 %s15, %s34
      %s92 = ssub.s32 %s16, %s30
      %s93 = sor.u32 %s91, %s92
      %p94 = scmp.eq.s32.totalorder %s93, 0
      %s96 = sadd.s32 %s95, 1
      %s97 = scalar_select %p94, %s95, %s96
      %p100 = pneg %p94
      %p101 = scmp.eq.s32.totalorder %s8, 1
      %p102 = por %p100, %p101
      %p103 = scmp.ne.s32.totalorder %s95, %s98
      %p104 = scmp.eq.s32.totalorder %s8, 0
      %p105 = por %p103, %p104
      %p106 = scmp.ne.s32.totalorder %s95, %s98
      %p107 = scmp.eq.s32.totalorder %s13, 1
      %p108 = por %p106, %p107
      %p109 = scmp.ne.s32.totalorder %s98, %s99
      %p110 = scmp.eq.s32.totalorder %s13, 0
      %p111 = por %p109, %p110
      %p112 = scmp.ne.s32.totalorder %s98, %s99
      %p113 = scmp.eq.s32.totalorder %s14, 1
      %p114 = por %p112, %p113
      %p116 = scmp.ne.s32.totalorder %s99, %s115
      %p117 = scmp.eq.s32.totalorder %s14, 0
      %p118 = por %p116, %p117
      %p119 = scmp.le.s32.totalorder 1, %s8
      %p120 = scmp.lt.s32.totalorder %s8, 3
      %p121 = pnand %p119, %p120
      %p122 = pneg %p121
      // Predicated region
      $region9: #{meta_bert_3d.23} parent=5 // pred_check
        _
      $region10: #{meta_bert_3d.23} parent=5 // pred_check_branch
        %124 = sbr.rel (%p121) target = $region12
      $region11: #{meta_bert_3d.23} parent=5 // pred_region
        %s125 = ssub.s32 %s8, 1
      $region12: #{meta_bert_3d.23} parent=5 // pred_fallthru
        _
      %p126 = scmp.lt.s32.totalorder %s8, 2
      // Predicated region
      $region13: #{meta_bert_3d.23} parent=5 // pred_check
        %p127 = pneg %p126
      $region14: #{meta_bert_3d.23} parent=5 // pred_check_branch
        %129 = sbr.rel (%p127) target = $region16
      $region15: #{meta_bert_3d.23} parent=5 // pred_region
        // Predicated region
        $region17: #{meta_bert_3d.23} parent=15 // pred_check
          %p130 = pneg %p49
        $region18: #{meta_bert_3d.23} parent=15 // pred_check_branch
          %132 = sbr.rel (%p130) target = $region20
        $region19: #{meta_bert_3d.23} parent=15 // pred_region
          %s133 = sand.u32 %s39, 1
          %s134 = sand.u32 %s39, 1
          %s135 = smul.addr %s134, 8
          %s136 = scalar_lea.vmem [#allocation5], %s135
          %s137 = smul.u32 2, %s16
          %s138 = smul.addr %s137, 3
          %s139 = sadd.s32 2, %s138
          %s140 = smul.addr %s15, 6
          %s141 = sadd.s32 %s139, %s140
          %s142 = smul.addr %s141, 4
          %s143 = scalar_lea.vmem %s0, %s142
          // Predicated region
          $region21: #{meta_bert_3d.23} parent=19 // pred_check
            _
          $region22: #{meta_bert_3d.23} parent=19 // pred_check_branch
            %145 = sbr.rel (0) target = $region24
          $region23: #{meta_bert_3d.23} parent=19 // pred_region
            // Predicated region
            $region25: #{meta_bert_3d.23} parent=23 // pred_check
              _
            $region26: #{meta_bert_3d.23} parent=23 // pred_check_branch
              %147 = sbr.rel target = $region28
            $region27: #{meta_bert_3d.23} parent=23 // pred_region
              // Predicated region
              $region40: #{meta_bert_3d.23} parent=27 // pred_check
                _
              $region41: #{meta_bert_3d.23} parent=27 // pred_check_branch
                %165 = sbr.rel (0) target = $region43
              $region42: #{meta_bert_3d.23} parent=27 // pred_region
                loop: start=0, step=1, limit=1
                $region44: #{meta_bert_3d.23} parent=42 // loop_pre_header
                  _
                $region45: #{meta_bert_3d.23} parent=42 // loop_header
                  %s167 = sphi 0, %s171
                  %p168 = scmp.ge.s32.totalorder %s167, 1
                  %s172 = sphi %s143, %s143
                  %s173 = sphi %s136, %s136
                $region46: #{meta_bert_3d.23} parent=42 // loop_header_branch
                  %170 = sbr.rel (%p168) target = $region50
                $region47: #{meta_bert_3d.23} parent=42 // loop_body
                  _
                $region48: #{meta_bert_3d.23} parent=42 // loop_footer
                  %s171 = sadd.s32 1, %s167
                $region49: #{meta_bert_3d.23} parent=42 // loop_footer_branch
                  %166 = sbr.rel target = $region45
                $region50: #{meta_bert_3d.23} parent=42 // loop_exit
                  _
                %s175 = ssub.s32 16, 1
                loop: start=0, step=1, limit=1
                $region51: #{meta_bert_3d.23} parent=42 // loop_pre_header
                  _
                $region52: #{meta_bert_3d.23} parent=42 // loop_header
                  %s177 = sphi 0, %s181
                  %p178 = scmp.ge.s32.totalorder %s177, 1
                  %s182 = sphi %s143, %s143
                  %s183 = sphi %s136, %s136
                $region53: #{meta_bert_3d.23} parent=42 // loop_header_branch
                  %180 = sbr.rel (%p178) target = $region57
                $region54: #{meta_bert_3d.23} parent=42 // loop_body
                  %v184 = vld [vmem:[%s182] sm:%s175]
                  %185 = vst [vmem:[%s183] sm:%s175] %v184
                  %v186 = vld [vmem:[%s182 + $0xc] sm:%s175]
                  %187 = vst [vmem:[%s183 + $0x4] sm:%s175] %v186
                $region55: #{meta_bert_3d.23} parent=42 // loop_footer
                  %s181 = sadd.s32 1, %s177
                $region56: #{meta_bert_3d.23} parent=42 // loop_footer_branch
                  %176 = sbr.rel target = $region52
                $region57: #{meta_bert_3d.23} parent=42 // loop_exit
                  _
              $region43: #{meta_bert_3d.23} parent=27 // pred_fallthru
                _
            $region28: #{meta_bert_3d.23} parent=23 // pred_fallthru
              _
            // Predicated region
            $region29: #{meta_bert_3d.23} parent=23 // pred_check
              _
            $region30: #{meta_bert_3d.23} parent=23 // pred_check_branch
              %149 = sbr.rel (0) target = $region32
            $region31: #{meta_bert_3d.23} parent=23 // pred_region
              %s151 = ssub.s32 16, 1
              loop: start=0, step=1, limit=1
              $region33: #{meta_bert_3d.23} parent=31 // loop_pre_header
                _
              $region34: #{meta_bert_3d.23} parent=31 // loop_header
                %s153 = sphi 0, %s157
                %p154 = scmp.ge.s32.totalorder %s153, 1
                %s158 = sphi %s143, %s143
                %s159 = sphi %s136, %s136
              $region35: #{meta_bert_3d.23} parent=31 // loop_header_branch
                %156 = sbr.rel (%p154) target = $region39
              $region36: #{meta_bert_3d.23} parent=31 // loop_body
                %v160 = vld [vmem:[%s158] sm:%s151]
                %161 = vst [vmem:[%s159] sm:%s151] %v160
                %v162 = vld [vmem:[%s158 + $0xc] sm:%s151]
                %163 = vst [vmem:[%s159 + $0x4] sm:%s151] %v162
              $region37: #{meta_bert_3d.23} parent=31 // loop_footer
                %s157 = sadd.s32 1, %s153
              $region38: #{meta_bert_3d.23} parent=31 // loop_footer_branch
                %152 = sbr.rel target = $region34
              $region39: #{meta_bert_3d.23} parent=31 // loop_exit
                _
            $region32: #{meta_bert_3d.23} parent=23 // pred_fallthru
              _
          $region24: #{meta_bert_3d.23} parent=19 // pred_fallthru
            _
          %188 = vnop
        $region20: #{meta_bert_3d.23} parent=15 // pred_fallthru
          _
        // Predicated region
        $region58: #{meta_bert_3d.23} parent=15 // pred_check
          %p189 = pneg %p77
        $region59: #{meta_bert_3d.23} parent=15 // pred_check_branch
          %191 = sbr.rel (%p189) target = $region61
        $region60: #{meta_bert_3d.23} parent=15 // pred_region
          %s192 = sand.u32 %s67, 1
          %s193 = sand.u32 %s67, 1
          %s194 = smul.addr %s193, 16
          %s195 = scalar_lea.vmem [#allocation6], %s194
          %s196 = smul.u32 2, %s17
          %s197 = smul.addr %s196, 3
          %s198 = smul.addr %s15, 6
          %s199 = sadd.s32 %s197, %s198
          %s200 = smul.addr %s199, 4
          %s201 = scalar_lea.vmem %s1, %s200
          // Predicated region
          $region62: #{meta_bert_3d.23} parent=60 // pred_check
            _
          $region63: #{meta_bert_3d.23} parent=60 // pred_check_branch
            %203 = sbr.rel (0) target = $region65
          $region64: #{meta_bert_3d.23} parent=60 // pred_region
            // Predicated region
            $region66: #{meta_bert_3d.23} parent=64 // pred_check
              _
            $region67: #{meta_bert_3d.23} parent=64 // pred_check_branch
              %205 = sbr.rel (0) target = $region69
            $region68: #{meta_bert_3d.23} parent=64 // pred_region
              // Predicated region
              $region81: #{meta_bert_3d.23} parent=68 // pred_check
                _
              $region82: #{meta_bert_3d.23} parent=68 // pred_check_branch
                %223 = sbr.rel (0) target = $region84
              $region83: #{meta_bert_3d.23} parent=68 // pred_region
                loop: start=0, step=1, limit=1
                $region85: #{meta_bert_3d.23} parent=83 // loop_pre_header
                  _
                $region86: #{meta_bert_3d.23} parent=83 // loop_header
                  %s225 = sphi 0, %s229
                  %p226 = scmp.ge.s32.totalorder %s225, 1
                  %s230 = sphi %s201, %s201
                  %s231 = sphi %s195, %s195
                $region87: #{meta_bert_3d.23} parent=83 // loop_header_branch
                  %228 = sbr.rel (%p226) target = $region91
                $region88: #{meta_bert_3d.23} parent=83 // loop_body
                  %v232 = vld [vmem:[%s230] sm:$0xff]
                  %233 = vst [vmem:[%s231] sm:$0xff] %v232
                  %v234 = vld [vmem:[%s230 + $0xc] sm:$0xff]
                  %235 = vst [vmem:[%s231 + $0x8] sm:$0xff] %v234
                $region89: #{meta_bert_3d.23} parent=83 // loop_footer
                  %s229 = sadd.s32 1, %s225
                $region90: #{meta_bert_3d.23} parent=83 // loop_footer_branch
                  %224 = sbr.rel target = $region86
                $region91: #{meta_bert_3d.23} parent=83 // loop_exit
                  _
              $region84: #{meta_bert_3d.23} parent=68 // pred_fallthru
                _
              // Predicated region
              $region92: #{meta_bert_3d.23} parent=68 // pred_check
                _
              $region93: #{meta_bert_3d.23} parent=68 // pred_check_branch
                %237 = sbr.rel target = $region95
              $region94: #{meta_bert_3d.23} parent=68 // pred_region
                _
              $region95: #{meta_bert_3d.23} parent=68 // pred_fallthru
                _
            $region69: #{meta_bert_3d.23} parent=64 // pred_fallthru
              _
            // Predicated region
            $region70: #{meta_bert_3d.23} parent=64 // pred_check
              _
            $region71: #{meta_bert_3d.23} parent=64 // pred_check_branch
              %207 = sbr.rel target = $region73
            $region72: #{meta_bert_3d.23} parent=64 // pred_region
              %s209 = ssub.s32 256, 1
              loop: start=0, step=1, limit=1
              $region74: #{meta_bert_3d.23} parent=72 // loop_pre_header
                _
              $region75: #{meta_bert_3d.23} parent=72 // loop_header
                %s211 = sphi 0, %s215
                %p212 = scmp.ge.s32.totalorder %s211, 1
                %s216 = sphi %s201, %s201
                %s217 = sphi %s195, %s195
              $region76: #{meta_bert_3d.23} parent=72 // loop_header_branch
                %214 = sbr.rel (%p212) target = $region80
              $region77: #{meta_bert_3d.23} parent=72 // loop_body
                %v218 = vld [vmem:[%s216] sm:%s209]
                %219 = vst [vmem:[%s217] sm:%s209] %v218
                %v220 = vld [vmem:[%s216 + $0xc] sm:%s209]
                %221 = vst [vmem:[%s217 + $0x8] sm:%s209] %v220
              $region78: #{meta_bert_3d.23} parent=72 // loop_footer
                %s215 = sadd.s32 1, %s211
              $region79: #{meta_bert_3d.23} parent=72 // loop_footer_branch
                %210 = sbr.rel target = $region75
              $region80: #{meta_bert_3d.23} parent=72 // loop_exit
                _
            $region73: #{meta_bert_3d.23} parent=64 // pred_fallthru
              _
          $region65: #{meta_bert_3d.23} parent=60 // pred_fallthru
            _
          %238 = vnop
        $region61: #{meta_bert_3d.23} parent=15 // pred_fallthru
          _
      $region16: #{meta_bert_3d.23} parent=5 // pred_fallthru
        _
      %p239 = scmp.le.s32.totalorder 1, %s8
      %p240 = scmp.lt.s32.totalorder %s8, 3
      %p241 = pnand %p239, %p240
      %p242 = pneg %p241
      // Predicated region
      $region96: #{meta_bert_3d.23} parent=5 // pred_check
        _
      $region97: #{meta_bert_3d.23} parent=5 // pred_check_branch
        %244 = sbr.rel (%p241) target = $region99
      $region98: #{meta_bert_3d.23} parent=5 // pred_region
        %s245 = ssub.s32 %s8, 1
        %s246 = sand.u32 %s42, 1
        %s247 = sand.u32 %s42, 1
        %s248 = smul.addr %s247, 8
        %s249 = scalar_lea.vmem [#allocation5], %s248
        // Predicated region
        $region100: #{meta_bert_3d.23} parent=98 // pred_check
          %p250 = pneg %p55
        $region101: #{meta_bert_3d.23} parent=98 // pred_check_branch
          %252 = sbr.rel (%p250) target = $region103
        $region102: #{meta_bert_3d.23} parent=98 // pred_region
          _
        $region103: #{meta_bert_3d.23} parent=98 // pred_fallthru
          _
        %s253 = sand.u32 %s70, 1
        %s254 = sand.u32 %s70, 1
        %s255 = smul.addr %s254, 16
        %s256 = scalar_lea.vmem [#allocation6], %s255
        // Predicated region
        $region104: #{meta_bert_3d.23} parent=98 // pred_check
          %p257 = pneg %p83
        $region105: #{meta_bert_3d.23} parent=98 // pred_check_branch
          %259 = sbr.rel (%p257) target = $region107
        $region106: #{meta_bert_3d.23} parent=98 // pred_region
          _
        $region107: #{meta_bert_3d.23} parent=98 // pred_fallthru
          _
        %s260 = sand.u32 %s42, 1
        %s261 = sand.u32 %s42, 1
        %s262 = smul.addr %s261, 8
        %s263 = scalar_lea.vmem [#allocation5], %s262
        %p264 = pneg %p55
        %p265 = pneg %p52
        %s266 = sand.u32 %s70, 1
        %s267 = sand.u32 %s70, 1
        %s268 = smul.addr %s267, 16
        %s269 = scalar_lea.vmem [#allocation6], %s268
        %p270 = pneg %p83
        %p271 = pneg %p80
        %p272 = pneg %p111
        %p273 = pneg %p108
        %s274 = smul.u32 2, %s19
        %p275 = scmp.lt.s32.totalorder %s18, 1
        %s276 = scalar_select %p275, %s18, 1
        %p277 = scmp.lt.s32.totalorder %s274, 1
        %s278 = scalar_select %p277, %s274, 1
        %s279 = smul.addr %s276, 2
        %s280 = sadd.s32 %s278, %s279
        %s281 = smul.addr %s280, 4
        %s282 = scalar_lea.vmem %s2, %s281
        %s283 = smul.u32 2, %s19
        %s284 = smul.u32 2, %s20
        %s285 = smul.u32 2, %s19
        %p286 = scmp.lt.s32.totalorder %s18, 1
        %s287 = scalar_select %p286, %s18, 1
        %p288 = scmp.lt.s32.totalorder %s285, 1
        %s289 = scalar_select %p288, %s285, 1
        %s290 = smul.addr %s287, 2
        %s291 = sadd.s32 %s289, %s290
        %s292 = smul.addr %s291, 4
        %s293 = scalar_lea.vmem %s2, %s292
        %s294 = smul.u32 2, %s19
        %p296 = scmp.eq.s32.totalorder %s20, 0
        // Predicated region
        $region108: #{meta_bert_3d.23} parent=98 // pred_check
          %p297 = pneg %p296
        $region109: #{meta_bert_3d.23} parent=98 // pred_check_branch
          %299 = sbr.rel (%p297) target = $region111
        $region110: #{meta_bert_3d.23} parent=98 // pred_region
          %vm300 = vcmask 7168
          %301 = vst.msk [vmem:[#allocation2] sm:$0xff] %vm300, -inf
          %302 = vst.msk [vmem:[#allocation2 + $0x8] sm:$0xff] %vm300, -inf
          %303 = vst.msk [vmem:[#allocation2 + $0x10] sm:$0xff] %vm300, -inf
          %304 = vst.msk [vmem:[#allocation2 + $0x18] sm:$0xff] %vm300, -inf
          %305 = vst.msk [vmem:[#allocation2 + $0x20] sm:$0xff] %vm300, -inf
          %306 = vst.msk [vmem:[#allocation2 + $0x28] sm:$0xff] %vm300, -inf
          %307 = vst.msk [vmem:[#allocation2 + $0x30] sm:$0xff] %vm300, -inf
          %308 = vst.msk [vmem:[#allocation2 + $0x38] sm:$0xff] %vm300, -inf
          %309 = vst.msk [vmem:[#allocation3] sm:$0xff] %vm300, 0.0
          %310 = vst.msk [vmem:[#allocation3 + $0x8] sm:$0xff] %vm300, 0.0
          %311 = vst.msk [vmem:[#allocation3 + $0x10] sm:$0xff] %vm300, 0.0
          %312 = vst.msk [vmem:[#allocation3 + $0x18] sm:$0xff] %vm300, 0.0
          %313 = vst.msk [vmem:[#allocation3 + $0x20] sm:$0xff] %vm300, 0.0
          %314 = vst.msk [vmem:[#allocation3 + $0x28] sm:$0xff] %vm300, 0.0
          %315 = vst.msk [vmem:[#allocation3 + $0x30] sm:$0xff] %vm300, 0.0
          %316 = vst.msk [vmem:[#allocation3 + $0x38] sm:$0xff] %vm300, 0.0
          %317 = vst [vmem:[#allocation4] sm:$0xff] 0.0
          %318 = vst [vmem:[#allocation4 + $0x8] sm:$0xff] 0.0
        $region111: #{meta_bert_3d.23} parent=98 // pred_fallthru
          _
        %v319 = vld [vmem:[%s249] sm:$0xf]
        %v320 = vld [vmem:[%s249 + $0x4] sm:$0xf]
        %v321 = vld [vmem:[%s256] sm:$0xff]
        %v322 = vld [vmem:[%s256 + $0x8] sm:$0xff]
        %v325 = vunpack.c.l.b16 %v319
        %v326 = vunpack.c.l.b16 %v320
        %v327 = vpack.c.b16 %v326, %v325
        %v330 = vunpack.c.l.b16 %v321
        %v331 = vunpack.c.l.b16 %v322
        %v332 = vpack.c.b16 %v331, %v330
        %vm333 = vcmask 261120
        %v335 = vsel %vm333, %v327, 0
        %v338 = vsel %vm333, %v332, 0
        %340 = vmatpush.bf16.xpose.msra.mxu0 0
        %341 = vmatpush.bf16.xpose.msra.mxu0 0
        %342 = vmatpush.bf16.xpose.msra.mxu0 0
        %343 = vmatpush.bf16.xpose.msra.mxu0 0
        %344 = vmatpush.bf16.xpose.msra.mxu0 0
        %345 = vmatpush.bf16.xpose.msra.mxu0 0
        %346 = vmatpush.bf16.xpose.msra.mxu0 0
        %347 = vmatpush.bf16.xpose.msra.mxu0 %v338
        %348 = vmatmul.bf16.gmra.mxu0 %v335
        %v349 = vpop.f32.mrf.mxu0
        %v350 = vadd.f32 0.0, %v349
        %v351 = vpop.f32.mrf.mxu0
        %v352 = vadd.f32 0.0, %v351
        %353 = vdwg.mxu0
        %v354 = vmul.f32 %v350, 0.17677669
        %v355 = vmul.f32 %v352, 0.17677669
        %v356 = vld [vmem:[#allocation2] sm:$0xff]
        %v357 = vld [vmem:[#allocation2 + $0x8] sm:$0xff]
        %vm358 = vcmask 130048
        %v359 = vsel %vm358, %v354, -inf
        %360 = vmax.xlane.f32.xlu0 %v359
        %v361 = vpop.xlane.xlu0 %360
        %v362 = vsel %vm358, %v355, -inf
        %363 = vmax.xlane.f32.xlu0 %v362
        %v364 = vpop.xlane.xlu0 %363
        %v365 = vmax.f32 %v356, %v361
        %v366 = vmax.f32 %v357, %v364
        %v367 = vsub.f32 %v356, %v365
        %v368 = vsub.f32 %v357, %v366
        %v369 = vmul.f32 %v367, 1.442695
        %v370 = vpow.pop %v369
        %v371 = vmul.f32 %v368, 1.442695
        %v372 = vpow.pop %v371
        %374 = vset.pattern.permute.xlu0 0
        %375 = vperm.xlu0 %374, %v365
        %v376 = vpop.permute.xlu0 %375
        %379 = vset.pattern.permute.xlu0 0
        %380 = vperm.xlu0 %379, %v366
        %v381 = vpop.permute.xlu0 %380
        %v383 = vsub.f32 %v354, %v376
        %v384 = vsub.f32 %v355, %v381
        %v385 = vmul.f32 %v383, 1.442695
        %v386 = vpow.pop %v385
        %v387 = vmul.f32 %v384, 1.442695
        %v388 = vpow.pop %v387
        %v389 = vld [vmem:[#allocation3] sm:$0xff]
        %v390 = vld [vmem:[#allocation3 + $0x8] sm:$0xff]
        %v391 = vmul.f32 %v370, %v389
        %v392 = vmul.f32 %v372, %v390
        %v393 = vsel %vm358, %v386, 0.0
        %394 = vadd.xlane.f32.xlu0 %v393
        %v395 = vpop.xlane.xlu0 %394
        %v396 = vsel %vm358, %v388, 0.0
        %397 = vadd.xlane.f32.xlu0 %v396
        %v398 = vpop.xlane.xlu0 %397
        %v399 = vadd.f32 %v391, %v395
        %v400 = vadd.f32 %v392, %v398
        %vm401 = vcmask 7168
        %402 = vst.msk [vmem:[#allocation3] sm:$0xff] %vm401, %v399
        %403 = vst.msk [vmem:[#allocation3 + $0x8] sm:$0xff] %vm401, %v400
        %v404 = vld [vmem:[#allocation4] sm:$0xff]
        %v405 = vld [vmem:[#allocation4 + $0x8] sm:$0xff]
        %407 = vset.pattern.permute.xlu0 0
        %408 = vperm.xlu0 %407, %v370
        %v409 = vpop.permute.xlu0 %408
        %412 = vset.pattern.permute.xlu0 0
        %413 = vperm.xlu0 %412, %v372
        %v414 = vpop.permute.xlu0 %413
        %v416 = vmul.f32 %v409, %v404
        %v417 = vmul.f32 %v414, %v405
        %v418 = vpack.c.bf16 %v388, %v386
        %v419 = vunpack.c.h.b16 %v321
        %v420 = vunpack.c.h.b16 %v322
        %v421 = vpack.c.b16 %v420, %v419
        %v424 = vsel %vm358, %v418, 0
        %426 = vmatpush.bf16.msra.mxu0 0
        %427 = vmatpush.bf16.msra.mxu0 0
        %428 = vmatpush.bf16.msra.mxu0 0
        %429 = vmatpush.bf16.msra.mxu0 0
        %430 = vmatpush.bf16.msra.mxu0 0
        %431 = vmatpush.bf16.msra.mxu0 0
        %432 = vmatpush.bf16.msra.mxu0 0
        %433 = vmatpush.bf16.msra.mxu0 %v421
        %434 = vmatmul.bf16.gmra.mxu0 %v424
        %v435 = vpop.f32.mrf.mxu0
        %v436 = vadd.f32 0.0, %v435
        %v437 = vpop.f32.mrf.mxu0
        %v438 = vadd.f32 0.0, %v437
        %439 = vdwg.mxu0
        %v440 = vadd.f32 %v416, %v436
        %v441 = vadd.f32 %v417, %v438
        %442 = vst.msk [vmem:[#allocation4] sm:$0xff] %vm333, %v440
        %443 = vst.msk [vmem:[#allocation4 + $0x8] sm:$0xff] %vm333, %v441
        %444 = vst.msk [vmem:[#allocation2] sm:$0xff] %vm401, %v365
        %445 = vst.msk [vmem:[#allocation2 + $0x8] sm:$0xff] %vm401, %v366
        %446 = vrot.lane.b32.xlu0 %v327, 96
        %v447 = vpop.permute.xlu0 %446
        %448 = vrot.lane.b32.xlu0 %v332, 96
        %v449 = vpop.permute.xlu0 %448
        %v451 = vsel %vm333, %v447, 0
        %v454 = vsel %vm333, %v449, 0
        %456 = vmatpush.bf16.xpose.msra.mxu0 0
        %457 = vmatpush.bf16.xpose.msra.mxu0 0
        %458 = vmatpush.bf16.xpose.msra.mxu0 0
        %459 = vmatpush.bf16.xpose.msra.mxu0 0
        %460 = vmatpush.bf16.xpose.msra.mxu0 0
        %461 = vmatpush.bf16.xpose.msra.mxu0 0
        %462 = vmatpush.bf16.xpose.msra.mxu0 0
        %463 = vmatpush.bf16.xpose.msra.mxu0 %v454
        %464 = vmatmul.bf16.gmra.mxu0 %v451
        %v465 = vpop.f32.mrf.mxu0
        %v466 = vadd.f32 0.0, %v465
        %v467 = vpop.f32.mrf.mxu0
        %v468 = vadd.f32 0.0, %v467
        %469 = vdwg.mxu0
        %v470 = vmul.f32 %v466, 0.17677669
        %v471 = vmul.f32 %v468, 0.17677669
        %s472 = scalar_lea.vmem [#allocation2], 16
        %v473 = vld [vmem:[%s472] sm:$0xff]
        %v474 = vld [vmem:[%s472 + $0x8] sm:$0xff]
        %v475 = vsel %vm358, %v470, -inf
        %476 = vmax.xlane.f32.xlu0 %v475
        %v477 = vpop.xlane.xlu0 %476
        %v478 = vsel %vm358, %v471, -inf
        %479 = vmax.xlane.f32.xlu0 %v478
        %v480 = vpop.xlane.xlu0 %479
        %v481 = vmax.f32 %v473, %v477
        %v482 = vmax.f32 %v474, %v480
        %v483 = vsub.f32 %v473, %v481
        %v484 = vsub.f32 %v474, %v482
        %v485 = vmul.f32 %v483, 1.442695
        %v486 = vpow.pop %v485
        %v487 = vmul.f32 %v484, 1.442695
        %v488 = vpow.pop %v487
        %490 = vset.pattern.permute.xlu0 0
        %491 = vperm.xlu0 %490, %v481
        %v492 = vpop.permute.xlu0 %491
        %495 = vset.pattern.permute.xlu0 0
        %496 = vperm.xlu0 %495, %v482
        %v497 = vpop.permute.xlu0 %496
        %v499 = vsub.f32 %v470, %v492
        %v500 = vsub.f32 %v471, %v497
        %v501 = vmul.f32 %v499, 1.442695
        %v502 = vpow.pop %v501
        %v503 = vmul.f32 %v500, 1.442695
        %v504 = vpow.pop %v503
        %s505 = scalar_lea.vmem [#allocation3], 16
        %v506 = vld [vmem:[%s505] sm:$0xff]
        %v507 = vld [vmem:[%s505 + $0x8] sm:$0xff]
        %v508 = vmul.f32 %v486, %v506
        %v509 = vmul.f32 %v488, %v507
        %v510 = vsel %vm358, %v502, 0.0
        %511 = vadd.xlane.f32.xlu0 %v510
        %v512 = vpop.xlane.xlu0 %511
        %v513 = vsel %vm358, %v504, 0.0
        %514 = vadd.xlane.f32.xlu0 %v513
        %v515 = vpop.xlane.xlu0 %514
        %v516 = vadd.f32 %v508, %v512
        %v517 = vadd.f32 %v509, %v515
        %518 = vst.msk [vmem:[%s505] sm:$0xff] %vm401, %v516
        %519 = vst.msk [vmem:[%s505 + $0x8] sm:$0xff] %vm401, %v517
        %v520 = vld [vmem:[#allocation4] sm:$0xff]
        %v521 = vld [vmem:[#allocation4 + $0x8] sm:$0xff]
        %523 = vset.pattern.permute.xlu0 0
        %524 = vperm.xlu0 %523, %v486
        %v525 = vpop.permute.xlu0 %524
        %528 = vset.pattern.permute.xlu0 0
        %529 = vperm.xlu0 %528, %v488
        %v530 = vpop.permute.xlu0 %529
        %v532 = vmul.f32 %v525, %v520
        %v533 = vmul.f32 %v530, %v521
        %v534 = vpack.c.bf16 %v504, %v502
        %535 = vrot.lane.b32.xlu0 %v421, 96
        %v536 = vpop.permute.xlu0 %535
        %v539 = vsel %vm358, %v534, 0
        %541 = vmatpush.bf16.msra.mxu0 0
        %542 = vmatpush.bf16.msra.mxu0 0
        %543 = vmatpush.bf16.msra.mxu0 0
        %544 = vmatpush.bf16.msra.mxu0 0
        %545 = vmatpush.bf16.msra.mxu0 0
        %546 = vmatpush.bf16.msra.mxu0 0
        %547 = vmatpush.bf16.msra.mxu0 0
        %548 = vmatpush.bf16.msra.mxu0 %v536
        %549 = vmatmul.bf16.gmra.mxu0 %v539
        %v550 = vpop.f32.mrf.mxu0
        %v551 = vadd.f32 0.0, %v550
        %v552 = vpop.f32.mrf.mxu0
        %v553 = vadd.f32 0.0, %v552
        %554 = vdwg.mxu0
        %557 = vrot.lane.b32.xlu0 %v551, 32
        %v558 = vpop.permute.xlu0 %557
        %559 = vrot.lane.b32.xlu0 %v553, 32
        %v560 = vpop.permute.xlu0 %559
        %v563 = vadd.f32 %v532, %v558
        %v564 = vadd.f32 %v533, %v560
        %vm565 = vcmask 523520
        %566 = vst.msk [vmem:[#allocation4] sm:$0xff] %vm565, %v563
        %567 = vst.msk [vmem:[#allocation4 + $0x8] sm:$0xff] %vm565, %v564
        %568 = vst.msk [vmem:[%s472] sm:$0xff] %vm401, %v481
        %569 = vst.msk [vmem:[%s472 + $0x8] sm:$0xff] %vm401, %v482
        %570 = vrot.lane.b32.xlu0 %v327, 64
        %v571 = vpop.permute.xlu0 %570
        %572 = vrot.lane.b32.xlu0 %v332, 64
        %v573 = vpop.permute.xlu0 %572
        %v575 = vsel %vm333, %v571, 0
        %v578 = vsel %vm333, %v573, 0
        %580 = vmatpush.bf16.xpose.msra.mxu0 0
        %581 = vmatpush.bf16.xpose.msra.mxu0 0
        %582 = vmatpush.bf16.xpose.msra.mxu0 0
        %583 = vmatpush.bf16.xpose.msra.mxu0 0
        %584 = vmatpush.bf16.xpose.msra.mxu0 0
        %585 = vmatpush.bf16.xpose.msra.mxu0 0
        %586 = vmatpush.bf16.xpose.msra.mxu0 0
        %587 = vmatpush.bf16.xpose.msra.mxu0 %v578
        %588 = vmatmul.bf16.gmra.mxu0 %v575
        %v589 = vpop.f32.mrf.mxu0
        %v590 = vadd.f32 0.0, %v589
        %v591 = vpop.f32.mrf.mxu0
        %v592 = vadd.f32 0.0, %v591
        %593 = vdwg.mxu0
        %v594 = vmul.f32 %v590, 0.17677669
        %v595 = vmul.f32 %v592, 0.17677669
        %s596 = scalar_lea.vmem [#allocation2], 32
        %v597 = vld [vmem:[%s596] sm:$0xff]
        %v598 = vld [vmem:[%s596 + $0x8] sm:$0xff]
        %v599 = vsel %vm358, %v594, -inf
        %600 = vmax.xlane.f32.xlu0 %v599
        %v601 = vpop.xlane.xlu0 %600
        %v602 = vsel %vm358, %v595, -inf
        %603 = vmax.xlane.f32.xlu0 %v602
        %v604 = vpop.xlane.xlu0 %603
        %v605 = vmax.f32 %v597, %v601
        %v606 = vmax.f32 %v598, %v604
        %v607 = vsub.f32 %v597, %v605
        %v608 = vsub.f32 %v598, %v606
        %v609 = vmul.f32 %v607, 1.442695
        %v610 = vpow.pop %v609
        %v611 = vmul.f32 %v608, 1.442695
        %v612 = vpow.pop %v611
        %614 = vset.pattern.permute.xlu0 0
        %615 = vperm.xlu0 %614, %v605
        %v616 = vpop.permute.xlu0 %615
        %619 = vset.pattern.permute.xlu0 0
        %620 = vperm.xlu0 %619, %v606
        %v621 = vpop.permute.xlu0 %620
        %v623 = vsub.f32 %v594, %v616
        %v624 = vsub.f32 %v595, %v621
        %v625 = vmul.f32 %v623, 1.442695
        %v626 = vpow.pop %v625
        %v627 = vmul.f32 %v624, 1.442695
        %v628 = vpow.pop %v627
        %s629 = scalar_lea.vmem [#allocation3], 32
        %v630 = vld [vmem:[%s629] sm:$0xff]
        %v631 = vld [vmem:[%s629 + $0x8] sm:$0xff]
        %v632 = vmul.f32 %v610, %v630
        %v633 = vmul.f32 %v612, %v631
        %v634 = vsel %vm358, %v626, 0.0
        %635 = vadd.xlane.f32.xlu0 %v634
        %v636 = vpop.xlane.xlu0 %635
        %v637 = vsel %vm358, %v628, 0.0
        %638 = vadd.xlane.f32.xlu0 %v637
        %v639 = vpop.xlane.xlu0 %638
        %v640 = vadd.f32 %v632, %v636
        %v641 = vadd.f32 %v633, %v639
        %642 = vst.msk [vmem:[%s629] sm:$0xff] %vm401, %v640
        %643 = vst.msk [vmem:[%s629 + $0x8] sm:$0xff] %vm401, %v641
        %v644 = vld [vmem:[#allocation4] sm:$0xff]
        %v645 = vld [vmem:[#allocation4 + $0x8] sm:$0xff]
        %647 = vset.pattern.permute.xlu0 0
        %648 = vperm.xlu0 %647, %v610
        %v649 = vpop.permute.xlu0 %648
        %652 = vset.pattern.permute.xlu0 0
        %653 = vperm.xlu0 %652, %v612
        %v654 = vpop.permute.xlu0 %653
        %v656 = vmul.f32 %v649, %v644
        %v657 = vmul.f32 %v654, %v645
        %v658 = vpack.c.bf16 %v628, %v626
        %659 = vrot.lane.b32.xlu0 %v421, 64
        %v660 = vpop.permute.xlu0 %659
        %v663 = vsel %vm358, %v658, 0
        %665 = vmatpush.bf16.msra.mxu0 0
        %666 = vmatpush.bf16.msra.mxu0 0
        %667 = vmatpush.bf16.msra.mxu0 0
        %668 = vmatpush.bf16.msra.mxu0 0
        %669 = vmatpush.bf16.msra.mxu0 0
        %670 = vmatpush.bf16.msra.mxu0 0
        %671 = vmatpush.bf16.msra.mxu0 0
        %672 = vmatpush.bf16.msra.mxu0 %v660
        %673 = vmatmul.bf16.gmra.mxu0 %v663
        %v674 = vpop.f32.mrf.mxu0
        %v675 = vadd.f32 0.0, %v674
        %v676 = vpop.f32.mrf.mxu0
        %v677 = vadd.f32 0.0, %v676
        %678 = vdwg.mxu0
        %681 = vrot.lane.b32.xlu0 %v675, 64
        %v682 = vpop.permute.xlu0 %681
        %683 = vrot.lane.b32.xlu0 %v677, 64
        %v684 = vpop.permute.xlu0 %683
        %v687 = vadd.f32 %v656, %v682
        %v688 = vadd.f32 %v657, %v684
        %vm689 = vcmask 785920
        %690 = vst.msk [vmem:[#allocation4] sm:$0xff] %vm689, %v687
        %691 = vst.msk [vmem:[#allocation4 + $0x8] sm:$0xff] %vm689, %v688
        %692 = vst.msk [vmem:[%s596] sm:$0xff] %vm401, %v605
        %693 = vst.msk [vmem:[%s596 + $0x8] sm:$0xff] %vm401, %v606
        %694 = vrot.lane.b32.xlu0 %v327, 32
        %v695 = vpop.permute.xlu0 %694
        %696 = vrot.lane.b32.xlu0 %v332, 32
        %v697 = vpop.permute.xlu0 %696
        %v699 = vsel %vm333, %v695, 0
        %v702 = vsel %vm333, %v697, 0
        %704 = vmatpush.bf16.xpose.msra.mxu0 0
        %705 = vmatpush.bf16.xpose.msra.mxu0 0
        %706 = vmatpush.bf16.xpose.msra.mxu0 0
        %707 = vmatpush.bf16.xpose.msra.mxu0 0
        %708 = vmatpush.bf16.xpose.msra.mxu0 0
        %709 = vmatpush.bf16.xpose.msra.mxu0 0
        %710 = vmatpush.bf16.xpose.msra.mxu0 0
        %711 = vmatpush.bf16.xpose.msra.mxu0 %v702
        %712 = vmatmul.bf16.gmra.mxu0 %v699
        %v713 = vpop.f32.mrf.mxu0
        %v714 = vadd.f32 0.0, %v713
        %v715 = vpop.f32.mrf.mxu0
        %v716 = vadd.f32 0.0, %v715
        %717 = vdwg.mxu0
        %v718 = vmul.f32 %v714, 0.17677669
        %v719 = vmul.f32 %v716, 0.17677669
        %s720 = scalar_lea.vmem [#allocation2], 48
        %v721 = vld [vmem:[%s720] sm:$0xff]
        %v722 = vld [vmem:[%s720 + $0x8] sm:$0xff]
        %v723 = vsel %vm358, %v718, -inf
        %724 = vmax.xlane.f32.xlu0 %v723
        %v725 = vpop.xlane.xlu0 %724
        %v726 = vsel %vm358, %v719, -inf
        %727 = vmax.xlane.f32.xlu0 %v726
        %v728 = vpop.xlane.xlu0 %727
        %v729 = vmax.f32 %v721, %v725
        %v730 = vmax.f32 %v722, %v728
        %v731 = vsub.f32 %v721, %v729
        %v732 = vsub.f32 %v722, %v730
        %v733 = vmul.f32 %v731, 1.442695
        %v734 = vpow.pop %v733
        %v735 = vmul.f32 %v732, 1.442695
        %v736 = vpow.pop %v735
        %738 = vset.pattern.permute.xlu0 0
        %739 = vperm.xlu0 %738, %v729
        %v740 = vpop.permute.xlu0 %739
        %743 = vset.pattern.permute.xlu0 0
        %744 = vperm.xlu0 %743, %v730
        %v745 = vpop.permute.xlu0 %744
        %v747 = vsub.f32 %v718, %v740
        %v748 = vsub.f32 %v719, %v745
        %v749 = vmul.f32 %v747, 1.442695
        %v750 = vpow.pop %v749
        %v751 = vmul.f32 %v748, 1.442695
        %v752 = vpow.pop %v751
        %s753 = scalar_lea.vmem [#allocation3], 48
        %v754 = vld [vmem:[%s753] sm:$0xff]
        %v755 = vld [vmem:[%s753 + $0x8] sm:$0xff]
        %v756 = vmul.f32 %v734, %v754
        %v757 = vmul.f32 %v736, %v755
        %v758 = vsel %vm358, %v750, 0.0
        %759 = vadd.xlane.f32.xlu0 %v758
        %v760 = vpop.xlane.xlu0 %759
        %v761 = vsel %vm358, %v752, 0.0
        %762 = vadd.xlane.f32.xlu0 %v761
        %v763 = vpop.xlane.xlu0 %762
        %v764 = vadd.f32 %v756, %v760
        %v765 = vadd.f32 %v757, %v763
        %766 = vst.msk [vmem:[%s753] sm:$0xff] %vm401, %v764
        %767 = vst.msk [vmem:[%s753 + $0x8] sm:$0xff] %vm401, %v765
        %v768 = vld [vmem:[#allocation4] sm:$0xff]
        %v769 = vld [vmem:[#allocation4 + $0x8] sm:$0xff]
        %771 = vset.pattern.permute.xlu0 0
        %772 = vperm.xlu0 %771, %v734
        %v773 = vpop.permute.xlu0 %772
        %776 = vset.pattern.permute.xlu0 0
        %777 = vperm.xlu0 %776, %v736
        %v778 = vpop.permute.xlu0 %777
        %v780 = vmul.f32 %v773, %v768
        %v781 = vmul.f32 %v778, %v769
        %v782 = vpack.c.bf16 %v752, %v750
        %783 = vrot.lane.b32.xlu0 %v421, 32
        %v784 = vpop.permute.xlu0 %783
        %v787 = vsel %vm358, %v782, 0
        %789 = vmatpush.bf16.msra.mxu0 0
        %790 = vmatpush.bf16.msra.mxu0 0
        %791 = vmatpush.bf16.msra.mxu0 0
        %792 = vmatpush.bf16.msra.mxu0 0
        %793 = vmatpush.bf16.msra.mxu0 0
        %794 = vmatpush.bf16.msra.mxu0 0
        %795 = vmatpush.bf16.msra.mxu0 0
        %796 = vmatpush.bf16.msra.mxu0 %v784
        %797 = vmatmul.bf16.gmra.mxu0 %v787
        %v798 = vpop.f32.mrf.mxu0
        %v799 = vadd.f32 0.0, %v798
        %v800 = vpop.f32.mrf.mxu0
        %v801 = vadd.f32 0.0, %v800
        %802 = vdwg.mxu0
        %805 = vrot.lane.b32.xlu0 %v799, 96
        %v806 = vpop.permute.xlu0 %805
        %807 = vrot.lane.b32.xlu0 %v801, 96
        %v808 = vpop.permute.xlu0 %807
        %v811 = vadd.f32 %v780, %v806
        %v812 = vadd.f32 %v781, %v808
        %vm813 = vcmask 1048320
        %814 = vst.msk [vmem:[#allocation4] sm:$0xff] %vm813, %v811
        %815 = vst.msk [vmem:[#allocation4 + $0x8] sm:$0xff] %vm813, %v812
        %816 = vst.msk [vmem:[%s720] sm:$0xff] %vm401, %v729
        %817 = vst.msk [vmem:[%s720 + $0x8] sm:$0xff] %vm401, %v730
        // Predicated region
        $region112: #{meta_bert_3d.23} parent=98 // pred_check
          %p818 = pneg %p296
        $region113: #{meta_bert_3d.23} parent=98 // pred_check_branch
          %820 = sbr.rel (%p818) target = $region115
        $region114: #{meta_bert_3d.23} parent=98 // pred_region
          %v821 = vld [vmem:[#allocation3] sm:$0xff]
          %v822 = vld [vmem:[#allocation3 + $0x8] sm:$0xff]
          %v823 = vrcp.pop %v821
          %v824 = vmul.f32 %v821, %v823
          %v825 = vsub.f32 1.0, %v824
          %v826 = vmul.f32 %v823, %v825
          %v827 = vadd.f32 %v823, %v826
          %vm828 = vweird.f32 %v821
          %vm829 = vweird.f32 %v823
          %vm830 = vmor %vm828, %vm829
          %v831 = vsel %vm830, %v823, %v827
          %v832 = vand.u32 2147483647, %v821
          %vm833 = vcmp.eq.f32.partialorder %v832, 8.507059e+37
          %v834 = vand.u32 %v821, 2147483648
          %v835 = vor.u32 1.1754944e-38, %v834
          %v836 = vsel %vm833, %v835, %v831
          %v837 = vrcp.pop %v822
          %v838 = vmul.f32 %v822, %v837
          %v839 = vsub.f32 1.0, %v838
          %v840 = vmul.f32 %v837, %v839
          %v841 = vadd.f32 %v837, %v840
          %vm842 = vweird.f32 %v822
          %vm843 = vweird.f32 %v837
          %vm844 = vmor %vm842, %vm843
          %v845 = vsel %vm844, %v837, %v841
          %v846 = vand.u32 2147483647, %v822
          %vm847 = vcmp.eq.f32.partialorder %v846, 8.507059e+37
          %v848 = vand.u32 %v822, 2147483648
          %v849 = vor.u32 1.1754944e-38, %v848
          %v850 = vsel %vm847, %v849, %v845
          %v851 = vld [vmem:[#allocation4] sm:$0xff]
          %v852 = vld [vmem:[#allocation4 + $0x8] sm:$0xff]
          %854 = vset.pattern.permute.xlu0 0
          %855 = vperm.xlu0 %854, %v836
          %v856 = vpop.permute.xlu0 %855
          %859 = vset.pattern.permute.xlu0 0
          %860 = vperm.xlu0 %859, %v850
          %v861 = vpop.permute.xlu0 %860
          %v863 = vmul.f32 %v851, %v856
          %v864 = vmul.f32 %v852, %v861
          %v865 = vpack.c.bf16 %v863, %v863
          %v866 = vpack.c.bf16 %v864, %v864
          %vm867 = vcmask 257024
          %868 = vst.msk [vmem:[%s293] sm:$0xf] %vm867, %v865
          %869 = vst.msk [vmem:[%s293 + $0x4] sm:$0xf] %vm867, %v866
          %v870 = vld [vmem:[%s505] sm:$0xff]
          %v871 = vld [vmem:[%s505 + $0x8] sm:$0xff]
          %v872 = vrcp.pop %v870
          %v873 = vmul.f32 %v870, %v872
          %v874 = vsub.f32 1.0, %v873
          %v875 = vmul.f32 %v872, %v874
          %v876 = vadd.f32 %v872, %v875
          %vm877 = vweird.f32 %v870
          %vm878 = vweird.f32 %v872
          %vm879 = vmor %vm877, %vm878
          %v880 = vsel %vm879, %v872, %v876
          %v881 = vand.u32 2147483647, %v870
          %vm882 = vcmp.eq.f32.partialorder %v881, 8.507059e+37
          %v883 = vand.u32 %v870, 2147483648
          %v884 = vor.u32 1.1754944e-38, %v883
          %v885 = vsel %vm882, %v884, %v880
          %v886 = vrcp.pop %v871
          %v887 = vmul.f32 %v871, %v886
          %v888 = vsub.f32 1.0, %v887
          %v889 = vmul.f32 %v886, %v888
          %v890 = vadd.f32 %v886, %v889
          %vm891 = vweird.f32 %v871
          %vm892 = vweird.f32 %v886
          %vm893 = vmor %vm891, %vm892
          %v894 = vsel %vm893, %v886, %v890
          %v895 = vand.u32 2147483647, %v871
          %vm896 = vcmp.eq.f32.partialorder %v895, 8.507059e+37
          %v897 = vand.u32 %v871, 2147483648
          %v898 = vor.u32 1.1754944e-38, %v897
          %v899 = vsel %vm896, %v898, %v894
          %v900 = vld [vmem:[#allocation4] sm:$0xff]
          %v901 = vld [vmem:[#allocation4 + $0x8] sm:$0xff]
          %903 = vset.pattern.permute.xlu0 0
          %904 = vperm.xlu0 %903, %v885
          %v905 = vpop.permute.xlu0 %904
          %908 = vset.pattern.permute.xlu0 0
          %909 = vperm.xlu0 %908, %v899
          %v910 = vpop.permute.xlu0 %909
          %v912 = vmul.f32 %v900, %v905
          %v913 = vmul.f32 %v901, %v910
          %v914 = vpack.c.bf16 %v912, %v912
          %v915 = vpack.c.bf16 %v913, %v913
          %vm916 = vcmask 519424
          %917 = vst.msk [vmem:[%s293] sm:$0xf] %vm916, %v914
          %918 = vst.msk [vmem:[%s293 + $0x4] sm:$0xf] %vm916, %v915
          %v919 = vld [vmem:[%s629] sm:$0xff]
          %v920 = vld [vmem:[%s629 + $0x8] sm:$0xff]
          %v921 = vrcp.pop %v919
          %v922 = vmul.f32 %v919, %v921
          %v923 = vsub.f32 1.0, %v922
          %v924 = vmul.f32 %v921, %v923
          %v925 = vadd.f32 %v921, %v924
          %vm926 = vweird.f32 %v919
          %vm927 = vweird.f32 %v921
          %vm928 = vmor %vm926, %vm927
          %v929 = vsel %vm928, %v921, %v925
          %v930 = vand.u32 2147483647, %v919
          %vm931 = vcmp.eq.f32.partialorder %v930, 8.507059e+37
          %v932 = vand.u32 %v919, 2147483648
          %v933 = vor.u32 1.1754944e-38, %v932
          %v934 = vsel %vm931, %v933, %v929
          %v935 = vrcp.pop %v920
          %v936 = vmul.f32 %v920, %v935
          %v937 = vsub.f32 1.0, %v936
          %v938 = vmul.f32 %v935, %v937
          %v939 = vadd.f32 %v935, %v938
          %vm940 = vweird.f32 %v920
          %vm941 = vweird.f32 %v935
          %vm942 = vmor %vm940, %vm941
          %v943 = vsel %vm942, %v935, %v939
          %v944 = vand.u32 2147483647, %v920
          %vm945 = vcmp.eq.f32.partialorder %v944, 8.507059e+37
          %v946 = vand.u32 %v920, 2147483648
          %v947 = vor.u32 1.1754944e-38, %v946
          %v948 = vsel %vm945, %v947, %v943
          %v949 = vld [vmem:[#allocation4] sm:$0xff]
          %v950 = vld [vmem:[#allocation4 + $0x8] sm:$0xff]
          %952 = vset.pattern.permute.xlu0 0
          %953 = vperm.xlu0 %952, %v934
          %v954 = vpop.permute.xlu0 %953
          %957 = vset.pattern.permute.xlu0 0
          %958 = vperm.xlu0 %957, %v948
          %v959 = vpop.permute.xlu0 %958
          %v961 = vmul.f32 %v949, %v954
          %v962 = vmul.f32 %v950, %v959
          %v963 = vpack.c.bf16 %v961, %v961
          %v964 = vpack.c.bf16 %v962, %v962
          %vm965 = vcmask 781824
          %966 = vst.msk [vmem:[%s293] sm:$0xf] %vm965, %v963
          %967 = vst.msk [vmem:[%s293 + $0x4] sm:$0xf] %vm965, %v964
          %v968 = vld [vmem:[%s753] sm:$0xff]
          %v969 = vld [vmem:[%s753 + $0x8] sm:$0xff]
          %v970 = vrcp.pop %v968
          %v971 = vmul.f32 %v968, %v970
          %v972 = vsub.f32 1.0, %v971
          %v973 = vmul.f32 %v970, %v972
          %v974 = vadd.f32 %v970, %v973
          %vm975 = vweird.f32 %v968
          %vm976 = vweird.f32 %v970
          %vm977 = vmor %vm975, %vm976
          %v978 = vsel %vm977, %v970, %v974
          %v979 = vand.u32 2147483647, %v968
          %vm980 = vcmp.eq.f32.partialorder %v979, 8.507059e+37
          %v981 = vand.u32 %v968, 2147483648
          %v982 = vor.u32 1.1754944e-38, %v981
          %v983 = vsel %vm980, %v982, %v978
          %v984 = vrcp.pop %v969
          %v985 = vmul.f32 %v969, %v984
          %v986 = vsub.f32 1.0, %v985
          %v987 = vmul.f32 %v984, %v986
          %v988 = vadd.f32 %v984, %v987
          %vm989 = vweird.f32 %v969
          %vm990 = vweird.f32 %v984
          %vm991 = vmor %vm989, %vm990
          %v992 = vsel %vm991, %v984, %v988
          %v993 = vand.u32 2147483647, %v969
          %vm994 = vcmp.eq.f32.partialorder %v993, 8.507059e+37
          %v995 = vand.u32 %v969, 2147483648
          %v996 = vor.u32 1.1754944e-38, %v995
          %v997 = vsel %vm994, %v996, %v992
          %v998 = vld [vmem:[#allocation4] sm:$0xff]
          %v999 = vld [vmem:[#allocation4 + $0x8] sm:$0xff]
          %1001 = vset.pattern.permute.xlu0 0
          %1002 = vperm.xlu0 %1001, %v983
          %v1003 = vpop.permute.xlu0 %1002
          %1006 = vset.pattern.permute.xlu0 0
          %1007 = vperm.xlu0 %1006, %v997
          %v1008 = vpop.permute.xlu0 %1007
          %v1010 = vmul.f32 %v998, %v1003
          %v1011 = vmul.f32 %v999, %v1008
          %v1012 = vpack.c.bf16 %v1010, %v1010
          %v1013 = vpack.c.bf16 %v1011, %v1011
          %vm1014 = vcmask 1044224
          %1015 = vst.msk [vmem:[%s293] sm:$0xf] %vm1014, %v1012
          %1016 = vst.msk [vmem:[%s293 + $0x4] sm:$0xf] %vm1014, %v1013
        $region115: #{meta_bert_3d.23} parent=98 // pred_fallthru
          _
        %s1017 = smul.u32 2, %s19
        %p1018 = scmp.lt.s32.totalorder %s18, 1
        %s1019 = scalar_select %p1018, %s18, 1
        %p1020 = scmp.lt.s32.totalorder %s1017, 1
        %s1021 = scalar_select %p1020, %s1017, 1
        %s1022 = smul.addr %s1019, 2
        %s1023 = sadd.s32 %s1021, %s1022
        %s1024 = smul.addr %s1023, 4
        %s1025 = scalar_lea.vmem %s2, %s1024
        // Predicated region
        $region116: #{meta_bert_3d.23} parent=98 // pred_check
          %p1026 = pneg %p108
        $region117: #{meta_bert_3d.23} parent=98 // pred_check_branch
          %1028 = sbr.rel (%p1026) target = $region119
        $region118: #{meta_bert_3d.23} parent=98 // pred_region
          %s1029 = smul.u32 2, %s19
        $region119: #{meta_bert_3d.23} parent=98 // pred_fallthru
          _
      $region99: #{meta_bert_3d.23} parent=5 // pred_fallthru
        _
      %p1030 = scmp.le.s32.totalorder 2, %s8
      // Predicated region
      $region120: #{meta_bert_3d.23} parent=5 // pred_check
        %p1031 = pneg %p1030
      $region121: #{meta_bert_3d.23} parent=5 // pred_check_branch
        %1033 = sbr.rel (%p1031) target = $region123
      $region122: #{meta_bert_3d.23} parent=5 // pred_region
        %s1034 = ssub.s32 %s8, 2
        // Predicated region
        $region124: #{meta_bert_3d.23} parent=122 // pred_check
          %p1035 = pneg %p114
        $region125: #{meta_bert_3d.23} parent=122 // pred_check_branch
          %1037 = sbr.rel (%p1035) target = $region127
        $region126: #{meta_bert_3d.23} parent=122 // pred_region
          %s1038 = smul.u32 2, %s22
          %p1039 = scmp.lt.s32.totalorder %s21, 1
          %s1040 = scalar_select %p1039, %s21, 1
          %p1041 = scmp.lt.s32.totalorder %s1038, 1
          %s1042 = scalar_select %p1041, %s1038, 1
          %s1043 = smul.addr %s1040, 2
          %s1044 = sadd.s32 %s1042, %s1043
          %s1045 = smul.addr %s1044, 4
          %s1046 = scalar_lea.vmem %s2, %s1045
        $region127: #{meta_bert_3d.23} parent=122 // pred_fallthru
          _
      $region123: #{meta_bert_3d.23} parent=5 // pred_fallthru
        _
    $region6: #{meta_bert_3d.23} parent=1 // loop_footer
      %s12 = sadd.s32 1, %s8
    $region7: #{meta_bert_3d.23} parent=1 // loop_footer_branch
      %7 = sbr.rel target = $region3
    $region8: #{meta_bert_3d.23} parent=1 // loop_exit
      _

// kernel: meta_bert_3d.35
$region0: #{meta_bert_3d.35}
  #allocation0 [shape = 'u32[]', space=smem, size = 0x4, offset = 0x4, fixed_abs, tag = 'smem constant byte address 0x4 - core index']
  #allocation1 [shape = 'u32[72,128]{1,0:T(1,128)}', space=vmem, size = 0x9000, scoped, tag = 'internal scratch']
  #allocation2 [shape = 'f32[32,128]{1,0:T(8,128)}', space=vmem, size = 0x4000, scoped, tag = 'scratch operand']
  %s0 = inlined_call_operand.vmem [shape: bf16[32,128], index: 0, kind: input, shape index: {}]
  %s1 = inlined_call_operand.hbm [shape: bf16[128,128], index: 1, kind: input, shape index: {}]
  %s2 = inlined_call_operand.vmem [shape: f32[1,128], index: 2, kind: input, shape index: {}]
  %s3 = inlined_call_operand.vmem [shape: bf16[32,128], index: 3, kind: output, shape index: {}]
  %s4 = sld [smem:[#allocation0]]
  $region34: #{meta_bert_3d.35} parent=0
    _
  %s6 = ssub.s32 1, %s4
  %s7 = scalar_select 0, %s6, %s4
  $region1: #{meta_bert_3d.35} parent=0
    #allocation3 [shape = 'u8[32768]{0}', space=vmem, size = 0x8000, scoped, tag = 'input window, operand 1, single buffered']
    #allocation4 [shape = 's32[1]{0}', space=sflag, size = 0x4, scoped, tag = 'scoped memory for meta_bert_3d.35']
    %8 = vsyncpa [#allocation4], 0
    // Predicated region
    $region2: #{meta_bert_3d.35} parent=1 // pred_check
      _
    $region3: #{meta_bert_3d.35} parent=1 // pred_check_branch
      %10 = sbr.rel (0) target = $region5
    $region4: #{meta_bert_3d.35} parent=1 // pred_region
      _
    $region5: #{meta_bert_3d.35} parent=1 // pred_fallthru
      _
    // Predicated region
    $region6: #{meta_bert_3d.35} parent=1 // pred_check
      _
    $region7: #{meta_bert_3d.35} parent=1 // pred_check_branch
      %12 = sbr.rel (0) target = $region9
    $region8: #{meta_bert_3d.35} parent=1 // pred_region
      %14 = vsyncadd [#allocation4], 0
      %s15 = sshll.u32 %s1, 4
      %s16 = int_to_ptr.hbm [resolvable:$true] %s15
      %s17 = sshll.u32 [#allocation3], 4
      %s18 = int_to_ptr.vmem [resolvable:$true] %s17
      %23 = dma.hbm_to_vmem [thread:$0]  %s16, 1024, %s18, [#allocation4], 64, 64, 4
    $region9: #{meta_bert_3d.35} parent=1 // pred_fallthru
      _
    // Predicated region
    $region10: #{meta_bert_3d.35} parent=1 // pred_check
      _
    $region11: #{meta_bert_3d.35} parent=1 // pred_check_branch
      %25 = sbr.rel (0) target = $region13
    $region12: #{meta_bert_3d.35} parent=1 // pred_region
      _
    $region13: #{meta_bert_3d.35} parent=1 // pred_fallthru
      _
    // Predicated region
    $region14: #{meta_bert_3d.35} parent=1 // pred_check
      _
    $region15: #{meta_bert_3d.35} parent=1 // pred_check_branch
      %27 = sbr.rel (0) target = $region17
    $region16: #{meta_bert_3d.35} parent=1 // pred_region
      %29 = dma.done [#allocation4], 1024
    $region17: #{meta_bert_3d.35} parent=1 // pred_fallthru
      _
    %p30 = scmp.eq.s32.totalorder 0, 0
    // Predicated region
    $region18: #{meta_bert_3d.35} parent=1 // pred_check
      %p31 = pneg %p30
    $region19: #{meta_bert_3d.35} parent=1 // pred_check_branch
      %33 = sbr.rel (%p31) target = $region21
    $region20: #{meta_bert_3d.35} parent=1 // pred_region
      %34 = vst [vmem:[#allocation2] sm:$0xff] 0.0
      %35 = vst [vmem:[#allocation2 + $0x8] sm:$0xff] 0.0
      %36 = vst [vmem:[#allocation2 + $0x10] sm:$0xff] 0.0
      %37 = vst [vmem:[#allocation2 + $0x18] sm:$0xff] 0.0
    $region21: #{meta_bert_3d.35} parent=1 // pred_fallthru
      _
    %v38 = vld [vmem:[#allocation2] sm:$0xff]
    %v39 = vld [vmem:[#allocation2 + $0x8] sm:$0xff]
    %v40 = vld [vmem:[#allocation2 + $0x10] sm:$0xff]
    %v41 = vld [vmem:[#allocation2 + $0x18] sm:$0xff]
    %v42 = vld [vmem:[%s0] sm:$0xf]
    %v43 = vld [vmem:[%s0 + $0x4] sm:$0xf]
    %v44 = vld [vmem:[%s0 + $0x8] sm:$0xf]
    %v45 = vld [vmem:[%s0 + $0xc] sm:$0xf]
    %v46 = vld [vmem:[#allocation3] sm:$0xf]
    %v47 = vld [vmem:[#allocation3 + $0x4] sm:$0xf]
    %v48 = vld [vmem:[#allocation3 + $0x8] sm:$0xf]
    %v49 = vld [vmem:[#allocation3 + $0xc] sm:$0xf]
    %v50 = vld [vmem:[#allocation3 + $0x10] sm:$0xf]
    %v51 = vld [vmem:[#allocation3 + $0x14] sm:$0xf]
    %v52 = vld [vmem:[#allocation3 + $0x18] sm:$0xf]
    %v53 = vld [vmem:[#allocation3 + $0x1c] sm:$0xf]
    %v54 = vld [vmem:[#allocation3 + $0x20] sm:$0xf]
    %v55 = vld [vmem:[#allocation3 + $0x24] sm:$0xf]
    %v56 = vld [vmem:[#allocation3 + $0x28] sm:$0xf]
    %v57 = vld [vmem:[#allocation3 + $0x2c] sm:$0xf]
    %v58 = vld [vmem:[#allocation3 + $0x30] sm:$0xf]
    %v59 = vld [vmem:[#allocation3 + $0x34] sm:$0xf]
    %v60 = vld [vmem:[#allocation3 + $0x38] sm:$0xf]
    %v61 = vld [vmem:[#allocation3 + $0x3c] sm:$0xf]
    %v66 = vunpack.c.l.b16 %v42
    %v67 = vunpack.c.l.b16 %v43
    %v68 = vunpack.c.l.b16 %v44
    %v69 = vunpack.c.l.b16 %v45
    %v70 = vpack.c.b16 %v67, %v66
    %v71 = vpack.c.b16 %v69, %v68
    %v90 = vunpack.c.l.b16 %v46
    %v91 = vunpack.c.l.b16 %v47
    %v92 = vunpack.c.l.b16 %v48
    %v93 = vunpack.c.l.b16 %v49
    %v94 = vunpack.c.l.b16 %v50
    %v95 = vunpack.c.l.b16 %v51
    %v96 = vunpack.c.l.b16 %v52
    %v97 = vunpack.c.l.b16 %v53
    %v98 = vunpack.c.l.b16 %v54
    %v99 = vunpack.c.l.b16 %v55
    %v100 = vunpack.c.l.b16 %v56
    %v101 = vunpack.c.l.b16 %v57
    %v102 = vunpack.c.l.b16 %v58
    %v103 = vunpack.c.l.b16 %v59
    %v104 = vunpack.c.l.b16 %v60
    %v105 = vunpack.c.l.b16 %v61
    %v106 = vpack.c.b16 %v91, %v90
    %v107 = vpack.c.b16 %v93, %v92
    %v108 = vpack.c.b16 %v95, %v94
    %v109 = vpack.c.b16 %v97, %v96
    %v110 = vpack.c.b16 %v99, %v98
    %v111 = vpack.c.b16 %v101, %v100
    %v112 = vpack.c.b16 %v103, %v102
    %v113 = vpack.c.b16 %v105, %v104
    %122 = vmatpush.bf16.msra.mxu0 %v113
    %123 = vmatpush.bf16.msra.mxu0 %v112
    %124 = vmatpush.bf16.msra.mxu0 %v111
    %125 = vmatpush.bf16.msra.mxu0 %v110
    %126 = vmatpush.bf16.msra.mxu0 %v109
    %127 = vmatpush.bf16.msra.mxu0 %v108
    %128 = vmatpush.bf16.msra.mxu0 %v107
    %129 = vmatpush.bf16.msra.mxu0 %v106
    %130 = vmatmul.bf16.gmra.mxu0 %v70
    %v131 = vpop.f32.mrf.mxu0
    %v132 = vadd.f32 0.0, %v131
    %v133 = vpop.f32.mrf.mxu0
    %v134 = vadd.f32 0.0, %v133
    %135 = vmatmul.bf16.gmra.mxu0 %v71
    %v136 = vpop.f32.mrf.mxu0
    %v137 = vadd.f32 0.0, %v136
    %v138 = vpop.f32.mrf.mxu0
    %v139 = vadd.f32 0.0, %v138
    %140 = vdwg.mxu0
    %v141 = vadd.f32 %v38, %v132
    %v142 = vadd.f32 %v39, %v134
    %v143 = vadd.f32 %v40, %v137
    %v144 = vadd.f32 %v41, %v139
    %145 = vst [vmem:[#allocation2] sm:$0xff] %v141
    %146 = vst [vmem:[#allocation2 + $0x8] sm:$0xff] %v142
    %147 = vst [vmem:[#allocation2 + $0x10] sm:$0xff] %v143
    %148 = vst [vmem:[#allocation2 + $0x18] sm:$0xff] %v144
    // Predicated region
    $region22: #{meta_bert_3d.35} parent=1 // pred_check
      %p149 = pneg %p30
    $region23: #{meta_bert_3d.35} parent=1 // pred_check_branch
      %151 = sbr.rel (%p149) target = $region25
    $region24: #{meta_bert_3d.35} parent=1 // pred_region
      %v152 = vld [vmem:[#allocation2] sm:$0xff]
      %v153 = vld [vmem:[#allocation2 + $0x8] sm:$0xff]
      %v154 = vld [vmem:[#allocation2 + $0x10] sm:$0xff]
      %v155 = vld [vmem:[#allocation2 + $0x18] sm:$0xff]
      %v156 = vld [vmem:[%s2] sm:$0x1]
      %v158 = vperm.slane %v156, 0
      %v160 = vadd.f32 %v152, %v158
      %v161 = vadd.f32 %v153, %v158
      %v162 = vadd.f32 %v154, %v158
      %v163 = vadd.f32 %v155, %v158
      %v164 = vpack.c.bf16 %v160, %v160
      %v165 = vpack.c.bf16 %v161, %v161
      %v166 = vpack.c.bf16 %v162, %v162
      %v167 = vpack.c.bf16 %v163, %v163
      %168 = vst [vmem:[%s3] sm:$0xf] %v164
      %169 = vst [vmem:[%s3 + $0x4] sm:$0xf] %v165
      %170 = vst [vmem:[%s3 + $0x8] sm:$0xf] %v166
      %171 = vst [vmem:[%s3 + $0xc] sm:$0xf] %v167
    $region25: #{meta_bert_3d.35} parent=1 // pred_fallthru
      _
    // Predicated region
    $region26: #{meta_bert_3d.35} parent=1 // pred_check
      _
    $region27: #{meta_bert_3d.35} parent=1 // pred_check_branch
      %173 = sbr.rel (0) target = $region29
    $region28: #{meta_bert_3d.35} parent=1 // pred_region
      _
    $region29: #{meta_bert_3d.35} parent=1 // pred_fallthru
      _
    // Predicated region
    $region30: #{meta_bert_3d.35} parent=1 // pred_check
      _
    $region31: #{meta_bert_3d.35} parent=1 // pred_check_branch
      %175 = sbr.rel (0) target = $region33
    $region32: #{meta_bert_3d.35} parent=1 // pred_region
      _
    $region33: #{meta_bert_3d.35} parent=1 // pred_fallthru
      _
    %176 = vsyncpa [#allocation4], 1

// kernel: meta_bert_3d.25
$region0: #{meta_bert_3d.25}
  #allocation0 [shape = 'u32[]', space=smem, size = 0x4, offset = 0x4, fixed_abs, tag = 'smem constant byte address 0x4 - core index']
  #allocation1 [shape = 'u32[72,128]{1,0:T(1,128)}', space=vmem, size = 0x9000, scoped, tag = 'internal scratch']
  %s0 = inlined_call_operand.vmem [shape: bf16[32,128], index: 0, kind: input, shape index: {}]
  %s1 = inlined_call_operand.hbm [shape: bf16[128,512], index: 1, kind: input, shape index: {}]
  %s2 = inlined_call_operand.vmem [shape: f32[1,512], index: 2, kind: input, shape index: {}]
  %s3 = inlined_call_operand.hbm [shape: bf16[512,128], index: 3, kind: input, shape index: {}]
  %s4 = inlined_call_operand.vmem [shape: f32[1,128], index: 4, kind: input, shape index: {}]
  %s5 = inlined_call_operand.vmem [shape: f32[1,128], index: 5, kind: input, shape index: {}]
  %s6 = inlined_call_operand.vmem [shape: f32[1,128], index: 6, kind: input, shape index: {}]
  %s7 = inlined_call_operand.vmem [shape: bf16[32,128], index: 7, kind: output, shape index: {}]
  %s8 = sld [smem:[#allocation0]]
  $region46: #{meta_bert_3d.25} parent=0
    _
  %s10 = ssub.s32 1, %s8
  %s11 = scalar_select 0, %s10, %s8
  $region1: #{meta_bert_3d.25} parent=0
    #allocation2 [shape = 'u8[131072]{0}', space=vmem, size = 0x20000, scoped, tag = 'input window, operand 1, single buffered']
    #allocation3 [shape = 's32[1]{0}', space=sflag, size = 0x4, scoped, tag = 'scoped memory for meta_bert_3d.25']
    #allocation4 [shape = 'u8[131072]{0}', space=vmem, size = 0x20000, scoped, tag = 'input window, operand 3, single buffered']
    #allocation5 [shape = 's32[1]{0}', space=sflag, size = 0x4, scoped, tag = 'scoped memory for meta_bert_3d.25']
    %12 = vsyncpa [#allocation3], 0
    %13 = vsyncpa [#allocation5], 0
    // Predicated region
    $region2: #{meta_bert_3d.25} parent=1 // pred_check
      _
    $region3: #{meta_bert_3d.25} parent=1 // pred_check_branch
      %15 = sbr.rel (0) target = $region5
    $region4: #{meta_bert_3d.25} parent=1 // pred_region
      _
    $region5: #{meta_bert_3d.25} parent=1 // pred_fallthru
      _
    // Predicated region
    $region6: #{meta_bert_3d.25} parent=1 // pred_check
      _
    $region7: #{meta_bert_3d.25} parent=1 // pred_check_branch
      %17 = sbr.rel (0) target = $region9
    $region8: #{meta_bert_3d.25} parent=1 // pred_region
      %19 = vsyncadd [#allocation3], 0
      %s20 = sshll.u32 %s1, 4
      %s21 = int_to_ptr.hbm [resolvable:$true] %s20
      %s22 = sshll.u32 [#allocation2], 4
      %s23 = int_to_ptr.vmem [resolvable:$true] %s22
      %28 = dma.hbm_to_vmem [thread:$0]  %s21, 4096, %s23, [#allocation3], 256, 256, 16
    $region9: #{meta_bert_3d.25} parent=1 // pred_fallthru
      _
    // Predicated region
    $region10: #{meta_bert_3d.25} parent=1 // pred_check
      _
    $region11: #{meta_bert_3d.25} parent=1 // pred_check_branch
      %30 = sbr.rel (0) target = $region13
    $region12: #{meta_bert_3d.25} parent=1 // pred_region
      _
    $region13: #{meta_bert_3d.25} parent=1 // pred_fallthru
      _
    // Predicated region
    $region14: #{meta_bert_3d.25} parent=1 // pred_check
      _
    $region15: #{meta_bert_3d.25} parent=1 // pred_check_branch
      %32 = sbr.rel (0) target = $region17
    $region16: #{meta_bert_3d.25} parent=1 // pred_region
      %34 = vsyncadd [#allocation5], 0
      %s35 = sshll.u32 %s3, 4
      %s36 = int_to_ptr.hbm [resolvable:$true] %s35
      %s37 = sshll.u32 [#allocation4], 4
      %s38 = int_to_ptr.vmem [resolvable:$true] %s37
      %43 = dma.hbm_to_vmem [thread:$0]  %s36, 4096, %s38, [#allocation5], 64, 64, 4
    $region17: #{meta_bert_3d.25} parent=1 // pred_fallthru
      _
    // Predicated region
    $region18: #{meta_bert_3d.25} parent=1 // pred_check
      _
    $region19: #{meta_bert_3d.25} parent=1 // pred_check_branch
      %45 = sbr.rel (0) target = $region21
    $region20: #{meta_bert_3d.25} parent=1 // pred_region
      _
    $region21: #{meta_bert_3d.25} parent=1 // pred_fallthru
      _
    // Predicated region
    $region22: #{meta_bert_3d.25} parent=1 // pred_check
      _
    $region23: #{meta_bert_3d.25} parent=1 // pred_check_branch
      %47 = sbr.rel (0) target = $region25
    $region24: #{meta_bert_3d.25} parent=1 // pred_region
      _
    $region25: #{meta_bert_3d.25} parent=1 // pred_fallthru
      _
    // Predicated region
    $region26: #{meta_bert_3d.25} parent=1 // pred_check
      _
    $region27: #{meta_bert_3d.25} parent=1 // pred_check_branch
      %49 = sbr.rel (0) target = $region29
    $region28: #{meta_bert_3d.25} parent=1 // pred_region
      _
    $region29: #{meta_bert_3d.25} parent=1 // pred_fallthru
      _
    // Predicated region
    $region30: #{meta_bert_3d.25} parent=1 // pred_check
      _
    $region31: #{meta_bert_3d.25} parent=1 // pred_check_branch
      %51 = sbr.rel (0) target = $region33
    $region32: #{meta_bert_3d.25} parent=1 // pred_region
      %53 = dma.done [#allocation3], 4096
    $region33: #{meta_bert_3d.25} parent=1 // pred_fallthru
      _
    // Predicated region
    $region34: #{meta_bert_3d.25} parent=1 // pred_check
      _
    $region35: #{meta_bert_3d.25} parent=1 // pred_check_branch
      %55 = sbr.rel (0) target = $region37
    $region36: #{meta_bert_3d.25} parent=1 // pred_region
      %57 = dma.done [#allocation5], 4096
    $region37: #{meta_bert_3d.25} parent=1 // pred_fallthru
      _
    %v58 = vld [vmem:[%s0] sm:$0xf]
    %v59 = vld [vmem:[%s0 + $0x4] sm:$0xf]
    %v60 = vld [vmem:[%s0 + $0x8] sm:$0xf]
    %v61 = vld [vmem:[%s0 + $0xc] sm:$0xf]
    %v62 = vld [vmem:[#allocation2] sm:$0xff]
    %v63 = vld [vmem:[#allocation2 + $0x8] sm:$0xff]
    %v64 = vld [vmem:[#allocation2 + $0x10] sm:$0xff]
    %v65 = vld [vmem:[#allocation2 + $0x18] sm:$0xff]
    %v66 = vld [vmem:[#allocation2 + $0x20] sm:$0xff]
    %v67 = vld [vmem:[#allocation2 + $0x28] sm:$0xff]
    %v68 = vld [vmem:[#allocation2 + $0x30] sm:$0xff]
    %v69 = vld [vmem:[#allocation2 + $0x38] sm:$0xff]
    %v70 = vld [vmem:[#allocation2 + $0x40] sm:$0xff]
    %v71 = vld [vmem:[#allocation2 + $0x48] sm:$0xff]
    %v72 = vld [vmem:[#allocation2 + $0x50] sm:$0xff]
    %v73 = vld [vmem:[#allocation2 + $0x58] sm:$0xff]
    %v74 = vld [vmem:[#allocation2 + $0x60] sm:$0xff]
    %v75 = vld [vmem:[#allocation2 + $0x68] sm:$0xff]
    %v76 = vld [vmem:[#allocation2 + $0x70] sm:$0xff]
    %v77 = vld [vmem:[#allocation2 + $0x78] sm:$0xff]
    %v78 = vld [vmem:[#allocation2 + $0x80] sm:$0xff]
    %v79 = vld [vmem:[#allocation2 + $0x88] sm:$0xff]
    %v80 = vld [vmem:[#allocation2 + $0x90] sm:$0xff]
    %v81 = vld [vmem:[#allocation2 + $0x98] sm:$0xff]
    %v82 = vld [vmem:[#allocation2 + $0xa0] sm:$0xff]
    %v83 = vld [vmem:[#allocation2 + $0xa8] sm:$0xff]
    %v84 = vld [vmem:[#allocation2 + $0xb0] sm:$0xff]
    %v85 = vld [vmem:[#allocation2 + $0xb8] sm:$0xff]
    %v86 = vld [vmem:[#allocation2 + $0xc0] sm:$0xff]
    %v87 = vld [vmem:[#allocation2 + $0xc8] sm:$0xff]
    %v88 = vld [vmem:[#allocation2 + $0xd0] sm:$0xff]
    %v89 = vld [vmem:[#allocation2 + $0xd8] sm:$0xff]
    %v90 = vld [vmem:[#allocation2 + $0xe0] sm:$0xff]
    %v91 = vld [vmem:[#allocation2 + $0xe8] sm:$0xff]
    %v92 = vld [vmem:[#allocation2 + $0xf0] sm:$0xff]
    %v93 = vld [vmem:[#allocation2 + $0xf8] sm:$0xff]
    %v94 = vld [vmem:[%s2] sm:$0xf]
    %v96 = vperm.slane %v94, 0
    %v97 = vperm.slane %v94, 1
    %v98 = vperm.slane %v94, 2
    %v99 = vperm.slane %v94, 3
    %v108 = vunpack.c.l.b16 %v58
    %v109 = vunpack.c.l.b16 %v59
    %v110 = vunpack.c.l.b16 %v60
    %v111 = vunpack.c.l.b16 %v61
    %v112 = vpack.c.b16 %v109, %v108
    %v113 = vpack.c.b16 %v111, %v110
    %v148 = vunpack.c.l.b16 %v62
    %v149 = vunpack.c.h.b16 %v62
    %v150 = vunpack.c.l.b16 %v63
    %v151 = vunpack.c.h.b16 %v63
    %v152 = vunpack.c.l.b16 %v64
    %v153 = vunpack.c.h.b16 %v64
    %v154 = vunpack.c.l.b16 %v65
    %v155 = vunpack.c.h.b16 %v65
    %v156 = vunpack.c.l.b16 %v66
    %v157 = vunpack.c.h.b16 %v66
    %v158 = vunpack.c.l.b16 %v67
    %v159 = vunpack.c.h.b16 %v67
    %v160 = vunpack.c.l.b16 %v68
    %v161 = vunpack.c.h.b16 %v68
    %v162 = vunpack.c.l.b16 %v69
    %v163 = vunpack.c.h.b16 %v69
    %v164 = vunpack.c.l.b16 %v70
    %v165 = vunpack.c.h.b16 %v70
    %v166 = vunpack.c.l.b16 %v71
    %v167 = vunpack.c.h.b16 %v71
    %v168 = vunpack.c.l.b16 %v72
    %v169 = vunpack.c.h.b16 %v72
    %v170 = vunpack.c.l.b16 %v73
    %v171 = vunpack.c.h.b16 %v73
    %v172 = vunpack.c.l.b16 %v74
    %v173 = vunpack.c.h.b16 %v74
    %v174 = vunpack.c.l.b16 %v75
    %v175 = vunpack.c.h.b16 %v75
    %v176 = vunpack.c.l.b16 %v76
    %v177 = vunpack.c.h.b16 %v76
    %v178 = vunpack.c.l.b16 %v77
    %v179 = vunpack.c.h.b16 %v77
    %v180 = vunpack.c.l.b16 %v78
    %v181 = vunpack.c.h.b16 %v78
    %v182 = vunpack.c.l.b16 %v79
    %v183 = vunpack.c.h.b16 %v79
    %v184 = vunpack.c.l.b16 %v80
    %v185 = vunpack.c.h.b16 %v80
    %v186 = vunpack.c.l.b16 %v81
    %v187 = vunpack.c.h.b16 %v81
    %v188 = vunpack.c.l.b16 %v82
    %v189 = vunpack.c.h.b16 %v82
    %v190 = vunpack.c.l.b16 %v83
    %v191 = vunpack.c.h.b16 %v83
    %v192 = vunpack.c.l.b16 %v84
    %v193 = vunpack.c.h.b16 %v84
    %v194 = vunpack.c.l.b16 %v85
    %v195 = vunpack.c.h.b16 %v85
    %v196 = vunpack.c.l.b16 %v86
    %v197 = vunpack.c.h.b16 %v86
    %v198 = vunpack.c.l.b16 %v87
    %v199 = vunpack.c.h.b16 %v87
    %v200 = vunpack.c.l.b16 %v88
    %v201 = vunpack.c.h.b16 %v88
    %v202 = vunpack.c.l.b16 %v89
    %v203 = vunpack.c.h.b16 %v89
    %v204 = vunpack.c.l.b16 %v90
    %v205 = vunpack.c.h.b16 %v90
    %v206 = vunpack.c.l.b16 %v91
    %v207 = vunpack.c.h.b16 %v91
    %v208 = vunpack.c.l.b16 %v92
    %v209 = vunpack.c.h.b16 %v92
    %v210 = vunpack.c.l.b16 %v93
    %v211 = vunpack.c.h.b16 %v93
    %v212 = vpack.c.b16 %v152, %v148
    %v213 = vpack.c.b16 %v153, %v149
    %v214 = vpack.c.b16 %v154, %v150
    %v215 = vpack.c.b16 %v155, %v151
    %v216 = vpack.c.b16 %v160, %v156
    %v217 = vpack.c.b16 %v161, %v157
    %v218 = vpack.c.b16 %v162, %v158
    %v219 = vpack.c.b16 %v163, %v159
    %v220 = vpack.c.b16 %v168, %v164
    %v221 = vpack.c.b16 %v169, %v165
    %v222 = vpack.c.b16 %v170, %v166
    %v223 = vpack.c.b16 %v171, %v167
    %v224 = vpack.c.b16 %v176, %v172
    %v225 = vpack.c.b16 %v177, %v173
    %v226 = vpack.c.b16 %v178, %v174
    %v227 = vpack.c.b16 %v179, %v175
    %v228 = vpack.c.b16 %v184, %v180
    %v229 = vpack.c.b16 %v185, %v181
    %v230 = vpack.c.b16 %v186, %v182
    %v231 = vpack.c.b16 %v187, %v183
    %v232 = vpack.c.b16 %v192, %v188
    %v233 = vpack.c.b16 %v193, %v189
    %v234 = vpack.c.b16 %v194, %v190
    %v235 = vpack.c.b16 %v195, %v191
    %v236 = vpack.c.b16 %v200, %v196
    %v237 = vpack.c.b16 %v201, %v197
    %v238 = vpack.c.b16 %v202, %v198
    %v239 = vpack.c.b16 %v203, %v199
    %v240 = vpack.c.b16 %v208, %v204
    %v241 = vpack.c.b16 %v209, %v205
    %v242 = vpack.c.b16 %v210, %v206
    %v243 = vpack.c.b16 %v211, %v207
    %276 = vmatpush.bf16.msra.mxu0 %v240
    %277 = vmatpush.bf16.msra.mxu0 %v236
    %278 = vmatpush.bf16.msra.mxu0 %v232
    %279 = vmatpush.bf16.msra.mxu0 %v228
    %280 = vmatpush.bf16.msra.mxu0 %v224
    %281 = vmatpush.bf16.msra.mxu0 %v220
    %282 = vmatpush.bf16.msra.mxu0 %v216
    %283 = vmatpush.bf16.msra.mxu0 %v212
    %284 = vmatmul.bf16.gmra.mxu0 %v112
    %v285 = vpop.f32.mrf.mxu0
    %v286 = vadd.f32 %v96, %v285
    %v287 = vpop.f32.mrf.mxu0
    %v288 = vadd.f32 %v96, %v287
    %289 = vmatmul.bf16.gmra.mxu0 %v113
    %v290 = vpop.f32.mrf.mxu0
    %v291 = vadd.f32 %v96, %v290
    %v292 = vpop.f32.mrf.mxu0
    %v293 = vadd.f32 %v96, %v292
    %294 = vdwg.mxu0
    %295 = vmatpush.bf16.msra.mxu0 %v241
    %296 = vmatpush.bf16.msra.mxu0 %v237
    %297 = vmatpush.bf16.msra.mxu0 %v233
    %298 = vmatpush.bf16.msra.mxu0 %v229
    %299 = vmatpush.bf16.msra.mxu0 %v225
    %300 = vmatpush.bf16.msra.mxu0 %v221
    %301 = vmatpush.bf16.msra.mxu0 %v217
    %302 = vmatpush.bf16.msra.mxu0 %v213
    %303 = vmatmul.bf16.gmra.mxu0 %v112
    %v304 = vpop.f32.mrf.mxu0
    %v305 = vadd.f32 %v97, %v304
    %v306 = vpop.f32.mrf.mxu0
    %v307 = vadd.f32 %v97, %v306
    %308 = vmatmul.bf16.gmra.mxu0 %v113
    %v309 = vpop.f32.mrf.mxu0
    %v310 = vadd.f32 %v97, %v309
    %v311 = vpop.f32.mrf.mxu0
    %v312 = vadd.f32 %v97, %v311
    %313 = vdwg.mxu0
    %314 = vmatpush.bf16.msra.mxu0 %v242
    %315 = vmatpush.bf16.msra.mxu0 %v238
    %316 = vmatpush.bf16.msra.mxu0 %v234
    %317 = vmatpush.bf16.msra.mxu0 %v230
    %318 = vmatpush.bf16.msra.mxu0 %v226
    %319 = vmatpush.bf16.msra.mxu0 %v222
    %320 = vmatpush.bf16.msra.mxu0 %v218
    %321 = vmatpush.bf16.msra.mxu0 %v214
    %322 = vmatmul.bf16.gmra.mxu0 %v112
    %v323 = vpop.f32.mrf.mxu0
    %v324 = vadd.f32 %v98, %v323
    %v325 = vpop.f32.mrf.mxu0
    %v326 = vadd.f32 %v98, %v325
    %327 = vmatmul.bf16.gmra.mxu0 %v113
    %v328 = vpop.f32.mrf.mxu0
    %v329 = vadd.f32 %v98, %v328
    %v330 = vpop.f32.mrf.mxu0
    %v331 = vadd.f32 %v98, %v330
    %332 = vdwg.mxu0
    %333 = vmatpush.bf16.msra.mxu0 %v243
    %334 = vmatpush.bf16.msra.mxu0 %v239
    %335 = vmatpush.bf16.msra.mxu0 %v235
    %336 = vmatpush.bf16.msra.mxu0 %v231
    %337 = vmatpush.bf16.msra.mxu0 %v227
    %338 = vmatpush.bf16.msra.mxu0 %v223
    %339 = vmatpush.bf16.msra.mxu0 %v219
    %340 = vmatpush.bf16.msra.mxu0 %v215
    %341 = vmatmul.bf16.gmra.mxu0 %v112
    %v342 = vpop.f32.mrf.mxu0
    %v343 = vadd.f32 %v99, %v342
    %v344 = vpop.f32.mrf.mxu0
    %v345 = vadd.f32 %v99, %v344
    %346 = vmatmul.bf16.gmra.mxu0 %v113
    %v347 = vpop.f32.mrf.mxu0
    %v348 = vadd.f32 %v99, %v347
    %v349 = vpop.f32.mrf.mxu0
    %v350 = vadd.f32 %v99, %v349
    %351 = vdwg.mxu0
    %v352 = vmax.f32 %v286, 0.0
    %v353 = vmax.f32 %v305, 0.0
    %v354 = vmax.f32 %v324, 0.0
    %v355 = vmax.f32 %v343, 0.0
    %v356 = vmax.f32 %v288, 0.0
    %v357 = vmax.f32 %v307, 0.0
    %v358 = vmax.f32 %v326, 0.0
    %v359 = vmax.f32 %v345, 0.0
    %v360 = vmax.f32 %v291, 0.0
    %v361 = vmax.f32 %v310, 0.0
    %v362 = vmax.f32 %v329, 0.0
    %v363 = vmax.f32 %v348, 0.0
    %v364 = vmax.f32 %v293, 0.0
    %v365 = vmax.f32 %v312, 0.0
    %v366 = vmax.f32 %v331, 0.0
    %v367 = vmax.f32 %v350, 0.0
    %v368 = vpack.c.bf16 %v356, %v352
    %v369 = vpack.c.bf16 %v357, %v353
    %v370 = vpack.c.bf16 %v358, %v354
    %v371 = vpack.c.bf16 %v359, %v355
    %v372 = vpack.c.bf16 %v364, %v360
    %v373 = vpack.c.bf16 %v365, %v361
    %v374 = vpack.c.bf16 %v366, %v362
    %v375 = vpack.c.bf16 %v367, %v363
    %v376 = vld [vmem:[#allocation4] sm:$0xf]
    %v377 = vld [vmem:[#allocation4 + $0x4] sm:$0xf]
    %v378 = vld [vmem:[#allocation4 + $0x8] sm:$0xf]
    %v379 = vld [vmem:[#allocation4 + $0xc] sm:$0xf]
    %v380 = vld [vmem:[#allocation4 + $0x10] sm:$0xf]
    %v381 = vld [vmem:[#allocation4 + $0x14] sm:$0xf]
    %v382 = vld [vmem:[#allocation4 + $0x18] sm:$0xf]
    %v383 = vld [vmem:[#allocation4 + $0x1c] sm:$0xf]
    %v384 = vld [vmem:[#allocation4 + $0x20] sm:$0xf]
    %v385 = vld [vmem:[#allocation4 + $0x24] sm:$0xf]
    %v386 = vld [vmem:[#allocation4 + $0x28] sm:$0xf]
    %v387 = vld [vmem:[#allocation4 + $0x2c] sm:$0xf]
    %v388 = vld [vmem:[#allocation4 + $0x30] sm:$0xf]
    %v389 = vld [vmem:[#allocation4 + $0x34] sm:$0xf]
    %v390 = vld [vmem:[#allocation4 + $0x38] sm:$0xf]
    %v391 = vld [vmem:[#allocation4 + $0x3c] sm:$0xf]
    %v392 = vld [vmem:[#allocation4 + $0x40] sm:$0xf]
    %v393 = vld [vmem:[#allocation4 + $0x44] sm:$0xf]
    %v394 = vld [vmem:[#allocation4 + $0x48] sm:$0xf]
    %v395 = vld [vmem:[#allocation4 + $0x4c] sm:$0xf]
    %v396 = vld [vmem:[#allocation4 + $0x50] sm:$0xf]
    %v397 = vld [vmem:[#allocation4 + $0x54] sm:$0xf]
    %v398 = vld [vmem:[#allocation4 + $0x58] sm:$0xf]
    %v399 = vld [vmem:[#allocation4 + $0x5c] sm:$0xf]
    %v400 = vld [vmem:[#allocation4 + $0x60] sm:$0xf]
    %v401 = vld [vmem:[#allocation4 + $0x64] sm:$0xf]
    %v402 = vld [vmem:[#allocation4 + $0x68] sm:$0xf]
    %v403 = vld [vmem:[#allocation4 + $0x6c] sm:$0xf]
    %v404 = vld [vmem:[#allocation4 + $0x70] sm:$0xf]
    %v405 = vld [vmem:[#allocation4 + $0x74] sm:$0xf]
    %v406 = vld [vmem:[#allocation4 + $0x78] sm:$0xf]
    %v407 = vld [vmem:[#allocation4 + $0x7c] sm:$0xf]
    %v408 = vld [vmem:[#allocation4 + $0x80] sm:$0xf]
    %v409 = vld [vmem:[#allocation4 + $0x84] sm:$0xf]
    %v410 = vld [vmem:[#allocation4 + $0x88] sm:$0xf]
    %v411 = vld [vmem:[#allocation4 + $0x8c] sm:$0xf]
    %v412 = vld [vmem:[#allocation4 + $0x90] sm:$0xf]
    %v413 = vld [vmem:[#allocation4 + $0x94] sm:$0xf]
    %v414 = vld [vmem:[#allocation4 + $0x98] sm:$0xf]
    %v415 = vld [vmem:[#allocation4 + $0x9c] sm:$0xf]
    %v416 = vld [vmem:[#allocation4 + $0xa0] sm:$0xf]
    %v417 = vld [vmem:[#allocation4 + $0xa4] sm:$0xf]
    %v418 = vld [vmem:[#allocation4 + $0xa8] sm:$0xf]
    %v419 = vld [vmem:[#allocation4 + $0xac] sm:$0xf]
    %v420 = vld [vmem:[#allocation4 + $0xb0] sm:$0xf]
    %v421 = vld [vmem:[#allocation4 + $0xb4] sm:$0xf]
    %v422 = vld [vmem:[#allocation4 + $0xb8] sm:$0xf]
    %v423 = vld [vmem:[#allocation4 + $0xbc] sm:$0xf]
    %v424 = vld [vmem:[#allocation4 + $0xc0] sm:$0xf]
    %v425 = vld [vmem:[#allocation4 + $0xc4] sm:$0xf]
    %v426 = vld [vmem:[#allocation4 + $0xc8] sm:$0xf]
    %v427 = vld [vmem:[#allocation4 + $0xcc] sm:$0xf]
    %v428 = vld [vmem:[#allocation4 + $0xd0] sm:$0xf]
    %v429 = vld [vmem:[#allocation4 + $0xd4] sm:$0xf]
    %v430 = vld [vmem:[#allocation4 + $0xd8] sm:$0xf]
    %v431 = vld [vmem:[#allocation4 + $0xdc] sm:$0xf]
    %v432 = vld [vmem:[#allocation4 + $0xe0] sm:$0xf]
    %v433 = vld [vmem:[#allocation4 + $0xe4] sm:$0xf]
    %v434 = vld [vmem:[#allocation4 + $0xe8] sm:$0xf]
    %v435 = vld [vmem:[#allocation4 + $0xec] sm:$0xf]
    %v436 = vld [vmem:[#allocation4 + $0xf0] sm:$0xf]
    %v437 = vld [vmem:[#allocation4 + $0xf4] sm:$0xf]
    %v438 = vld [vmem:[#allocation4 + $0xf8] sm:$0xf]
    %v439 = vld [vmem:[#allocation4 + $0xfc] sm:$0xf]
    %v440 = vld [vmem:[%s4] sm:$0x1]
    %v442 = vperm.slane %v440, 0
    %v508 = vunpack.c.l.b16 %v376
    %v509 = vunpack.c.l.b16 %v377
    %v510 = vunpack.c.l.b16 %v378
    %v511 = vunpack.c.l.b16 %v379
    %v512 = vunpack.c.l.b16 %v380
    %v513 = vunpack.c.l.b16 %v381
    %v514 = vunpack.c.l.b16 %v382
    %v515 = vunpack.c.l.b16 %v383
    %v516 = vunpack.c.l.b16 %v384
    %v517 = vunpack.c.l.b16 %v385
    %v518 = vunpack.c.l.b16 %v386
    %v519 = vunpack.c.l.b16 %v387
    %v520 = vunpack.c.l.b16 %v388
    %v521 = vunpack.c.l.b16 %v389
    %v522 = vunpack.c.l.b16 %v390
    %v523 = vunpack.c.l.b16 %v391
    %v524 = vunpack.c.l.b16 %v392
    %v525 = vunpack.c.l.b16 %v393
    %v526 = vunpack.c.l.b16 %v394
    %v527 = vunpack.c.l.b16 %v395
    %v528 = vunpack.c.l.b16 %v396
    %v529 = vunpack.c.l.b16 %v397
    %v530 = vunpack.c.l.b16 %v398
    %v531 = vunpack.c.l.b16 %v399
    %v532 = vunpack.c.l.b16 %v400
    %v533 = vunpack.c.l.b16 %v401
    %v534 = vunpack.c.l.b16 %v402
    %v535 = vunpack.c.l.b16 %v403
    %v536 = vunpack.c.l.b16 %v404
    %v537 = vunpack.c.l.b16 %v405
    %v538 = vunpack.c.l.b16 %v406
    %v539 = vunpack.c.l.b16 %v407
    %v540 = vunpack.c.l.b16 %v408
    %v541 = vunpack.c.l.b16 %v409
    %v542 = vunpack.c.l.b16 %v410
    %v543 = vunpack.c.l.b16 %v411
    %v544 = vunpack.c.l.b16 %v412
    %v545 = vunpack.c.l.b16 %v413
    %v546 = vunpack.c.l.b16 %v414
    %v547 = vunpack.c.l.b16 %v415
    %v548 = vunpack.c.l.b16 %v416
    %v549 = vunpack.c.l.b16 %v417
    %v550 = vunpack.c.l.b16 %v418
    %v551 = vunpack.c.l.b16 %v419
    %v552 = vunpack.c.l.b16 %v420
    %v553 = vunpack.c.l.b16 %v421
    %v554 = vunpack.c.l.b16 %v422
    %v555 = vunpack.c.l.b16 %v423
    %v556 = vunpack.c.l.b16 %v424
    %v557 = vunpack.c.l.b16 %v425
    %v558 = vunpack.c.l.b16 %v426
    %v559 = vunpack.c.l.b16 %v427
    %v560 = vunpack.c.l.b16 %v428
    %v561 = vunpack.c.l.b16 %v429
    %v562 = vunpack.c.l.b16 %v430
    %v563 = vunpack.c.l.b16 %v431
    %v564 = vunpack.c.l.b16 %v432
    %v565 = vunpack.c.l.b16 %v433
    %v566 = vunpack.c.l.b16 %v434
    %v567 = vunpack.c.l.b16 %v435
    %v568 = vunpack.c.l.b16 %v436
    %v569 = vunpack.c.l.b16 %v437
    %v570 = vunpack.c.l.b16 %v438
    %v571 = vunpack.c.l.b16 %v439
    %v572 = vpack.c.b16 %v509, %v508
    %v573 = vpack.c.b16 %v511, %v510
    %v574 = vpack.c.b16 %v513, %v512
    %v575 = vpack.c.b16 %v515, %v514
    %v576 = vpack.c.b16 %v517, %v516
    %v577 = vpack.c.b16 %v519, %v518
    %v578 = vpack.c.b16 %v521, %v520
    %v579 = vpack.c.b16 %v523, %v522
    %v580 = vpack.c.b16 %v525, %v524
    %v581 = vpack.c.b16 %v527, %v526
    %v582 = vpack.c.b16 %v529, %v528
    %v583 = vpack.c.b16 %v531, %v530
    %v584 = vpack.c.b16 %v533, %v532
    %v585 = vpack.c.b16 %v535, %v534
    %v586 = vpack.c.b16 %v537, %v536
    %v587 = vpack.c.b16 %v539, %v538
    %v588 = vpack.c.b16 %v541, %v540
    %v589 = vpack.c.b16 %v543, %v542
    %v590 = vpack.c.b16 %v545, %v544
    %v591 = vpack.c.b16 %v547, %v546
    %v592 = vpack.c.b16 %v549, %v548
    %v593 = vpack.c.b16 %v551, %v550
    %v594 = vpack.c.b16 %v553, %v552
    %v595 = vpack.c.b16 %v555, %v554
    %v596 = vpack.c.b16 %v557, %v556
    %v597 = vpack.c.b16 %v559, %v558
    %v598 = vpack.c.b16 %v561, %v560
    %v599 = vpack.c.b16 %v563, %v562
    %v600 = vpack.c.b16 %v565, %v564
    %v601 = vpack.c.b16 %v567, %v566
    %v602 = vpack.c.b16 %v569, %v568
    %v603 = vpack.c.b16 %v571, %v570
    %636 = vmatpush.bf16.msra.mxu0 %v579
    %637 = vmatpush.bf16.msra.mxu0 %v578
    %638 = vmatpush.bf16.msra.mxu0 %v577
    %639 = vmatpush.bf16.msra.mxu0 %v576
    %640 = vmatpush.bf16.msra.mxu0 %v575
    %641 = vmatpush.bf16.msra.mxu0 %v574
    %642 = vmatpush.bf16.msra.mxu0 %v573
    %643 = vmatpush.bf16.msra.mxu0 %v572
    %644 = vmatmul.bf16.gmra.mxu0 %v368
    %v645 = vpop.f32.mrf.mxu0
    %v646 = vadd.f32 %v442, %v645
    %v647 = vpop.f32.mrf.mxu0
    %v648 = vadd.f32 %v442, %v647
    %649 = vmatmul.bf16.gmra.mxu0 %v372
    %v650 = vpop.f32.mrf.mxu0
    %v651 = vadd.f32 %v442, %v650
    %v652 = vpop.f32.mrf.mxu0
    %v653 = vadd.f32 %v442, %v652
    %654 = vdwg.mxu0
    %655 = vmatpush.bf16.msra.mxu0 %v587
    %656 = vmatpush.bf16.msra.mxu0 %v586
    %657 = vmatpush.bf16.msra.mxu0 %v585
    %658 = vmatpush.bf16.msra.mxu0 %v584
    %659 = vmatpush.bf16.msra.mxu0 %v583
    %660 = vmatpush.bf16.msra.mxu0 %v582
    %661 = vmatpush.bf16.msra.mxu0 %v581
    %662 = vmatpush.bf16.msra.mxu0 %v580
    %663 = vmatmul.bf16.gmra.mxu0 %v369
    %v664 = vpop.f32.mrf.mxu0
    %v665 = vadd.f32 %v646, %v664
    %v666 = vpop.f32.mrf.mxu0
    %v667 = vadd.f32 %v648, %v666
    %668 = vmatmul.bf16.gmra.mxu0 %v373
    %v669 = vpop.f32.mrf.mxu0
    %v670 = vadd.f32 %v651, %v669
    %v671 = vpop.f32.mrf.mxu0
    %v672 = vadd.f32 %v653, %v671
    %673 = vdwg.mxu0
    %674 = vmatpush.bf16.msra.mxu0 %v595
    %675 = vmatpush.bf16.msra.mxu0 %v594
    %676 = vmatpush.bf16.msra.mxu0 %v593
    %677 = vmatpush.bf16.msra.mxu0 %v592
    %678 = vmatpush.bf16.msra.mxu0 %v591
    %679 = vmatpush.bf16.msra.mxu0 %v590
    %680 = vmatpush.bf16.msra.mxu0 %v589
    %681 = vmatpush.bf16.msra.mxu0 %v588
    %682 = vmatmul.bf16.gmra.mxu0 %v370
    %v683 = vpop.f32.mrf.mxu0
    %v684 = vadd.f32 %v665, %v683
    %v685 = vpop.f32.mrf.mxu0
    %v686 = vadd.f32 %v667, %v685
    %687 = vmatmul.bf16.gmra.mxu0 %v374
    %v688 = vpop.f32.mrf.mxu0
    %v689 = vadd.f32 %v670, %v688
    %v690 = vpop.f32.mrf.mxu0
    %v691 = vadd.f32 %v672, %v690
    %692 = vdwg.mxu0
    %693 = vmatpush.bf16.msra.mxu0 %v603
    %694 = vmatpush.bf16.msra.mxu0 %v602
    %695 = vmatpush.bf16.msra.mxu0 %v601
    %696 = vmatpush.bf16.msra.mxu0 %v600
    %697 = vmatpush.bf16.msra.mxu0 %v599
    %698 = vmatpush.bf16.msra.mxu0 %v598
    %699 = vmatpush.bf16.msra.mxu0 %v597
    %700 = vmatpush.bf16.msra.mxu0 %v596
    %701 = vmatmul.bf16.gmra.mxu0 %v371
    %v702 = vpop.f32.mrf.mxu0
    %v703 = vadd.f32 %v684, %v702
    %v704 = vpop.f32.mrf.mxu0
    %v705 = vadd.f32 %v686, %v704
    %706 = vmatmul.bf16.gmra.mxu0 %v375
    %v707 = vpop.f32.mrf.mxu0
    %v708 = vadd.f32 %v689, %v707
    %v709 = vpop.f32.mrf.mxu0
    %v710 = vadd.f32 %v691, %v709
    %711 = vdwg.mxu0
    %v712 = vunpack.c.l.bf16 %v58
    %v713 = vunpack.c.l.bf16 %v59
    %v714 = vunpack.c.l.bf16 %v60
    %v715 = vunpack.c.l.bf16 %v61
    %v716 = vadd.f32 %v703, %v712
    %v717 = vadd.f32 %v705, %v713
    %v718 = vadd.f32 %v708, %v714
    %v719 = vadd.f32 %v710, %v715
    %720 = vadd.xlane.f32.xlu0 %v716
    %v721 = vpop.xlane.xlu0 %720
    %722 = vadd.xlane.f32.xlu0 %v717
    %v723 = vpop.xlane.xlu0 %722
    %724 = vadd.xlane.f32.xlu0 %v718
    %v725 = vpop.xlane.xlu0 %724
    %726 = vadd.xlane.f32.xlu0 %v719
    %v727 = vpop.xlane.xlu0 %726
    %v728 = vrcp.pop 128.0
    %v729 = vmul.f32 128.0, %v728
    %v730 = vsub.f32 1.0, %v729
    %v731 = vmul.f32 %v728, %v730
    %v732 = vadd.f32 %v728, %v731
    %vm733 = vweird.f32 %v728
    %v734 = vsel %vm733, %v728, %v732
    %v735 = vmul.f32 %v721, %v734
    %v736 = vmul.f32 %v723, %v734
    %v737 = vmul.f32 %v725, %v734
    %v738 = vmul.f32 %v727, %v734
    %v739 = vsub.f32 %v716, %v735
    %v740 = vsub.f32 %v717, %v736
    %v741 = vsub.f32 %v718, %v737
    %v742 = vsub.f32 %v719, %v738
    %v743 = vmul.f32 %v739, %v739
    %v744 = vmul.f32 %v740, %v740
    %v745 = vmul.f32 %v741, %v741
    %v746 = vmul.f32 %v742, %v742
    %747 = vadd.xlane.f32.xlu0 %v743
    %v748 = vpop.xlane.xlu0 %747
    %749 = vadd.xlane.f32.xlu0 %v744
    %v750 = vpop.xlane.xlu0 %749
    %751 = vadd.xlane.f32.xlu0 %v745
    %v752 = vpop.xlane.xlu0 %751
    %753 = vadd.xlane.f32.xlu0 %v746
    %v754 = vpop.xlane.xlu0 %753
    %v755 = vmul.f32 %v748, %v734
    %v756 = vmul.f32 %v750, %v734
    %v757 = vmul.f32 %v752, %v734
    %v758 = vmul.f32 %v754, %v734
    %v759 = vadd.f32 %v755, 1e-05
    %v760 = vadd.f32 %v756, 1e-05
    %v761 = vadd.f32 %v757, 1e-05
    %v762 = vadd.f32 %v758, 1e-05
    %v763 = vrsqrt.pop %v759
    %v764 = vmul.f32 %v763, %v759
    %v765 = vmul.f32 %v764, %v763
    %v766 = vmul.f32 0.5, %v765
    %v767 = vsub.f32 1.5, %v766
    %v768 = vmul.f32 %v763, %v767
    %vm769 = vweird.f32 %v759
    %vm770 = vweird.f32 %v763
    %vm771 = vmor %vm769, %vm770
    %v772 = vsel %vm771, %v763, %v768
    %v773 = vrsqrt.pop %v760
    %v774 = vmul.f32 %v773, %v760
    %v775 = vmul.f32 %v774, %v773
    %v776 = vmul.f32 0.5, %v775
    %v777 = vsub.f32 1.5, %v776
    %v778 = vmul.f32 %v773, %v777
    %vm779 = vweird.f32 %v760
    %vm780 = vweird.f32 %v773
    %vm781 = vmor %vm779, %vm780
    %v782 = vsel %vm781, %v773, %v778
    %v783 = vrsqrt.pop %v761
    %v784 = vmul.f32 %v783, %v761
    %v785 = vmul.f32 %v784, %v783
    %v786 = vmul.f32 0.5, %v785
    %v787 = vsub.f32 1.5, %v786
    %v788 = vmul.f32 %v783, %v787
    %vm789 = vweird.f32 %v761
    %vm790 = vweird.f32 %v783
    %vm791 = vmor %vm789, %vm790
    %v792 = vsel %vm791, %v783, %v788
    %v793 = vrsqrt.pop %v762
    %v794 = vmul.f32 %v793, %v762
    %v795 = vmul.f32 %v794, %v793
    %v796 = vmul.f32 0.5, %v795
    %v797 = vsub.f32 1.5, %v796
    %v798 = vmul.f32 %v793, %v797
    %vm799 = vweird.f32 %v762
    %vm800 = vweird.f32 %v793
    %vm801 = vmor %vm799, %vm800
    %v802 = vsel %vm801, %v793, %v798
    %v803 = vmul.f32 %v739, %v772
    %v804 = vmul.f32 %v740, %v782
    %v805 = vmul.f32 %v741, %v792
    %v806 = vmul.f32 %v742, %v802
    %v807 = vld [vmem:[%s5] sm:$0x1]
    %v809 = vperm.slane %v807, 0
    %v811 = vmul.f32 %v803, %v809
    %v812 = vmul.f32 %v804, %v809
    %v813 = vmul.f32 %v805, %v809
    %v814 = vmul.f32 %v806, %v809
    %v815 = vld [vmem:[%s6] sm:$0x1]
    %v817 = vperm.slane %v815, 0
    %v819 = vadd.f32 %v811, %v817
    %v820 = vadd.f32 %v812, %v817
    %v821 = vadd.f32 %v813, %v817
    %v822 = vadd.f32 %v814, %v817
    %v823 = vpack.c.bf16 %v819, %v819
    %v824 = vpack.c.bf16 %v820, %v820
    %v825 = vpack.c.bf16 %v821, %v821
    %v826 = vpack.c.bf16 %v822, %v822
    %827 = vst [vmem:[%s7] sm:$0xf] %v823
    %828 = vst [vmem:[%s7 + $0x4] sm:$0xf] %v824
    %829 = vst [vmem:[%s7 + $0x8] sm:$0xf] %v825
    %830 = vst [vmem:[%s7 + $0xc] sm:$0xf] %v826
    // Predicated region
    $region38: #{meta_bert_3d.25} parent=1 // pred_check
      _
    $region39: #{meta_bert_3d.25} parent=1 // pred_check_branch
      %832 = sbr.rel (0) target = $region41
    $region40: #{meta_bert_3d.25} parent=1 // pred_region
      _
    $region41: #{meta_bert_3d.25} parent=1 // pred_fallthru
      _
    // Predicated region
    $region42: #{meta_bert_3d.25} parent=1 // pred_check
      _
    $region43: #{meta_bert_3d.25} parent=1 // pred_check_branch
      %834 = sbr.rel (0) target = $region45
    $region44: #{meta_bert_3d.25} parent=1 // pred_region
      _
    $region45: #{meta_bert_3d.25} parent=1 // pred_fallthru
      _
    %835 = vsyncpa [#allocation3], 1
    %836 = vsyncpa [#allocation5], 1

// kernel: meta_bert_3d.38
$region0: #{meta_bert_3d.38}
  #allocation0 [shape = 'u32[]', space=smem, size = 0x4, offset = 0x4, fixed_abs, tag = 'smem constant byte address 0x4 - core index']
  #allocation1 [shape = 'u32[72,128]{1,0:T(1,128)}', space=vmem, size = 0x9000, scoped, tag = 'internal scratch']
  #allocation2 [shape = 'f32[32,128]{1,0:T(8,128)}', space=vmem, size = 0x4000, scoped, tag = 'scratch operand']
  %s0 = inlined_call_operand.vmem [shape: bf16[32,128], index: 0, kind: input, shape index: {}]
  %s1 = inlined_call_operand.vmem [shape: bf16[128,256], index: 1, kind: input, shape index: {}]
  %s2 = inlined_call_operand.vmem [shape: f32[1,256], index: 2, kind: input, shape index: {}]
  %s3 = inlined_call_operand.vmem [shape: bf16[32,256], index: 3, kind: output, shape index: {}]
  %s4 = sld [smem:[#allocation0]]
  $region131: #{meta_bert_3d.38} parent=0
    _
  %s6 = ssub.s32 1, %s4
  %s7 = scalar_select 0, %s6, %s4
  $region1: #{meta_bert_3d.38} parent=0
    #allocation3 [shape = 'u8[65536]{0}', space=vmem, size = 0x10000, scoped, tag = 'input window, operand 1']
    #allocation4 [shape = 'u8[16384]{0}', space=vmem, size = 0x4000, scoped, tag = 'output window, operand 0']
    loop: start=0, step=1, limit=4
    $region2: #{meta_bert_3d.38} parent=1 // loop_pre_header
      _
    $region3: #{meta_bert_3d.38} parent=1 // loop_header
      %s9 = sphi 0, %s13
      %p10 = scmp.ge.s32.totalorder %s9, 4
      %s16 = sphi 0, %s35
      %s17 = sphi 0, %s31
      %s18 = sphi 0, %s27
      %s19 = sphi 0, %s16
      %s20 = sphi 0, %s17
      %s21 = sphi 0, %s18
      %s22 = sphi 0, %s19
      %s23 = sphi 0, %s20
      %s24 = sphi 0, %s21
      %s40 = sphi 0, %s42
      %s43 = sphi 0, %s40
      %s44 = sphi 0, %s43
      %s60 = sphi 0, %s44
      %s68 = sphi 0, %s70
      %s71 = sphi 0, %s68
      %s72 = sphi 0, %s71
      %s88 = sphi 0, %s72
      %s94 = sphi 0, %s96
      %s97 = sphi 0, %s94
      %s98 = sphi 0, %s97
      %s114 = sphi 0, %s98
      %s122 = sphi 0, %s124
      %s125 = sphi 0, %s122
      %s126 = sphi 0, %s125
      %s142 = sphi 0, %s126
    $region4: #{meta_bert_3d.38} parent=1 // loop_header_branch
      %12 = sbr.rel (%p10) target = $region8
    $region5: #{meta_bert_3d.38} parent=1 // loop_body
      %s14 = ssub.s32 %s9, 1
      %s15 = ssub.s32 %s9, 2
      %s25 = sadd.s32 1, %s18
      %p26 = scmp.ge.s32.totalorder %s25, 1
      %s27 = scalar_select %p26, 0, %s25
      %s28 = sadd.s32 1, %s17
      %s29 = scalar_select %p26, %s28, %s17
      %p30 = scmp.ge.s32.totalorder %s29, 2
      %s31 = scalar_select %p30, 0, %s29
      %s32 = sadd.s32 1, %s16
      %s33 = scalar_select %p30, %s32, %s16
      %p34 = scmp.ge.s32.totalorder %s33, 1
      %s35 = scalar_select %p34, 0, %s33
      %s36 = ssub.s32 %s16, %s35
      %s37 = ssub.s32 %s18, %s27
      %s38 = sor.u32 %s36, %s37
      %p39 = scmp.eq.s32.totalorder %s38, 0
      %s41 = sadd.s32 %s40, 1
      %s42 = scalar_select %p39, %s40, %s41
      %p45 = pneg %p39
      %p46 = scmp.eq.s32.totalorder %s9, 1
      %p47 = por %p45, %p46
      %p48 = scmp.ne.s32.totalorder %s40, %s43
      %p49 = scmp.eq.s32.totalorder %s9, 0
      %p50 = por %p48, %p49
      %p51 = scmp.ne.s32.totalorder %s40, %s43
      %p52 = scmp.eq.s32.totalorder %s14, 1
      %p53 = por %p51, %p52
      %p54 = scmp.ne.s32.totalorder %s43, %s44
      %p55 = scmp.eq.s32.totalorder %s14, 0
      %p56 = por %p54, %p55
      %p57 = scmp.ne.s32.totalorder %s43, %s44
      %p58 = scmp.eq.s32.totalorder %s15, 1
      %p59 = por %p57, %p58
      %p61 = scmp.ne.s32.totalorder %s44, %s60
      %p62 = scmp.eq.s32.totalorder %s15, 0
      %p63 = por %p61, %p62
      %s64 = ssub.s32 %s18, %s27
      %s65 = ssub.s32 %s17, %s31
      %s66 = sor.u32 %s64, %s65
      %p67 = scmp.eq.s32.totalorder %s66, 0
      %s69 = sadd.s32 %s68, 1
      %s70 = scalar_select %p67, %s68, %s69
      %p73 = pneg %p67
      %p74 = scmp.eq.s32.totalorder %s9, 1
      %p75 = por %p73, %p74
      %p76 = scmp.ne.s32.totalorder %s68, %s71
      %p77 = scmp.eq.s32.totalorder %s9, 0
      %p78 = por %p76, %p77
      %p79 = scmp.ne.s32.totalorder %s68, %s71
      %p80 = scmp.eq.s32.totalorder %s14, 1
      %p81 = por %p79, %p80
      %p82 = scmp.ne.s32.totalorder %s71, %s72
      %p83 = scmp.eq.s32.totalorder %s14, 0
      %p84 = por %p82, %p83
      %p85 = scmp.ne.s32.totalorder %s71, %s72
      %p86 = scmp.eq.s32.totalorder %s15, 1
      %p87 = por %p85, %p86
      %p89 = scmp.ne.s32.totalorder %s72, %s88
      %p90 = scmp.eq.s32.totalorder %s15, 0
      %p91 = por %p89, %p90
      %s92 = ssub.s32 %s17, %s31
      %p93 = scmp.eq.s32.totalorder %s92, 0
      %s95 = sadd.s32 %s94, 1
      %s96 = scalar_select %p93, %s94, %s95
      %p99 = pneg %p93
      %p100 = scmp.eq.s32.totalorder %s9, 1
      %p101 = por %p99, %p100
      %p102 = scmp.ne.s32.totalorder %s94, %s97
      %p103 = scmp.eq.s32.totalorder %s9, 0
      %p104 = por %p102, %p103
      %p105 = scmp.ne.s32.totalorder %s94, %s97
      %p106 = scmp.eq.s32.totalorder %s14, 1
      %p107 = por %p105, %p106
      %p108 = scmp.ne.s32.totalorder %s97, %s98
      %p109 = scmp.eq.s32.totalorder %s14, 0
      %p110 = por %p108, %p109
      %p111 = scmp.ne.s32.totalorder %s97, %s98
      %p112 = scmp.eq.s32.totalorder %s15, 1
      %p113 = por %p111, %p112
      %p115 = scmp.ne.s32.totalorder %s98, %s114
      %p116 = scmp.eq.s32.totalorder %s15, 0
      %p117 = por %p115, %p116
      %s118 = ssub.s32 %s16, %s35
      %s119 = ssub.s32 %s17, %s31
      %s120 = sor.u32 %s118, %s119
      %p121 = scmp.eq.s32.totalorder %s120, 0
      %s123 = sadd.s32 %s122, 1
      %s124 = scalar_select %p121, %s122, %s123
      %p127 = pneg %p121
      %p128 = scmp.eq.s32.totalorder %s9, 1
      %p129 = por %p127, %p128
      %p130 = scmp.ne.s32.totalorder %s122, %s125
      %p131 = scmp.eq.s32.totalorder %s9, 0
      %p132 = por %p130, %p131
      %p133 = scmp.ne.s32.totalorder %s122, %s125
      %p134 = scmp.eq.s32.totalorder %s14, 1
      %p135 = por %p133, %p134
      %p136 = scmp.ne.s32.totalorder %s125, %s126
      %p137 = scmp.eq.s32.totalorder %s14, 0
      %p138 = por %p136, %p137
      %p139 = scmp.ne.s32.totalorder %s125, %s126
      %p140 = scmp.eq.s32.totalorder %s15, 1
      %p141 = por %p139, %p140
      %p143 = scmp.ne.s32.totalorder %s126, %s142
      %p144 = scmp.eq.s32.totalorder %s15, 0
      %p145 = por %p143, %p144
      %p146 = scmp.le.s32.totalorder 1, %s9
      %p147 = scmp.lt.s32.totalorder %s9, 3
      %p148 = pnand %p146, %p147
      %p149 = pneg %p148
      // Predicated region
      $region9: #{meta_bert_3d.38} parent=5 // pred_check
        _
      $region10: #{meta_bert_3d.38} parent=5 // pred_check_branch
        %151 = sbr.rel (%p148) target = $region12
      $region11: #{meta_bert_3d.38} parent=5 // pred_region
        %s152 = ssub.s32 %s9, 1
        // Predicated region
        $region13: #{meta_bert_3d.38} parent=11 // pred_check
          %p153 = pneg %p56
        $region14: #{meta_bert_3d.38} parent=11 // pred_check_branch
          %155 = sbr.rel (%p153) target = $region16
        $region15: #{meta_bert_3d.38} parent=11 // pred_region
          %s156 = smul.u32 4, %s19
          %p157 = scmp.lt.s32.totalorder %s156, 3
          %s158 = scalar_select %p157, %s156, 3
          %p159 = scmp.lt.s32.totalorder %s21, 0
          %s160 = scalar_select %p159, %s21, 0
          %s161 = sadd.s32 %s160, %s158
          %s162 = smul.addr %s161, 4
          %s163 = scalar_lea.vmem %s0, %s162
          %s164 = smul.u32 4, %s19
        $region16: #{meta_bert_3d.38} parent=11 // pred_fallthru
          _
      $region12: #{meta_bert_3d.38} parent=5 // pred_fallthru
        _
      %p165 = scmp.lt.s32.totalorder %s9, 2
      // Predicated region
      $region17: #{meta_bert_3d.38} parent=5 // pred_check
        %p166 = pneg %p165
      $region18: #{meta_bert_3d.38} parent=5 // pred_check_branch
        %168 = sbr.rel (%p166) target = $region20
      $region19: #{meta_bert_3d.38} parent=5 // pred_region
        // Predicated region
        $region21: #{meta_bert_3d.38} parent=19 // pred_check
          %p169 = pneg %p78
        $region22: #{meta_bert_3d.38} parent=19 // pred_check_branch
          %171 = sbr.rel (%p169) target = $region24
        $region23: #{meta_bert_3d.38} parent=19 // pred_region
          %s172 = sand.u32 %s68, 1
          %s173 = sand.u32 %s68, 1
          %s174 = smul.addr %s173, 64
          %s175 = scalar_lea.vmem [#allocation3], %s174
          %s176 = smul.u32 16, %s18
          %s177 = smul.addr %s176, 2
          %s178 = sadd.s32 %s17, %s177
          %s179 = smul.addr %s178, 4
          %s180 = scalar_lea.vmem %s1, %s179
          // Predicated region
          $region25: #{meta_bert_3d.38} parent=23 // pred_check
            _
          $region26: #{meta_bert_3d.38} parent=23 // pred_check_branch
            %182 = sbr.rel (0) target = $region28
          $region27: #{meta_bert_3d.38} parent=23 // pred_region
            // Predicated region
            $region29: #{meta_bert_3d.38} parent=27 // pred_check
              _
            $region30: #{meta_bert_3d.38} parent=27 // pred_check_branch
              %184 = sbr.rel target = $region32
            $region31: #{meta_bert_3d.38} parent=27 // pred_region
              // Predicated region
              $region44: #{meta_bert_3d.38} parent=31 // pred_check
                _
              $region45: #{meta_bert_3d.38} parent=31 // pred_check_branch
                %230 = sbr.rel (0) target = $region47
              $region46: #{meta_bert_3d.38} parent=31 // pred_region
                loop: start=0, step=1, limit=1
                $region48: #{meta_bert_3d.38} parent=46 // loop_pre_header
                  _
                $region49: #{meta_bert_3d.38} parent=46 // loop_header
                  %s232 = sphi 0, %s236
                  %p233 = scmp.ge.s32.totalorder %s232, 1
                  %s237 = sphi %s180, %s180
                  %s238 = sphi %s175, %s175
                $region50: #{meta_bert_3d.38} parent=46 // loop_header_branch
                  %235 = sbr.rel (%p233) target = $region54
                $region51: #{meta_bert_3d.38} parent=46 // loop_body
                  _
                $region52: #{meta_bert_3d.38} parent=46 // loop_footer
                  %s236 = sadd.s32 1, %s232
                $region53: #{meta_bert_3d.38} parent=46 // loop_footer_branch
                  %231 = sbr.rel target = $region49
                $region54: #{meta_bert_3d.38} parent=46 // loop_exit
                  _
                %s240 = ssub.s32 16, 1
                loop: start=0, step=1, limit=1
                $region55: #{meta_bert_3d.38} parent=46 // loop_pre_header
                  _
                $region56: #{meta_bert_3d.38} parent=46 // loop_header
                  %s242 = sphi 0, %s246
                  %p243 = scmp.ge.s32.totalorder %s242, 1
                  %s247 = sphi %s180, %s180
                  %s248 = sphi %s175, %s175
                $region57: #{meta_bert_3d.38} parent=46 // loop_header_branch
                  %245 = sbr.rel (%p243) target = $region61
                $region58: #{meta_bert_3d.38} parent=46 // loop_body
                  %v249 = vld [vmem:[%s247] sm:%s240]
                  %250 = vst [vmem:[%s248] sm:%s240] %v249
                  %v251 = vld [vmem:[%s247 + $0x8] sm:%s240]
                  %252 = vst [vmem:[%s248 + $0x4] sm:%s240] %v251
                  %v253 = vld [vmem:[%s247 + $0x10] sm:%s240]
                  %254 = vst [vmem:[%s248 + $0x8] sm:%s240] %v253
                  %v255 = vld [vmem:[%s247 + $0x18] sm:%s240]
                  %256 = vst [vmem:[%s248 + $0xc] sm:%s240] %v255
                  %v257 = vld [vmem:[%s247 + $0x20] sm:%s240]
                  %258 = vst [vmem:[%s248 + $0x10] sm:%s240] %v257
                  %v259 = vld [vmem:[%s247 + $0x28] sm:%s240]
                  %260 = vst [vmem:[%s248 + $0x14] sm:%s240] %v259
                  %v261 = vld [vmem:[%s247 + $0x30] sm:%s240]
                  %262 = vst [vmem:[%s248 + $0x18] sm:%s240] %v261
                  %v263 = vld [vmem:[%s247 + $0x38] sm:%s240]
                  %264 = vst [vmem:[%s248 + $0x1c] sm:%s240] %v263
                  %v265 = vld [vmem:[%s247 + $0x40] sm:%s240]
                  %266 = vst [vmem:[%s248 + $0x20] sm:%s240] %v265
                  %v267 = vld [vmem:[%s247 + $0x48] sm:%s240]
                  %268 = vst [vmem:[%s248 + $0x24] sm:%s240] %v267
                  %v269 = vld [vmem:[%s247 + $0x50] sm:%s240]
                  %270 = vst [vmem:[%s248 + $0x28] sm:%s240] %v269
                  %v271 = vld [vmem:[%s247 + $0x58] sm:%s240]
                  %272 = vst [vmem:[%s248 + $0x2c] sm:%s240] %v271
                  %v273 = vld [vmem:[%s247 + $0x60] sm:%s240]
                  %274 = vst [vmem:[%s248 + $0x30] sm:%s240] %v273
                  %v275 = vld [vmem:[%s247 + $0x68] sm:%s240]
                  %276 = vst [vmem:[%s248 + $0x34] sm:%s240] %v275
                  %v277 = vld [vmem:[%s247 + $0x70] sm:%s240]
                  %278 = vst [vmem:[%s248 + $0x38] sm:%s240] %v277
                  %v279 = vld [vmem:[%s247 + $0x78] sm:%s240]
                  %280 = vst [vmem:[%s248 + $0x3c] sm:%s240] %v279
                $region59: #{meta_bert_3d.38} parent=46 // loop_footer
                  %s246 = sadd.s32 1, %s242
                $region60: #{meta_bert_3d.38} parent=46 // loop_footer_branch
                  %241 = sbr.rel target = $region56
                $region61: #{meta_bert_3d.38} parent=46 // loop_exit
                  _
              $region47: #{meta_bert_3d.38} parent=31 // pred_fallthru
                _
            $region32: #{meta_bert_3d.38} parent=27 // pred_fallthru
              _
            // Predicated region
            $region33: #{meta_bert_3d.38} parent=27 // pred_check
              _
            $region34: #{meta_bert_3d.38} parent=27 // pred_check_branch
              %186 = sbr.rel (0) target = $region36
            $region35: #{meta_bert_3d.38} parent=27 // pred_region
              %s188 = ssub.s32 16, 1
              loop: start=0, step=1, limit=1
              $region37: #{meta_bert_3d.38} parent=35 // loop_pre_header
                _
              $region38: #{meta_bert_3d.38} parent=35 // loop_header
                %s190 = sphi 0, %s194
                %p191 = scmp.ge.s32.totalorder %s190, 1
                %s195 = sphi %s180, %s180
                %s196 = sphi %s175, %s175
              $region39: #{meta_bert_3d.38} parent=35 // loop_header_branch
                %193 = sbr.rel (%p191) target = $region43
              $region40: #{meta_bert_3d.38} parent=35 // loop_body
                %v197 = vld [vmem:[%s195] sm:%s188]
                %198 = vst [vmem:[%s196] sm:%s188] %v197
                %v199 = vld [vmem:[%s195 + $0x8] sm:%s188]
                %200 = vst [vmem:[%s196 + $0x4] sm:%s188] %v199
                %v201 = vld [vmem:[%s195 + $0x10] sm:%s188]
                %202 = vst [vmem:[%s196 + $0x8] sm:%s188] %v201
                %v203 = vld [vmem:[%s195 + $0x18] sm:%s188]
                %204 = vst [vmem:[%s196 + $0xc] sm:%s188] %v203
                %v205 = vld [vmem:[%s195 + $0x20] sm:%s188]
                %206 = vst [vmem:[%s196 + $0x10] sm:%s188] %v205
                %v207 = vld [vmem:[%s195 + $0x28] sm:%s188]
                %208 = vst [vmem:[%s196 + $0x14] sm:%s188] %v207
                %v209 = vld [vmem:[%s195 + $0x30] sm:%s188]
                %210 = vst [vmem:[%s196 + $0x18] sm:%s188] %v209
                %v211 = vld [vmem:[%s195 + $0x38] sm:%s188]
                %212 = vst [vmem:[%s196 + $0x1c] sm:%s188] %v211
                %v213 = vld [vmem:[%s195 + $0x40] sm:%s188]
                %214 = vst [vmem:[%s196 + $0x20] sm:%s188] %v213
                %v215 = vld [vmem:[%s195 + $0x48] sm:%s188]
                %216 = vst [vmem:[%s196 + $0x24] sm:%s188] %v215
                %v217 = vld [vmem:[%s195 + $0x50] sm:%s188]
                %218 = vst [vmem:[%s196 + $0x28] sm:%s188] %v217
                %v219 = vld [vmem:[%s195 + $0x58] sm:%s188]
                %220 = vst [vmem:[%s196 + $0x2c] sm:%s188] %v219
                %v221 = vld [vmem:[%s195 + $0x60] sm:%s188]
                %222 = vst [vmem:[%s196 + $0x30] sm:%s188] %v221
                %v223 = vld [vmem:[%s195 + $0x68] sm:%s188]
                %224 = vst [vmem:[%s196 + $0x34] sm:%s188] %v223
                %v225 = vld [vmem:[%s195 + $0x70] sm:%s188]
                %226 = vst [vmem:[%s196 + $0x38] sm:%s188] %v225
                %v227 = vld [vmem:[%s195 + $0x78] sm:%s188]
                %228 = vst [vmem:[%s196 + $0x3c] sm:%s188] %v227
              $region41: #{meta_bert_3d.38} parent=35 // loop_footer
                %s194 = sadd.s32 1, %s190
              $region42: #{meta_bert_3d.38} parent=35 // loop_footer_branch
                %189 = sbr.rel target = $region38
              $region43: #{meta_bert_3d.38} parent=35 // loop_exit
                _
            $region36: #{meta_bert_3d.38} parent=27 // pred_fallthru
              _
          $region28: #{meta_bert_3d.38} parent=23 // pred_fallthru
            _
          %281 = vnop
        $region24: #{meta_bert_3d.38} parent=19 // pred_fallthru
          _
        // Predicated region
        $region62: #{meta_bert_3d.38} parent=19 // pred_check
          %p282 = pneg %p104
        $region63: #{meta_bert_3d.38} parent=19 // pred_check_branch
          %284 = sbr.rel (%p282) target = $region65
        $region64: #{meta_bert_3d.38} parent=19 // pred_region
          %p285 = scmp.lt.s32.totalorder %s17, 1
          %s286 = scalar_select %p285, %s17, 1
          %s287 = scalar_lea.vmem %s2, %s286
        $region65: #{meta_bert_3d.38} parent=19 // pred_fallthru
          _
      $region20: #{meta_bert_3d.38} parent=5 // pred_fallthru
        _
      %p288 = scmp.le.s32.totalorder 1, %s9
      %p289 = scmp.lt.s32.totalorder %s9, 3
      %p290 = pnand %p288, %p289
      %p291 = pneg %p290
      // Predicated region
      $region66: #{meta_bert_3d.38} parent=5 // pred_check
        _
      $region67: #{meta_bert_3d.38} parent=5 // pred_check_branch
        %293 = sbr.rel (%p290) target = $region69
      $region68: #{meta_bert_3d.38} parent=5 // pred_region
        %s294 = ssub.s32 %s9, 1
        %s295 = sand.u32 %s71, 1
        %s296 = sand.u32 %s71, 1
        %s297 = smul.addr %s296, 64
        %s298 = scalar_lea.vmem [#allocation3], %s297
        // Predicated region
        $region70: #{meta_bert_3d.38} parent=68 // pred_check
          %p299 = pneg %p84
        $region71: #{meta_bert_3d.38} parent=68 // pred_check_branch
          %301 = sbr.rel (%p299) target = $region73
        $region72: #{meta_bert_3d.38} parent=68 // pred_region
          _
        $region73: #{meta_bert_3d.38} parent=68 // pred_fallthru
          _
        %s302 = smul.u32 4, %s19
        %p303 = scmp.lt.s32.totalorder %s302, 3
        %s304 = scalar_select %p303, %s302, 3
        %p305 = scmp.lt.s32.totalorder %s21, 0
        %s306 = scalar_select %p305, %s21, 0
        %s307 = sadd.s32 %s306, %s304
        %s308 = smul.addr %s307, 4
        %s309 = scalar_lea.vmem %s0, %s308
        %p310 = pneg %p56
        %p311 = pneg %p53
        %s312 = sand.u32 %s71, 1
        %s313 = sand.u32 %s71, 1
        %s314 = smul.addr %s313, 64
        %s315 = scalar_lea.vmem [#allocation3], %s314
        %p316 = pneg %p84
        %p317 = pneg %p81
        %p318 = scmp.lt.s32.totalorder %s20, 1
        %s319 = scalar_select %p318, %s20, 1
        %s320 = scalar_lea.vmem %s2, %s319
        %p321 = pneg %p110
        %p322 = pneg %p107
        %p323 = pneg %p138
        %p324 = pneg %p135
        %s325 = sand.u32 %s125, 1
        %s326 = sand.u32 %s125, 1
        %s327 = smul.addr %s326, 16
        %s328 = scalar_lea.vmem [#allocation4], %s327
        %s329 = smul.u32 4, %s19
        %p330 = scmp.lt.s32.totalorder %s329, 3
        %s331 = scalar_select %p330, %s329, 3
        %p332 = scmp.lt.s32.totalorder %s21, 0
        %s333 = scalar_select %p332, %s21, 0
        %s334 = sadd.s32 %s333, %s331
        %s335 = smul.addr %s334, 4
        %s336 = scalar_lea.vmem %s0, %s335
        %s337 = smul.u32 4, %s19
        %s338 = smul.u32 16, %s21
        %p339 = scmp.lt.s32.totalorder %s20, 1
        %s340 = scalar_select %p339, %s20, 1
        %s341 = scalar_lea.vmem %s2, %s340
        %s342 = smul.u32 4, %s19
        %p343 = scmp.eq.s32.totalorder %s21, 0
        // Predicated region
        $region74: #{meta_bert_3d.38} parent=68 // pred_check
          %p344 = pneg %p343
        $region75: #{meta_bert_3d.38} parent=68 // pred_check_branch
          %346 = sbr.rel (%p344) target = $region77
        $region76: #{meta_bert_3d.38} parent=68 // pred_region
          %347 = vst [vmem:[#allocation2] sm:$0xff] 0.0
          %348 = vst [vmem:[#allocation2 + $0x8] sm:$0xff] 0.0
          %349 = vst [vmem:[#allocation2 + $0x10] sm:$0xff] 0.0
          %350 = vst [vmem:[#allocation2 + $0x18] sm:$0xff] 0.0
        $region77: #{meta_bert_3d.38} parent=68 // pred_fallthru
          _
        %v351 = vld [vmem:[#allocation2] sm:$0xff]
        %v352 = vld [vmem:[#allocation2 + $0x8] sm:$0xff]
        %v353 = vld [vmem:[#allocation2 + $0x10] sm:$0xff]
        %v354 = vld [vmem:[#allocation2 + $0x18] sm:$0xff]
        %v355 = vld [vmem:[%s336] sm:$0xf]
        %v356 = vld [vmem:[%s336 + $0x4] sm:$0xf]
        %v357 = vld [vmem:[%s336 + $0x8] sm:$0xf]
        %v358 = vld [vmem:[%s336 + $0xc] sm:$0xf]
        %v359 = vld [vmem:[%s298] sm:$0xf]
        %v360 = vld [vmem:[%s298 + $0x4] sm:$0xf]
        %v361 = vld [vmem:[%s298 + $0x8] sm:$0xf]
        %v362 = vld [vmem:[%s298 + $0xc] sm:$0xf]
        %v363 = vld [vmem:[%s298 + $0x10] sm:$0xf]
        %v364 = vld [vmem:[%s298 + $0x14] sm:$0xf]
        %v365 = vld [vmem:[%s298 + $0x18] sm:$0xf]
        %v366 = vld [vmem:[%s298 + $0x1c] sm:$0xf]
        %v367 = vld [vmem:[%s298 + $0x20] sm:$0xf]
        %v368 = vld [vmem:[%s298 + $0x24] sm:$0xf]
        %v369 = vld [vmem:[%s298 + $0x28] sm:$0xf]
        %v370 = vld [vmem:[%s298 + $0x2c] sm:$0xf]
        %v371 = vld [vmem:[%s298 + $0x30] sm:$0xf]
        %v372 = vld [vmem:[%s298 + $0x34] sm:$0xf]
        %v373 = vld [vmem:[%s298 + $0x38] sm:$0xf]
        %v374 = vld [vmem:[%s298 + $0x3c] sm:$0xf]
        %v379 = vunpack.c.l.b16 %v355
        %v380 = vunpack.c.l.b16 %v356
        %v381 = vunpack.c.l.b16 %v357
        %v382 = vunpack.c.l.b16 %v358
        %v383 = vpack.c.b16 %v380, %v379
        %v384 = vpack.c.b16 %v382, %v381
        %v403 = vunpack.c.l.b16 %v359
        %v404 = vunpack.c.l.b16 %v360
        %v405 = vunpack.c.l.b16 %v361
        %v406 = vunpack.c.l.b16 %v362
        %v407 = vunpack.c.l.b16 %v363
        %v408 = vunpack.c.l.b16 %v364
        %v409 = vunpack.c.l.b16 %v365
        %v410 = vunpack.c.l.b16 %v366
        %v411 = vunpack.c.l.b16 %v367
        %v412 = vunpack.c.l.b16 %v368
        %v413 = vunpack.c.l.b16 %v369
        %v414 = vunpack.c.l.b16 %v370
        %v415 = vunpack.c.l.b16 %v371
        %v416 = vunpack.c.l.b16 %v372
        %v417 = vunpack.c.l.b16 %v373
        %v418 = vunpack.c.l.b16 %v374
        %v419 = vpack.c.b16 %v404, %v403
        %v420 = vpack.c.b16 %v406, %v405
        %v421 = vpack.c.b16 %v408, %v407
        %v422 = vpack.c.b16 %v410, %v409
        %v423 = vpack.c.b16 %v412, %v411
        %v424 = vpack.c.b16 %v414, %v413
        %v425 = vpack.c.b16 %v416, %v415
        %v426 = vpack.c.b16 %v418, %v417
        %435 = vmatpush.bf16.msra.mxu0 %v426
        %436 = vmatpush.bf16.msra.mxu0 %v425
        %437 = vmatpush.bf16.msra.mxu0 %v424
        %438 = vmatpush.bf16.msra.mxu0 %v423
        %439 = vmatpush.bf16.msra.mxu0 %v422
        %440 = vmatpush.bf16.msra.mxu0 %v421
        %441 = vmatpush.bf16.msra.mxu0 %v420
        %442 = vmatpush.bf16.msra.mxu0 %v419
        %443 = vmatmul.bf16.gmra.mxu0 %v383
        %v444 = vpop.f32.mrf.mxu0
        %v445 = vadd.f32 0.0, %v444
        %v446 = vpop.f32.mrf.mxu0
        %v447 = vadd.f32 0.0, %v446
        %448 = vmatmul.bf16.gmra.mxu0 %v384
        %v449 = vpop.f32.mrf.mxu0
        %v450 = vadd.f32 0.0, %v449
        %v451 = vpop.f32.mrf.mxu0
        %v452 = vadd.f32 0.0, %v451
        %453 = vdwg.mxu0
        %v454 = vadd.f32 %v351, %v445
        %v455 = vadd.f32 %v352, %v447
        %v456 = vadd.f32 %v353, %v450
        %v457 = vadd.f32 %v354, %v452
        %458 = vst [vmem:[#allocation2] sm:$0xff] %v454
        %459 = vst [vmem:[#allocation2 + $0x8] sm:$0xff] %v455
        %460 = vst [vmem:[#allocation2 + $0x10] sm:$0xff] %v456
        %461 = vst [vmem:[#allocation2 + $0x18] sm:$0xff] %v457
        // Predicated region
        $region78: #{meta_bert_3d.38} parent=68 // pred_check
          %p462 = pneg %p343
        $region79: #{meta_bert_3d.38} parent=68 // pred_check_branch
          %464 = sbr.rel (%p462) target = $region81
        $region80: #{meta_bert_3d.38} parent=68 // pred_region
          %v465 = vld [vmem:[#allocation2] sm:$0xff]
          %v466 = vld [vmem:[#allocation2 + $0x8] sm:$0xff]
          %v467 = vld [vmem:[#allocation2 + $0x10] sm:$0xff]
          %v468 = vld [vmem:[#allocation2 + $0x18] sm:$0xff]
          %v469 = vld [vmem:[%s341] sm:$0x1]
          %v471 = vperm.slane %v469, 0
          %v473 = vadd.f32 %v465, %v471
          %v474 = vadd.f32 %v466, %v471
          %v475 = vadd.f32 %v467, %v471
          %v476 = vadd.f32 %v468, %v471
          %v477 = vpack.c.bf16 %v473, %v473
          %v478 = vpack.c.bf16 %v474, %v474
          %v479 = vpack.c.bf16 %v475, %v475
          %v480 = vpack.c.bf16 %v476, %v476
          %481 = vst [vmem:[%s328] sm:$0xf] %v477
          %482 = vst [vmem:[%s328 + $0x4] sm:$0xf] %v478
          %483 = vst [vmem:[%s328 + $0x8] sm:$0xf] %v479
          %484 = vst [vmem:[%s328 + $0xc] sm:$0xf] %v480
        $region81: #{meta_bert_3d.38} parent=68 // pred_fallthru
          _
        %s485 = sand.u32 %s125, 1
        %s486 = sand.u32 %s125, 1
        %s487 = smul.addr %s486, 16
        %s488 = scalar_lea.vmem [#allocation4], %s487
        // Predicated region
        $region82: #{meta_bert_3d.38} parent=68 // pred_check
          %p489 = pneg %p135
        $region83: #{meta_bert_3d.38} parent=68 // pred_check_branch
          %491 = sbr.rel (%p489) target = $region85
        $region84: #{meta_bert_3d.38} parent=68 // pred_region
          %s492 = smul.u32 4, %s19
          %s493 = smul.addr %s492, 2
          %s494 = sadd.s32 %s20, %s493
          %s495 = smul.addr %s494, 4
          %s496 = scalar_lea.vmem %s3, %s495
          // Predicated region
          $region86: #{meta_bert_3d.38} parent=84 // pred_check
            _
          $region87: #{meta_bert_3d.38} parent=84 // pred_check_branch
            %498 = sbr.rel (0) target = $region89
          $region88: #{meta_bert_3d.38} parent=84 // pred_region
            // Predicated region
            $region90: #{meta_bert_3d.38} parent=88 // pred_check
              _
            $region91: #{meta_bert_3d.38} parent=88 // pred_check_branch
              %500 = sbr.rel target = $region93
            $region92: #{meta_bert_3d.38} parent=88 // pred_region
              // Predicated region
              $region105: #{meta_bert_3d.38} parent=92 // pred_check
                _
              $region106: #{meta_bert_3d.38} parent=92 // pred_check_branch
                %522 = sbr.rel (0) target = $region108
              $region107: #{meta_bert_3d.38} parent=92 // pred_region
                loop: start=0, step=1, limit=1
                $region109: #{meta_bert_3d.38} parent=107 // loop_pre_header
                  _
                $region110: #{meta_bert_3d.38} parent=107 // loop_header
                  %s524 = sphi 0, %s528
                  %p525 = scmp.ge.s32.totalorder %s524, 1
                  %s529 = sphi %s488, %s488
                  %s530 = sphi %s496, %s496
                $region111: #{meta_bert_3d.38} parent=107 // loop_header_branch
                  %527 = sbr.rel (%p525) target = $region115
                $region112: #{meta_bert_3d.38} parent=107 // loop_body
                  _
                $region113: #{meta_bert_3d.38} parent=107 // loop_footer
                  %s528 = sadd.s32 1, %s524
                $region114: #{meta_bert_3d.38} parent=107 // loop_footer_branch
                  %523 = sbr.rel target = $region110
                $region115: #{meta_bert_3d.38} parent=107 // loop_exit
                  _
                %s532 = ssub.s32 16, 1
                loop: start=0, step=1, limit=1
                $region116: #{meta_bert_3d.38} parent=107 // loop_pre_header
                  _
                $region117: #{meta_bert_3d.38} parent=107 // loop_header
                  %s534 = sphi 0, %s538
                  %p535 = scmp.ge.s32.totalorder %s534, 1
                  %s539 = sphi %s488, %s488
                  %s540 = sphi %s496, %s496
                $region118: #{meta_bert_3d.38} parent=107 // loop_header_branch
                  %537 = sbr.rel (%p535) target = $region122
                $region119: #{meta_bert_3d.38} parent=107 // loop_body
                  %v541 = vld [vmem:[%s539] sm:%s532]
                  %542 = vst [vmem:[%s540] sm:%s532] %v541
                  %v543 = vld [vmem:[%s539 + $0x4] sm:%s532]
                  %544 = vst [vmem:[%s540 + $0x8] sm:%s532] %v543
                  %v545 = vld [vmem:[%s539 + $0x8] sm:%s532]
                  %546 = vst [vmem:[%s540 + $0x10] sm:%s532] %v545
                  %v547 = vld [vmem:[%s539 + $0xc] sm:%s532]
                  %548 = vst [vmem:[%s540 + $0x18] sm:%s532] %v547
                $region120: #{meta_bert_3d.38} parent=107 // loop_footer
                  %s538 = sadd.s32 1, %s534
                $region121: #{meta_bert_3d.38} parent=107 // loop_footer_branch
                  %533 = sbr.rel target = $region117
                $region122: #{meta_bert_3d.38} parent=107 // loop_exit
                  _
              $region108: #{meta_bert_3d.38} parent=92 // pred_fallthru
                _
            $region93: #{meta_bert_3d.38} parent=88 // pred_fallthru
              _
            // Predicated region
            $region94: #{meta_bert_3d.38} parent=88 // pred_check
              _
            $region95: #{meta_bert_3d.38} parent=88 // pred_check_branch
              %502 = sbr.rel (0) target = $region97
            $region96: #{meta_bert_3d.38} parent=88 // pred_region
              %s504 = ssub.s32 16, 1
              loop: start=0, step=1, limit=1
              $region98: #{meta_bert_3d.38} parent=96 // loop_pre_header
                _
              $region99: #{meta_bert_3d.38} parent=96 // loop_header
                %s506 = sphi 0, %s510
                %p507 = scmp.ge.s32.totalorder %s506, 1
                %s511 = sphi %s488, %s488
                %s512 = sphi %s496, %s496
              $region100: #{meta_bert_3d.38} parent=96 // loop_header_branch
                %509 = sbr.rel (%p507) target = $region104
              $region101: #{meta_bert_3d.38} parent=96 // loop_body
                %v513 = vld [vmem:[%s511] sm:%s504]
                %514 = vst [vmem:[%s512] sm:%s504] %v513
                %v515 = vld [vmem:[%s511 + $0x4] sm:%s504]
                %516 = vst [vmem:[%s512 + $0x8] sm:%s504] %v515
                %v517 = vld [vmem:[%s511 + $0x8] sm:%s504]
                %518 = vst [vmem:[%s512 + $0x10] sm:%s504] %v517
                %v519 = vld [vmem:[%s511 + $0xc] sm:%s504]
                %520 = vst [vmem:[%s512 + $0x18] sm:%s504] %v519
              $region102: #{meta_bert_3d.38} parent=96 // loop_footer
                %s510 = sadd.s32 1, %s506
              $region103: #{meta_bert_3d.38} parent=96 // loop_footer_branch
                %505 = sbr.rel target = $region99
              $region104: #{meta_bert_3d.38} parent=96 // loop_exit
                _
            $region97: #{meta_bert_3d.38} parent=88 // pred_fallthru
              _
          $region89: #{meta_bert_3d.38} parent=84 // pred_fallthru
            _
          %549 = vnop
        $region85: #{meta_bert_3d.38} parent=68 // pred_fallthru
          _
      $region69: #{meta_bert_3d.38} parent=5 // pred_fallthru
        _
      %p550 = scmp.le.s32.totalorder 2, %s9
      // Predicated region
      $region123: #{meta_bert_3d.38} parent=5 // pred_check
        %p551 = pneg %p550
      $region124: #{meta_bert_3d.38} parent=5 // pred_check_branch
        %553 = sbr.rel (%p551) target = $region126
      $region125: #{meta_bert_3d.38} parent=5 // pred_region
        %s554 = ssub.s32 %s9, 2
        // Predicated region
        $region127: #{meta_bert_3d.38} parent=125 // pred_check
          %p555 = pneg %p141
        $region128: #{meta_bert_3d.38} parent=125 // pred_check_branch
          %557 = sbr.rel (%p555) target = $region130
        $region129: #{meta_bert_3d.38} parent=125 // pred_region
          %s558 = sand.u32 %s126, 1
          %s559 = sand.u32 %s126, 1
          %s560 = smul.addr %s559, 16
          %s561 = scalar_lea.vmem [#allocation4], %s560
        $region130: #{meta_bert_3d.38} parent=125 // pred_fallthru
          _
      $region126: #{meta_bert_3d.38} parent=5 // pred_fallthru
        _
    $region6: #{meta_bert_3d.38} parent=1 // loop_footer
      %s13 = sadd.s32 1, %s9
    $region7: #{meta_bert_3d.38} parent=1 // loop_footer_branch
      %8 = sbr.rel target = $region3
    $region8: #{meta_bert_3d.38} parent=1 // loop_exit
      _

// kernel: meta_bert_3d.41
$region0: #{meta_bert_3d.41}
  #allocation0 [shape = 'u32[]', space=smem, size = 0x4, offset = 0x4, fixed_abs, tag = 'smem constant byte address 0x4 - core index']
  #allocation1 [shape = 'u32[72,128]{1,0:T(1,128)}', space=vmem, size = 0x9000, scoped, tag = 'internal scratch']
  #allocation2 [shape = 'bf16[16,128]{1,0:T(8,128)(2,1)}', space=vmem, size = 0x1000, scoped, tag = 'scratch operand']
  %s0 = inlined_call_operand.vmem [shape: bf16[16,128], index: 0, kind: input, shape index: {}]
  %s1 = inlined_call_operand.hbm [shape: bf16[128,128], index: 1, kind: input, shape index: {}]
  %s2 = inlined_call_operand.vmem [shape: f32[1,128], index: 2, kind: input, shape index: {}]
  %s3 = inlined_call_operand.hbm [shape: bf16[128,128], index: 3, kind: input, shape index: {}]
  %s4 = inlined_call_operand.hbm [shape: f32[1,128], index: 4, kind: input, shape index: {}]
  %s5 = inlined_call_operand.hbm [shape: f32[16,128], index: 5, kind: output, shape index: {}]
  %s6 = sld [smem:[#allocation0]]
  $region46: #{meta_bert_3d.41} parent=0
    _
  %s8 = ssub.s32 1, %s6
  %s9 = scalar_select 0, %s8, %s6
  $region1: #{meta_bert_3d.41} parent=0
    #allocation3 [shape = 'u8[32768]{0}', space=vmem, size = 0x8000, scoped, tag = 'input window, operand 1, single buffered']
    #allocation4 [shape = 's32[1]{0}', space=sflag, size = 0x4, scoped, tag = 'scoped memory for meta_bert_3d.41']
    #allocation5 [shape = 's32[1]{0}', space=sflag, size = 0x4, scoped, tag = 'scoped memory for meta_bert_3d.41']
    #allocation6 [shape = 'u8[32768]{0}', space=vmem, size = 0x8000, scoped, tag = 'input window, operand 3, single buffered']
    #allocation7 [shape = 's32[1]{0}', space=sflag, size = 0x4, scoped, tag = 'scoped memory for meta_bert_3d.41']
    #allocation8 [shape = 'u8[512]{0}', space=vmem, size = 0x400, scoped, tag = 'input window, operand 4, single buffered']
    #allocation9 [shape = 'u8[8192]{0}', space=vmem, size = 0x2000, scoped, tag = 'output window, operand 0, single buffered']
    %10 = vsyncpa [#allocation4], 0
    %11 = vsyncpa [#allocation7], 0
    %12 = vsyncpa [#allocation5], 0
    // Predicated region
    $region2: #{meta_bert_3d.41} parent=1 // pred_check
      _
    $region3: #{meta_bert_3d.41} parent=1 // pred_check_branch
      %14 = sbr.rel (0) target = $region5
    $region4: #{meta_bert_3d.41} parent=1 // pred_region
      _
    $region5: #{meta_bert_3d.41} parent=1 // pred_fallthru
      _
    // Predicated region
    $region6: #{meta_bert_3d.41} parent=1 // pred_check
      _
    $region7: #{meta_bert_3d.41} parent=1 // pred_check_branch
      %16 = sbr.rel (0) target = $region9
    $region8: #{meta_bert_3d.41} parent=1 // pred_region
      %18 = vsyncadd [#allocation4], 0
      %s19 = sshll.u32 %s1, 4
      %s20 = int_to_ptr.hbm [resolvable:$true] %s19
      %s21 = sshll.u32 [#allocation3], 4
      %s22 = int_to_ptr.vmem [resolvable:$true] %s21
      %27 = dma.hbm_to_vmem [thread:$0]  %s20, 1024, %s22, [#allocation4], 64, 64, 4
    $region9: #{meta_bert_3d.41} parent=1 // pred_fallthru
      _
    // Predicated region
    $region10: #{meta_bert_3d.41} parent=1 // pred_check
      _
    $region11: #{meta_bert_3d.41} parent=1 // pred_check_branch
      %29 = sbr.rel (0) target = $region13
    $region12: #{meta_bert_3d.41} parent=1 // pred_region
      _
    $region13: #{meta_bert_3d.41} parent=1 // pred_fallthru
      _
    // Predicated region
    $region14: #{meta_bert_3d.41} parent=1 // pred_check
      _
    $region15: #{meta_bert_3d.41} parent=1 // pred_check_branch
      %31 = sbr.rel (0) target = $region17
    $region16: #{meta_bert_3d.41} parent=1 // pred_region
      %33 = vsyncadd [#allocation7], 0
      %s34 = sshll.u32 %s3, 4
      %s35 = int_to_ptr.hbm [resolvable:$true] %s34
      %s36 = sshll.u32 [#allocation6], 4
      %s37 = int_to_ptr.vmem [resolvable:$true] %s36
      %42 = dma.hbm_to_vmem [thread:$0]  %s35, 1024, %s37, [#allocation7], 64, 64, 4
    $region17: #{meta_bert_3d.41} parent=1 // pred_fallthru
      _
    // Predicated region
    $region18: #{meta_bert_3d.41} parent=1 // pred_check
      _
    $region19: #{meta_bert_3d.41} parent=1 // pred_check_branch
      %44 = sbr.rel (0) target = $region21
    $region20: #{meta_bert_3d.41} parent=1 // pred_region
      %46 = vsyncadd [#allocation7], 0
      %s48 = sshll.u32 %s4, 4
      %s49 = int_to_ptr.hbm [resolvable:$true] %s48
      %s50 = sshll.u32 [#allocation8], 4
      %s51 = int_to_ptr.vmem [resolvable:$true] %s50
      %53 = dma.hbm_to_vmem [thread:$0]  %s49, 16, %s51, [#allocation7]
    $region21: #{meta_bert_3d.41} parent=1 // pred_fallthru
      _
    // Predicated region
    $region22: #{meta_bert_3d.41} parent=1 // pred_check
      _
    $region23: #{meta_bert_3d.41} parent=1 // pred_check_branch
      %55 = sbr.rel (0) target = $region25
    $region24: #{meta_bert_3d.41} parent=1 // pred_region
      %57 = dma.done [#allocation4], 1024
    $region25: #{meta_bert_3d.41} parent=1 // pred_fallthru
      _
    // Predicated region
    $region26: #{meta_bert_3d.41} parent=1 // pred_check
      _
    $region27: #{meta_bert_3d.41} parent=1 // pred_check_branch
      %59 = sbr.rel (0) target = $region29
    $region28: #{meta_bert_3d.41} parent=1 // pred_region
      %61 = dma.done [#allocation7], 1024
    $region29: #{meta_bert_3d.41} parent=1 // pred_fallthru
      _
    // Predicated region
    $region30: #{meta_bert_3d.41} parent=1 // pred_check
      _
    $region31: #{meta_bert_3d.41} parent=1 // pred_check_branch
      %63 = sbr.rel (0) target = $region33
    $region32: #{meta_bert_3d.41} parent=1 // pred_region
      %65 = dma.done [#allocation7], 16
    $region33: #{meta_bert_3d.41} parent=1 // pred_fallthru
      _
    %p66 = scmp.eq.s32.totalorder 0, 0
    // Predicated region
    $region34: #{meta_bert_3d.41} parent=1 // pred_check
      %p67 = pneg %p66
    $region35: #{meta_bert_3d.41} parent=1 // pred_check_branch
      %69 = sbr.rel (%p67) target = $region37
    $region36: #{meta_bert_3d.41} parent=1 // pred_region
      %v70 = vld [vmem:[%s0] sm:$0xf]
      %v71 = vld [vmem:[%s0 + $0x4] sm:$0xf]
      %v72 = vld [vmem:[#allocation3] sm:$0xf]
      %v73 = vld [vmem:[#allocation3 + $0x4] sm:$0xf]
      %v74 = vld [vmem:[#allocation3 + $0x8] sm:$0xf]
      %v75 = vld [vmem:[#allocation3 + $0xc] sm:$0xf]
      %v76 = vld [vmem:[#allocation3 + $0x10] sm:$0xf]
      %v77 = vld [vmem:[#allocation3 + $0x14] sm:$0xf]
      %v78 = vld [vmem:[#allocation3 + $0x18] sm:$0xf]
      %v79 = vld [vmem:[#allocation3 + $0x1c] sm:$0xf]
      %v80 = vld [vmem:[#allocation3 + $0x20] sm:$0xf]
      %v81 = vld [vmem:[#allocation3 + $0x24] sm:$0xf]
      %v82 = vld [vmem:[#allocation3 + $0x28] sm:$0xf]
      %v83 = vld [vmem:[#allocation3 + $0x2c] sm:$0xf]
      %v84 = vld [vmem:[#allocation3 + $0x30] sm:$0xf]
      %v85 = vld [vmem:[#allocation3 + $0x34] sm:$0xf]
      %v86 = vld [vmem:[#allocation3 + $0x38] sm:$0xf]
      %v87 = vld [vmem:[#allocation3 + $0x3c] sm:$0xf]
      %v88 = vld [vmem:[%s2] sm:$0x1]
      %v90 = vperm.slane %v88, 0
      %v94 = vunpack.c.l.b16 %v70
      %v95 = vunpack.c.l.b16 %v71
      %v96 = vpack.c.b16 %v95, %v94
      %v114 = vunpack.c.l.b16 %v72
      %v115 = vunpack.c.l.b16 %v73
      %v116 = vunpack.c.l.b16 %v74
      %v117 = vunpack.c.l.b16 %v75
      %v118 = vunpack.c.l.b16 %v76
      %v119 = vunpack.c.l.b16 %v77
      %v120 = vunpack.c.l.b16 %v78
      %v121 = vunpack.c.l.b16 %v79
      %v122 = vunpack.c.l.b16 %v80
      %v123 = vunpack.c.l.b16 %v81
      %v124 = vunpack.c.l.b16 %v82
      %v125 = vunpack.c.l.b16 %v83
      %v126 = vunpack.c.l.b16 %v84
      %v127 = vunpack.c.l.b16 %v85
      %v128 = vunpack.c.l.b16 %v86
      %v129 = vunpack.c.l.b16 %v87
      %v130 = vpack.c.b16 %v115, %v114
      %v131 = vpack.c.b16 %v117, %v116
      %v132 = vpack.c.b16 %v119, %v118
      %v133 = vpack.c.b16 %v121, %v120
      %v134 = vpack.c.b16 %v123, %v122
      %v135 = vpack.c.b16 %v125, %v124
      %v136 = vpack.c.b16 %v127, %v126
      %v137 = vpack.c.b16 %v129, %v128
      %146 = vmatpush.bf16.msra.mxu0 %v137
      %147 = vmatpush.bf16.msra.mxu0 %v136
      %148 = vmatpush.bf16.msra.mxu0 %v135
      %149 = vmatpush.bf16.msra.mxu0 %v134
      %150 = vmatpush.bf16.msra.mxu0 %v133
      %151 = vmatpush.bf16.msra.mxu0 %v132
      %152 = vmatpush.bf16.msra.mxu0 %v131
      %153 = vmatpush.bf16.msra.mxu0 %v130
      %154 = vmatmul.bf16.gmra.mxu0 %v96
      %v155 = vpop.f32.mrf.mxu0
      %v156 = vadd.f32 %v90, %v155
      %v157 = vpop.f32.mrf.mxu0
      %v158 = vadd.f32 %v90, %v157
      %159 = vdwg.mxu0
      %v160 = vmax.f32 %v156, 0.0
      %v161 = vmax.f32 %v158, 0.0
      %v162 = vpack.c.bf16 %v160, %v160
      %v163 = vpack.c.bf16 %v161, %v161
      %164 = vst [vmem:[#allocation2] sm:$0xf] %v162
      %165 = vst [vmem:[#allocation2 + $0x4] sm:$0xf] %v163
    $region37: #{meta_bert_3d.41} parent=1 // pred_fallthru
      _
    %v166 = vld [vmem:[#allocation2] sm:$0xf]
    %v167 = vld [vmem:[#allocation2 + $0x4] sm:$0xf]
    %v168 = vld [vmem:[#allocation6] sm:$0xf]
    %v169 = vld [vmem:[#allocation6 + $0x4] sm:$0xf]
    %v170 = vld [vmem:[#allocation6 + $0x8] sm:$0xf]
    %v171 = vld [vmem:[#allocation6 + $0xc] sm:$0xf]
    %v172 = vld [vmem:[#allocation6 + $0x10] sm:$0xf]
    %v173 = vld [vmem:[#allocation6 + $0x14] sm:$0xf]
    %v174 = vld [vmem:[#allocation6 + $0x18] sm:$0xf]
    %v175 = vld [vmem:[#allocation6 + $0x1c] sm:$0xf]
    %v176 = vld [vmem:[#allocation6 + $0x20] sm:$0xf]
    %v177 = vld [vmem:[#allocation6 + $0x24] sm:$0xf]
    %v178 = vld [vmem:[#allocation6 + $0x28] sm:$0xf]
    %v179 = vld [vmem:[#allocation6 + $0x2c] sm:$0xf]
    %v180 = vld [vmem:[#allocation6 + $0x30] sm:$0xf]
    %v181 = vld [vmem:[#allocation6 + $0x34] sm:$0xf]
    %v182 = vld [vmem:[#allocation6 + $0x38] sm:$0xf]
    %v183 = vld [vmem:[#allocation6 + $0x3c] sm:$0xf]
    %v184 = vld [vmem:[#allocation8] sm:$0x1]
    %v186 = vperm.slane %v184, 0
    %v190 = vunpack.c.l.b16 %v166
    %v191 = vunpack.c.l.b16 %v167
    %v192 = vpack.c.b16 %v191, %v190
    %v210 = vunpack.c.l.b16 %v168
    %v211 = vunpack.c.l.b16 %v169
    %v212 = vunpack.c.l.b16 %v170
    %v213 = vunpack.c.l.b16 %v171
    %v214 = vunpack.c.l.b16 %v172
    %v215 = vunpack.c.l.b16 %v173
    %v216 = vunpack.c.l.b16 %v174
    %v217 = vunpack.c.l.b16 %v175
    %v218 = vunpack.c.l.b16 %v176
    %v219 = vunpack.c.l.b16 %v177
    %v220 = vunpack.c.l.b16 %v178
    %v221 = vunpack.c.l.b16 %v179
    %v222 = vunpack.c.l.b16 %v180
    %v223 = vunpack.c.l.b16 %v181
    %v224 = vunpack.c.l.b16 %v182
    %v225 = vunpack.c.l.b16 %v183
    %v226 = vpack.c.b16 %v211, %v210
    %v227 = vpack.c.b16 %v213, %v212
    %v228 = vpack.c.b16 %v215, %v214
    %v229 = vpack.c.b16 %v217, %v216
    %v230 = vpack.c.b16 %v219, %v218
    %v231 = vpack.c.b16 %v221, %v220
    %v232 = vpack.c.b16 %v223, %v222
    %v233 = vpack.c.b16 %v225, %v224
    %242 = vmatpush.bf16.msra.mxu0 %v233
    %243 = vmatpush.bf16.msra.mxu0 %v232
    %244 = vmatpush.bf16.msra.mxu0 %v231
    %245 = vmatpush.bf16.msra.mxu0 %v230
    %246 = vmatpush.bf16.msra.mxu0 %v229
    %247 = vmatpush.bf16.msra.mxu0 %v228
    %248 = vmatpush.bf16.msra.mxu0 %v227
    %249 = vmatpush.bf16.msra.mxu0 %v226
    %250 = vmatmul.bf16.gmra.mxu0 %v192
    %v251 = vpop.f32.mrf.mxu0
    %v252 = vadd.f32 %v186, %v251
    %v253 = vpop.f32.mrf.mxu0
    %v254 = vadd.f32 %v186, %v253
    %255 = vdwg.mxu0
    %256 = vst [vmem:[#allocation9] sm:$0xff] %v252
    %257 = vst [vmem:[#allocation9 + $0x8] sm:$0xff] %v254
    // Predicated region
    $region38: #{meta_bert_3d.41} parent=1 // pred_check
      _
    $region39: #{meta_bert_3d.41} parent=1 // pred_check_branch
      %259 = sbr.rel (0) target = $region41
    $region40: #{meta_bert_3d.41} parent=1 // pred_region
      %261 = vsyncadd [#allocation5], 0
      %s262 = sshll.u32 [#allocation9], 4
      %s263 = int_to_ptr.vmem [resolvable:$true] %s262
      %s264 = sshll.u32 %s5, 4
      %s265 = int_to_ptr.hbm [resolvable:$true] %s264
      %270 = dma.vmem_to_hbm [thread:$0]  %s263, 256, %s265, [#allocation5], 128, 128, 8
    $region41: #{meta_bert_3d.41} parent=1 // pred_fallthru
      _
    // Predicated region
    $region42: #{meta_bert_3d.41} parent=1 // pred_check
      _
    $region43: #{meta_bert_3d.41} parent=1 // pred_check_branch
      %272 = sbr.rel (0) target = $region45
    $region44: #{meta_bert_3d.41} parent=1 // pred_region
      %274 = dma.done [#allocation5], 256
    $region45: #{meta_bert_3d.41} parent=1 // pred_fallthru
      _
    %275 = vsyncpa [#allocation4], 1
    %276 = vsyncpa [#allocation7], 1
    %277 = vsyncpa [#allocation5], 1

// kernel: meta_bert_3d.39
$region0: #{meta_bert_3d.39}
  #allocation0 [shape = 'u32[]', space=smem, size = 0x4, offset = 0x4, fixed_abs, tag = 'smem constant byte address 0x4 - core index']
  #allocation1 [shape = 'u32[72,128]{1,0:T(1,128)}', space=vmem, size = 0x9000, scoped, tag = 'internal scratch']
  #allocation2 [shape = 'f32[4,8,1]{2,1,0:T(8,128)}', space=vmem, size = 0x4000, scoped, tag = 'scratch operand']
  #allocation3 [shape = 'f32[4,8,1]{2,1,0:T(8,128)}', space=vmem, size = 0x4000, scoped, tag = 'scratch operand']
  #allocation4 [shape = 'f32[8,128]{1,0:T(8,128)}', space=vmem, size = 0x1000, scoped, tag = 'scratch operand']
  %s0 = inlined_call_operand.vmem [shape: bf16[2,8,128], index: 0, kind: input, shape index: {}]
  %s1 = inlined_call_operand.vmem [shape: bf16[2,16,256], index: 1, kind: input, shape index: {}]
  %s2 = inlined_call_operand.vmem [shape: bf16[2,8,128], index: 2, kind: output, shape index: {}]
  %s3 = sld [smem:[#allocation0]]
  $region49: #{meta_bert_3d.39} parent=0
    _
  %s5 = ssub.s32 1, %s3
  %s6 = scalar_select 0, %s5, %s3
  loop: start=0, step=1, limit=4
  $region2: #{meta_bert_3d.39} parent=0 // loop_pre_header
    _
  $region3: #{meta_bert_3d.39} parent=0 // loop_header
    %s8 = sphi 0, %s12
    %p9 = scmp.ge.s32.totalorder %s8, 4
    %s15 = sphi 0, %s34
    %s16 = sphi 0, %s30
    %s17 = sphi 0, %s26
    %s18 = sphi 0, %s15
    %s19 = sphi 0, %s16
    %s20 = sphi 0, %s17
    %s21 = sphi 0, %s18
    %s22 = sphi 0, %s19
    %s23 = sphi 0, %s20
    %s39 = sphi 0, %s41
    %s42 = sphi 0, %s39
    %s43 = sphi 0, %s42
    %s59 = sphi 0, %s43
    %s67 = sphi 0, %s69
    %s70 = sphi 0, %s67
    %s71 = sphi 0, %s70
    %s87 = sphi 0, %s71
    %s95 = sphi 0, %s97
    %s98 = sphi 0, %s95
    %s99 = sphi 0, %s98
    %s115 = sphi 0, %s99
  $region4: #{meta_bert_3d.39} parent=0 // loop_header_branch
    %11 = sbr.rel (%p9) target = $region8
  $region5: #{meta_bert_3d.39} parent=0 // loop_body
    %s13 = ssub.s32 %s8, 1
    %s14 = ssub.s32 %s8, 2
    %s24 = sadd.s32 1, %s17
    %p25 = scmp.ge.s32.totalorder %s24, 1
    %s26 = scalar_select %p25, 0, %s24
    %s27 = sadd.s32 1, %s16
    %s28 = scalar_select %p25, %s27, %s16
    %p29 = scmp.ge.s32.totalorder %s28, 1
    %s30 = scalar_select %p29, 0, %s28
    %s31 = sadd.s32 1, %s15
    %s32 = scalar_select %p29, %s31, %s15
    %p33 = scmp.ge.s32.totalorder %s32, 2
    %s34 = scalar_select %p33, 0, %s32
    %s35 = ssub.s32 %s15, %s34
    %s36 = ssub.s32 %s16, %s30
    %s37 = sor.u32 %s35, %s36
    %p38 = scmp.eq.s32.totalorder %s37, 0
    %s40 = sadd.s32 %s39, 1
    %s41 = scalar_select %p38, %s39, %s40
    %p44 = pneg %p38
    %p45 = scmp.eq.s32.totalorder %s8, 1
    %p46 = por %p44, %p45
    %p47 = scmp.ne.s32.totalorder %s39, %s42
    %p48 = scmp.eq.s32.totalorder %s8, 0
    %p49 = por %p47, %p48
    %p50 = scmp.ne.s32.totalorder %s39, %s42
    %p51 = scmp.eq.s32.totalorder %s13, 1
    %p52 = por %p50, %p51
    %p53 = scmp.ne.s32.totalorder %s42, %s43
    %p54 = scmp.eq.s32.totalorder %s13, 0
    %p55 = por %p53, %p54
    %p56 = scmp.ne.s32.totalorder %s42, %s43
    %p57 = scmp.eq.s32.totalorder %s14, 1
    %p58 = por %p56, %p57
    %p60 = scmp.ne.s32.totalorder %s43, %s59
    %p61 = scmp.eq.s32.totalorder %s14, 0
    %p62 = por %p60, %p61
    %s63 = ssub.s32 %s15, %s34
    %s64 = ssub.s32 %s17, %s26
    %s65 = sor.u32 %s63, %s64
    %p66 = scmp.eq.s32.totalorder %s65, 0
    %s68 = sadd.s32 %s67, 1
    %s69 = scalar_select %p66, %s67, %s68
    %p72 = pneg %p66
    %p73 = scmp.eq.s32.totalorder %s8, 1
    %p74 = por %p72, %p73
    %p75 = scmp.ne.s32.totalorder %s67, %s70
    %p76 = scmp.eq.s32.totalorder %s8, 0
    %p77 = por %p75, %p76
    %p78 = scmp.ne.s32.totalorder %s67, %s70
    %p79 = scmp.eq.s32.totalorder %s13, 1
    %p80 = por %p78, %p79
    %p81 = scmp.ne.s32.totalorder %s70, %s71
    %p82 = scmp.eq.s32.totalorder %s13, 0
    %p83 = por %p81, %p82
    %p84 = scmp.ne.s32.totalorder %s70, %s71
    %p85 = scmp.eq.s32.totalorder %s14, 1
    %p86 = por %p84, %p85
    %p88 = scmp.ne.s32.totalorder %s71, %s87
    %p89 = scmp.eq.s32.totalorder %s14, 0
    %p90 = por %p88, %p89
    %s91 = ssub.s32 %s15, %s34
    %s92 = ssub.s32 %s16, %s30
    %s93 = sor.u32 %s91, %s92
    %p94 = scmp.eq.s32.totalorder %s93, 0
    %s96 = sadd.s32 %s95, 1
    %s97 = scalar_select %p94, %s95, %s96
    %p100 = pneg %p94
    %p101 = scmp.eq.s32.totalorder %s8, 1
    %p102 = por %p100, %p101
    %p103 = scmp.ne.s32.totalorder %s95, %s98
    %p104 = scmp.eq.s32.totalorder %s8, 0
    %p105 = por %p103, %p104
    %p106 = scmp.ne.s32.totalorder %s95, %s98
    %p107 = scmp.eq.s32.totalorder %s13, 1
    %p108 = por %p106, %p107
    %p109 = scmp.ne.s32.totalorder %s98, %s99
    %p110 = scmp.eq.s32.totalorder %s13, 0
    %p111 = por %p109, %p110
    %p112 = scmp.ne.s32.totalorder %s98, %s99
    %p113 = scmp.eq.s32.totalorder %s14, 1
    %p114 = por %p112, %p113
    %p116 = scmp.ne.s32.totalorder %s99, %s115
    %p117 = scmp.eq.s32.totalorder %s14, 0
    %p118 = por %p116, %p117
    %p119 = scmp.le.s32.totalorder 1, %s8
    %p120 = scmp.lt.s32.totalorder %s8, 3
    %p121 = pnand %p119, %p120
    %p122 = pneg %p121
    // Predicated region
    $region9: #{meta_bert_3d.39} parent=5 // pred_check
      _
    $region10: #{meta_bert_3d.39} parent=5 // pred_check_branch
      %124 = sbr.rel (%p121) target = $region12
    $region11: #{meta_bert_3d.39} parent=5 // pred_region
      %s125 = ssub.s32 %s8, 1
    $region12: #{meta_bert_3d.39} parent=5 // pred_fallthru
      _
    %p126 = scmp.lt.s32.totalorder %s8, 2
    // Predicated region
    $region13: #{meta_bert_3d.39} parent=5 // pred_check
      %p127 = pneg %p126
    $region14: #{meta_bert_3d.39} parent=5 // pred_check_branch
      %129 = sbr.rel (%p127) target = $region16
    $region15: #{meta_bert_3d.39} parent=5 // pred_region
      // Predicated region
      $region17: #{meta_bert_3d.39} parent=15 // pred_check
        %p130 = pneg %p49
      $region18: #{meta_bert_3d.39} parent=15 // pred_check_branch
        %132 = sbr.rel (%p130) target = $region20
      $region19: #{meta_bert_3d.39} parent=15 // pred_region
        %p133 = scmp.lt.s32.totalorder %s15, 1
        %s134 = scalar_select %p133, %s15, 1
        %p135 = scmp.lt.s32.totalorder %s16, 0
        %s136 = scalar_select %p135, %s16, 0
        %s137 = sadd.s32 %s136, %s134
        %s138 = smul.addr %s137, 4
        %s139 = scalar_lea.vmem %s0, %s138
      $region20: #{meta_bert_3d.39} parent=15 // pred_fallthru
        _
      // Predicated region
      $region21: #{meta_bert_3d.39} parent=15 // pred_check
        %p140 = pneg %p77
      $region22: #{meta_bert_3d.39} parent=15 // pred_check_branch
        %142 = sbr.rel (%p140) target = $region24
      $region23: #{meta_bert_3d.39} parent=15 // pred_region
        %s143 = smul.u32 2, %s17
        %p144 = scmp.lt.s32.totalorder %s15, 1
        %s145 = scalar_select %p144, %s15, 1
        %p146 = scmp.lt.s32.totalorder %s143, 1
        %s147 = scalar_select %p146, %s143, 1
        %s148 = smul.addr %s147, 2
        %s149 = smul.addr %s145, 4
        %s150 = sadd.s32 %s148, %s149
        %s151 = smul.addr %s150, 4
        %s152 = scalar_lea.vmem %s1, %s151
        %s153 = smul.u32 2, %s17
      $region24: #{meta_bert_3d.39} parent=15 // pred_fallthru
        _
    $region16: #{meta_bert_3d.39} parent=5 // pred_fallthru
      _
    %p154 = scmp.le.s32.totalorder 1, %s8
    %p155 = scmp.lt.s32.totalorder %s8, 3
    %p156 = pnand %p154, %p155
    %p157 = pneg %p156
    // Predicated region
    $region25: #{meta_bert_3d.39} parent=5 // pred_check
      _
    $region26: #{meta_bert_3d.39} parent=5 // pred_check_branch
      %159 = sbr.rel (%p156) target = $region28
    $region27: #{meta_bert_3d.39} parent=5 // pred_region
      %s160 = ssub.s32 %s8, 1
      %p161 = scmp.lt.s32.totalorder %s18, 1
      %s162 = scalar_select %p161, %s18, 1
      %p163 = scmp.lt.s32.totalorder %s19, 0
      %s164 = scalar_select %p163, %s19, 0
      %s165 = sadd.s32 %s164, %s162
      %s166 = smul.addr %s165, 4
      %s167 = scalar_lea.vmem %s0, %s166
      %p168 = pneg %p55
      %p169 = pneg %p52
      %s170 = smul.u32 2, %s20
      %p171 = scmp.lt.s32.totalorder %s18, 1
      %s172 = scalar_select %p171, %s18, 1
      %p173 = scmp.lt.s32.totalorder %s170, 1
      %s174 = scalar_select %p173, %s170, 1
      %s175 = smul.addr %s174, 2
      %s176 = smul.addr %s172, 4
      %s177 = sadd.s32 %s175, %s176
      %s178 = smul.addr %s177, 4
      %s179 = scalar_lea.vmem %s1, %s178
      %p180 = pneg %p83
      %p181 = pneg %p80
      %p182 = pneg %p111
      %p183 = pneg %p108
      %p184 = scmp.lt.s32.totalorder %s18, 1
      %s185 = scalar_select %p184, %s18, 1
      %p186 = scmp.lt.s32.totalorder %s19, 0
      %s187 = scalar_select %p186, %s19, 0
      %s188 = sadd.s32 %s187, %s185
      %s189 = smul.addr %s188, 4
      %s190 = scalar_lea.vmem %s2, %s189
      %p191 = scmp.lt.s32.totalorder %s18, 1
      %s192 = scalar_select %p191, %s18, 1
      %p193 = scmp.lt.s32.totalorder %s19, 0
      %s194 = scalar_select %p193, %s19, 0
      %s195 = sadd.s32 %s194, %s192
      %s196 = smul.addr %s195, 4
      %s197 = scalar_lea.vmem %s0, %s196
      %s198 = smul.u32 2, %s20
      %p199 = scmp.lt.s32.totalorder %s18, 1
      %s200 = scalar_select %p199, %s18, 1
      %p201 = scmp.lt.s32.totalorder %s198, 1
      %s202 = scalar_select %p201, %s198, 1
      %s203 = smul.addr %s202, 2
      %s204 = smul.addr %s200, 4
      %s205 = sadd.s32 %s203, %s204
      %s206 = smul.addr %s205, 4
      %s207 = scalar_lea.vmem %s1, %s206
      %s208 = smul.u32 2, %s20
      %p209 = scmp.lt.s32.totalorder %s18, 1
      %s210 = scalar_select %p209, %s18, 1
      %p211 = scmp.lt.s32.totalorder %s19, 0
      %s212 = scalar_select %p211, %s19, 0
      %s213 = sadd.s32 %s212, %s210
      %s214 = smul.addr %s213, 4
      %s215 = scalar_lea.vmem %s2, %s214
      %p217 = scmp.eq.s32.totalorder %s20, 0
      // Predicated region
      $region29: #{meta_bert_3d.39} parent=27 // pred_check
        %p218 = pneg %p217
      $region30: #{meta_bert_3d.39} parent=27 // pred_check_branch
        %220 = sbr.rel (%p218) target = $region32
      $region31: #{meta_bert_3d.39} parent=27 // pred_region
        %vm221 = vcmask 7168
        %222 = vst.msk [vmem:[#allocation2] sm:$0xff] %vm221, -inf
        %223 = vst.msk [vmem:[#allocation2 + $0x8] sm:$0xff] %vm221, -inf
        %224 = vst.msk [vmem:[#allocation2 + $0x10] sm:$0xff] %vm221, -inf
        %225 = vst.msk [vmem:[#allocation2 + $0x18] sm:$0xff] %vm221, -inf
        %226 = vst.msk [vmem:[#allocation3] sm:$0xff] %vm221, 0.0
        %227 = vst.msk [vmem:[#allocation3 + $0x8] sm:$0xff] %vm221, 0.0
        %228 = vst.msk [vmem:[#allocation3 + $0x10] sm:$0xff] %vm221, 0.0
        %229 = vst.msk [vmem:[#allocation3 + $0x18] sm:$0xff] %vm221, 0.0
        %230 = vst [vmem:[#allocation4] sm:$0xff] 0.0
      $region32: #{meta_bert_3d.39} parent=27 // pred_fallthru
        _
      %v231 = vld [vmem:[%s197] sm:$0xf]
      %v232 = vld [vmem:[%s207] sm:$0xff]
      %v233 = vld [vmem:[%s207 + $0x8] sm:$0xff]
      %v236 = vunpack.c.l.b16 %v232
      %v237 = vunpack.c.l.b16 %v233
      %v238 = vpack.c.b16 %v237, %v236
      %vm239 = vcmask 261120
      %v241 = vsel %vm239, %v231, 0
      %v244 = vsel %vm239, %v238, 0
      %246 = vmatpush.bf16.xpose.msra.mxu0 0
      %247 = vmatpush.bf16.xpose.msra.mxu0 0
      %248 = vmatpush.bf16.xpose.msra.mxu0 0
      %249 = vmatpush.bf16.xpose.msra.mxu0 0
      %250 = vmatpush.bf16.xpose.msra.mxu0 0
      %251 = vmatpush.bf16.xpose.msra.mxu0 0
      %252 = vmatpush.bf16.xpose.msra.mxu0 0
      %253 = vmatpush.bf16.xpose.msra.mxu0 %v244
      %254 = vmatmul.bf16.gmra.mxu0 %v241
      %v255 = vpop.f32.mrf.mxu0
      %v256 = vadd.f32 0.0, %v255
      %v257 = vpop.f32.mrf.mxu0
      %258 = vdwg.mxu0
      %v259 = vmul.f32 %v256, 0.17677669
      %v260 = vld [vmem:[#allocation2] sm:$0xff]
      %vm261 = vcmask 130048
      %v262 = vsel %vm261, %v259, -inf
      %263 = vmax.xlane.f32.xlu0 %v262
      %v264 = vpop.xlane.xlu0 %263
      %v265 = vmax.f32 %v260, %v264
      %v266 = vsub.f32 %v260, %v265
      %v267 = vmul.f32 %v266, 1.442695
      %v268 = vpow.pop %v267
      %270 = vset.pattern.permute.xlu0 0
      %271 = vperm.xlu0 %270, %v265
      %v272 = vpop.permute.xlu0 %271
      %v274 = vsub.f32 %v259, %v272
      %v275 = vmul.f32 %v274, 1.442695
      %v276 = vpow.pop %v275
      %v277 = vld [vmem:[#allocation3] sm:$0xff]
      %v278 = vmul.f32 %v268, %v277
      %v279 = vsel %vm261, %v276, 0.0
      %280 = vadd.xlane.f32.xlu0 %v279
      %v281 = vpop.xlane.xlu0 %280
      %v282 = vadd.f32 %v278, %v281
      %vm283 = vcmask 7168
      %284 = vst.msk [vmem:[#allocation3] sm:$0xff] %vm283, %v282
      %v285 = vld [vmem:[#allocation4] sm:$0xff]
      %287 = vset.pattern.permute.xlu0 0
      %288 = vperm.xlu0 %287, %v268
      %v289 = vpop.permute.xlu0 %288
      %v291 = vmul.f32 %v289, %v285
      %v292 = vpack.c.bf16 %v276, %v276
      %v293 = vunpack.c.h.b16 %v232
      %v294 = vunpack.c.h.b16 %v233
      %v295 = vpack.c.b16 %v294, %v293
      %v298 = vsel %vm261, %v292, 0
      %300 = vmatpush.bf16.msra.mxu0 0
      %301 = vmatpush.bf16.msra.mxu0 0
      %302 = vmatpush.bf16.msra.mxu0 0
      %303 = vmatpush.bf16.msra.mxu0 0
      %304 = vmatpush.bf16.msra.mxu0 0
      %305 = vmatpush.bf16.msra.mxu0 0
      %306 = vmatpush.bf16.msra.mxu0 0
      %307 = vmatpush.bf16.msra.mxu0 %v295
      %308 = vmatmul.bf16.gmra.mxu0 %v298
      %v309 = vpop.f32.mrf.mxu0
      %v310 = vadd.f32 0.0, %v309
      %v311 = vpop.f32.mrf.mxu0
      %312 = vdwg.mxu0
      %v313 = vadd.f32 %v291, %v310
      %314 = vst.msk [vmem:[#allocation4] sm:$0xff] %vm239, %v313
      %315 = vst.msk [vmem:[#allocation2] sm:$0xff] %vm283, %v265
      %v317 = vunpack.c.l.b16 %v231
      %v318 = vpack.c.b16 %v317, %v317
      %319 = vrot.lane.b32.xlu0 %v318, 96
      %v320 = vpop.permute.xlu0 %319
      %321 = vrot.lane.b32.xlu0 %v238, 96
      %v322 = vpop.permute.xlu0 %321
      %v324 = vsel %vm239, %v320, 0
      %v327 = vsel %vm239, %v322, 0
      %329 = vmatpush.bf16.xpose.msra.mxu0 0
      %330 = vmatpush.bf16.xpose.msra.mxu0 0
      %331 = vmatpush.bf16.xpose.msra.mxu0 0
      %332 = vmatpush.bf16.xpose.msra.mxu0 0
      %333 = vmatpush.bf16.xpose.msra.mxu0 0
      %334 = vmatpush.bf16.xpose.msra.mxu0 0
      %335 = vmatpush.bf16.xpose.msra.mxu0 0
      %336 = vmatpush.bf16.xpose.msra.mxu0 %v327
      %337 = vmatmul.bf16.gmra.mxu0 %v324
      %v338 = vpop.f32.mrf.mxu0
      %v339 = vadd.f32 0.0, %v338
      %v340 = vpop.f32.mrf.mxu0
      %341 = vdwg.mxu0
      %v342 = vmul.f32 %v339, 0.17677669
      %s343 = scalar_lea.vmem [#allocation2], 8
      %v344 = vld [vmem:[%s343] sm:$0xff]
      %v345 = vsel %vm261, %v342, -inf
      %346 = vmax.xlane.f32.xlu0 %v345
      %v347 = vpop.xlane.xlu0 %346
      %v348 = vmax.f32 %v344, %v347
      %v349 = vsub.f32 %v344, %v348
      %v350 = vmul.f32 %v349, 1.442695
      %v351 = vpow.pop %v350
      %353 = vset.pattern.permute.xlu0 0
      %354 = vperm.xlu0 %353, %v348
      %v355 = vpop.permute.xlu0 %354
      %v357 = vsub.f32 %v342, %v355
      %v358 = vmul.f32 %v357, 1.442695
      %v359 = vpow.pop %v358
      %s360 = scalar_lea.vmem [#allocation3], 8
      %v361 = vld [vmem:[%s360] sm:$0xff]
      %v362 = vmul.f32 %v351, %v361
      %v363 = vsel %vm261, %v359, 0.0
      %364 = vadd.xlane.f32.xlu0 %v363
      %v365 = vpop.xlane.xlu0 %364
      %v366 = vadd.f32 %v362, %v365
      %367 = vst.msk [vmem:[%s360] sm:$0xff] %vm283, %v366
      %v368 = vld [vmem:[#allocation4] sm:$0xff]
      %370 = vset.pattern.permute.xlu0 0
      %371 = vperm.xlu0 %370, %v351
      %v372 = vpop.permute.xlu0 %371
      %v374 = vmul.f32 %v372, %v368
      %v375 = vpack.c.bf16 %v359, %v359
      %376 = vrot.lane.b32.xlu0 %v295, 96
      %v377 = vpop.permute.xlu0 %376
      %v380 = vsel %vm261, %v375, 0
      %382 = vmatpush.bf16.msra.mxu0 0
      %383 = vmatpush.bf16.msra.mxu0 0
      %384 = vmatpush.bf16.msra.mxu0 0
      %385 = vmatpush.bf16.msra.mxu0 0
      %386 = vmatpush.bf16.msra.mxu0 0
      %387 = vmatpush.bf16.msra.mxu0 0
      %388 = vmatpush.bf16.msra.mxu0 0
      %389 = vmatpush.bf16.msra.mxu0 %v377
      %390 = vmatmul.bf16.gmra.mxu0 %v380
      %v391 = vpop.f32.mrf.mxu0
      %v392 = vadd.f32 0.0, %v391
      %v393 = vpop.f32.mrf.mxu0
      %394 = vdwg.mxu0
      %396 = vrot.lane.b32.xlu0 %v392, 32
      %v397 = vpop.permute.xlu0 %396
      %v399 = vadd.f32 %v374, %v397
      %vm400 = vcmask 523520
      %401 = vst.msk [vmem:[#allocation4] sm:$0xff] %vm400, %v399
      %402 = vst.msk [vmem:[%s343] sm:$0xff] %vm283, %v348
      %403 = vrot.lane.b32.xlu0 %v318, 64
      %v404 = vpop.permute.xlu0 %403
      %405 = vrot.lane.b32.xlu0 %v238, 64
      %v406 = vpop.permute.xlu0 %405
      %v408 = vsel %vm239, %v404, 0
      %v411 = vsel %vm239, %v406, 0
      %413 = vmatpush.bf16.xpose.msra.mxu0 0
      %414 = vmatpush.bf16.xpose.msra.mxu0 0
      %415 = vmatpush.bf16.xpose.msra.mxu0 0
      %416 = vmatpush.bf16.xpose.msra.mxu0 0
      %417 = vmatpush.bf16.xpose.msra.mxu0 0
      %418 = vmatpush.bf16.xpose.msra.mxu0 0
      %419 = vmatpush.bf16.xpose.msra.mxu0 0
      %420 = vmatpush.bf16.xpose.msra.mxu0 %v411
      %421 = vmatmul.bf16.gmra.mxu0 %v408
      %v422 = vpop.f32.mrf.mxu0
      %v423 = vadd.f32 0.0, %v422
      %v424 = vpop.f32.mrf.mxu0
      %425 = vdwg.mxu0
      %v426 = vmul.f32 %v423, 0.17677669
      %s427 = scalar_lea.vmem [#allocation2], 16
      %v428 = vld [vmem:[%s427] sm:$0xff]
      %v429 = vsel %vm261, %v426, -inf
      %430 = vmax.xlane.f32.xlu0 %v429
      %v431 = vpop.xlane.xlu0 %430
      %v432 = vmax.f32 %v428, %v431
      %v433 = vsub.f32 %v428, %v432
      %v434 = vmul.f32 %v433, 1.442695
      %v435 = vpow.pop %v434
      %437 = vset.pattern.permute.xlu0 0
      %438 = vperm.xlu0 %437, %v432
      %v439 = vpop.permute.xlu0 %438
      %v441 = vsub.f32 %v426, %v439
      %v442 = vmul.f32 %v441, 1.442695
      %v443 = vpow.pop %v442
      %s444 = scalar_lea.vmem [#allocation3], 16
      %v445 = vld [vmem:[%s444] sm:$0xff]
      %v446 = vmul.f32 %v435, %v445
      %v447 = vsel %vm261, %v443, 0.0
      %448 = vadd.xlane.f32.xlu0 %v447
      %v449 = vpop.xlane.xlu0 %448
      %v450 = vadd.f32 %v446, %v449
      %451 = vst.msk [vmem:[%s444] sm:$0xff] %vm283, %v450
      %v452 = vld [vmem:[#allocation4] sm:$0xff]
      %454 = vset.pattern.permute.xlu0 0
      %455 = vperm.xlu0 %454, %v435
      %v456 = vpop.permute.xlu0 %455
      %v458 = vmul.f32 %v456, %v452
      %v459 = vpack.c.bf16 %v443, %v443
      %460 = vrot.lane.b32.xlu0 %v295, 64
      %v461 = vpop.permute.xlu0 %460
      %v464 = vsel %vm261, %v459, 0
      %466 = vmatpush.bf16.msra.mxu0 0
      %467 = vmatpush.bf16.msra.mxu0 0
      %468 = vmatpush.bf16.msra.mxu0 0
      %469 = vmatpush.bf16.msra.mxu0 0
      %470 = vmatpush.bf16.msra.mxu0 0
      %471 = vmatpush.bf16.msra.mxu0 0
      %472 = vmatpush.bf16.msra.mxu0 0
      %473 = vmatpush.bf16.msra.mxu0 %v461
      %474 = vmatmul.bf16.gmra.mxu0 %v464
      %v475 = vpop.f32.mrf.mxu0
      %v476 = vadd.f32 0.0, %v475
      %v477 = vpop.f32.mrf.mxu0
      %478 = vdwg.mxu0
      %480 = vrot.lane.b32.xlu0 %v476, 64
      %v481 = vpop.permute.xlu0 %480
      %v483 = vadd.f32 %v458, %v481
      %vm484 = vcmask 785920
      %485 = vst.msk [vmem:[#allocation4] sm:$0xff] %vm484, %v483
      %486 = vst.msk [vmem:[%s427] sm:$0xff] %vm283, %v432
      %487 = vrot.lane.b32.xlu0 %v318, 32
      %v488 = vpop.permute.xlu0 %487
      %489 = vrot.lane.b32.xlu0 %v238, 32
      %v490 = vpop.permute.xlu0 %489
      %v492 = vsel %vm239, %v488, 0
      %v495 = vsel %vm239, %v490, 0
      %497 = vmatpush.bf16.xpose.msra.mxu0 0
      %498 = vmatpush.bf16.xpose.msra.mxu0 0
      %499 = vmatpush.bf16.xpose.msra.mxu0 0
      %500 = vmatpush.bf16.xpose.msra.mxu0 0
      %501 = vmatpush.bf16.xpose.msra.mxu0 0
      %502 = vmatpush.bf16.xpose.msra.mxu0 0
      %503 = vmatpush.bf16.xpose.msra.mxu0 0
      %504 = vmatpush.bf16.xpose.msra.mxu0 %v495
      %505 = vmatmul.bf16.gmra.mxu0 %v492
      %v506 = vpop.f32.mrf.mxu0
      %v507 = vadd.f32 0.0, %v506
      %v508 = vpop.f32.mrf.mxu0
      %509 = vdwg.mxu0
      %v510 = vmul.f32 %v507, 0.17677669
      %s511 = scalar_lea.vmem [#allocation2], 24
      %v512 = vld [vmem:[%s511] sm:$0xff]
      %v513 = vsel %vm261, %v510, -inf
      %514 = vmax.xlane.f32.xlu0 %v513
      %v515 = vpop.xlane.xlu0 %514
      %v516 = vmax.f32 %v512, %v515
      %v517 = vsub.f32 %v512, %v516
      %v518 = vmul.f32 %v517, 1.442695
      %v519 = vpow.pop %v518
      %521 = vset.pattern.permute.xlu0 0
      %522 = vperm.xlu0 %521, %v516
      %v523 = vpop.permute.xlu0 %522
      %v525 = vsub.f32 %v510, %v523
      %v526 = vmul.f32 %v525, 1.442695
      %v527 = vpow.pop %v526
      %s528 = scalar_lea.vmem [#allocation3], 24
      %v529 = vld [vmem:[%s528] sm:$0xff]
      %v530 = vmul.f32 %v519, %v529
      %v531 = vsel %vm261, %v527, 0.0
      %532 = vadd.xlane.f32.xlu0 %v531
      %v533 = vpop.xlane.xlu0 %532
      %v534 = vadd.f32 %v530, %v533
      %535 = vst.msk [vmem:[%s528] sm:$0xff] %vm283, %v534
      %v536 = vld [vmem:[#allocation4] sm:$0xff]
      %538 = vset.pattern.permute.xlu0 0
      %539 = vperm.xlu0 %538, %v519
      %v540 = vpop.permute.xlu0 %539
      %v542 = vmul.f32 %v540, %v536
      %v543 = vpack.c.bf16 %v527, %v527
      %544 = vrot.lane.b32.xlu0 %v295, 32
      %v545 = vpop.permute.xlu0 %544
      %v548 = vsel %vm261, %v543, 0
      %550 = vmatpush.bf16.msra.mxu0 0
      %551 = vmatpush.bf16.msra.mxu0 0
      %552 = vmatpush.bf16.msra.mxu0 0
      %553 = vmatpush.bf16.msra.mxu0 0
      %554 = vmatpush.bf16.msra.mxu0 0
      %555 = vmatpush.bf16.msra.mxu0 0
      %556 = vmatpush.bf16.msra.mxu0 0
      %557 = vmatpush.bf16.msra.mxu0 %v545
      %558 = vmatmul.bf16.gmra.mxu0 %v548
      %v559 = vpop.f32.mrf.mxu0
      %v560 = vadd.f32 0.0, %v559
      %v561 = vpop.f32.mrf.mxu0
      %562 = vdwg.mxu0
      %564 = vrot.lane.b32.xlu0 %v560, 96
      %v565 = vpop.permute.xlu0 %564
      %v567 = vadd.f32 %v542, %v565
      %vm568 = vcmask 1048320
      %569 = vst.msk [vmem:[#allocation4] sm:$0xff] %vm568, %v567
      %570 = vst.msk [vmem:[%s511] sm:$0xff] %vm283, %v516
      // Predicated region
      $region33: #{meta_bert_3d.39} parent=27 // pred_check
        %p571 = pneg %p217
      $region34: #{meta_bert_3d.39} parent=27 // pred_check_branch
        %573 = sbr.rel (%p571) target = $region36
      $region35: #{meta_bert_3d.39} parent=27 // pred_region
        %v574 = vld [vmem:[#allocation3] sm:$0xff]
        %v575 = vrcp.pop %v574
        %v576 = vmul.f32 %v574, %v575
        %v577 = vsub.f32 1.0, %v576
        %v578 = vmul.f32 %v575, %v577
        %v579 = vadd.f32 %v575, %v578
        %vm580 = vweird.f32 %v574
        %vm581 = vweird.f32 %v575
        %vm582 = vmor %vm580, %vm581
        %v583 = vsel %vm582, %v575, %v579
        %v584 = vand.u32 2147483647, %v574
        %vm585 = vcmp.eq.f32.partialorder %v584, 8.507059e+37
        %v586 = vand.u32 %v574, 2147483648
        %v587 = vor.u32 1.1754944e-38, %v586
        %v588 = vsel %vm585, %v587, %v583
        %v589 = vld [vmem:[#allocation4] sm:$0xff]
        %591 = vset.pattern.permute.xlu0 0
        %592 = vperm.xlu0 %591, %v588
        %v593 = vpop.permute.xlu0 %592
        %v595 = vmul.f32 %v589, %v593
        %v596 = vpack.c.bf16 %v595, %v595
        %vm597 = vcmask 257024
        %598 = vst.msk [vmem:[%s215] sm:$0xf] %vm597, %v596
        %v599 = vld [vmem:[%s360] sm:$0xff]
        %v600 = vrcp.pop %v599
        %v601 = vmul.f32 %v599, %v600
        %v602 = vsub.f32 1.0, %v601
        %v603 = vmul.f32 %v600, %v602
        %v604 = vadd.f32 %v600, %v603
        %vm605 = vweird.f32 %v599
        %vm606 = vweird.f32 %v600
        %vm607 = vmor %vm605, %vm606
        %v608 = vsel %vm607, %v600, %v604
        %v609 = vand.u32 2147483647, %v599
        %vm610 = vcmp.eq.f32.partialorder %v609, 8.507059e+37
        %v611 = vand.u32 %v599, 2147483648
        %v612 = vor.u32 1.1754944e-38, %v611
        %v613 = vsel %vm610, %v612, %v608
        %v614 = vld [vmem:[#allocation4] sm:$0xff]
        %616 = vset.pattern.permute.xlu0 0
        %617 = vperm.xlu0 %616, %v613
        %v618 = vpop.permute.xlu0 %617
        %v620 = vmul.f32 %v614, %v618
        %v621 = vpack.c.bf16 %v620, %v620
        %vm622 = vcmask 519424
        %623 = vst.msk [vmem:[%s215] sm:$0xf] %vm622, %v621
        %v624 = vld [vmem:[%s444] sm:$0xff]
        %v625 = vrcp.pop %v624
        %v626 = vmul.f32 %v624, %v625
        %v627 = vsub.f32 1.0, %v626
        %v628 = vmul.f32 %v625, %v627
        %v629 = vadd.f32 %v625, %v628
        %vm630 = vweird.f32 %v624
        %vm631 = vweird.f32 %v625
        %vm632 = vmor %vm630, %vm631
        %v633 = vsel %vm632, %v625, %v629
        %v634 = vand.u32 2147483647, %v624
        %vm635 = vcmp.eq.f32.partialorder %v634, 8.507059e+37
        %v636 = vand.u32 %v624, 2147483648
        %v637 = vor.u32 1.1754944e-38, %v636
        %v638 = vsel %vm635, %v637, %v633
        %v639 = vld [vmem:[#allocation4] sm:$0xff]
        %641 = vset.pattern.permute.xlu0 0
        %642 = vperm.xlu0 %641, %v638
        %v643 = vpop.permute.xlu0 %642
        %v645 = vmul.f32 %v639, %v643
        %v646 = vpack.c.bf16 %v645, %v645
        %vm647 = vcmask 781824
        %648 = vst.msk [vmem:[%s215] sm:$0xf] %vm647, %v646
        %v649 = vld [vmem:[%s528] sm:$0xff]
        %v650 = vrcp.pop %v649
        %v651 = vmul.f32 %v649, %v650
        %v652 = vsub.f32 1.0, %v651
        %v653 = vmul.f32 %v650, %v652
        %v654 = vadd.f32 %v650, %v653
        %vm655 = vweird.f32 %v649
        %vm656 = vweird.f32 %v650
        %vm657 = vmor %vm655, %vm656
        %v658 = vsel %vm657, %v650, %v654
        %v659 = vand.u32 2147483647, %v649
        %vm660 = vcmp.eq.f32.partialorder %v659, 8.507059e+37
        %v661 = vand.u32 %v649, 2147483648
        %v662 = vor.u32 1.1754944e-38, %v661
        %v663 = vsel %vm660, %v662, %v658
        %v664 = vld [vmem:[#allocation4] sm:$0xff]
        %666 = vset.pattern.permute.xlu0 0
        %667 = vperm.xlu0 %666, %v663
        %v668 = vpop.permute.xlu0 %667
        %v670 = vmul.f32 %v664, %v668
        %v671 = vpack.c.bf16 %v670, %v670
        %vm672 = vcmask 1044224
        %673 = vst.msk [vmem:[%s215] sm:$0xf] %vm672, %v671
      $region36: #{meta_bert_3d.39} parent=27 // pred_fallthru
        _
      %p674 = scmp.lt.s32.totalorder %s18, 1
      %s675 = scalar_select %p674, %s18, 1
      %p676 = scmp.lt.s32.totalorder %s19, 0
      %s677 = scalar_select %p676, %s19, 0
      %s678 = sadd.s32 %s677, %s675
      %s679 = smul.addr %s678, 4
      %s680 = scalar_lea.vmem %s2, %s679
      // Predicated region
      $region37: #{meta_bert_3d.39} parent=27 // pred_check
        %p681 = pneg %p108
      $region38: #{meta_bert_3d.39} parent=27 // pred_check_branch
        %683 = sbr.rel (%p681) target = $region40
      $region39: #{meta_bert_3d.39} parent=27 // pred_region
        _
      $region40: #{meta_bert_3d.39} parent=27 // pred_fallthru
        _
    $region28: #{meta_bert_3d.39} parent=5 // pred_fallthru
      _
    %p684 = scmp.le.s32.totalorder 2, %s8
    // Predicated region
    $region41: #{meta_bert_3d.39} parent=5 // pred_check
      %p685 = pneg %p684
    $region42: #{meta_bert_3d.39} parent=5 // pred_check_branch
      %687 = sbr.rel (%p685) target = $region44
    $region43: #{meta_bert_3d.39} parent=5 // pred_region
      %s688 = ssub.s32 %s8, 2
      // Predicated region
      $region45: #{meta_bert_3d.39} parent=43 // pred_check
        %p689 = pneg %p114
      $region46: #{meta_bert_3d.39} parent=43 // pred_check_branch
        %691 = sbr.rel (%p689) target = $region48
      $region47: #{meta_bert_3d.39} parent=43 // pred_region
        %p692 = scmp.lt.s32.totalorder %s21, 1
        %s693 = scalar_select %p692, %s21, 1
        %p694 = scmp.lt.s32.totalorder %s22, 0
        %s695 = scalar_select %p694, %s22, 0
        %s696 = sadd.s32 %s695, %s693
        %s697 = smul.addr %s696, 4
        %s698 = scalar_lea.vmem %s2, %s697
      $region48: #{meta_bert_3d.39} parent=43 // pred_fallthru
        _
    $region44: #{meta_bert_3d.39} parent=5 // pred_fallthru
      _
  $region6: #{meta_bert_3d.39} parent=0 // loop_footer
    %s12 = sadd.s32 1, %s8
  $region7: #{meta_bert_3d.39} parent=0 // loop_footer_branch
    %7 = sbr.rel target = $region3
  $region8: #{meta_bert_3d.39} parent=0 // loop_exit
    _

</llo_original>
